<compile_context>
chip_gen: v6e
topology: v6e:2x2x1
jax: 0.10.0
libtpu: 0.0.40
codegen_flags: <defaults>
</compile_context>

<pallas_src>
import functools
import math

import numpy as np

import jax
import jax.numpy as jnp
from jax import lax
from jax.experimental import pallas as pl
from jax.experimental.pallas import tpu as pltpu


LN_EPS = 1e-12                     # espnet LayerNorm eps


# ---------------------------------------------------------------------------
# Per-generation hardware budgets
# ---------------------------------------------------------------------------
@functools.lru_cache(maxsize=None)
def _vmem_capacity_bytes():
    try:
        return int(pltpu.get_tpu_info().vmem_capacity_bytes)
    except Exception:
        return 64 * 1024 * 1024


@functools.lru_cache(maxsize=None)
def _vmem_limit_bytes():
    # ~75% of physical VMEM, capped at 100 MiB (v5e/v6e -> 96 MiB, v7x -> 48 MiB).
    return int(min(_vmem_capacity_bytes() * 3 // 4, 100 * 1024 * 1024))


@functools.lru_cache(maxsize=None)
def _default_t_tile():
    # Bigger T tiles on 128 MiB-VMEM chips (v5e/v6e), smaller on v7x.
    return 512 if _vmem_capacity_bytes() >= (100 * 1024 * 1024) else 256


# ---------------------------------------------------------------------------
# pltpu.roll convention probes (run once, on device, OUTSIDE jit)
# ---------------------------------------------------------------------------
_LANE_ROLL_OK = "unresolved"       # True if strided lane roll matches np.roll(x[i], i)
_SUB_ROLL_SIGN = "unresolved"      # +1 / -1 / None


def _probe_lane_roll():
    R, N = 8, 128
    x = (jnp.arange(R, dtype=jnp.float32)[:, None] * N
         + jnp.arange(N, dtype=jnp.float32)[None, :])

    def kern(x_ref, o_ref):
        o_ref[...] = pltpu.roll(x_ref[...], 0, 1, stride=1, stride_axis=0)

    try:
        out = pl.pallas_call(
            kern, out_shape=jax.ShapeDtypeStruct((R, N), jnp.float32))(x)
        out = np.asarray(jax.device_get(out))
    except Exception:
        return False
    xh = np.asarray(jax.device_get(x))
    return all(np.array_equal(out[i], np.roll(xh[i], i)) for i in range(R))


def _probe_sublane_roll():
    R, N = 8, 128
    x = (jnp.arange(R, dtype=jnp.float32)[:, None] * N
         + jnp.arange(N, dtype=jnp.float32)[None, :])

    def kern(x_ref, o_ref):
        o_ref[...] = pltpu.roll(x_ref[...], 3, 0)

    try:
        out = pl.pallas_call(
            kern, out_shape=jax.ShapeDtypeStruct((R, N), jnp.float32))(x)
        out = np.asarray(jax.device_get(out))
    except Exception:
        return None
    xh = np.asarray(jax.device_get(x))
    if np.array_equal(out, np.roll(xh, 3, axis=0)):
        return 1
    if np.array_equal(out, np.roll(xh, -3, axis=0)):
        return -1
    return None


def resolve_roll_semantics():
    """Probe pltpu.roll semantics.  Must be called outside any jit trace."""
    global _LANE_ROLL_OK, _SUB_ROLL_SIGN
    if _LANE_ROLL_OK == "unresolved":
        _LANE_ROLL_OK = _probe_lane_roll()
    if _SUB_ROLL_SIGN == "unresolved":
        _SUB_ROLL_SIGN = _probe_sublane_roll()
    return _LANE_ROLL_OK, _SUB_ROLL_SIGN


def _lane_roll_ok():
    return _LANE_ROLL_OK is True


def _sub_roll_sign():
    return None if _SUB_ROLL_SIGN in ("unresolved", None) else _SUB_ROLL_SIGN


# ---------------------------------------------------------------------------
def _ln(x, g, b, eps):
    """Row-wise LayerNorm in f32 (x: (T, D) f32, g/b: (1, D) f32)."""
    mean = jnp.mean(x, axis=-1, keepdims=True)
    var = jnp.mean(jnp.square(x - mean), axis=-1, keepdims=True)
    return (x - mean) * jax.lax.rsqrt(var + eps) * g + b


# ---------------------------------------------------------------------------
# Kernel 1: positional-encoding projection for all layers (one call total)
# ---------------------------------------------------------------------------
def _pos_proj_kernel(pe_ref, w_ref, o_ref):
    o_ref[0] = jnp.dot(pe_ref[...], w_ref[0],
                       preferred_element_type=jnp.float32).astype(o_ref.dtype)


def project_positions(pe, wpos_stack):
    """pe (Pp, D) @ wpos (L, D, D) -> (L, Pp, D)."""
    L, D, _ = wpos_stack.shape
    Pp = pe.shape[0]
    return pl.pallas_call(
        _pos_proj_kernel,
        out_shape=jax.ShapeDtypeStruct((L, Pp, D), pe.dtype),
        grid=(L,),
        in_specs=[pl.BlockSpec((Pp, D), lambda l: (0, 0)),
                  pl.BlockSpec((1, D, D), lambda l: (l, 0, 0))],
        out_specs=pl.BlockSpec((1, Pp, D), lambda l: (l, 0, 0)),
        compiler_params=pltpu.CompilerParams(
            dimension_semantics=("parallel",),
            vmem_limit_bytes=_vmem_limit_bytes()),
    )(pe, wpos_stack)


# ---------------------------------------------------------------------------
# Kernel 2: LN + FFN + scaled residual (+ fused trailing LayerNorm), T-tiled
# ---------------------------------------------------------------------------
def _ln_ffn_kernel(x_ref, g_ref, b_ref, w1_ref, b1_ref, w2_ref, b2_ref, *rest,
                   scale, eps, final_norm):
    if final_norm:
        g2_ref, bb2_ref, o_ref = rest
    else:
        (o_ref,) = rest
    x = x_ref[0].astype(jnp.float32)
    xn = _ln(x, g_ref[...], b_ref[...], eps)
    h = jnp.dot(xn.astype(w1_ref.dtype), w1_ref[...],
                preferred_element_type=jnp.float32)
    h = jnp.maximum(h + b1_ref[...].astype(jnp.float32), 0.0)
    y = jnp.dot(h.astype(w2_ref.dtype), w2_ref[...],
                preferred_element_type=jnp.float32)
    y = y + b2_ref[...].astype(jnp.float32)
    out = x + scale * y
    if final_norm:
        out = _ln(out, g2_ref[...], bb2_ref[...], eps)
    o_ref[0] = out.astype(o_ref.dtype)


def ln_ffn(x, g, b, w1, b1, w2, b2, *, scale, final_norm=None, t_tile=None):
    B, T, D = x.shape
    U = w1.shape[1]
    if t_tile is None:
        t_tile = _default_t_tile()
    tt = t_tile if T > t_tile else T        # tt is a multiple of 8 or == T
    nT = pl.cdiv(T, tt)                     # ragged last tile handled by Pallas
    has_final = final_norm is not None

    in_specs = [pl.BlockSpec((1, tt, D), lambda bi, ti: (bi, ti, 0)),
                pl.BlockSpec((1, D), lambda bi, ti: (0, 0)),
                pl.BlockSpec((1, D), lambda bi, ti: (0, 0)),
                pl.BlockSpec((D, U), lambda bi, ti: (0, 0)),
                pl.BlockSpec((1, U), lambda bi, ti: (0, 0)),
                pl.BlockSpec((U, D), lambda bi, ti: (0, 0)),
                pl.BlockSpec((1, D), lambda bi, ti: (0, 0))]
    args = [x, g, b, w1, b1, w2, b2]
    if has_final:
        in_specs += [pl.BlockSpec((1, D), lambda bi, ti: (0, 0)),
                     pl.BlockSpec((1, D), lambda bi, ti: (0, 0))]
        args += [final_norm[0], final_norm[1]]

    itemsize = jnp.dtype(x.dtype).itemsize
    flops = 4 * B * T * D * U
    bytes_acc = 2 * B * T * D * itemsize + (w1.size + w2.size) * itemsize
    return pl.pallas_call(
        functools.partial(_ln_ffn_kernel, scale=scale, eps=LN_EPS,
                          final_norm=has_final),
        out_shape=jax.ShapeDtypeStruct((B, T, D), x.dtype),
        grid=(B, nT),
        in_specs=in_specs,
        out_specs=pl.BlockSpec((1, tt, D), lambda bi, ti: (bi, ti, 0)),
        compiler_params=pltpu.CompilerParams(
            dimension_semantics=("parallel", "parallel"),
            vmem_limit_bytes=_vmem_limit_bytes()),
        cost_estimate=pl.CostEstimate(flops=int(flops), transcendentals=0,
                                      bytes_accessed=int(bytes_acc)),
    )(*args)


# ---------------------------------------------------------------------------
# Kernel 3: fused macaron-FFN + LN + rel-pos self-attention (one head per grid
# step, accumulated through the output projection) + residuals
# ---------------------------------------------------------------------------
def _attn_block_kernel(x_ref, ln1g_ref, ln1b_ref, fw1_ref, fb1_ref, fw2_ref,
                       fb2_ref, ln2g_ref, ln2b_ref, wq_ref, bq_ref, wk_ref,
                       bk_ref, wv_ref, bv_ref, pu_ref, pv_ref, p_ref, wo_ref,
                       bo_ref, o_ref, x1_scr, acc_scr, *, heads, eps, use_roll):
    h = pl.program_id(1)
    T = x_ref.shape[1]
    dk = wq_ref.shape[2]
    inv_sqrt_dk = 1.0 / math.sqrt(dk)

    @pl.when(h == 0)
    def _():
        # Macaron feed-forward fused into the attention kernel's preamble.
        x = x_ref[0].astype(jnp.float32)
        xn = _ln(x, ln1g_ref[...], ln1b_ref[...], eps)
        hid = jnp.dot(xn.astype(fw1_ref.dtype), fw1_ref[...],
                      preferred_element_type=jnp.float32)
        hid = jnp.maximum(hid + fb1_ref[...].astype(jnp.float32), 0.0)
        y = jnp.dot(hid.astype(fw2_ref.dtype), fw2_ref[...],
                    preferred_element_type=jnp.float32)
        y = y + fb2_ref[...].astype(jnp.float32)
        x1_scr[...] = x + 0.5 * y
        acc_scr[...] = jnp.zeros_like(acc_scr)

    # One attention head per grid step; all tensors below are 2-D.
    x1 = x1_scr[...]
    xn = _ln(x1, ln2g_ref[...], ln2b_ref[...], eps)
    xb = xn.astype(wq_ref.dtype)
    q = jnp.dot(xb, wq_ref[0], preferred_element_type=jnp.float32)
    q = q + bq_ref[0].astype(jnp.float32)
    k = jnp.dot(xb, wk_ref[0], preferred_element_type=jnp.float32)
    k = k + bk_ref[0].astype(jnp.float32)
    v = jnp.dot(xb, wv_ref[0], preferred_element_type=jnp.float32)
    v = v + bv_ref[0].astype(jnp.float32)
    q_u = q + pu_ref[0].astype(jnp.float32)
    q_v = q + pv_ref[0].astype(jnp.float32)
    p_h = p_ref[0].astype(jnp.float32)                               # (Pp, dk)

    ac = lax.dot_general(q_u, k, (((1,), (1,)), ((), ())),
                         preferred_element_type=jnp.float32)         # (T, T)
    bd_full = lax.dot_general(q_v, p_h, (((1,), (1,)), ((), ())),
                              preferred_element_type=jnp.float32)    # (T, Pp)

    if use_roll:
        # rel_shift as ONE strided lane roll (XLU): row i is rotated by i, so
        # column (T-1+j) holds bd_full[i, T-1-i+j]; take the T middle columns.
        rolled = pltpu.roll(bd_full, 0, 1, stride=1, stride_axis=0)
        bd = rolled[:, T - 1:2 * T - 1]
    else:
        # TODO(synk): slow fallback, only used if the strided-roll probe failed.
        bd = jnp.concatenate(
            [bd_full[i:i + 1, T - 1 - i: 2 * T - 1 - i] for i in range(T)],
            axis=0)

    s = (ac + bd) * inv_sqrt_dk
    s = s - jnp.max(s, axis=-1, keepdims=True)
    e = jnp.exp(s)
    prob = e / jnp.sum(e, axis=-1, keepdims=True)                    # exact div
    ctx = jnp.dot(prob, v, preferred_element_type=jnp.float32)       # (T, dk)
    acc_scr[...] = acc_scr[...] + jnp.dot(
        ctx.astype(wo_ref.dtype), wo_ref[0], preferred_element_type=jnp.float32)

    @pl.when(h == heads - 1)
    def _():
        out = x1_scr[...] + acc_scr[...] + bo_ref[...].astype(jnp.float32)
        o_ref[0] = out.astype(o_ref.dtype)


def attention_block(x, p_heads, lp, *, heads):
    """Fused macaron FFN + relative-position MHSA + residuals (grid = (B, H))."""
    B, T, D = x.shape
    dk = D // heads
    Pp = p_heads.shape[1]
    U = lp["ffm_w1"].shape[1]
    use_roll = _lane_roll_ok()

    wqkv, bqkv = lp["wqkv"], lp["bqkv"]

    def _w(ws):                       # (D, D) -> (H, D, dk)
        return ws.reshape(D, heads, dk).transpose(1, 0, 2)

    def _b(bs):                       # (1, D) -> (H, 1, dk)
        return bs.reshape(heads, 1, dk)

    wq_s, wk_s, wv_s = _w(wqkv[:, :D]), _w(wqkv[:, D:2 * D]), _w(wqkv[:, 2 * D:])
    bq_s, bk_s, bv_s = _b(bqkv[:, :D]), _b(bqkv[:, D:2 * D]), _b(bqkv[:, 2 * D:])
    pu_s, pv_s = _b(lp["pos_u"]), _b(lp["pos_v"])
    wo_s = lp["wo"].reshape(heads, dk, D)

    itemsize = jnp.dtype(x.dtype).itemsize
    flops = (4 * B * T * D * U
             + B * heads * (6 * T * D * dk + 4 * T * T * dk
                            + 2 * T * Pp * dk + 2 * T * dk * D))
    bytes_acc = (2 * B * T * D * itemsize
                 + (wqkv.size + lp["wo"].size + p_heads.size
                    + lp["ffm_w1"].size + lp["ffm_w2"].size) * itemsize)

    in_specs = [
        pl.BlockSpec((1, T, D), lambda b, h: (b, 0, 0)),       # x
        pl.BlockSpec((1, D), lambda b, h: (0, 0)),             # macaron LN g
        pl.BlockSpec((1, D), lambda b, h: (0, 0)),             # macaron LN b
        pl.BlockSpec((D, U), lambda b, h: (0, 0)),             # macaron w1
        pl.BlockSpec((1, U), lambda b, h: (0, 0)),             # macaron b1
        pl.BlockSpec((U, D), lambda b, h: (0, 0)),             # macaron w2
        pl.BlockSpec((1, D), lambda b, h: (0, 0)),             # macaron b2
        pl.BlockSpec((1, D), lambda b, h: (0, 0)),             # MHA LN g
        pl.BlockSpec((1, D), lambda b, h: (0, 0)),             # MHA LN b
        pl.BlockSpec((1, D, dk), lambda b, h: (h, 0, 0)),      # wq
        pl.BlockSpec((1, 1, dk), lambda b, h: (h, 0, 0)),      # bq
        pl.BlockSpec((1, D, dk), lambda b, h: (h, 0, 0)),      # wk
        pl.BlockSpec((1, 1, dk), lambda b, h: (h, 0, 0)),      # bk
        pl.BlockSpec((1, D, dk), lambda b, h: (h, 0, 0)),      # wv
        pl.BlockSpec((1, 1, dk), lambda b, h: (h, 0, 0)),      # bv
        pl.BlockSpec((1, 1, dk), lambda b, h: (h, 0, 0)),      # pos_u
        pl.BlockSpec((1, 1, dk), lambda b, h: (h, 0, 0)),      # pos_v
        pl.BlockSpec((1, Pp, dk), lambda b, h: (h, 0, 0)),     # projected pos
        pl.BlockSpec((1, dk, D), lambda b, h: (h, 0, 0)),      # wo
        pl.BlockSpec((1, D), lambda b, h: (0, 0)),             # bo
    ]

    return pl.pallas_call(
        functools.partial(_attn_block_kernel, heads=heads, eps=LN_EPS,
                          use_roll=use_roll),
        out_shape=jax.ShapeDtypeStruct((B, T, D), x.dtype),
        grid=(B, heads),
        in_specs=in_specs,
        out_specs=pl.BlockSpec((1, T, D), lambda b, h: (b, 0, 0)),
        scratch_shapes=[pltpu.VMEM((T, D), jnp.float32),
                        pltpu.VMEM((T, D), jnp.float32)],
        compiler_params=pltpu.CompilerParams(
            dimension_semantics=("parallel", "arbitrary"),
            vmem_limit_bytes=_vmem_limit_bytes()),
        cost_estimate=pl.CostEstimate(flops=int(flops),
                                      transcendentals=int(B * heads * T * T),
                                      bytes_accessed=int(bytes_acc)),
    )(x, lp["ln_ffm_g"], lp["ln_ffm_b"], lp["ffm_w1"], lp["ffm_b1"],
      lp["ffm_w2"], lp["ffm_b2"], lp["ln_mha_g"], lp["ln_mha_b"],
      wq_s, bq_s, wk_s, bk_s, wv_s, bv_s, pu_s, pv_s, p_heads, wo_s, lp["bo"])


# ---------------------------------------------------------------------------
# Kernel 4: fused LN + conv module (pw1 + GLU + depthwise + BN + swish + pw2) + res
# ---------------------------------------------------------------------------
def _conv_module_kernel(x_ref, g_ref, b_ref, w1_ref, b1_ref, dw_ref, sc_ref,
                        sh_ref, w2_ref, b2_ref, o_ref, *, K, eps, roll_sign):
    T = x_ref.shape[1]
    D = x_ref.shape[2]
    pad = (K - 1) // 2

    x = x_ref[0].astype(jnp.float32)
    xn = _ln(x, g_ref[...], b_ref[...], eps)
    y = jnp.dot(xn.astype(w1_ref.dtype), w1_ref[...],
                preferred_element_type=jnp.float32)
    y = y + b1_ref[...].astype(jnp.float32)
    u = y[:, :D] * jax.nn.sigmoid(y[:, D:])                    # GLU (channels)

    if roll_sign is None:
        # Fallback: 'same' pad in VMEM + K shifted slices.
        zeros = jnp.zeros((pad, D), jnp.float32)
        upad = jnp.concatenate([zeros, u, zeros], axis=0)
        acc = jnp.zeros((T, D), jnp.float32)
        for kk in range(K):
            acc = acc + upad[kk:kk + T, :] * dw_ref[kk:kk + 1, :].astype(jnp.float32)
    else:
        # Depthwise taps via sublane rolls (XLU) + iota edge mask.
        t_idx = jax.lax.broadcasted_iota(jnp.int32, (T, D), 0)
        acc = u * dw_ref[pad:pad + 1, :].astype(jnp.float32)
        for kk in range(K):
            if kk == pad:
                continue
            off = kk - pad                              # want u[t + off]
            shift = ((-off) if roll_sign > 0 else off) % T
            rolled = pltpu.roll(u, shift, 0)
            src = t_idx + off
            valid = (src >= 0) & (src < T)
            acc = acc + jnp.where(valid, rolled, 0.0) * \
                dw_ref[kk:kk + 1, :].astype(jnp.float32)

    yb = acc * sc_ref[...] + sh_ref[...]                       # folded BatchNorm
    sw = yb * jax.nn.sigmoid(yb)                               # swish
    z = jnp.dot(sw.astype(w2_ref.dtype), w2_ref[...],
                preferred_element_type=jnp.float32)
    z = z + b2_ref[...].astype(jnp.float32)
    o_ref[0] = (x + z).astype(o_ref.dtype)


def conv_module(x, g, b, w1, b1, dw_w, dw_scale, dw_shift, w2, b2):
    B, T, D = x.shape
    K = dw_w.shape[0]
    return pl.pallas_call(
        functools.partial(_conv_module_kernel, K=K, eps=LN_EPS,
                          roll_sign=_sub_roll_sign()),
        out_shape=jax.ShapeDtypeStruct((B, T, D), x.dtype),
        grid=(B,),
        in_specs=[pl.BlockSpec((1, T, D), lambda bi: (bi, 0, 0)),
                  pl.BlockSpec((1, D), lambda bi: (0, 0)),
                  pl.BlockSpec((1, D), lambda bi: (0, 0)),
                  pl.BlockSpec((D, 2 * D), lambda bi: (0, 0)),
                  pl.BlockSpec((1, 2 * D), lambda bi: (0, 0)),
                  pl.BlockSpec((K, D), lambda bi: (0, 0)),
                  pl.BlockSpec((1, D), lambda bi: (0, 0)),
                  pl.BlockSpec((1, D), lambda bi: (0, 0)),
                  pl.BlockSpec((D, D), lambda bi: (0, 0)),
                  pl.BlockSpec((1, D), lambda bi: (0, 0))],
        out_specs=pl.BlockSpec((1, T, D), lambda bi: (bi, 0, 0)),
        compiler_params=pltpu.CompilerParams(
            dimension_semantics=("parallel",),
            vmem_limit_bytes=_vmem_limit_bytes()),
    )(x, g, b, w1, b1, dw_w, dw_scale, dw_shift, w2, b2)


# ---------------------------------------------------------------------------
# Kernel 5: fused after_norm (LN) + feat_out (Linear), T-tiled
# ---------------------------------------------------------------------------
def _ln_linear_kernel(x_ref, g_ref, b_ref, w_ref, bw_ref, o_ref, *, eps):
    x = x_ref[0].astype(jnp.float32)
    xn = _ln(x, g_ref[...], b_ref[...], eps)
    y = jnp.dot(xn.astype(w_ref.dtype), w_ref[...],
                preferred_element_type=jnp.float32)
    y = y + bw_ref[...].astype(jnp.float32)
    o_ref[0] = y.astype(o_ref.dtype)


def ln_linear(x, g, b, w, bw, *, t_tile=None):
    B, T, D = x.shape
    Dout = w.shape[1]
    if t_tile is None:
        t_tile = _default_t_tile()
    tt = t_tile if T > t_tile else T
    nT = pl.cdiv(T, tt)
    return pl.pallas_call(
        functools.partial(_ln_linear_kernel, eps=LN_EPS),
        out_shape=jax.ShapeDtypeStruct((B, T, Dout), x.dtype),
        grid=(B, nT),
        in_specs=[pl.BlockSpec((1, tt, D), lambda bi, ti: (bi, ti, 0)),
                  pl.BlockSpec((1, D), lambda bi, ti: (0, 0)),
                  pl.BlockSpec((1, D), lambda bi, ti: (0, 0)),
                  pl.BlockSpec((D, Dout), lambda bi, ti: (0, 0)),
                  pl.BlockSpec((1, Dout), lambda bi, ti: (0, 0))],
        out_specs=pl.BlockSpec((1, tt, Dout), lambda bi, ti: (bi, ti, 0)),
        compiler_params=pltpu.CompilerParams(
            dimension_semantics=("parallel", "parallel"),
            vmem_limit_bytes=_vmem_limit_bytes()),
    )(x, g, b, w, bw)


# ---------------------------------------------------------------------------
# Kernel 6: postnet conv layer as K tap-wise matmuls (+BN fold, tanh/residual)
# ---------------------------------------------------------------------------
def _postnet_kernel(x_ref, w_ref, sc_ref, sh_ref, *rest, K, apply_tanh,
                    add_residual):
    if add_residual:
        res_ref, o_ref = rest
    else:
        (o_ref,) = rest
    T = x_ref.shape[1]
    Cin = x_ref.shape[2]
    Cout = w_ref.shape[2]
    pad = (K - 1) // 2
    x = x_ref[0]
    zeros = jnp.zeros((pad, Cin), x.dtype)
    xpad = jnp.concatenate([zeros, x, zeros], axis=0)
    acc = jnp.zeros((T, Cout), jnp.float32)
    for kk in range(K):                      # tap-wise (T,Cin)@(Cin,Cout) matmuls
        acc = acc + jnp.dot(xpad[kk:kk + T, :], w_ref[kk],
                            preferred_element_type=jnp.float32)
    y = acc * sc_ref[...] + sh_ref[...]      # folded BatchNorm (eval)
    if apply_tanh:
        y = jnp.tanh(y)
    if add_residual:
        y = y + res_ref[0].astype(jnp.float32)
    o_ref[0] = y.astype(o_ref.dtype)


def postnet_conv(x, w, scale, shift, *, apply_tanh, residual=None):
    B, T, Cin = x.shape
    K, _, Cout = w.shape
    out_dtype = jnp.float32 if residual is not None else x.dtype
    in_specs = [pl.BlockSpec((1, T, Cin), lambda bi: (bi, 0, 0)),
                pl.BlockSpec((K, Cin, Cout), lambda bi: (0, 0, 0)),
                pl.BlockSpec((1, Cout), lambda bi: (0, 0)),
                pl.BlockSpec((1, Cout), lambda bi: (0, 0))]
    args = [x, w, scale, shift]
    if residual is not None:
        in_specs.append(pl.BlockSpec((1, T, Cout), lambda bi: (bi, 0, 0)))
        args.append(residual)
    return pl.pallas_call(
        functools.partial(_postnet_kernel, K=K, apply_tanh=apply_tanh,
                          add_residual=residual is not None),
        out_shape=jax.ShapeDtypeStruct((B, T, Cout), out_dtype),
        grid=(B,),
        in_specs=in_specs,
        out_specs=pl.BlockSpec((1, T, Cout), lambda bi: (bi, 0, 0)),
        compiler_params=pltpu.CompilerParams(
            dimension_semantics=("parallel",),
            vmem_limit_bytes=_vmem_limit_bytes()),
    )(*args)


# ---------------------------------------------------------------------------
# JAX glue: positional table, per-layer wiring, full forward
# ---------------------------------------------------------------------------
def rel_positional_encoding(T, D, p_len, dtype):
    """ESPnet RelPositionalEncoding table (2T-1 rows), zero-padded to p_len rows."""
    pos = jnp.arange(T, dtype=jnp.float32)[:, None]
    div = jnp.exp(jnp.arange(0, D, 2, dtype=jnp.float32) * -(math.log(10000.0) / D))
    pe_pos = jnp.zeros((T, D), jnp.float32)
    pe_pos = pe_pos.at[:, 0::2].set(jnp.sin(pos * div))
    pe_pos = pe_pos.at[:, 1::2].set(jnp.cos(pos * div))
    pe_neg = jnp.zeros((T, D), jnp.float32)
    pe_neg = pe_neg.at[:, 0::2].set(jnp.sin(-pos * div))
    pe_neg = pe_neg.at[:, 1::2].set(jnp.cos(-pos * div))
    pe = jnp.concatenate([pe_pos[::-1], pe_neg[1:]], axis=0)    # (2T-1, D)
    pe = jnp.pad(pe, ((0, p_len - (2 * T - 1)), (0, 0)))        # lane-friendly pad
    return pe.astype(dtype)


def conformer_layer(x, p_heads, lp, heads):
    # fused macaron FFN (scale 0.5) + relative-position MHSA + residuals
    x = attention_block(x, p_heads, lp, heads=heads)
    # convolution module
    x = conv_module(x, lp["ln_conv_g"], lp["ln_conv_b"], lp["pw1_w"], lp["pw1_b"],
                    lp["dw_w"], lp["dw_scale"], lp["dw_shift"],
                    lp["pw2_w"], lp["pw2_b"])
    # final FFN (scale 0.5) + fused norm_final
    x = ln_ffn(x, lp["ln_ff_g"], lp["ln_ff_b"], lp["ff_w1"], lp["ff_b1"],
               lp["ff_w2"], lp["ff_b2"], scale=0.5,
               final_norm=(lp["ln_final_g"], lp["ln_final_b"]))
    return x


def conformer_decoder_forward(params, feats, *, heads, odim, pn_filts,
                              reduction_factor=1):
    """feats: (B, odim, T) PyTorch NCW.  Returns (B, odim, T*r)."""
    compute_dtype = params["feat_out_w"].dtype
    x = jnp.transpose(feats, (0, 2, 1)).astype(jnp.float32)     # (B, T, adim)
    B, T, D = x.shape
    x = (x * math.sqrt(D)).astype(compute_dtype)                # xscale
    dk = D // heads

    p_len = ((2 * T - 1 + 127) // 128) * 128                    # round128(2T-1)
    pe = rel_positional_encoding(T, D, p_len, compute_dtype)    # (Pp, D)
    wpos_stack = jnp.stack([lp["wpos"] for lp in params["layers"]], axis=0)
    p_all = project_positions(pe, wpos_stack)                   # (L, Pp, D)

    for li, lp in enumerate(params["layers"]):
        p_heads = p_all[li].reshape(p_len, heads, dk).transpose(1, 0, 2)
        x = conformer_layer(x, p_heads, lp, heads)

    before = ln_linear(x, params["after_norm_g"], params["after_norm_b"],
                       params["feat_out_w"], params["feat_out_b"])
    before = before.reshape(B, -1, odim)                        # (B, T*r, odim)

    pn = params["postnet"]
    if len(pn) == 0:
        after = before.astype(jnp.float32)
    else:
        y = before
        for i, cp in enumerate(pn):
            last = (i == len(pn) - 1)
            y = postnet_conv(y, cp["w"], cp["scale"], cp["shift"],
                             apply_tanh=not last,
                             residual=before if last else None)
        after = y                                               # f32, residual fused

    return jnp.transpose(after, (0, 2, 1))                      # (B, odim, T*r)


# ---------------------------------------------------------------------------
# Deterministic synthetic parameters (bf16 matmul weights, f32 norms/biases)
# ---------------------------------------------------------------------------
def init_params(key, *, adim, odim, heads, units, layers, cnn_k,
                pn_layers, pn_chans, pn_filts, reduction_factor=1,
                wdtype=jnp.bfloat16):
    keys = iter(jax.random.split(key, 4096))
    f32 = jnp.float32

    def nrm(shape, scale=0.05, dtype=wdtype):
        return (scale * jax.random.normal(next(keys), shape)).astype(dtype)

    D = adim
    bn_eps = 1e-5

    def fold_bn(conv_bias, gamma, beta, mean, var):
        s = gamma / jnp.sqrt(var + bn_eps)
        sh = (conv_bias - mean) * s + beta
        return s.astype(f32), sh.astype(f32)

    layer_list = []
    for _ in range(layers):
        p = {
            "ln_ffm_g": jnp.ones((1, D), f32), "ln_ffm_b": jnp.zeros((1, D), f32),
            "ffm_w1": nrm((D, units)), "ffm_b1": nrm((1, units), 0.01, f32),
            "ffm_w2": nrm((units, D)), "ffm_b2": nrm((1, D), 0.01, f32),
            "ln_mha_g": jnp.ones((1, D), f32), "ln_mha_b": jnp.zeros((1, D), f32),
            "wqkv": nrm((D, 3 * D)), "bqkv": nrm((1, 3 * D), 0.01, f32),
            "wpos": nrm((D, D)),
            "pos_u": nrm((1, D), 0.05, f32), "pos_v": nrm((1, D), 0.05, f32),
            "wo": nrm((D, D)), "bo": nrm((1, D), 0.01, f32),
            "ln_conv_g": jnp.ones((1, D), f32), "ln_conv_b": jnp.zeros((1, D), f32),
            "pw1_w": nrm((D, 2 * D)), "pw1_b": nrm((1, 2 * D), 0.01, f32),
            "dw_w": nrm((cnn_k, D), 0.05, f32),
            "pw2_w": nrm((D, D)), "pw2_b": nrm((1, D), 0.01, f32),
            "ln_ff_g": jnp.ones((1, D), f32), "ln_ff_b": jnp.zeros((1, D), f32),
            "ff_w1": nrm((D, units)), "ff_b1": nrm((1, units), 0.01, f32),
            "ff_w2": nrm((units, D)), "ff_b2": nrm((1, D), 0.01, f32),
            "ln_final_g": jnp.ones((1, D), f32), "ln_final_b": jnp.zeros((1, D), f32),
        }
        dw_bias = nrm((1, D), 0.01, f32)
        bn_g = 1.0 + nrm((1, D), 0.01, f32)
        bn_b = nrm((1, D), 0.01, f32)
        p["dw_scale"], p["dw_shift"] = fold_bn(
            dw_bias, bn_g, bn_b, jnp.zeros((1, D), f32), jnp.ones((1, D), f32))
        layer_list.append(p)

    params = {
        "layers": layer_list,
        "after_norm_g": jnp.ones((1, D), f32),
        "after_norm_b": jnp.zeros((1, D), f32),
        "feat_out_w": nrm((D, odim * reduction_factor)),
        "feat_out_b": nrm((1, odim * reduction_factor), 0.01, f32),
    }

    pn = []
    for i in range(pn_layers):
        cin = odim if i == 0 else pn_chans
        cout = pn_chans if i < pn_layers - 1 else odim
        w = nrm((pn_filts, cin, cout))            # tap-major layout (K, Cin, Cout)
        bn_g = 1.0 + nrm((1, cout), 0.01, f32)
        bn_b = nrm((1, cout), 0.01, f32)
        scale, shift = fold_bn(jnp.zeros((1, cout), f32), bn_g, bn_b,
                               jnp.zeros((1, cout), f32), jnp.ones((1, cout), f32))
        pn.append({"w": w, "scale": scale, "shift": shift})
    params["postnet"] = pn
    return params


# ---------------------------------------------------------------------------
if __name__ == "__main__":
    B, T = 2, 16
    adim = odim = 32          # feats channel dim feeds the decoder directly
    heads, units, layers = 4, 64, 2
    cnn_k = 7
    pn_layers, pn_chans, pn_filts = 2, 16, 5
    reduction_factor = 1

    # Probe pltpu.roll semantics once, outside jit (falls back safely if needed).
    resolve_roll_semantics()

    key = jax.random.PRNGKey(0)
    kp, kx = jax.random.split(key)
    params = init_params(kp, adim=adim, odim=odim, heads=heads, units=units,
                         layers=layers, cnn_k=cnn_k, pn_layers=pn_layers,
                         pn_chans=pn_chans, pn_filts=pn_filts,
                         reduction_factor=reduction_factor)

    feats = jax.random.normal(kx, (B, odim, T), jnp.float32)   # (B, odim, feats_T)

    fwd = jax.jit(lambda prm, f: conformer_decoder_forward(
        prm, f, heads=heads, odim=odim, pn_filts=pn_filts,
        reduction_factor=reduction_factor))

    out = fwd(params, feats)
    out = jax.block_until_ready(out)
    assert out.shape == (B, odim, T * reduction_factor), out.shape
    assert bool(jnp.all(jnp.isfinite(out)))
    print("KERNEL_OK")
</pallas_src>

<mosaic_0001>
module attributes {stable_mosaic.version = 11 : i64} {
  func.func @kern(%arg0: memref<8x128xf32, #tpu.memory_space<vmem>>, %arg1: memref<8x128xf32, #tpu.memory_space<vmem>>) attributes {dimension_semantics = [], scalar_prefetch = 0 : i64, scratch_operands = 0 : i64, tpu.core_type = #tpu.core_type<tc>} {
    %c0 = arith.constant 0 : index
    %c0_0 = arith.constant 0 : index
    %0 = vector.load %arg0[%c0, %c0_0] : memref<8x128xf32, #tpu.memory_space<vmem>>, vector<8x128xf32>
    %c0_i32 = arith.constant 0 : i32
    %1 = tpu.dynamic_rotate %0 by %c0_i32 dim 1 {stride = 1 : si32, stride_dimension = 0 : si32} : vector<8x128xf32>, i32 -> vector<8x128xf32>
    %c0_1 = arith.constant 0 : index
    %c0_2 = arith.constant 0 : index
    %2 = vector.load %arg1[%c0_1, %c0_2] : memref<8x128xf32, #tpu.memory_space<vmem>>, vector<8x128xf32>
    tpu.vector_store %arg1[%c0_1, %c0_2], %1 {strides = array<i32>} : memref<8x128xf32, #tpu.memory_space<vmem>>, vector<8x128xf32>,
    return
  }
}

module attributes {stable_mosaic.version = 11 : i64} {
  func.func @kern(%arg0: memref<8x128xf32, #tpu.memory_space<vmem>>, %arg1: memref<8x128xf32, #tpu.memory_space<vmem>>) attributes {dimension_semantics = [], scalar_prefetch = 0 : i64, scratch_operands = 0 : i64, tpu.core_type = #tpu.core_type<tc>} {
    %c0 = arith.constant 0 : index
    %c0_0 = arith.constant 0 : index
    %0 = vector.load %arg0[%c0, %c0_0] : memref<8x128xf32, #tpu.memory_space<vmem>>, vector<8x128xf32>
    %c3_i32 = arith.constant 3 : i32
    %1 = tpu.dynamic_rotate %0 by %c3_i32 dim 0 : vector<8x128xf32>, i32 -> vector<8x128xf32>
    %c0_1 = arith.constant 0 : index
    %c0_2 = arith.constant 0 : index
    %2 = vector.load %arg1[%c0_1, %c0_2] : memref<8x128xf32, #tpu.memory_space<vmem>>, vector<8x128xf32>
    tpu.vector_store %arg1[%c0_1, %c0_2], %1 {strides = array<i32>} : memref<8x128xf32, #tpu.memory_space<vmem>>, vector<8x128xf32>,
    return
  }
}

module attributes {stable_mosaic.version = 11 : i64} {
  func.func @_pos_proj_kernel(%arg0: i32, %arg1: memref<128x32xbf16, #tpu.memory_space<vmem>>, %arg2: memref<1x32x32xbf16, #tpu.memory_space<vmem>>, %arg3: memref<1x128x32xbf16, #tpu.memory_space<vmem>>) attributes {dimension_semantics = [#tpu.dimension_semantics<parallel>], iteration_bounds = array<i64: 2>, scalar_prefetch = 0 : i64, scratch_operands = 0 : i64, tpu.core_type = #tpu.core_type<tc>, window_params = [{pipeline_mode = #tpu.pipeline_mode<synchronous>, transform_indices = @transform_0, window_bounds = array<i64: 128, 32>}, {transform_indices = @transform_1, window_bounds = array<i64: 1, 32, 32>}, {transform_indices = @transform_2, window_bounds = array<i64: 1, 128, 32>}]} {
    %c0 = arith.constant 0 : index
    %c0_0 = arith.constant 0 : index
    %0 = vector.load %arg1[%c0, %c0_0] : memref<128x32xbf16, #tpu.memory_space<vmem>>, vector<128x32xbf16>
    %c0_1 = arith.constant 0 : index
    %c0_2 = arith.constant 0 : index
    %c0_3 = arith.constant 0 : index
    %1 = vector.load %arg2[%c0_1, %c0_2, %c0_3] : memref<1x32x32xbf16, #tpu.memory_space<vmem>>, vector<1x32x32xbf16>
    %2 = vector.shape_cast %1 : vector<1x32x32xbf16> to vector<32x32xbf16>
    %cst = arith.constant dense<0.000000e+00> : vector<128x32xf32>
    %3 = tpu.matmul %0, %2, %cst {dimension_numbers = #tpu.dot_dimension_numbers<[1], [0], [0], [1], [0, 0, 1, 1], [], []>} : vector<128x32xbf16>, vector<32x32xbf16>, vector<128x32xf32> -> vector<128x32xf32>
    %4 = arith.truncf %3 : vector<128x32xf32> to vector<128x32xbf16>
    %c0_4 = arith.constant 0 : index
    %c0_5 = arith.constant 0 : index
    %c0_6 = arith.constant 0 : index
    %5 = vector.load %arg3[%c0_4, %c0_5, %c0_6] : memref<1x128x32xbf16, #tpu.memory_space<vmem>>, vector<1x128x32xbf16>
    %6 = vector.shape_cast %5 : vector<1x128x32xbf16> to vector<128x32xbf16>
    %7 = vector.shape_cast %4 : vector<128x32xbf16> to vector<1x128x32xbf16>
    tpu.vector_store %arg3[%c0_4, %c0_5, %c0_6], %7 {strides = array<i32>} : memref<1x128x32xbf16, #tpu.memory_space<vmem>>, vector<1x128x32xbf16>,
    return
  }
  func.func @transform_0(%arg0: i32) -> (i32, i32) {
    %c0_i32 = arith.constant 0 : i32
    %c0_i32_0 = arith.constant 0 : i32
    %c0_i32_1 = arith.constant 0 : i32
    return %c0_i32, %c0_i32_0 : i32, i32
  }
  func.func @transform_1(%arg0: i32) -> (i32, i32, i32) {
    %c0_i32 = arith.constant 0 : i32
    %c0_i32_0 = arith.constant 0 : i32
    %c0_i32_1 = arith.constant 0 : i32
    return %arg0, %c0_i32, %c0_i32_0 : i32, i32, i32
  }
  func.func @transform_2(%arg0: i32) -> (i32, i32, i32) {
    %c0_i32 = arith.constant 0 : i32
    %c0_i32_0 = arith.constant 0 : i32
    %c0_i32_1 = arith.constant 0 : i32
    return %arg0, %c0_i32, %c0_i32_0 : i32, i32, i32
  }
}

module attributes {stable_mosaic.version = 11 : i64} {
  func.func @_ln_linear_kernel(%arg0: i32, %arg1: i32, %arg2: memref<1x16x32xbf16, #tpu.memory_space<vmem>>, %arg3: memref<1x32xf32, #tpu.memory_space<vmem>>, %arg4: memref<1x32xf32, #tpu.memory_space<vmem>>, %arg5: memref<32x32xbf16, #tpu.memory_space<vmem>>, %arg6: memref<1x32xf32, #tpu.memory_space<vmem>>, %arg7: memref<1x16x32xbf16, #tpu.memory_space<vmem>>) attributes {dimension_semantics = [#tpu.dimension_semantics<parallel>, #tpu.dimension_semantics<parallel>], iteration_bounds = array<i64: 2, 1>, scalar_prefetch = 0 : i64, scratch_operands = 0 : i64, tpu.core_type = #tpu.core_type<tc>, window_params = [{transform_indices = @transform_0, window_bounds = array<i64: 1, 16, 32>}, {pipeline_mode = #tpu.pipeline_mode<synchronous>, transform_indices = @transform_1, window_bounds = array<i64: 1, 32>}, {pipeline_mode = #tpu.pipeline_mode<synchronous>, transform_indices = @transform_2, window_bounds = array<i64: 1, 32>}, {pipeline_mode = #tpu.pipeline_mode<synchronous>, transform_indices = @transform_3, window_bounds = array<i64: 32, 32>}, {pipeline_mode = #tpu.pipeline_mode<synchronous>, transform_indices = @transform_4, window_bounds = array<i64: 1, 32>}, {transform_indices = @transform_5, window_bounds = array<i64: 1, 16, 32>}]} {
    %c0 = arith.constant 0 : index
    %c0_0 = arith.constant 0 : index
    %c0_1 = arith.constant 0 : index
    %0 = vector.load %arg2[%c0, %c0_0, %c0_1] : memref<1x16x32xbf16, #tpu.memory_space<vmem>>, vector<1x16x32xbf16>
    %1 = vector.shape_cast %0 : vector<1x16x32xbf16> to vector<16x32xbf16>
    %2 = arith.extf %1 : vector<16x32xbf16> to vector<16x32xf32>
    %c0_2 = arith.constant 0 : index
    %c0_3 = arith.constant 0 : index
    %3 = vector.load %arg3[%c0_2, %c0_3] : memref<1x32xf32, #tpu.memory_space<vmem>>, vector<1x32xf32>
    %c0_4 = arith.constant 0 : index
    %c0_5 = arith.constant 0 : index
    %4 = vector.load %arg4[%c0_4, %c0_5] : memref<1x32xf32, #tpu.memory_space<vmem>>, vector<1x32xf32>
    %cst = arith.constant dense<0.000000e+00> : vector<16xf32>
    %5 = vector.multi_reduction <add>, %2, %cst [1] : vector<16x32xf32> to vector<16xf32>
    %6 = vector.shape_cast %5 : vector<16xf32> to vector<16x1xf32>
    %cst_6 = arith.constant 3.200000e+01 : f32
    %7 = vector.broadcast %cst_6 : f32 to vector<16x1xf32>
    %8 = arith.divf %6, %7 : vector<16x1xf32>
    %9 = vector.broadcast %8 : vector<16x1xf32> to vector<16x32xf32>
    %10 = arith.subf %2, %9 : vector<16x32xf32>
    %11 = arith.mulf %10, %10 : vector<16x32xf32>
    %cst_7 = arith.constant dense<0.000000e+00> : vector<16xf32>
    %12 = vector.multi_reduction <add>, %11, %cst_7 [1] : vector<16x32xf32> to vector<16xf32>
    %13 = vector.shape_cast %12 : vector<16xf32> to vector<16x1xf32>
    %cst_8 = arith.constant 3.200000e+01 : f32
    %14 = vector.broadcast %cst_8 : f32 to vector<16x1xf32>
    %15 = arith.divf %13, %14 : vector<16x1xf32>
    %16 = vector.broadcast %8 : vector<16x1xf32> to vector<16x32xf32>
    %17 = arith.subf %2, %16 : vector<16x32xf32>
    %cst_9 = arith.constant 9.99999996E-13 : f32
    %18 = vector.broadcast %cst_9 : f32 to vector<16x1xf32>
    %19 = arith.addf %15, %18 : vector<16x1xf32>
    %20 = math.rsqrt %19 : vector<16x1xf32>
    %21 = vector.broadcast %20 : vector<16x1xf32> to vector<16x32xf32>
    %22 = arith.mulf %17, %21 : vector<16x32xf32>
    %23 = vector.broadcast %3 : vector<1x32xf32> to vector<16x32xf32>
    %24 = arith.mulf %22, %23 : vector<16x32xf32>
    %25 = vector.broadcast %4 : vector<1x32xf32> to vector<16x32xf32>
    %26 = arith.addf %24, %25 : vector<16x32xf32>
    %27 = arith.truncf %26 : vector<16x32xf32> to vector<16x32xbf16>
    %c0_10 = arith.constant 0 : index
    %c0_11 = arith.constant 0 : index
    %28 = vector.load %arg5[%c0_10, %c0_11] : memref<32x32xbf16, #tpu.memory_space<vmem>>, vector<32x32xbf16>
    %cst_12 = arith.constant dense<0.000000e+00> : vector<16x32xf32>
    %29 = tpu.matmul %27, %28, %cst_12 {dimension_numbers = #tpu.dot_dimension_numbers<[1], [0], [0], [1], [0, 0, 1, 1], [], []>} : vector<16x32xbf16>, vector<32x32xbf16>, vector<16x32xf32> -> vector<16x32xf32>
    %c0_13 = arith.constant 0 : index
    %c0_14 = arith.constant 0 : index
    %30 = vector.load %arg6[%c0_13, %c0_14] : memref<1x32xf32, #tpu.memory_space<vmem>>, vector<1x32xf32>
    %31 = vector.broadcast %30 : vector<1x32xf32> to vector<16x32xf32>
    %32 = arith.addf %29, %31 : vector<16x32xf32>
    %33 = arith.truncf %32 : vector<16x32xf32> to vector<16x32xbf16>
    %c0_15 = arith.constant 0 : index
    %c0_16 = arith.constant 0 : index
    %c0_17 = arith.constant 0 : index
    %34 = vector.load %arg7[%c0_15, %c0_16, %c0_17] : memref<1x16x32xbf16, #tpu.memory_space<vmem>>, vector<1x16x32xbf16>
    %35 = vector.shape_cast %34 : vector<1x16x32xbf16> to vector<16x32xbf16>
    %36 = vector.shape_cast %33 : vector<16x32xbf16> to vector<1x16x32xbf16>
    tpu.vector_store %arg7[%c0_15, %c0_16, %c0_17], %36 {strides = array<i32>} : memref<1x16x32xbf16, #tpu.memory_space<vmem>>, vector<1x16x32xbf16>,
    return
  }
  func.func @transform_0(%arg0: i32, %arg1: i32) -> (i32, i32, i32) {
    %c0_i32 = arith.constant 0 : i32
    %c0_i32_0 = arith.constant 0 : i32
    return %arg0, %arg1, %c0_i32 : i32, i32, i32
  }
  func.func @transform_1(%arg0: i32, %arg1: i32) -> (i32, i32) {
    %c0_i32 = arith.constant 0 : i32
    %c0_i32_0 = arith.constant 0 : i32
    %c0_i32_1 = arith.constant 0 : i32
    return %c0_i32, %c0_i32_0 : i32, i32
  }
  func.func @transform_2(%arg0: i32, %arg1: i32) -> (i32, i32) {
    %c0_i32 = arith.constant 0 : i32
    %c0_i32_0 = arith.constant 0 : i32
    %c0_i32_1 = arith.constant 0 : i32
    return %c0_i32, %c0_i32_0 : i32, i32
  }
  func.func @transform_3(%arg0: i32, %arg1: i32) -> (i32, i32) {
    %c0_i32 = arith.constant 0 : i32
    %c0_i32_0 = arith.constant 0 : i32
    %c0_i32_1 = arith.constant 0 : i32
    return %c0_i32, %c0_i32_0 : i32, i32
  }
  func.func @transform_4(%arg0: i32, %arg1: i32) -> (i32, i32) {
    %c0_i32 = arith.constant 0 : i32
    %c0_i32_0 = arith.constant 0 : i32
    %c0_i32_1 = arith.constant 0 : i32
    return %c0_i32, %c0_i32_0 : i32, i32
  }
  func.func @transform_5(%arg0: i32, %arg1: i32) -> (i32, i32, i32) {
    %c0_i32 = arith.constant 0 : i32
    %c0_i32_0 = arith.constant 0 : i32
    return %arg0, %arg1, %c0_i32 : i32, i32, i32
  }
}

module attributes {stable_mosaic.version = 11 : i64} {
  func.func @_attn_block_kernel(%arg0: i32, %arg1: i32, %arg2: memref<1x16x32xbf16, #tpu.memory_space<vmem>>, %arg3: memref<1x32xf32, #tpu.memory_space<vmem>>, %arg4: memref<1x32xf32, #tpu.memory_space<vmem>>, %arg5: memref<32x64xbf16, #tpu.memory_space<vmem>>, %arg6: memref<1x64xf32, #tpu.memory_space<vmem>>, %arg7: memref<64x32xbf16, #tpu.memory_space<vmem>>, %arg8: memref<1x32xf32, #tpu.memory_space<vmem>>, %arg9: memref<1x32xf32, #tpu.memory_space<vmem>>, %arg10: memref<1x32xf32, #tpu.memory_space<vmem>>, %arg11: memref<1x32x8xbf16, #tpu.memory_space<vmem>>, %arg12: memref<1x1x8xf32, #tpu.memory_space<vmem>>, %arg13: memref<1x32x8xbf16, #tpu.memory_space<vmem>>, %arg14: memref<1x1x8xf32, #tpu.memory_space<vmem>>, %arg15: memref<1x32x8xbf16, #tpu.memory_space<vmem>>, %arg16: memref<1x1x8xf32, #tpu.memory_space<vmem>>, %arg17: memref<1x1x8xf32, #tpu.memory_space<vmem>>, %arg18: memref<1x1x8xf32, #tpu.memory_space<vmem>>, %arg19: memref<1x128x8xbf16, #tpu.memory_space<vmem>>, %arg20: memref<1x8x32xbf16, #tpu.memory_space<vmem>>, %arg21: memref<1x32xf32, #tpu.memory_space<vmem>>, %arg22: memref<1x16x32xbf16, #tpu.memory_space<vmem>>, %arg23: memref<16x32xf32, #tpu.memory_space<vmem>>, %arg24: memref<16x32xf32, #tpu.memory_space<vmem>>) attributes {dimension_semantics = [#tpu.dimension_semantics<parallel>, #tpu.dimension_semantics<arbitrary>], iteration_bounds = array<i64: 2, 4>, scalar_prefetch = 0 : i64, scratch_operands = 2 : i64, tpu.core_type = #tpu.core_type<tc>, window_params = [{transform_indices = @transform_0, window_bounds = array<i64: 1, 16, 32>}, {pipeline_mode = #tpu.pipeline_mode<synchronous>, transform_indices = @transform_1, window_bounds = array<i64: 1, 32>}, {pipeline_mode = #tpu.pipeline_mode<synchronous>, transform_indices = @transform_2, window_bounds = array<i64: 1, 32>}, {pipeline_mode = #tpu.pipeline_mode<synchronous>, transform_indices = @transform_3, window_bounds = array<i64: 32, 64>}, {pipeline_mode = #tpu.pipeline_mode<synchronous>, transform_indices = @transform_4, window_bounds = array<i64: 1, 64>}, {pipeline_mode = #tpu.pipeline_mode<synchronous>, transform_indices = @transform_5, window_bounds = array<i64: 64, 32>}, {pipeline_mode = #tpu.pipeline_mode<synchronous>, transform_indices = @transform_6, window_bounds = array<i64: 1, 32>}, {pipeline_mode = #tpu.pipeline_mode<synchronous>, transform_indices = @transform_7, window_bounds = array<i64: 1, 32>}, {pipeline_mode = #tpu.pipeline_mode<synchronous>, transform_indices = @transform_8, window_bounds = array<i64: 1, 32>}, {transform_indices = @transform_9, window_bounds = array<i64: 1, 32, 8>}, {transform_indices = @transform_10, window_bounds = array<i64: 1, 1, 8>}, {transform_indices = @transform_11, window_bounds = array<i64: 1, 32, 8>}, {transform_indices = @transform_12, window_bounds = array<i64: 1, 1, 8>}, {transform_indices = @transform_13, window_bounds = array<i64: 1, 32, 8>}, {transform_indices = @transform_14, window_bounds = array<i64: 1, 1, 8>}, {transform_indices = @transform_15, window_bounds = array<i64: 1, 1, 8>}, {transform_indices = @transform_16, window_bounds = array<i64: 1, 1, 8>}, {transform_indices = @transform_17, window_bounds = array<i64: 1, 128, 8>}, {transform_indices = @transform_18, window_bounds = array<i64: 1, 8, 32>}, {pipeline_mode = #tpu.pipeline_mode<synchronous>, transform_indices = @transform_19, window_bounds = array<i64: 1, 32>}, {transform_indices = @transform_20, window_bounds = array<i64: 1, 16, 32>}]} {
    %c0_i32 = arith.constant 0 : i32
    %0 = arith.cmpi eq, %arg1, %c0_i32 : i32
    %1 = arith.extui %0 : i1 to i32
    %c0_i32_0 = arith.constant 0 : i32
    %2 = arith.cmpi ne, %1, %c0_i32_0 : i32
    scf.if %2 {
      %c0_55 = arith.constant 0 : index
      %c0_56 = arith.constant 0 : index
      %c0_57 = arith.constant 0 : index
      %103 = vector.load %arg2[%c0_55, %c0_56, %c0_57] : memref<1x16x32xbf16, #tpu.memory_space<vmem>>, vector<1x16x32xbf16>
      %104 = vector.shape_cast %103 : vector<1x16x32xbf16> to vector<16x32xbf16>
      %105 = arith.extf %104 : vector<16x32xbf16> to vector<16x32xf32>
      %c0_58 = arith.constant 0 : index
      %c0_59 = arith.constant 0 : index
      %106 = vector.load %arg3[%c0_58, %c0_59] : memref<1x32xf32, #tpu.memory_space<vmem>>, vector<1x32xf32>
      %c0_60 = arith.constant 0 : index
      %c0_61 = arith.constant 0 : index
      %107 = vector.load %arg4[%c0_60, %c0_61] : memref<1x32xf32, #tpu.memory_space<vmem>>, vector<1x32xf32>
      %cst_62 = arith.constant dense<0.000000e+00> : vector<16xf32>
      %108 = vector.multi_reduction <add>, %105, %cst_62 [1] : vector<16x32xf32> to vector<16xf32>
      %109 = vector.shape_cast %108 : vector<16xf32> to vector<16x1xf32>
      %cst_63 = arith.constant 3.200000e+01 : f32
      %110 = vector.broadcast %cst_63 : f32 to vector<16x1xf32>
      %111 = arith.divf %109, %110 : vector<16x1xf32>
      %112 = vector.broadcast %111 : vector<16x1xf32> to vector<16x32xf32>
      %113 = arith.subf %105, %112 : vector<16x32xf32>
      %114 = arith.mulf %113, %113 : vector<16x32xf32>
      %cst_64 = arith.constant dense<0.000000e+00> : vector<16xf32>
      %115 = vector.multi_reduction <add>, %114, %cst_64 [1] : vector<16x32xf32> to vector<16xf32>
      %116 = vector.shape_cast %115 : vector<16xf32> to vector<16x1xf32>
      %cst_65 = arith.constant 3.200000e+01 : f32
      %117 = vector.broadcast %cst_65 : f32 to vector<16x1xf32>
      %118 = arith.divf %116, %117 : vector<16x1xf32>
      %119 = vector.broadcast %111 : vector<16x1xf32> to vector<16x32xf32>
      %120 = arith.subf %105, %119 : vector<16x32xf32>
      %cst_66 = arith.constant 9.99999996E-13 : f32
      %121 = vector.broadcast %cst_66 : f32 to vector<16x1xf32>
      %122 = arith.addf %118, %121 : vector<16x1xf32>
      %123 = math.rsqrt %122 : vector<16x1xf32>
      %124 = vector.broadcast %123 : vector<16x1xf32> to vector<16x32xf32>
      %125 = arith.mulf %120, %124 : vector<16x32xf32>
      %126 = vector.broadcast %106 : vector<1x32xf32> to vector<16x32xf32>
      %127 = arith.mulf %125, %126 : vector<16x32xf32>
      %128 = vector.broadcast %107 : vector<1x32xf32> to vector<16x32xf32>
      %129 = arith.addf %127, %128 : vector<16x32xf32>
      %130 = arith.truncf %129 : vector<16x32xf32> to vector<16x32xbf16>
      %c0_67 = arith.constant 0 : index
      %c0_68 = arith.constant 0 : index
      %131 = vector.load %arg5[%c0_67, %c0_68] : memref<32x64xbf16, #tpu.memory_space<vmem>>, vector<32x64xbf16>
      %cst_69 = arith.constant dense<0.000000e+00> : vector<16x64xf32>
      %132 = tpu.matmul %130, %131, %cst_69 {dimension_numbers = #tpu.dot_dimension_numbers<[1], [0], [0], [1], [0, 0, 1, 1], [], []>} : vector<16x32xbf16>, vector<32x64xbf16>, vector<16x64xf32> -> vector<16x64xf32>
      %c0_70 = arith.constant 0 : index
      %c0_71 = arith.constant 0 : index
      %133 = vector.load %arg6[%c0_70, %c0_71] : memref<1x64xf32, #tpu.memory_space<vmem>>, vector<1x64xf32>
      %134 = vector.broadcast %133 : vector<1x64xf32> to vector<16x64xf32>
      %135 = arith.addf %132, %134 : vector<16x64xf32>
      %cst_72 = arith.constant 0.000000e+00 : f32
      %136 = vector.broadcast %cst_72 : f32 to vector<16x64xf32>
      %137 = arith.maximumf %135, %136 : vector<16x64xf32>
      %138 = arith.truncf %137 : vector<16x64xf32> to vector<16x64xbf16>
      %c0_73 = arith.constant 0 : index
      %c0_74 = arith.constant 0 : index
      %139 = vector.load %arg7[%c0_73, %c0_74] : memref<64x32xbf16, #tpu.memory_space<vmem>>, vector<64x32xbf16>
      %cst_75 = arith.constant dense<0.000000e+00> : vector<16x32xf32>
      %140 = tpu.matmul %138, %139, %cst_75 {dimension_numbers = #tpu.dot_dimension_numbers<[1], [0], [0], [1], [0, 0, 1, 1], [], []>} : vector<16x64xbf16>, vector<64x32xbf16>, vector<16x32xf32> -> vector<16x32xf32>
      %c0_76 = arith.constant 0 : index
      %c0_77 = arith.constant 0 : index
      %141 = vector.load %arg8[%c0_76, %c0_77] : memref<1x32xf32, #tpu.memory_space<vmem>>, vector<1x32xf32>
      %142 = vector.broadcast %141 : vector<1x32xf32> to vector<16x32xf32>
      %143 = arith.addf %140, %142 : vector<16x32xf32>
      %cst_78 = arith.constant 5.000000e-01 : f32
      %144 = vector.broadcast %cst_78 : f32 to vector<16x32xf32>
      %145 = arith.mulf %144, %143 : vector<16x32xf32>
      %146 = arith.addf %105, %145 : vector<16x32xf32>
      %c0_79 = arith.constant 0 : index
      %c0_80 = arith.constant 0 : index
      %147 = vector.load %arg23[%c0_79, %c0_80] : memref<16x32xf32, #tpu.memory_space<vmem>>, vector<16x32xf32>
      tpu.vector_store %arg23[%c0_79, %c0_80], %146 {strides = array<i32>} : memref<16x32xf32, #tpu.memory_space<vmem>>, vector<16x32xf32>,
      %cst_81 = arith.constant 0.000000e+00 : f32
      %148 = vector.broadcast %cst_81 : f32 to vector<16x32xf32>
      %c0_82 = arith.constant 0 : index
      %c0_83 = arith.constant 0 : index
      %149 = vector.load %arg24[%c0_82, %c0_83] : memref<16x32xf32, #tpu.memory_space<vmem>>, vector<16x32xf32>
      tpu.vector_store %arg24[%c0_82, %c0_83], %148 {strides = array<i32>} : memref<16x32xf32, #tpu.memory_space<vmem>>, vector<16x32xf32>,
    } else {
    }
    %c0 = arith.constant 0 : index
    %c0_1 = arith.constant 0 : index
    %3 = vector.load %arg23[%c0, %c0_1] : memref<16x32xf32, #tpu.memory_space<vmem>>, vector<16x32xf32>
    %c0_2 = arith.constant 0 : index
    %c0_3 = arith.constant 0 : index
    %4 = vector.load %arg9[%c0_2, %c0_3] : memref<1x32xf32, #tpu.memory_space<vmem>>, vector<1x32xf32>
    %c0_4 = arith.constant 0 : index
    %c0_5 = arith.constant 0 : index
    %5 = vector.load %arg10[%c0_4, %c0_5] : memref<1x32xf32, #tpu.memory_space<vmem>>, vector<1x32xf32>
    %cst = arith.constant dense<0.000000e+00> : vector<16xf32>
    %6 = vector.multi_reduction <add>, %3, %cst [1] : vector<16x32xf32> to vector<16xf32>
    %7 = vector.shape_cast %6 : vector<16xf32> to vector<16x1xf32>
    %cst_6 = arith.constant 3.200000e+01 : f32
    %8 = vector.broadcast %cst_6 : f32 to vector<16x1xf32>
    %9 = arith.divf %7, %8 : vector<16x1xf32>
    %10 = vector.broadcast %9 : vector<16x1xf32> to vector<16x32xf32>
    %11 = arith.subf %3, %10 : vector<16x32xf32>
    %12 = arith.mulf %11, %11 : vector<16x32xf32>
    %cst_7 = arith.constant dense<0.000000e+00> : vector<16xf32>
    %13 = vector.multi_reduction <add>, %12, %cst_7 [1] : vector<16x32xf32> to vector<16xf32>
    %14 = vector.shape_cast %13 : vector<16xf32> to vector<16x1xf32>
    %cst_8 = arith.constant 3.200000e+01 : f32
    %15 = vector.broadcast %cst_8 : f32 to vector<16x1xf32>
    %16 = arith.divf %14, %15 : vector<16x1xf32>
    %17 = vector.broadcast %9 : vector<16x1xf32> to vector<16x32xf32>
    %18 = arith.subf %3, %17 : vector<16x32xf32>
    %cst_9 = arith.constant 9.99999996E-13 : f32
    %19 = vector.broadcast %cst_9 : f32 to vector<16x1xf32>
    %20 = arith.addf %16, %19 : vector<16x1xf32>
    %21 = math.rsqrt %20 : vector<16x1xf32>
    %22 = vector.broadcast %21 : vector<16x1xf32> to vector<16x32xf32>
    %23 = arith.mulf %18, %22 : vector<16x32xf32>
    %24 = vector.broadcast %4 : vector<1x32xf32> to vector<16x32xf32>
    %25 = arith.mulf %23, %24 : vector<16x32xf32>
    %26 = vector.broadcast %5 : vector<1x32xf32> to vector<16x32xf32>
    %27 = arith.addf %25, %26 : vector<16x32xf32>
    %28 = arith.truncf %27 : vector<16x32xf32> to vector<16x32xbf16>
    %c0_10 = arith.constant 0 : index
    %c0_11 = arith.constant 0 : index
    %c0_12 = arith.constant 0 : index
    %29 = vector.load %arg11[%c0_10, %c0_11, %c0_12] : memref<1x32x8xbf16, #tpu.memory_space<vmem>>, vector<1x32x8xbf16>
    %30 = vector.shape_cast %29 : vector<1x32x8xbf16> to vector<32x8xbf16>
    %cst_13 = arith.constant dense<0.000000e+00> : vector<16x8xf32>
    %31 = tpu.matmul %28, %30, %cst_13 {dimension_numbers = #tpu.dot_dimension_numbers<[1], [0], [0], [1], [0, 0, 1, 1], [], []>} : vector<16x32xbf16>, vector<32x8xbf16>, vector<16x8xf32> -> vector<16x8xf32>
    %c0_14 = arith.constant 0 : index
    %c0_15 = arith.constant 0 : index
    %c0_16 = arith.constant 0 : index
    %32 = vector.load %arg12[%c0_14, %c0_15, %c0_16] : memref<1x1x8xf32, #tpu.memory_space<vmem>>, vector<1x1x8xf32>
    %33 = vector.shape_cast %32 : vector<1x1x8xf32> to vector<1x8xf32>
    %34 = vector.broadcast %33 : vector<1x8xf32> to vector<16x8xf32>
    %35 = arith.addf %31, %34 : vector<16x8xf32>
    %c0_17 = arith.constant 0 : index
    %c0_18 = arith.constant 0 : index
    %c0_19 = arith.constant 0 : index
    %36 = vector.load %arg13[%c0_17, %c0_18, %c0_19] : memref<1x32x8xbf16, #tpu.memory_space<vmem>>, vector<1x32x8xbf16>
    %37 = vector.shape_cast %36 : vector<1x32x8xbf16> to vector<32x8xbf16>
    %cst_20 = arith.constant dense<0.000000e+00> : vector<16x8xf32>
    %38 = tpu.matmul %28, %37, %cst_20 {dimension_numbers = #tpu.dot_dimension_numbers<[1], [0], [0], [1], [0, 0, 1, 1], [], []>} : vector<16x32xbf16>, vector<32x8xbf16>, vector<16x8xf32> -> vector<16x8xf32>
    %c0_21 = arith.constant 0 : index
    %c0_22 = arith.constant 0 : index
    %c0_23 = arith.constant 0 : index
    %39 = vector.load %arg14[%c0_21, %c0_22, %c0_23] : memref<1x1x8xf32, #tpu.memory_space<vmem>>, vector<1x1x8xf32>
    %40 = vector.shape_cast %39 : vector<1x1x8xf32> to vector<1x8xf32>
    %41 = vector.broadcast %40 : vector<1x8xf32> to vector<16x8xf32>
    %42 = arith.addf %38, %41 : vector<16x8xf32>
    %c0_24 = arith.constant 0 : index
    %c0_25 = arith.constant 0 : index
    %c0_26 = arith.constant 0 : index
    %43 = vector.load %arg15[%c0_24, %c0_25, %c0_26] : memref<1x32x8xbf16, #tpu.memory_space<vmem>>, vector<1x32x8xbf16>
    %44 = vector.shape_cast %43 : vector<1x32x8xbf16> to vector<32x8xbf16>
    %cst_27 = arith.constant dense<0.000000e+00> : vector<16x8xf32>
    %45 = tpu.matmul %28, %44, %cst_27 {dimension_numbers = #tpu.dot_dimension_numbers<[1], [0], [0], [1], [0, 0, 1, 1], [], []>} : vector<16x32xbf16>, vector<32x8xbf16>, vector<16x8xf32> -> vector<16x8xf32>
    %c0_28 = arith.constant 0 : index
    %c0_29 = arith.constant 0 : index
    %c0_30 = arith.constant 0 : index
    %46 = vector.load %arg16[%c0_28, %c0_29, %c0_30] : memref<1x1x8xf32, #tpu.memory_space<vmem>>, vector<1x1x8xf32>
    %47 = vector.shape_cast %46 : vector<1x1x8xf32> to vector<1x8xf32>
    %48 = vector.broadcast %47 : vector<1x8xf32> to vector<16x8xf32>
    %49 = arith.addf %45, %48 : vector<16x8xf32>
    %c0_31 = arith.constant 0 : index
    %c0_32 = arith.constant 0 : index
    %c0_33 = arith.constant 0 : index
    %50 = vector.load %arg17[%c0_31, %c0_32, %c0_33] : memref<1x1x8xf32, #tpu.memory_space<vmem>>, vector<1x1x8xf32>
    %51 = vector.shape_cast %50 : vector<1x1x8xf32> to vector<1x8xf32>
    %52 = vector.broadcast %51 : vector<1x8xf32> to vector<16x8xf32>
    %53 = arith.addf %35, %52 : vector<16x8xf32>
    %c0_34 = arith.constant 0 : index
    %c0_35 = arith.constant 0 : index
    %c0_36 = arith.constant 0 : index
    %54 = vector.load %arg18[%c0_34, %c0_35, %c0_36] : memref<1x1x8xf32, #tpu.memory_space<vmem>>, vector<1x1x8xf32>
    %55 = vector.shape_cast %54 : vector<1x1x8xf32> to vector<1x8xf32>
    %56 = vector.broadcast %55 : vector<1x8xf32> to vector<16x8xf32>
    %57 = arith.addf %35, %56 : vector<16x8xf32>
    %c0_37 = arith.constant 0 : index
    %c0_38 = arith.constant 0 : index
    %c0_39 = arith.constant 0 : index
    %58 = vector.load %arg19[%c0_37, %c0_38, %c0_39] : memref<1x128x8xbf16, #tpu.memory_space<vmem>>, vector<1x128x8xbf16>
    %59 = vector.shape_cast %58 : vector<1x128x8xbf16> to vector<128x8xbf16>
    %60 = arith.extf %59 : vector<128x8xbf16> to vector<128x8xf32>
    %cst_40 = arith.constant dense<0.000000e+00> : vector<16x16xf32>
    %61 = tpu.matmul %53, %42, %cst_40 {dimension_numbers = #tpu.dot_dimension_numbers<[1], [1], [0], [0], [0, 0, 1, 0], [], []>} : vector<16x8xf32>, vector<16x8xf32>, vector<16x16xf32> -> vector<16x16xf32>
    %cst_41 = arith.constant dense<0.000000e+00> : vector<16x128xf32>
    %62 = tpu.matmul %57, %60, %cst_41 {dimension_numbers = #tpu.dot_dimension_numbers<[1], [1], [0], [0], [0, 0, 1, 0], [], []>} : vector<16x8xf32>, vector<128x8xf32>, vector<16x128xf32> -> vector<16x128xf32>
    %63 = vector.extract_strided_slice %62 {offsets = [0, 15], sizes = [1, 16], strides = [1, 1]} : vector<16x128xf32> to vector<1x16xf32>
    %64 = vector.extract_strided_slice %62 {offsets = [1, 14], sizes = [1, 16], strides = [1, 1]} : vector<16x128xf32> to vector<1x16xf32>
    %65 = vector.extract_strided_slice %62 {offsets = [2, 13], sizes = [1, 16], strides = [1, 1]} : vector<16x128xf32> to vector<1x16xf32>
    %66 = vector.extract_strided_slice %62 {offsets = [3, 12], sizes = [1, 16], strides = [1, 1]} : vector<16x128xf32> to vector<1x16xf32>
    %67 = vector.extract_strided_slice %62 {offsets = [4, 11], sizes = [1, 16], strides = [1, 1]} : vector<16x128xf32> to vector<1x16xf32>
    %68 = vector.extract_strided_slice %62 {offsets = [5, 10], sizes = [1, 16], strides = [1, 1]} : vector<16x128xf32> to vector<1x16xf32>
    %69 = vector.extract_strided_slice %62 {offsets = [6, 9], sizes = [1, 16], strides = [1, 1]} : vector<16x128xf32> to vector<1x16xf32>
    %70 = vector.extract_strided_slice %62 {offsets = [7, 8], sizes = [1, 16], strides = [1, 1]} : vector<16x128xf32> to vector<1x16xf32>
    %71 = vector.extract_strided_slice %62 {offsets = [8, 7], sizes = [1, 16], strides = [1, 1]} : vector<16x128xf32> to vector<1x16xf32>
    %72 = vector.extract_strided_slice %62 {offsets = [9, 6], sizes = [1, 16], strides = [1, 1]} : vector<16x128xf32> to vector<1x16xf32>
    %73 = vector.extract_strided_slice %62 {offsets = [10, 5], sizes = [1, 16], strides = [1, 1]} : vector<16x128xf32> to vector<1x16xf32>
    %74 = vector.extract_strided_slice %62 {offsets = [11, 4], sizes = [1, 16], strides = [1, 1]} : vector<16x128xf32> to vector<1x16xf32>
    %75 = vector.extract_strided_slice %62 {offsets = [12, 3], sizes = [1, 16], strides = [1, 1]} : vector<16x128xf32> to vector<1x16xf32>
    %76 = vector.extract_strided_slice %62 {offsets = [13, 2], sizes = [1, 16], strides = [1, 1]} : vector<16x128xf32> to vector<1x16xf32>
    %77 = vector.extract_strided_slice %62 {offsets = [14, 1], sizes = [1, 16], strides = [1, 1]} : vector<16x128xf32> to vector<1x16xf32>
    %78 = vector.extract_strided_slice %62 {offsets = [15, 0], sizes = [1, 16], strides = [1, 1]} : vector<16x128xf32> to vector<1x16xf32>
    %79 = tpu.concatenate %63, %64, %65, %66, %67, %68, %69, %70, %71, %72, %73, %74, %75, %76, %77, %78 in 0 : vector<1x16xf32>, vector<1x16xf32>, vector<1x16xf32>, vector<1x16xf32>, vector<1x16xf32>, vector<1x16xf32>, vector<1x16xf32>, vector<1x16xf32>, vector<1x16xf32>, vector<1x16xf32>, vector<1x16xf32>, vector<1x16xf32>, vector<1x16xf32>, vector<1x16xf32>, vector<1x16xf32>, vector<1x16xf32> -> vector<16x16xf32>
    %80 = arith.addf %61, %79 : vector<16x16xf32>
    %cst_42 = arith.constant 0.353553385 : f32
    %81 = vector.broadcast %cst_42 : f32 to vector<16x16xf32>
    %82 = arith.mulf %80, %81 : vector<16x16xf32>
    %cst_43 = arith.constant dense<0xFF800000> : vector<16xf32>
    %83 = vector.multi_reduction <maximumf>, %82, %cst_43 [1] : vector<16x16xf32> to vector<16xf32>
    %84 = vector.shape_cast %83 : vector<16xf32> to vector<16x1xf32>
    %85 = vector.broadcast %84 : vector<16x1xf32> to vector<16x16xf32>
    %86 = arith.subf %82, %85 : vector<16x16xf32>
    %87 = math.exp %86 : vector<16x16xf32>
    %cst_44 = arith.constant dense<0.000000e+00> : vector<16xf32>
    %88 = vector.multi_reduction <add>, %87, %cst_44 [1] : vector<16x16xf32> to vector<16xf32>
    %89 = vector.shape_cast %88 : vector<16xf32> to vector<16x1xf32>
    %90 = vector.broadcast %89 : vector<16x1xf32> to vector<16x16xf32>
    %91 = arith.divf %87, %90 : vector<16x16xf32>
    %cst_45 = arith.constant dense<0.000000e+00> : vector<16x8xf32>
    %92 = tpu.matmul %91, %49, %cst_45 {dimension_numbers = #tpu.dot_dimension_numbers<[1], [0], [0], [1], [0, 0, 1, 1], [], []>} : vector<16x16xf32>, vector<16x8xf32>, vector<16x8xf32> -> vector<16x8xf32>
    %c0_46 = arith.constant 0 : index
    %c0_47 = arith.constant 0 : index
    %93 = vector.load %arg24[%c0_46, %c0_47] : memref<16x32xf32, #tpu.memory_space<vmem>>, vector<16x32xf32>
    %94 = arith.truncf %92 : vector<16x8xf32> to vector<16x8xbf16>
    %c0_48 = arith.constant 0 : index
    %c0_49 = arith.constant 0 : index
    %c0_50 = arith.constant 0 : index
    %95 = vector.load %arg20[%c0_48, %c0_49, %c0_50] : memref<1x8x32xbf16, #tpu.memory_space<vmem>>, vector<1x8x32xbf16>
    %96 = vector.shape_cast %95 : vector<1x8x32xbf16> to vector<8x32xbf16>
    %cst_51 = arith.constant dense<0.000000e+00> : vector<16x32xf32>
    %97 = tpu.matmul %94, %96, %cst_51 {dimension_numbers = #tpu.dot_dimension_numbers<[1], [0], [0], [1], [0, 0, 1, 1], [], []>} : vector<16x8xbf16>, vector<8x32xbf16>, vector<16x32xf32> -> vector<16x32xf32>
    %98 = arith.addf %93, %97 : vector<16x32xf32>
    %c0_52 = arith.constant 0 : index
    %c0_53 = arith.constant 0 : index
    %99 = vector.load %arg24[%c0_52, %c0_53] : memref<16x32xf32, #tpu.memory_space<vmem>>, vector<16x32xf32>
    tpu.vector_store %arg24[%c0_52, %c0_53], %98 {strides = array<i32>} : memref<16x32xf32, #tpu.memory_space<vmem>>, vector<16x32xf32>,
    %c3_i32 = arith.constant 3 : i32
    %100 = arith.cmpi eq, %arg1, %c3_i32 : i32
    %101 = arith.extui %100 : i1 to i32
    %c0_i32_54 = arith.constant 0 : i32
    %102 = arith.cmpi ne, %101, %c0_i32_54 : i32
    scf.if %102 {
      %c0_55 = arith.constant 0 : index
      %c0_56 = arith.constant 0 : index
      %103 = vector.load %arg23[%c0_55, %c0_56] : memref<16x32xf32, #tpu.memory_space<vmem>>, vector<16x32xf32>
      %c0_57 = arith.constant 0 : index
      %c0_58 = arith.constant 0 : index
      %104 = vector.load %arg24[%c0_57, %c0_58] : memref<16x32xf32, #tpu.memory_space<vmem>>, vector<16x32xf32>
      %105 = arith.addf %103, %104 : vector<16x32xf32>
      %c0_59 = arith.constant 0 : index
      %c0_60 = arith.constant 0 : index
      %106 = vector.load %arg21[%c0_59, %c0_60] : memref<1x32xf32, #tpu.memory_space<vmem>>, vector<1x32xf32>
      %107 = vector.broadcast %106 : vector<1x32xf32> to vector<16x32xf32>
      %108 = arith.addf %105, %107 : vector<16x32xf32>
      %109 = arith.truncf %108 : vector<16x32xf32> to vector<16x32xbf16>
      %c0_61 = arith.constant 0 : index
      %c0_62 = arith.constant 0 : index
      %c0_63 = arith.constant 0 : index
      %110 = vector.load %arg22[%c0_61, %c0_62, %c0_63] : memref<1x16x32xbf16, #tpu.memory_space<vmem>>, vector<1x16x32xbf16>
      %111 = vector.shape_cast %110 : vector<1x16x32xbf16> to vector<16x32xbf16>
      %112 = vector.shape_cast %109 : vector<16x32xbf16> to vector<1x16x32xbf16>
      tpu.vector_store %arg22[%c0_61, %c0_62, %c0_63], %112 {strides = array<i32>} : memref<1x16x32xbf16, #tpu.memory_space<vmem>>, vector<1x16x32xbf16>,
    } else {
    }
    return
  }
  func.func @transform_0(%arg0: i32, %arg1: i32) -> (i32, i32, i32) {
    %c0_i32 = arith.constant 0 : i32
    %c0_i32_0 = arith.constant 0 : i32
    %c0_i32_1 = arith.constant 0 : i32
    return %arg0, %c0_i32, %c0_i32_0 : i32, i32, i32
  }
  func.func @transform_1(%arg0: i32, %arg1: i32) -> (i32, i32) {
    %c0_i32 = arith.constant 0 : i32
    %c0_i32_0 = arith.constant 0 : i32
    %c0_i32_1 = arith.constant 0 : i32
    return %c0_i32, %c0_i32_0 : i32, i32
  }
  func.func @transform_2(%arg0: i32, %arg1: i32) -> (i32, i32) {
    %c0_i32 = arith.constant 0 : i32
    %c0_i32_0 = arith.constant 0 : i32
    %c0_i32_1 = arith.constant 0 : i32
    return %c0_i32, %c0_i32_0 : i32, i32
  }
  func.func @transform_3(%arg0: i32, %arg1: i32) -> (i32, i32) {
    %c0_i32 = arith.constant 0 : i32
    %c0_i32_0 = arith.constant 0 : i32
    %c0_i32_1 = arith.constant 0 : i32
    return %c0_i32, %c0_i32_0 : i32, i32
  }
  func.func @transform_4(%arg0: i32, %arg1: i32) -> (i32, i32) {
    %c0_i32 = arith.constant 0 : i32
    %c0_i32_0 = arith.constant 0 : i32
    %c0_i32_1 = arith.constant 0 : i32
    return %c0_i32, %c0_i32_0 : i32, i32
  }
  func.func @transform_5(%arg0: i32, %arg1: i32) -> (i32, i32) {
    %c0_i32 = arith.constant 0 : i32
    %c0_i32_0 = arith.constant 0 : i32
    %c0_i32_1 = arith.constant 0 : i32
    return %c0_i32, %c0_i32_0 : i32, i32
  }
  func.func @transform_6(%arg0: i32, %arg1: i32) -> (i32, i32) {
    %c0_i32 = arith.constant 0 : i32
    %c0_i32_0 = arith.constant 0 : i32
    %c0_i32_1 = arith.constant 0 : i32
    return %c0_i32, %c0_i32_0 : i32, i32
  }
  func.func @transform_7(%arg0: i32, %arg1: i32) -> (i32, i32) {
    %c0_i32 = arith.constant 0 : i32
    %c0_i32_0 = arith.constant 0 : i32
    %c0_i32_1 = arith.constant 0 : i32
    return %c0_i32, %c0_i32_0 : i32, i32
  }
  func.func @transform_8(%arg0: i32, %arg1: i32) -> (i32, i32) {
    %c0_i32 = arith.constant 0 : i32
    %c0_i32_0 = arith.constant 0 : i32
    %c0_i32_1 = arith.constant 0 : i32
    return %c0_i32, %c0_i32_0 : i32, i32
  }
  func.func @transform_9(%arg0: i32, %arg1: i32) -> (i32, i32, i32) {
    %c0_i32 = arith.constant 0 : i32
    %c0_i32_0 = arith.constant 0 : i32
    %c0_i32_1 = arith.constant 0 : i32
    return %arg1, %c0_i32, %c0_i32_0 : i32, i32, i32
  }
  func.func @transform_10(%arg0: i32, %arg1: i32) -> (i32, i32, i32) {
    %c0_i32 = arith.constant 0 : i32
    %c0_i32_0 = arith.constant 0 : i32
    %c0_i32_1 = arith.constant 0 : i32
    return %arg1, %c0_i32, %c0_i32_0 : i32, i32, i32
  }
  func.func @transform_11(%arg0: i32, %arg1: i32) -> (i32, i32, i32) {
    %c0_i32 = arith.constant 0 : i32
    %c0_i32_0 = arith.constant 0 : i32
    %c0_i32_1 = arith.constant 0 : i32
    return %arg1, %c0_i32, %c0_i32_0 : i32, i32, i32
  }
  func.func @transform_12(%arg0: i32, %arg1: i32) -> (i32, i32, i32) {
    %c0_i32 = arith.constant 0 : i32
    %c0_i32_0 = arith.constant 0 : i32
    %c0_i32_1 = arith.constant 0 : i32
    return %arg1, %c0_i32, %c0_i32_0 : i32, i32, i32
  }
  func.func @transform_13(%arg0: i32, %arg1: i32) -> (i32, i32, i32) {
    %c0_i32 = arith.constant 0 : i32
    %c0_i32_0 = arith.constant 0 : i32
    %c0_i32_1 = arith.constant 0 : i32
    return %arg1, %c0_i32, %c0_i32_0 : i32, i32, i32
  }
  func.func @transform_14(%arg0: i32, %arg1: i32) -> (i32, i32, i32) {
    %c0_i32 = arith.constant 0 : i32
    %c0_i32_0 = arith.constant 0 : i32
    %c0_i32_1 = arith.constant 0 : i32
    return %arg1, %c0_i32, %c0_i32_0 : i32, i32, i32
  }
  func.func @transform_15(%arg0: i32, %arg1: i32) -> (i32, i32, i32) {
    %c0_i32 = arith.constant 0 : i32
    %c0_i32_0 = arith.constant 0 : i32
    %c0_i32_1 = arith.constant 0 : i32
    return %arg1, %c0_i32, %c0_i32_0 : i32, i32, i32
  }
  func.func @transform_16(%arg0: i32, %arg1: i32) -> (i32, i32, i32) {
    %c0_i32 = arith.constant 0 : i32
    %c0_i32_0 = arith.constant 0 : i32
    %c0_i32_1 = arith.constant 0 : i32
    return %arg1, %c0_i32, %c0_i32_0 : i32, i32, i32
  }
  func.func @transform_17(%arg0: i32, %arg1: i32) -> (i32, i32, i32) {
    %c0_i32 = arith.constant 0 : i32
    %c0_i32_0 = arith.constant 0 : i32
    %c0_i32_1 = arith.constant 0 : i32
    return %arg1, %c0_i32, %c0_i32_0 : i32, i32, i32
  }
  func.func @transform_18(%arg0: i32, %arg1: i32) -> (i32, i32, i32) {
    %c0_i32 = arith.constant 0 : i32
    %c0_i32_0 = arith.constant 0 : i32
    %c0_i32_1 = arith.constant 0 : i32
    return %arg1, %c0_i32, %c0_i32_0 : i32, i32, i32
  }
  func.func @transform_19(%arg0: i32, %arg1: i32) -> (i32, i32) {
    %c0_i32 = arith.constant 0 : i32
    %c0_i32_0 = arith.constant 0 : i32
    %c0_i32_1 = arith.constant 0 : i32
    return %c0_i32, %c0_i32_0 : i32, i32
  }
  func.func @transform_20(%arg0: i32, %arg1: i32) -> (i32, i32, i32) {
    %c0_i32 = arith.constant 0 : i32
    %c0_i32_0 = arith.constant 0 : i32
    %c0_i32_1 = arith.constant 0 : i32
    return %arg0, %c0_i32, %c0_i32_0 : i32, i32, i32
  }
}

module attributes {stable_mosaic.version = 11 : i64} {
  func.func @_ln_ffn_kernel(%arg0: i32, %arg1: i32, %arg2: memref<1x16x32xbf16, #tpu.memory_space<vmem>>, %arg3: memref<1x32xf32, #tpu.memory_space<vmem>>, %arg4: memref<1x32xf32, #tpu.memory_space<vmem>>, %arg5: memref<32x64xbf16, #tpu.memory_space<vmem>>, %arg6: memref<1x64xf32, #tpu.memory_space<vmem>>, %arg7: memref<64x32xbf16, #tpu.memory_space<vmem>>, %arg8: memref<1x32xf32, #tpu.memory_space<vmem>>, %arg9: memref<1x32xf32, #tpu.memory_space<vmem>>, %arg10: memref<1x32xf32, #tpu.memory_space<vmem>>, %arg11: memref<1x16x32xbf16, #tpu.memory_space<vmem>>) attributes {dimension_semantics = [#tpu.dimension_semantics<parallel>, #tpu.dimension_semantics<parallel>], iteration_bounds = array<i64: 2, 1>, scalar_prefetch = 0 : i64, scratch_operands = 0 : i64, tpu.core_type = #tpu.core_type<tc>, window_params = [{transform_indices = @transform_0, window_bounds = array<i64: 1, 16, 32>}, {pipeline_mode = #tpu.pipeline_mode<synchronous>, transform_indices = @transform_1, window_bounds = array<i64: 1, 32>}, {pipeline_mode = #tpu.pipeline_mode<synchronous>, transform_indices = @transform_2, window_bounds = array<i64: 1, 32>}, {pipeline_mode = #tpu.pipeline_mode<synchronous>, transform_indices = @transform_3, window_bounds = array<i64: 32, 64>}, {pipeline_mode = #tpu.pipeline_mode<synchronous>, transform_indices = @transform_4, window_bounds = array<i64: 1, 64>}, {pipeline_mode = #tpu.pipeline_mode<synchronous>, transform_indices = @transform_5, window_bounds = array<i64: 64, 32>}, {pipeline_mode = #tpu.pipeline_mode<synchronous>, transform_indices = @transform_6, window_bounds = array<i64: 1, 32>}, {pipeline_mode = #tpu.pipeline_mode<synchronous>, transform_indices = @transform_7, window_bounds = array<i64: 1, 32>}, {pipeline_mode = #tpu.pipeline_mode<synchronous>, transform_indices = @transform_8, window_bounds = array<i64: 1, 32>}, {transform_indices = @transform_9, window_bounds = array<i64: 1, 16, 32>}]} {
    %c0 = arith.constant 0 : index
    %c0_0 = arith.constant 0 : index
    %c0_1 = arith.constant 0 : index
    %0 = vector.load %arg2[%c0, %c0_0, %c0_1] : memref<1x16x32xbf16, #tpu.memory_space<vmem>>, vector<1x16x32xbf16>
    %1 = vector.shape_cast %0 : vector<1x16x32xbf16> to vector<16x32xbf16>
    %2 = arith.extf %1 : vector<16x32xbf16> to vector<16x32xf32>
    %c0_2 = arith.constant 0 : index
    %c0_3 = arith.constant 0 : index
    %3 = vector.load %arg3[%c0_2, %c0_3] : memref<1x32xf32, #tpu.memory_space<vmem>>, vector<1x32xf32>
    %c0_4 = arith.constant 0 : index
    %c0_5 = arith.constant 0 : index
    %4 = vector.load %arg4[%c0_4, %c0_5] : memref<1x32xf32, #tpu.memory_space<vmem>>, vector<1x32xf32>
    %cst = arith.constant dense<0.000000e+00> : vector<16xf32>
    %5 = vector.multi_reduction <add>, %2, %cst [1] : vector<16x32xf32> to vector<16xf32>
    %6 = vector.shape_cast %5 : vector<16xf32> to vector<16x1xf32>
    %cst_6 = arith.constant 3.200000e+01 : f32
    %7 = vector.broadcast %cst_6 : f32 to vector<16x1xf32>
    %8 = arith.divf %6, %7 : vector<16x1xf32>
    %9 = vector.broadcast %8 : vector<16x1xf32> to vector<16x32xf32>
    %10 = arith.subf %2, %9 : vector<16x32xf32>
    %11 = arith.mulf %10, %10 : vector<16x32xf32>
    %cst_7 = arith.constant dense<0.000000e+00> : vector<16xf32>
    %12 = vector.multi_reduction <add>, %11, %cst_7 [1] : vector<16x32xf32> to vector<16xf32>
    %13 = vector.shape_cast %12 : vector<16xf32> to vector<16x1xf32>
    %cst_8 = arith.constant 3.200000e+01 : f32
    %14 = vector.broadcast %cst_8 : f32 to vector<16x1xf32>
    %15 = arith.divf %13, %14 : vector<16x1xf32>
    %16 = vector.broadcast %8 : vector<16x1xf32> to vector<16x32xf32>
    %17 = arith.subf %2, %16 : vector<16x32xf32>
    %cst_9 = arith.constant 9.99999996E-13 : f32
    %18 = vector.broadcast %cst_9 : f32 to vector<16x1xf32>
    %19 = arith.addf %15, %18 : vector<16x1xf32>
    %20 = math.rsqrt %19 : vector<16x1xf32>
    %21 = vector.broadcast %20 : vector<16x1xf32> to vector<16x32xf32>
    %22 = arith.mulf %17, %21 : vector<16x32xf32>
    %23 = vector.broadcast %3 : vector<1x32xf32> to vector<16x32xf32>
    %24 = arith.mulf %22, %23 : vector<16x32xf32>
    %25 = vector.broadcast %4 : vector<1x32xf32> to vector<16x32xf32>
    %26 = arith.addf %24, %25 : vector<16x32xf32>
    %27 = arith.truncf %26 : vector<16x32xf32> to vector<16x32xbf16>
    %c0_10 = arith.constant 0 : index
    %c0_11 = arith.constant 0 : index
    %28 = vector.load %arg5[%c0_10, %c0_11] : memref<32x64xbf16, #tpu.memory_space<vmem>>, vector<32x64xbf16>
    %cst_12 = arith.constant dense<0.000000e+00> : vector<16x64xf32>
    %29 = tpu.matmul %27, %28, %cst_12 {dimension_numbers = #tpu.dot_dimension_numbers<[1], [0], [0], [1], [0, 0, 1, 1], [], []>} : vector<16x32xbf16>, vector<32x64xbf16>, vector<16x64xf32> -> vector<16x64xf32>
    %c0_13 = arith.constant 0 : index
    %c0_14 = arith.constant 0 : index
    %30 = vector.load %arg6[%c0_13, %c0_14] : memref<1x64xf32, #tpu.memory_space<vmem>>, vector<1x64xf32>
    %31 = vector.broadcast %30 : vector<1x64xf32> to vector<16x64xf32>
    %32 = arith.addf %29, %31 : vector<16x64xf32>
    %cst_15 = arith.constant 0.000000e+00 : f32
    %33 = vector.broadcast %cst_15 : f32 to vector<16x64xf32>
    %34 = arith.maximumf %32, %33 : vector<16x64xf32>
    %35 = arith.truncf %34 : vector<16x64xf32> to vector<16x64xbf16>
    %c0_16 = arith.constant 0 : index
    %c0_17 = arith.constant 0 : index
    %36 = vector.load %arg7[%c0_16, %c0_17] : memref<64x32xbf16, #tpu.memory_space<vmem>>, vector<64x32xbf16>
    %cst_18 = arith.constant dense<0.000000e+00> : vector<16x32xf32>
    %37 = tpu.matmul %35, %36, %cst_18 {dimension_numbers = #tpu.dot_dimension_numbers<[1], [0], [0], [1], [0, 0, 1, 1], [], []>} : vector<16x64xbf16>, vector<64x32xbf16>, vector<16x32xf32> -> vector<16x32xf32>
    %c0_19 = arith.constant 0 : index
    %c0_20 = arith.constant 0 : index
    %38 = vector.load %arg8[%c0_19, %c0_20] : memref<1x32xf32, #tpu.memory_space<vmem>>, vector<1x32xf32>
    %39 = vector.broadcast %38 : vector<1x32xf32> to vector<16x32xf32>
    %40 = arith.addf %37, %39 : vector<16x32xf32>
    %cst_21 = arith.constant 5.000000e-01 : f32
    %41 = vector.broadcast %cst_21 : f32 to vector<16x32xf32>
    %42 = arith.mulf %41, %40 : vector<16x32xf32>
    %43 = arith.addf %2, %42 : vector<16x32xf32>
    %c0_22 = arith.constant 0 : index
    %c0_23 = arith.constant 0 : index
    %44 = vector.load %arg9[%c0_22, %c0_23] : memref<1x32xf32, #tpu.memory_space<vmem>>, vector<1x32xf32>
    %c0_24 = arith.constant 0 : index
    %c0_25 = arith.constant 0 : index
    %45 = vector.load %arg10[%c0_24, %c0_25] : memref<1x32xf32, #tpu.memory_space<vmem>>, vector<1x32xf32>
    %cst_26 = arith.constant dense<0.000000e+00> : vector<16xf32>
    %46 = vector.multi_reduction <add>, %43, %cst_26 [1] : vector<16x32xf32> to vector<16xf32>
    %47 = vector.shape_cast %46 : vector<16xf32> to vector<16x1xf32>
    %cst_27 = arith.constant 3.200000e+01 : f32
    %48 = vector.broadcast %cst_27 : f32 to vector<16x1xf32>
    %49 = arith.divf %47, %48 : vector<16x1xf32>
    %50 = vector.broadcast %49 : vector<16x1xf32> to vector<16x32xf32>
    %51 = arith.subf %43, %50 : vector<16x32xf32>
    %52 = arith.mulf %51, %51 : vector<16x32xf32>
    %cst_28 = arith.constant dense<0.000000e+00> : vector<16xf32>
    %53 = vector.multi_reduction <add>, %52, %cst_28 [1] : vector<16x32xf32> to vector<16xf32>
    %54 = vector.shape_cast %53 : vector<16xf32> to vector<16x1xf32>
    %cst_29 = arith.constant 3.200000e+01 : f32
    %55 = vector.broadcast %cst_29 : f32 to vector<16x1xf32>
    %56 = arith.divf %54, %55 : vector<16x1xf32>
    %57 = vector.broadcast %49 : vector<16x1xf32> to vector<16x32xf32>
    %58 = arith.subf %43, %57 : vector<16x32xf32>
    %cst_30 = arith.constant 9.99999996E-13 : f32
    %59 = vector.broadcast %cst_30 : f32 to vector<16x1xf32>
    %60 = arith.addf %56, %59 : vector<16x1xf32>
    %61 = math.rsqrt %60 : vector<16x1xf32>
    %62 = vector.broadcast %61 : vector<16x1xf32> to vector<16x32xf32>
    %63 = arith.mulf %58, %62 : vector<16x32xf32>
    %64 = vector.broadcast %44 : vector<1x32xf32> to vector<16x32xf32>
    %65 = arith.mulf %63, %64 : vector<16x32xf32>
    %66 = vector.broadcast %45 : vector<1x32xf32> to vector<16x32xf32>
    %67 = arith.addf %65, %66 : vector<16x32xf32>
    %68 = arith.truncf %67 : vector<16x32xf32> to vector<16x32xbf16>
    %c0_31 = arith.constant 0 : index
    %c0_32 = arith.constant 0 : index
    %c0_33 = arith.constant 0 : index
    %69 = vector.load %arg11[%c0_31, %c0_32, %c0_33] : memref<1x16x32xbf16, #tpu.memory_space<vmem>>, vector<1x16x32xbf16>
    %70 = vector.shape_cast %69 : vector<1x16x32xbf16> to vector<16x32xbf16>
    %71 = vector.shape_cast %68 : vector<16x32xbf16> to vector<1x16x32xbf16>
    tpu.vector_store %arg11[%c0_31, %c0_32, %c0_33], %71 {strides = array<i32>} : memref<1x16x32xbf16, #tpu.memory_space<vmem>>, vector<1x16x32xbf16>,
    return
  }
  func.func @transform_0(%arg0: i32, %arg1: i32) -> (i32, i32, i32) {
    %c0_i32 = arith.constant 0 : i32
    %c0_i32_0 = arith.constant 0 : i32
    return %arg0, %arg1, %c0_i32 : i32, i32, i32
  }
  func.func @transform_1(%arg0: i32, %arg1: i32) -> (i32, i32) {
    %c0_i32 = arith.constant 0 : i32
    %c0_i32_0 = arith.constant 0 : i32
    %c0_i32_1 = arith.constant 0 : i32
    return %c0_i32, %c0_i32_0 : i32, i32
  }
  func.func @transform_2(%arg0: i32, %arg1: i32) -> (i32, i32) {
    %c0_i32 = arith.constant 0 : i32
    %c0_i32_0 = arith.constant 0 : i32
    %c0_i32_1 = arith.constant 0 : i32
    return %c0_i32, %c0_i32_0 : i32, i32
  }
  func.func @transform_3(%arg0: i32, %arg1: i32) -> (i32, i32) {
    %c0_i32 = arith.constant 0 : i32
    %c0_i32_0 = arith.constant 0 : i32
    %c0_i32_1 = arith.constant 0 : i32
    return %c0_i32, %c0_i32_0 : i32, i32
  }
  func.func @transform_4(%arg0: i32, %arg1: i32) -> (i32, i32) {
    %c0_i32 = arith.constant 0 : i32
    %c0_i32_0 = arith.constant 0 : i32
    %c0_i32_1 = arith.constant 0 : i32
    return %c0_i32, %c0_i32_0 : i32, i32
  }
  func.func @transform_5(%arg0: i32, %arg1: i32) -> (i32, i32) {
    %c0_i32 = arith.constant 0 : i32
    %c0_i32_0 = arith.constant 0 : i32
    %c0_i32_1 = arith.constant 0 : i32
    return %c0_i32, %c0_i32_0 : i32, i32
  }
  func.func @transform_6(%arg0: i32, %arg1: i32) -> (i32, i32) {
    %c0_i32 = arith.constant 0 : i32
    %c0_i32_0 = arith.constant 0 : i32
    %c0_i32_1 = arith.constant 0 : i32
    return %c0_i32, %c0_i32_0 : i32, i32
  }
  func.func @transform_7(%arg0: i32, %arg1: i32) -> (i32, i32) {
    %c0_i32 = arith.constant 0 : i32
    %c0_i32_0 = arith.constant 0 : i32
    %c0_i32_1 = arith.constant 0 : i32
    return %c0_i32, %c0_i32_0 : i32, i32
  }
  func.func @transform_8(%arg0: i32, %arg1: i32) -> (i32, i32) {
    %c0_i32 = arith.constant 0 : i32
    %c0_i32_0 = arith.constant 0 : i32
    %c0_i32_1 = arith.constant 0 : i32
    return %c0_i32, %c0_i32_0 : i32, i32
  }
  func.func @transform_9(%arg0: i32, %arg1: i32) -> (i32, i32, i32) {
    %c0_i32 = arith.constant 0 : i32
    %c0_i32_0 = arith.constant 0 : i32
    return %arg0, %arg1, %c0_i32 : i32, i32, i32
  }
}

module attributes {stable_mosaic.version = 11 : i64} {
  func.func @_conv_module_kernel(%arg0: i32, %arg1: memref<1x16x32xbf16, #tpu.memory_space<vmem>>, %arg2: memref<1x32xf32, #tpu.memory_space<vmem>>, %arg3: memref<1x32xf32, #tpu.memory_space<vmem>>, %arg4: memref<32x64xbf16, #tpu.memory_space<vmem>>, %arg5: memref<1x64xf32, #tpu.memory_space<vmem>>, %arg6: memref<7x32xf32, #tpu.memory_space<vmem>>, %arg7: memref<1x32xf32, #tpu.memory_space<vmem>>, %arg8: memref<1x32xf32, #tpu.memory_space<vmem>>, %arg9: memref<32x32xbf16, #tpu.memory_space<vmem>>, %arg10: memref<1x32xf32, #tpu.memory_space<vmem>>, %arg11: memref<1x16x32xbf16, #tpu.memory_space<vmem>>) attributes {dimension_semantics = [#tpu.dimension_semantics<parallel>], iteration_bounds = array<i64: 2>, scalar_prefetch = 0 : i64, scratch_operands = 0 : i64, tpu.core_type = #tpu.core_type<tc>, window_params = [{transform_indices = @transform_0, window_bounds = array<i64: 1, 16, 32>}, {pipeline_mode = #tpu.pipeline_mode<synchronous>, transform_indices = @transform_1, window_bounds = array<i64: 1, 32>}, {pipeline_mode = #tpu.pipeline_mode<synchronous>, transform_indices = @transform_2, window_bounds = array<i64: 1, 32>}, {pipeline_mode = #tpu.pipeline_mode<synchronous>, transform_indices = @transform_3, window_bounds = array<i64: 32, 64>}, {pipeline_mode = #tpu.pipeline_mode<synchronous>, transform_indices = @transform_4, window_bounds = array<i64: 1, 64>}, {pipeline_mode = #tpu.pipeline_mode<synchronous>, transform_indices = @transform_5, window_bounds = array<i64: 7, 32>}, {pipeline_mode = #tpu.pipeline_mode<synchronous>, transform_indices = @transform_6, window_bounds = array<i64: 1, 32>}, {pipeline_mode = #tpu.pipeline_mode<synchronous>, transform_indices = @transform_7, window_bounds = array<i64: 1, 32>}, {pipeline_mode = #tpu.pipeline_mode<synchronous>, transform_indices = @transform_8, window_bounds = array<i64: 32, 32>}, {pipeline_mode = #tpu.pipeline_mode<synchronous>, transform_indices = @transform_9, window_bounds = array<i64: 1, 32>}, {transform_indices = @transform_10, window_bounds = array<i64: 1, 16, 32>}]} {
    %c0 = arith.constant 0 : index
    %c0_0 = arith.constant 0 : index
    %c0_1 = arith.constant 0 : index
    %0 = vector.load %arg1[%c0, %c0_0, %c0_1] : memref<1x16x32xbf16, #tpu.memory_space<vmem>>, vector<1x16x32xbf16>
    %1 = vector.shape_cast %0 : vector<1x16x32xbf16> to vector<16x32xbf16>
    %2 = arith.extf %1 : vector<16x32xbf16> to vector<16x32xf32>
    %c0_2 = arith.constant 0 : index
    %c0_3 = arith.constant 0 : index
    %3 = vector.load %arg2[%c0_2, %c0_3] : memref<1x32xf32, #tpu.memory_space<vmem>>, vector<1x32xf32>
    %c0_4 = arith.constant 0 : index
    %c0_5 = arith.constant 0 : index
    %4 = vector.load %arg3[%c0_4, %c0_5] : memref<1x32xf32, #tpu.memory_space<vmem>>, vector<1x32xf32>
    %cst = arith.constant dense<0.000000e+00> : vector<16xf32>
    %5 = vector.multi_reduction <add>, %2, %cst [1] : vector<16x32xf32> to vector<16xf32>
    %6 = vector.shape_cast %5 : vector<16xf32> to vector<16x1xf32>
    %cst_6 = arith.constant 3.200000e+01 : f32
    %7 = vector.broadcast %cst_6 : f32 to vector<16x1xf32>
    %8 = arith.divf %6, %7 : vector<16x1xf32>
    %9 = vector.broadcast %8 : vector<16x1xf32> to vector<16x32xf32>
    %10 = arith.subf %2, %9 : vector<16x32xf32>
    %11 = arith.mulf %10, %10 : vector<16x32xf32>
    %cst_7 = arith.constant dense<0.000000e+00> : vector<16xf32>
    %12 = vector.multi_reduction <add>, %11, %cst_7 [1] : vector<16x32xf32> to vector<16xf32>
    %13 = vector.shape_cast %12 : vector<16xf32> to vector<16x1xf32>
    %cst_8 = arith.constant 3.200000e+01 : f32
    %14 = vector.broadcast %cst_8 : f32 to vector<16x1xf32>
    %15 = arith.divf %13, %14 : vector<16x1xf32>
    %16 = vector.broadcast %8 : vector<16x1xf32> to vector<16x32xf32>
    %17 = arith.subf %2, %16 : vector<16x32xf32>
    %cst_9 = arith.constant 9.99999996E-13 : f32
    %18 = vector.broadcast %cst_9 : f32 to vector<16x1xf32>
    %19 = arith.addf %15, %18 : vector<16x1xf32>
    %20 = math.rsqrt %19 : vector<16x1xf32>
    %21 = vector.broadcast %20 : vector<16x1xf32> to vector<16x32xf32>
    %22 = arith.mulf %17, %21 : vector<16x32xf32>
    %23 = vector.broadcast %3 : vector<1x32xf32> to vector<16x32xf32>
    %24 = arith.mulf %22, %23 : vector<16x32xf32>
    %25 = vector.broadcast %4 : vector<1x32xf32> to vector<16x32xf32>
    %26 = arith.addf %24, %25 : vector<16x32xf32>
    %27 = arith.truncf %26 : vector<16x32xf32> to vector<16x32xbf16>
    %c0_10 = arith.constant 0 : index
    %c0_11 = arith.constant 0 : index
    %28 = vector.load %arg4[%c0_10, %c0_11] : memref<32x64xbf16, #tpu.memory_space<vmem>>, vector<32x64xbf16>
    %cst_12 = arith.constant dense<0.000000e+00> : vector<16x64xf32>
    %29 = tpu.matmul %27, %28, %cst_12 {dimension_numbers = #tpu.dot_dimension_numbers<[1], [0], [0], [1], [0, 0, 1, 1], [], []>} : vector<16x32xbf16>, vector<32x64xbf16>, vector<16x64xf32> -> vector<16x64xf32>
    %c0_13 = arith.constant 0 : index
    %c0_14 = arith.constant 0 : index
    %30 = vector.load %arg5[%c0_13, %c0_14] : memref<1x64xf32, #tpu.memory_space<vmem>>, vector<1x64xf32>
    %31 = vector.broadcast %30 : vector<1x64xf32> to vector<16x64xf32>
    %32 = arith.addf %29, %31 : vector<16x64xf32>
    %33 = vector.extract_strided_slice %32 {offsets = [0, 0], sizes = [16, 32], strides = [1, 1]} : vector<16x64xf32> to vector<16x32xf32>
    %34 = vector.extract_strided_slice %32 {offsets = [0, 32], sizes = [16, 32], strides = [1, 1]} : vector<16x64xf32> to vector<16x32xf32>
    %35 = arith.negf %34 : vector<16x32xf32>
    %36 = math.exp %35 : vector<16x32xf32>
    %cst_15 = arith.constant 1.000000e+00 : f32
    %37 = vector.broadcast %cst_15 : f32 to vector<16x32xf32>
    %38 = arith.addf %37, %36 : vector<16x32xf32>
    %39 = arith.divf %37, %38 : vector<16x32xf32>
    %40 = arith.mulf %33, %39 : vector<16x32xf32>
    %cst_16 = arith.constant 0.000000e+00 : f32
    %41 = vector.broadcast %cst_16 : f32 to vector<3x32xf32>
    %42 = tpu.concatenate %41, %40, %41 in 0 : vector<3x32xf32>, vector<16x32xf32>, vector<3x32xf32> -> vector<22x32xf32>
    %cst_17 = arith.constant 0.000000e+00 : f32
    %43 = vector.broadcast %cst_17 : f32 to vector<16x32xf32>
    %44 = vector.extract_strided_slice %42 {offsets = [0, 0], sizes = [16, 32], strides = [1, 1]} : vector<22x32xf32> to vector<16x32xf32>
    %c0_18 = arith.constant 0 : index
    %c0_19 = arith.constant 0 : index
    %45 = vector.load %arg6[%c0_18, %c0_19] : memref<7x32xf32, #tpu.memory_space<vmem>>, vector<1x32xf32>
    %46 = vector.broadcast %45 : vector<1x32xf32> to vector<16x32xf32>
    %47 = arith.mulf %44, %46 : vector<16x32xf32>
    %48 = arith.addf %43, %47 : vector<16x32xf32>
    %49 = vector.extract_strided_slice %42 {offsets = [1, 0], sizes = [16, 32], strides = [1, 1]} : vector<22x32xf32> to vector<16x32xf32>
    %c1 = arith.constant 1 : index
    %c0_20 = arith.constant 0 : index
    %50 = vector.load %arg6[%c1, %c0_20] : memref<7x32xf32, #tpu.memory_space<vmem>>, vector<1x32xf32>
    %51 = vector.broadcast %50 : vector<1x32xf32> to vector<16x32xf32>
    %52 = arith.mulf %49, %51 : vector<16x32xf32>
    %53 = arith.addf %48, %52 : vector<16x32xf32>
    %54 = vector.extract_strided_slice %42 {offsets = [2, 0], sizes = [16, 32], strides = [1, 1]} : vector<22x32xf32> to vector<16x32xf32>
    %c2 = arith.constant 2 : index
    %c0_21 = arith.constant 0 : index
    %55 = vector.load %arg6[%c2, %c0_21] : memref<7x32xf32, #tpu.memory_space<vmem>>, vector<1x32xf32>
    %56 = vector.broadcast %55 : vector<1x32xf32> to vector<16x32xf32>
    %57 = arith.mulf %54, %56 : vector<16x32xf32>
    %58 = arith.addf %53, %57 : vector<16x32xf32>
    %59 = vector.extract_strided_slice %42 {offsets = [3, 0], sizes = [16, 32], strides = [1, 1]} : vector<22x32xf32> to vector<16x32xf32>
    %c3 = arith.constant 3 : index
    %c0_22 = arith.constant 0 : index
    %60 = vector.load %arg6[%c3, %c0_22] : memref<7x32xf32, #tpu.memory_space<vmem>>, vector<1x32xf32>
    %61 = vector.broadcast %60 : vector<1x32xf32> to vector<16x32xf32>
    %62 = arith.mulf %59, %61 : vector<16x32xf32>
    %63 = arith.addf %58, %62 : vector<16x32xf32>
    %64 = vector.extract_strided_slice %42 {offsets = [4, 0], sizes = [16, 32], strides = [1, 1]} : vector<22x32xf32> to vector<16x32xf32>
    %c4 = arith.constant 4 : index
    %c0_23 = arith.constant 0 : index
    %65 = vector.load %arg6[%c4, %c0_23] : memref<7x32xf32, #tpu.memory_space<vmem>>, vector<1x32xf32>
    %66 = vector.broadcast %65 : vector<1x32xf32> to vector<16x32xf32>
    %67 = arith.mulf %64, %66 : vector<16x32xf32>
    %68 = arith.addf %63, %67 : vector<16x32xf32>
    %69 = vector.extract_strided_slice %42 {offsets = [5, 0], sizes = [16, 32], strides = [1, 1]} : vector<22x32xf32> to vector<16x32xf32>
    %c5 = arith.constant 5 : index
    %c0_24 = arith.constant 0 : index
    %70 = vector.load %arg6[%c5, %c0_24] : memref<7x32xf32, #tpu.memory_space<vmem>>, vector<1x32xf32>
    %71 = vector.broadcast %70 : vector<1x32xf32> to vector<16x32xf32>
    %72 = arith.mulf %69, %71 : vector<16x32xf32>
    %73 = arith.addf %68, %72 : vector<16x32xf32>
    %74 = vector.extract_strided_slice %42 {offsets = [6, 0], sizes = [16, 32], strides = [1, 1]} : vector<22x32xf32> to vector<16x32xf32>
    %c6 = arith.constant 6 : index
    %c0_25 = arith.constant 0 : index
    %75 = vector.load %arg6[%c6, %c0_25] : memref<7x32xf32, #tpu.memory_space<vmem>>, vector<1x32xf32>
    %76 = vector.broadcast %75 : vector<1x32xf32> to vector<16x32xf32>
    %77 = arith.mulf %74, %76 : vector<16x32xf32>
    %78 = arith.addf %73, %77 : vector<16x32xf32>
    %c0_26 = arith.constant 0 : index
    %c0_27 = arith.constant 0 : index
    %79 = vector.load %arg7[%c0_26, %c0_27] : memref<1x32xf32, #tpu.memory_space<vmem>>, vector<1x32xf32>
    %80 = vector.broadcast %79 : vector<1x32xf32> to vector<16x32xf32>
    %81 = arith.mulf %78, %80 : vector<16x32xf32>
    %c0_28 = arith.constant 0 : index
    %c0_29 = arith.constant 0 : index
    %82 = vector.load %arg8[%c0_28, %c0_29] : memref<1x32xf32, #tpu.memory_space<vmem>>, vector<1x32xf32>
    %83 = vector.broadcast %82 : vector<1x32xf32> to vector<16x32xf32>
    %84 = arith.addf %81, %83 : vector<16x32xf32>
    %85 = arith.negf %84 : vector<16x32xf32>
    %86 = math.exp %85 : vector<16x32xf32>
    %cst_30 = arith.constant 1.000000e+00 : f32
    %87 = vector.broadcast %cst_30 : f32 to vector<16x32xf32>
    %88 = arith.addf %87, %86 : vector<16x32xf32>
    %89 = arith.divf %87, %88 : vector<16x32xf32>
    %90 = arith.mulf %84, %89 : vector<16x32xf32>
    %91 = arith.truncf %90 : vector<16x32xf32> to vector<16x32xbf16>
    %c0_31 = arith.constant 0 : index
    %c0_32 = arith.constant 0 : index
    %92 = vector.load %arg9[%c0_31, %c0_32] : memref<32x32xbf16, #tpu.memory_space<vmem>>, vector<32x32xbf16>
    %cst_33 = arith.constant dense<0.000000e+00> : vector<16x32xf32>
    %93 = tpu.matmul %91, %92, %cst_33 {dimension_numbers = #tpu.dot_dimension_numbers<[1], [0], [0], [1], [0, 0, 1, 1], [], []>} : vector<16x32xbf16>, vector<32x32xbf16>, vector<16x32xf32> -> vector<16x32xf32>
    %c0_34 = arith.constant 0 : index
    %c0_35 = arith.constant 0 : index
    %94 = vector.load %arg10[%c0_34, %c0_35] : memref<1x32xf32, #tpu.memory_space<vmem>>, vector<1x32xf32>
    %95 = vector.broadcast %94 : vector<1x32xf32> to vector<16x32xf32>
    %96 = arith.addf %93, %95 : vector<16x32xf32>
    %97 = arith.addf %2, %96 : vector<16x32xf32>
    %98 = arith.truncf %97 : vector<16x32xf32> to vector<16x32xbf16>
    %c0_36 = arith.constant 0 : index
    %c0_37 = arith.constant 0 : index
    %c0_38 = arith.constant 0 : index
    %99 = vector.load %arg11[%c0_36, %c0_37, %c0_38] : memref<1x16x32xbf16, #tpu.memory_space<vmem>>, vector<1x16x32xbf16>
    %100 = vector.shape_cast %99 : vector<1x16x32xbf16> to vector<16x32xbf16>
    %101 = vector.shape_cast %98 : vector<16x32xbf16> to vector<1x16x32xbf16>
    tpu.vector_store %arg11[%c0_36, %c0_37, %c0_38], %101 {strides = array<i32>} : memref<1x16x32xbf16, #tpu.memory_space<vmem>>, vector<1x16x32xbf16>,
    return
  }
  func.func @transform_0(%arg0: i32) -> (i32, i32, i32) {
    %c0_i32 = arith.constant 0 : i32
    %c0_i32_0 = arith.constant 0 : i32
    %c0_i32_1 = arith.constant 0 : i32
    return %arg0, %c0_i32, %c0_i32_0 : i32, i32, i32
  }
  func.func @transform_1(%arg0: i32) -> (i32, i32) {
    %c0_i32 = arith.constant 0 : i32
    %c0_i32_0 = arith.constant 0 : i32
    %c0_i32_1 = arith.constant 0 : i32
    return %c0_i32, %c0_i32_0 : i32, i32
  }
  func.func @transform_2(%arg0: i32) -> (i32, i32) {
    %c0_i32 = arith.constant 0 : i32
    %c0_i32_0 = arith.constant 0 : i32
    %c0_i32_1 = arith.constant 0 : i32
    return %c0_i32, %c0_i32_0 : i32, i32
  }
  func.func @transform_3(%arg0: i32) -> (i32, i32) {
    %c0_i32 = arith.constant 0 : i32
    %c0_i32_0 = arith.constant 0 : i32
    %c0_i32_1 = arith.constant 0 : i32
    return %c0_i32, %c0_i32_0 : i32, i32
  }
  func.func @transform_4(%arg0: i32) -> (i32, i32) {
    %c0_i32 = arith.constant 0 : i32
    %c0_i32_0 = arith.constant 0 : i32
    %c0_i32_1 = arith.constant 0 : i32
    return %c0_i32, %c0_i32_0 : i32, i32
  }
  func.func @transform_5(%arg0: i32) -> (i32, i32) {
    %c0_i32 = arith.constant 0 : i32
    %c0_i32_0 = arith.constant 0 : i32
    %c0_i32_1 = arith.constant 0 : i32
    return %c0_i32, %c0_i32_0 : i32, i32
  }
  func.func @transform_6(%arg0: i32) -> (i32, i32) {
    %c0_i32 = arith.constant 0 : i32
    %c0_i32_0 = arith.constant 0 : i32
    %c0_i32_1 = arith.constant 0 : i32
    return %c0_i32, %c0_i32_0 : i32, i32
  }
  func.func @transform_7(%arg0: i32) -> (i32, i32) {
    %c0_i32 = arith.constant 0 : i32
    %c0_i32_0 = arith.constant 0 : i32
    %c0_i32_1 = arith.constant 0 : i32
    return %c0_i32, %c0_i32_0 : i32, i32
  }
  func.func @transform_8(%arg0: i32) -> (i32, i32) {
    %c0_i32 = arith.constant 0 : i32
    %c0_i32_0 = arith.constant 0 : i32
    %c0_i32_1 = arith.constant 0 : i32
    return %c0_i32, %c0_i32_0 : i32, i32
  }
  func.func @transform_9(%arg0: i32) -> (i32, i32) {
    %c0_i32 = arith.constant 0 : i32
    %c0_i32_0 = arith.constant 0 : i32
    %c0_i32_1 = arith.constant 0 : i32
    return %c0_i32, %c0_i32_0 : i32, i32
  }
  func.func @transform_10(%arg0: i32) -> (i32, i32, i32) {
    %c0_i32 = arith.constant 0 : i32
    %c0_i32_0 = arith.constant 0 : i32
    %c0_i32_1 = arith.constant 0 : i32
    return %arg0, %c0_i32, %c0_i32_0 : i32, i32, i32
  }
}

module attributes {stable_mosaic.version = 11 : i64} {
  func.func @_postnet_kernel(%arg0: i32, %arg1: memref<1x16x32xbf16, #tpu.memory_space<vmem>>, %arg2: memref<5x32x16xbf16, #tpu.memory_space<vmem>>, %arg3: memref<1x16xf32, #tpu.memory_space<vmem>>, %arg4: memref<1x16xf32, #tpu.memory_space<vmem>>, %arg5: memref<1x16x16xbf16, #tpu.memory_space<vmem>>) attributes {dimension_semantics = [#tpu.dimension_semantics<parallel>], iteration_bounds = array<i64: 2>, scalar_prefetch = 0 : i64, scratch_operands = 0 : i64, tpu.core_type = #tpu.core_type<tc>, window_params = [{transform_indices = @transform_0, window_bounds = array<i64: 1, 16, 32>}, {pipeline_mode = #tpu.pipeline_mode<synchronous>, transform_indices = @transform_1, window_bounds = array<i64: 5, 32, 16>}, {pipeline_mode = #tpu.pipeline_mode<synchronous>, transform_indices = @transform_2, window_bounds = array<i64: 1, 16>}, {pipeline_mode = #tpu.pipeline_mode<synchronous>, transform_indices = @transform_3, window_bounds = array<i64: 1, 16>}, {transform_indices = @transform_4, window_bounds = array<i64: 1, 16, 16>}]} {
    %c0 = arith.constant 0 : index
    %c0_0 = arith.constant 0 : index
    %c0_1 = arith.constant 0 : index
    %0 = vector.load %arg1[%c0, %c0_0, %c0_1] : memref<1x16x32xbf16, #tpu.memory_space<vmem>>, vector<1x16x32xbf16>
    %1 = vector.shape_cast %0 : vector<1x16x32xbf16> to vector<16x32xbf16>
    %cst = arith.constant 0.000000e+00 : bf16
    %2 = vector.broadcast %cst : bf16 to vector<2x32xbf16>
    %3 = tpu.concatenate %2, %1, %2 in 0 : vector<2x32xbf16>, vector<16x32xbf16>, vector<2x32xbf16> -> vector<20x32xbf16>
    %cst_2 = arith.constant 0.000000e+00 : f32
    %4 = vector.broadcast %cst_2 : f32 to vector<16x16xf32>
    %5 = vector.extract_strided_slice %3 {offsets = [0, 0], sizes = [16, 32], strides = [1, 1]} : vector<20x32xbf16> to vector<16x32xbf16>
    %c0_3 = arith.constant 0 : index
    %c0_4 = arith.constant 0 : index
    %c0_5 = arith.constant 0 : index
    %6 = vector.load %arg2[%c0_3, %c0_4, %c0_5] : memref<5x32x16xbf16, #tpu.memory_space<vmem>>, vector<1x32x16xbf16>
    %7 = vector.shape_cast %6 : vector<1x32x16xbf16> to vector<32x16xbf16>
    %cst_6 = arith.constant dense<0.000000e+00> : vector<16x16xf32>
    %8 = tpu.matmul %5, %7, %cst_6 {dimension_numbers = #tpu.dot_dimension_numbers<[1], [0], [0], [1], [0, 0, 1, 1], [], []>} : vector<16x32xbf16>, vector<32x16xbf16>, vector<16x16xf32> -> vector<16x16xf32>
    %9 = arith.addf %4, %8 : vector<16x16xf32>
    %10 = vector.extract_strided_slice %3 {offsets = [1, 0], sizes = [16, 32], strides = [1, 1]} : vector<20x32xbf16> to vector<16x32xbf16>
    %c1 = arith.constant 1 : index
    %c0_7 = arith.constant 0 : index
    %c0_8 = arith.constant 0 : index
    %11 = vector.load %arg2[%c1, %c0_7, %c0_8] : memref<5x32x16xbf16, #tpu.memory_space<vmem>>, vector<1x32x16xbf16>
    %12 = vector.shape_cast %11 : vector<1x32x16xbf16> to vector<32x16xbf16>
    %cst_9 = arith.constant dense<0.000000e+00> : vector<16x16xf32>
    %13 = tpu.matmul %10, %12, %cst_9 {dimension_numbers = #tpu.dot_dimension_numbers<[1], [0], [0], [1], [0, 0, 1, 1], [], []>} : vector<16x32xbf16>, vector<32x16xbf16>, vector<16x16xf32> -> vector<16x16xf32>
    %14 = arith.addf %9, %13 : vector<16x16xf32>
    %15 = vector.extract_strided_slice %3 {offsets = [2, 0], sizes = [16, 32], strides = [1, 1]} : vector<20x32xbf16> to vector<16x32xbf16>
    %c2 = arith.constant 2 : index
    %c0_10 = arith.constant 0 : index
    %c0_11 = arith.constant 0 : index
    %16 = vector.load %arg2[%c2, %c0_10, %c0_11] : memref<5x32x16xbf16, #tpu.memory_space<vmem>>, vector<1x32x16xbf16>
    %17 = vector.shape_cast %16 : vector<1x32x16xbf16> to vector<32x16xbf16>
    %cst_12 = arith.constant dense<0.000000e+00> : vector<16x16xf32>
    %18 = tpu.matmul %15, %17, %cst_12 {dimension_numbers = #tpu.dot_dimension_numbers<[1], [0], [0], [1], [0, 0, 1, 1], [], []>} : vector<16x32xbf16>, vector<32x16xbf16>, vector<16x16xf32> -> vector<16x16xf32>
    %19 = arith.addf %14, %18 : vector<16x16xf32>
    %20 = vector.extract_strided_slice %3 {offsets = [3, 0], sizes = [16, 32], strides = [1, 1]} : vector<20x32xbf16> to vector<16x32xbf16>
    %c3 = arith.constant 3 : index
    %c0_13 = arith.constant 0 : index
    %c0_14 = arith.constant 0 : index
    %21 = vector.load %arg2[%c3, %c0_13, %c0_14] : memref<5x32x16xbf16, #tpu.memory_space<vmem>>, vector<1x32x16xbf16>
    %22 = vector.shape_cast %21 : vector<1x32x16xbf16> to vector<32x16xbf16>
    %cst_15 = arith.constant dense<0.000000e+00> : vector<16x16xf32>
    %23 = tpu.matmul %20, %22, %cst_15 {dimension_numbers = #tpu.dot_dimension_numbers<[1], [0], [0], [1], [0, 0, 1, 1], [], []>} : vector<16x32xbf16>, vector<32x16xbf16>, vector<16x16xf32> -> vector<16x16xf32>
    %24 = arith.addf %19, %23 : vector<16x16xf32>
    %25 = vector.extract_strided_slice %3 {offsets = [4, 0], sizes = [16, 32], strides = [1, 1]} : vector<20x32xbf16> to vector<16x32xbf16>
    %c4 = arith.constant 4 : index
    %c0_16 = arith.constant 0 : index
    %c0_17 = arith.constant 0 : index
    %26 = vector.load %arg2[%c4, %c0_16, %c0_17] : memref<5x32x16xbf16, #tpu.memory_space<vmem>>, vector<1x32x16xbf16>
    %27 = vector.shape_cast %26 : vector<1x32x16xbf16> to vector<32x16xbf16>
    %cst_18 = arith.constant dense<0.000000e+00> : vector<16x16xf32>
    %28 = tpu.matmul %25, %27, %cst_18 {dimension_numbers = #tpu.dot_dimension_numbers<[1], [0], [0], [1], [0, 0, 1, 1], [], []>} : vector<16x32xbf16>, vector<32x16xbf16>, vector<16x16xf32> -> vector<16x16xf32>
    %29 = arith.addf %24, %28 : vector<16x16xf32>
    %c0_19 = arith.constant 0 : index
    %c0_20 = arith.constant 0 : index
    %30 = vector.load %arg3[%c0_19, %c0_20] : memref<1x16xf32, #tpu.memory_space<vmem>>, vector<1x16xf32>
    %31 = vector.broadcast %30 : vector<1x16xf32> to vector<16x16xf32>
    %32 = arith.mulf %29, %31 : vector<16x16xf32>
    %c0_21 = arith.constant 0 : index
    %c0_22 = arith.constant 0 : index
    %33 = vector.load %arg4[%c0_21, %c0_22] : memref<1x16xf32, #tpu.memory_space<vmem>>, vector<1x16xf32>
    %34 = vector.broadcast %33 : vector<1x16xf32> to vector<16x16xf32>
    %35 = arith.addf %32, %34 : vector<16x16xf32>
    %36 = math.tanh %35 : vector<16x16xf32>
    %37 = arith.truncf %36 : vector<16x16xf32> to vector<16x16xbf16>
    %c0_23 = arith.constant 0 : index
    %c0_24 = arith.constant 0 : index
    %c0_25 = arith.constant 0 : index
    %38 = vector.load %arg5[%c0_23, %c0_24, %c0_25] : memref<1x16x16xbf16, #tpu.memory_space<vmem>>, vector<1x16x16xbf16>
    %39 = vector.shape_cast %38 : vector<1x16x16xbf16> to vector<16x16xbf16>
    %40 = vector.shape_cast %37 : vector<16x16xbf16> to vector<1x16x16xbf16>
    tpu.vector_store %arg5[%c0_23, %c0_24, %c0_25], %40 {strides = array<i32>} : memref<1x16x16xbf16, #tpu.memory_space<vmem>>, vector<1x16x16xbf16>,
    return
  }
  func.func @transform_0(%arg0: i32) -> (i32, i32, i32) {
    %c0_i32 = arith.constant 0 : i32
    %c0_i32_0 = arith.constant 0 : i32
    %c0_i32_1 = arith.constant 0 : i32
    return %arg0, %c0_i32, %c0_i32_0 : i32, i32, i32
  }
  func.func @transform_1(%arg0: i32) -> (i32, i32, i32) {
    %c0_i32 = arith.constant 0 : i32
    %c0_i32_0 = arith.constant 0 : i32
    %c0_i32_1 = arith.constant 0 : i32
    %c0_i32_2 = arith.constant 0 : i32
    return %c0_i32, %c0_i32_0, %c0_i32_1 : i32, i32, i32
  }
  func.func @transform_2(%arg0: i32) -> (i32, i32) {
    %c0_i32 = arith.constant 0 : i32
    %c0_i32_0 = arith.constant 0 : i32
    %c0_i32_1 = arith.constant 0 : i32
    return %c0_i32, %c0_i32_0 : i32, i32
  }
  func.func @transform_3(%arg0: i32) -> (i32, i32) {
    %c0_i32 = arith.constant 0 : i32
    %c0_i32_0 = arith.constant 0 : i32
    %c0_i32_1 = arith.constant 0 : i32
    return %c0_i32, %c0_i32_0 : i32, i32
  }
  func.func @transform_4(%arg0: i32) -> (i32, i32, i32) {
    %c0_i32 = arith.constant 0 : i32
    %c0_i32_0 = arith.constant 0 : i32
    %c0_i32_1 = arith.constant 0 : i32
    return %arg0, %c0_i32, %c0_i32_0 : i32, i32, i32
  }
}

module attributes {stable_mosaic.version = 11 : i64} {
  func.func @_postnet_kernel(%arg0: i32, %arg1: memref<1x16x16xbf16, #tpu.memory_space<vmem>>, %arg2: memref<5x16x32xbf16, #tpu.memory_space<vmem>>, %arg3: memref<1x32xf32, #tpu.memory_space<vmem>>, %arg4: memref<1x32xf32, #tpu.memory_space<vmem>>, %arg5: memref<1x16x32xbf16, #tpu.memory_space<vmem>>, %arg6: memref<1x16x32xf32, #tpu.memory_space<vmem>>) attributes {dimension_semantics = [#tpu.dimension_semantics<parallel>], iteration_bounds = array<i64: 2>, scalar_prefetch = 0 : i64, scratch_operands = 0 : i64, tpu.core_type = #tpu.core_type<tc>, window_params = [{transform_indices = @transform_0, window_bounds = array<i64: 1, 16, 16>}, {pipeline_mode = #tpu.pipeline_mode<synchronous>, transform_indices = @transform_1, window_bounds = array<i64: 5, 16, 32>}, {pipeline_mode = #tpu.pipeline_mode<synchronous>, transform_indices = @transform_2, window_bounds = array<i64: 1, 32>}, {pipeline_mode = #tpu.pipeline_mode<synchronous>, transform_indices = @transform_3, window_bounds = array<i64: 1, 32>}, {transform_indices = @transform_4, window_bounds = array<i64: 1, 16, 32>}, {transform_indices = @transform_5, window_bounds = array<i64: 1, 16, 32>}]} {
    %c0 = arith.constant 0 : index
    %c0_0 = arith.constant 0 : index
    %c0_1 = arith.constant 0 : index
    %0 = vector.load %arg1[%c0, %c0_0, %c0_1] : memref<1x16x16xbf16, #tpu.memory_space<vmem>>, vector<1x16x16xbf16>
    %1 = vector.shape_cast %0 : vector<1x16x16xbf16> to vector<16x16xbf16>
    %cst = arith.constant 0.000000e+00 : bf16
    %2 = vector.broadcast %cst : bf16 to vector<2x16xbf16>
    %3 = tpu.concatenate %2, %1, %2 in 0 : vector<2x16xbf16>, vector<16x16xbf16>, vector<2x16xbf16> -> vector<20x16xbf16>
    %cst_2 = arith.constant 0.000000e+00 : f32
    %4 = vector.broadcast %cst_2 : f32 to vector<16x32xf32>
    %5 = vector.extract_strided_slice %3 {offsets = [0, 0], sizes = [16, 16], strides = [1, 1]} : vector<20x16xbf16> to vector<16x16xbf16>
    %c0_3 = arith.constant 0 : index
    %c0_4 = arith.constant 0 : index
    %c0_5 = arith.constant 0 : index
    %6 = vector.load %arg2[%c0_3, %c0_4, %c0_5] : memref<5x16x32xbf16, #tpu.memory_space<vmem>>, vector<1x16x32xbf16>
    %7 = vector.shape_cast %6 : vector<1x16x32xbf16> to vector<16x32xbf16>
    %cst_6 = arith.constant dense<0.000000e+00> : vector<16x32xf32>
    %8 = tpu.matmul %5, %7, %cst_6 {dimension_numbers = #tpu.dot_dimension_numbers<[1], [0], [0], [1], [0, 0, 1, 1], [], []>} : vector<16x16xbf16>, vector<16x32xbf16>, vector<16x32xf32> -> vector<16x32xf32>
    %9 = arith.addf %4, %8 : vector<16x32xf32>
    %10 = vector.extract_strided_slice %3 {offsets = [1, 0], sizes = [16, 16], strides = [1, 1]} : vector<20x16xbf16> to vector<16x16xbf16>
    %c1 = arith.constant 1 : index
    %c0_7 = arith.constant 0 : index
    %c0_8 = arith.constant 0 : index
    %11 = vector.load %arg2[%c1, %c0_7, %c0_8] : memref<5x16x32xbf16, #tpu.memory_space<vmem>>, vector<1x16x32xbf16>
    %12 = vector.shape_cast %11 : vector<1x16x32xbf16> to vector<16x32xbf16>
    %cst_9 = arith.constant dense<0.000000e+00> : vector<16x32xf32>
    %13 = tpu.matmul %10, %12, %cst_9 {dimension_numbers = #tpu.dot_dimension_numbers<[1], [0], [0], [1], [0, 0, 1, 1], [], []>} : vector<16x16xbf16>, vector<16x32xbf16>, vector<16x32xf32> -> vector<16x32xf32>
    %14 = arith.addf %9, %13 : vector<16x32xf32>
    %15 = vector.extract_strided_slice %3 {offsets = [2, 0], sizes = [16, 16], strides = [1, 1]} : vector<20x16xbf16> to vector<16x16xbf16>
    %c2 = arith.constant 2 : index
    %c0_10 = arith.constant 0 : index
    %c0_11 = arith.constant 0 : index
    %16 = vector.load %arg2[%c2, %c0_10, %c0_11] : memref<5x16x32xbf16, #tpu.memory_space<vmem>>, vector<1x16x32xbf16>
    %17 = vector.shape_cast %16 : vector<1x16x32xbf16> to vector<16x32xbf16>
    %cst_12 = arith.constant dense<0.000000e+00> : vector<16x32xf32>
    %18 = tpu.matmul %15, %17, %cst_12 {dimension_numbers = #tpu.dot_dimension_numbers<[1], [0], [0], [1], [0, 0, 1, 1], [], []>} : vector<16x16xbf16>, vector<16x32xbf16>, vector<16x32xf32> -> vector<16x32xf32>
    %19 = arith.addf %14, %18 : vector<16x32xf32>
    %20 = vector.extract_strided_slice %3 {offsets = [3, 0], sizes = [16, 16], strides = [1, 1]} : vector<20x16xbf16> to vector<16x16xbf16>
    %c3 = arith.constant 3 : index
    %c0_13 = arith.constant 0 : index
    %c0_14 = arith.constant 0 : index
    %21 = vector.load %arg2[%c3, %c0_13, %c0_14] : memref<5x16x32xbf16, #tpu.memory_space<vmem>>, vector<1x16x32xbf16>
    %22 = vector.shape_cast %21 : vector<1x16x32xbf16> to vector<16x32xbf16>
    %cst_15 = arith.constant dense<0.000000e+00> : vector<16x32xf32>
    %23 = tpu.matmul %20, %22, %cst_15 {dimension_numbers = #tpu.dot_dimension_numbers<[1], [0], [0], [1], [0, 0, 1, 1], [], []>} : vector<16x16xbf16>, vector<16x32xbf16>, vector<16x32xf32> -> vector<16x32xf32>
    %24 = arith.addf %19, %23 : vector<16x32xf32>
    %25 = vector.extract_strided_slice %3 {offsets = [4, 0], sizes = [16, 16], strides = [1, 1]} : vector<20x16xbf16> to vector<16x16xbf16>
    %c4 = arith.constant 4 : index
    %c0_16 = arith.constant 0 : index
    %c0_17 = arith.constant 0 : index
    %26 = vector.load %arg2[%c4, %c0_16, %c0_17] : memref<5x16x32xbf16, #tpu.memory_space<vmem>>, vector<1x16x32xbf16>
    %27 = vector.shape_cast %26 : vector<1x16x32xbf16> to vector<16x32xbf16>
    %cst_18 = arith.constant dense<0.000000e+00> : vector<16x32xf32>
    %28 = tpu.matmul %25, %27, %cst_18 {dimension_numbers = #tpu.dot_dimension_numbers<[1], [0], [0], [1], [0, 0, 1, 1], [], []>} : vector<16x16xbf16>, vector<16x32xbf16>, vector<16x32xf32> -> vector<16x32xf32>
    %29 = arith.addf %24, %28 : vector<16x32xf32>
    %c0_19 = arith.constant 0 : index
    %c0_20 = arith.constant 0 : index
    %30 = vector.load %arg3[%c0_19, %c0_20] : memref<1x32xf32, #tpu.memory_space<vmem>>, vector<1x32xf32>
    %31 = vector.broadcast %30 : vector<1x32xf32> to vector<16x32xf32>
    %32 = arith.mulf %29, %31 : vector<16x32xf32>
    %c0_21 = arith.constant 0 : index
    %c0_22 = arith.constant 0 : index
    %33 = vector.load %arg4[%c0_21, %c0_22] : memref<1x32xf32, #tpu.memory_space<vmem>>, vector<1x32xf32>
    %34 = vector.broadcast %33 : vector<1x32xf32> to vector<16x32xf32>
    %35 = arith.addf %32, %34 : vector<16x32xf32>
    %c0_23 = arith.constant 0 : index
    %c0_24 = arith.constant 0 : index
    %c0_25 = arith.constant 0 : index
    %36 = vector.load %arg5[%c0_23, %c0_24, %c0_25] : memref<1x16x32xbf16, #tpu.memory_space<vmem>>, vector<1x16x32xbf16>
    %37 = vector.shape_cast %36 : vector<1x16x32xbf16> to vector<16x32xbf16>
    %38 = arith.extf %37 : vector<16x32xbf16> to vector<16x32xf32>
    %39 = arith.addf %35, %38 : vector<16x32xf32>
    %c0_26 = arith.constant 0 : index
    %c0_27 = arith.constant 0 : index
    %c0_28 = arith.constant 0 : index
    %40 = vector.load %arg6[%c0_26, %c0_27, %c0_28] : memref<1x16x32xf32, #tpu.memory_space<vmem>>, vector<1x16x32xf32>
    %41 = vector.shape_cast %40 : vector<1x16x32xf32> to vector<16x32xf32>
    %42 = vector.shape_cast %39 : vector<16x32xf32> to vector<1x16x32xf32>
    tpu.vector_store %arg6[%c0_26, %c0_27, %c0_28], %42 {strides = array<i32>} : memref<1x16x32xf32, #tpu.memory_space<vmem>>, vector<1x16x32xf32>,
    return
  }
  func.func @transform_0(%arg0: i32) -> (i32, i32, i32) {
    %c0_i32 = arith.constant 0 : i32
    %c0_i32_0 = arith.constant 0 : i32
    %c0_i32_1 = arith.constant 0 : i32
    return %arg0, %c0_i32, %c0_i32_0 : i32, i32, i32
  }
  func.func @transform_1(%arg0: i32) -> (i32, i32, i32) {
    %c0_i32 = arith.constant 0 : i32
    %c0_i32_0 = arith.constant 0 : i32
    %c0_i32_1 = arith.constant 0 : i32
    %c0_i32_2 = arith.constant 0 : i32
    return %c0_i32, %c0_i32_0, %c0_i32_1 : i32, i32, i32
  }
  func.func @transform_2(%arg0: i32) -> (i32, i32) {
    %c0_i32 = arith.constant 0 : i32
    %c0_i32_0 = arith.constant 0 : i32
    %c0_i32_1 = arith.constant 0 : i32
    return %c0_i32, %c0_i32_0 : i32, i32
  }
  func.func @transform_3(%arg0: i32) -> (i32, i32) {
    %c0_i32 = arith.constant 0 : i32
    %c0_i32_0 = arith.constant 0 : i32
    %c0_i32_1 = arith.constant 0 : i32
    return %c0_i32, %c0_i32_0 : i32, i32
  }
  func.func @transform_4(%arg0: i32) -> (i32, i32, i32) {
    %c0_i32 = arith.constant 0 : i32
    %c0_i32_0 = arith.constant 0 : i32
    %c0_i32_1 = arith.constant 0 : i32
    return %arg0, %c0_i32, %c0_i32_0 : i32, i32, i32
  }
  func.func @transform_5(%arg0: i32) -> (i32, i32, i32) {
    %c0_i32 = arith.constant 0 : i32
    %c0_i32_0 = arith.constant 0 : i32
    %c0_i32_1 = arith.constant 0 : i32
    return %arg0, %c0_i32, %c0_i32_0 : i32, i32, i32
  }
}

</mosaic_0001>

<llo_original>
// kernel: tpu_custom_call.1
$region0: #{tpu_custom_call.1}
  #allocation0 [shape = 'u32[]', space=smem, size = 0x4, offset = 0x4, fixed_abs, tag = 'smem constant byte address 0x4 - core index']
  #allocation1 [shape = 'u32[144,128]{1,0:T(1,128)}', space=vmem, size = 0x12000, scoped, tag = 'internal scratch']
  %s0 = inlined_call_operand.hbm [shape: f32[8,128], index: 0, kind: input, shape index: {}]
  %s1 = inlined_call_operand.hbm [shape: f32[8,128], index: 1, kind: output, shape index: {}]
  %s2 = sld [smem:[#allocation0]]
  $region18: #{tpu_custom_call.1} parent=0
    _
  %s4 = ssub.s32 1, %s2
  %s5 = scalar_select 0, %s4, %s2
  $region1: #{tpu_custom_call.1} parent=0
    #allocation2 [shape = 'u8[4096]{0}', space=vmem, size = 0x1000, scoped, tag = 'input window, operand 0, single buffered']
    #allocation3 [shape = 's32[1]{0}', space=sflag, size = 0x4, scoped, tag = 'scoped memory for tpu_custom_call.1']
    #allocation4 [shape = 's32[1]{0}', space=sflag, size = 0x4, scoped, tag = 'scoped memory for tpu_custom_call.1']
    #allocation5 [shape = 'u8[4096]{0}', space=vmem, size = 0x1000, scoped, tag = 'output window, operand 0, single buffered']
    %6 = vsyncpa [#allocation3], 0
    %7 = vsyncpa [#allocation4], 0
    // Predicated region
    $region2: #{tpu_custom_call.1} parent=1 // pred_check
      _
    $region3: #{tpu_custom_call.1} parent=1 // pred_check_branch
      %9 = sbr.rel (0) target = $region5
    $region4: #{tpu_custom_call.1} parent=1 // pred_region
      %s11 = ssub.s32 128, 128
      %12 = vsyncadd [#allocation3], %s11
      %s14 = sshll.u32 [#allocation2], 4
      %s15 = int_to_ptr.vmem [resolvable:$true] %s14
      %17 = dma.hbm_to_vmem [thread:$0]  %s0, 128, %s15, [#allocation3]
    $region5: #{tpu_custom_call.1} parent=1 // pred_fallthru
      _
    // Predicated region
    $region6: #{tpu_custom_call.1} parent=1 // pred_check
      _
    $region7: #{tpu_custom_call.1} parent=1 // pred_check_branch
      %19 = sbr.rel (0) target = $region9
    $region8: #{tpu_custom_call.1} parent=1 // pred_region
      %20 = dma.done [#allocation3], 128
    $region9: #{tpu_custom_call.1} parent=1 // pred_fallthru
      _
    %v21 = vld [vmem:[#allocation2] sm:$0xff]
    %23 = vrot.lane.b32.xlu0 %v21, 256
    %v24 = vpop.permute.xlu0 %23
    %25 = vst [vmem:[#allocation5] sm:$0xff] %v24
    // Predicated region
    $region10: #{tpu_custom_call.1} parent=1 // pred_check
      _
    $region11: #{tpu_custom_call.1} parent=1 // pred_check_branch
      %27 = sbr.rel (0) target = $region13
    $region12: #{tpu_custom_call.1} parent=1 // pred_region
      %s29 = ssub.s32 128, 128
      %30 = vsyncadd [#allocation4], %s29
      %s32 = sshll.u32 [#allocation5], 4
      %s33 = int_to_ptr.vmem [resolvable:$true] %s32
      %35 = dma.vmem_to_hbm [thread:$0]  %s33, 128, %s1, [#allocation4]
    $region13: #{tpu_custom_call.1} parent=1 // pred_fallthru
      _
    // Predicated region
    $region14: #{tpu_custom_call.1} parent=1 // pred_check
      _
    $region15: #{tpu_custom_call.1} parent=1 // pred_check_branch
      %37 = sbr.rel (0) target = $region17
    $region16: #{tpu_custom_call.1} parent=1 // pred_region
      %38 = dma.done [#allocation4], 128
    $region17: #{tpu_custom_call.1} parent=1 // pred_fallthru
      _
    %39 = vsyncpa [#allocation3], 1
    %40 = vsyncpa [#allocation4], 1

// kernel: tpu_custom_call.1
$region0: #{tpu_custom_call.1}
  #allocation0 [shape = 'u32[]', space=smem, size = 0x4, offset = 0x4, fixed_abs, tag = 'smem constant byte address 0x4 - core index']
  #allocation1 [shape = 'u32[144,128]{1,0:T(1,128)}', space=vmem, size = 0x12000, scoped, tag = 'internal scratch']
  %s0 = inlined_call_operand.hbm [shape: f32[8,128], index: 0, kind: input, shape index: {}]
  %s1 = inlined_call_operand.hbm [shape: f32[8,128], index: 1, kind: output, shape index: {}]
  %s2 = sld [smem:[#allocation0]]
  $region18: #{tpu_custom_call.1} parent=0
    _
  %s4 = ssub.s32 1, %s2
  %s5 = scalar_select 0, %s4, %s2
  $region1: #{tpu_custom_call.1} parent=0
    #allocation2 [shape = 'u8[4096]{0}', space=vmem, size = 0x1000, scoped, tag = 'input window, operand 0, single buffered']
    #allocation3 [shape = 's32[1]{0}', space=sflag, size = 0x4, scoped, tag = 'scoped memory for tpu_custom_call.1']
    #allocation4 [shape = 's32[1]{0}', space=sflag, size = 0x4, scoped, tag = 'scoped memory for tpu_custom_call.1']
    #allocation5 [shape = 'u8[4096]{0}', space=vmem, size = 0x1000, scoped, tag = 'output window, operand 0, single buffered']
    %6 = vsyncpa [#allocation3], 0
    %7 = vsyncpa [#allocation4], 0
    // Predicated region
    $region2: #{tpu_custom_call.1} parent=1 // pred_check
      _
    $region3: #{tpu_custom_call.1} parent=1 // pred_check_branch
      %9 = sbr.rel (0) target = $region5
    $region4: #{tpu_custom_call.1} parent=1 // pred_region
      %s11 = ssub.s32 128, 128
      %12 = vsyncadd [#allocation3], %s11
      %s14 = sshll.u32 [#allocation2], 4
      %s15 = int_to_ptr.vmem [resolvable:$true] %s14
      %17 = dma.hbm_to_vmem [thread:$0]  %s0, 128, %s15, [#allocation3]
    $region5: #{tpu_custom_call.1} parent=1 // pred_fallthru
      _
    // Predicated region
    $region6: #{tpu_custom_call.1} parent=1 // pred_check
      _
    $region7: #{tpu_custom_call.1} parent=1 // pred_check_branch
      %19 = sbr.rel (0) target = $region9
    $region8: #{tpu_custom_call.1} parent=1 // pred_region
      %20 = dma.done [#allocation3], 128
    $region9: #{tpu_custom_call.1} parent=1 // pred_fallthru
      _
    %v21 = vld [vmem:[#allocation2] sm:$0xff]
    %v22 = vrot.slane %v21, 5
    %23 = vst [vmem:[#allocation5] sm:$0xff] %v22
    // Predicated region
    $region10: #{tpu_custom_call.1} parent=1 // pred_check
      _
    $region11: #{tpu_custom_call.1} parent=1 // pred_check_branch
      %25 = sbr.rel (0) target = $region13
    $region12: #{tpu_custom_call.1} parent=1 // pred_region
      %s27 = ssub.s32 128, 128
      %28 = vsyncadd [#allocation4], %s27
      %s30 = sshll.u32 [#allocation5], 4
      %s31 = int_to_ptr.vmem [resolvable:$true] %s30
      %33 = dma.vmem_to_hbm [thread:$0]  %s31, 128, %s1, [#allocation4]
    $region13: #{tpu_custom_call.1} parent=1 // pred_fallthru
      _
    // Predicated region
    $region14: #{tpu_custom_call.1} parent=1 // pred_check
      _
    $region15: #{tpu_custom_call.1} parent=1 // pred_check_branch
      %35 = sbr.rel (0) target = $region17
    $region16: #{tpu_custom_call.1} parent=1 // pred_region
      %36 = dma.done [#allocation4], 128
    $region17: #{tpu_custom_call.1} parent=1 // pred_fallthru
      _
    %37 = vsyncpa [#allocation3], 1
    %38 = vsyncpa [#allocation4], 1

// kernel: _lambda_.10
$region0: #{_lambda_.10}
  #allocation0 [shape = 'u32[]', space=smem, size = 0x4, offset = 0x4, fixed_abs, tag = 'smem constant byte address 0x4 - core index']
  #allocation1 [shape = 'u32[144,128]{1,0:T(1,128)}', space=vmem, size = 0x12000, scoped, tag = 'internal scratch']
  %s0 = inlined_call_operand.vmem [shape: bf16[128,32], index: 0, kind: input, shape index: {}]
  %s1 = inlined_call_operand.vmem [shape: bf16[2,32,32], index: 1, kind: input, shape index: {}]
  %s2 = inlined_call_operand.vmem [shape: bf16[2,128,32], index: 2, kind: output, shape index: {}]
  %s3 = sld [smem:[#allocation0]]
  $region41: #{_lambda_.10} parent=0
    _
  %s5 = ssub.s32 1, %s3
  %s6 = scalar_select 0, %s5, %s3
  loop: start=0, step=1, limit=4
  $region2: #{_lambda_.10} parent=0 // loop_pre_header
    _
  $region3: #{_lambda_.10} parent=0 // loop_header
    %s8 = sphi 0, %s12
    %p9 = scmp.ge.s32.totalorder %s8, 4
    %s16 = sphi 0, %s16
    %s18 = sphi 0, %s16
    %s19 = sphi 0, %s18
    %s33 = sphi 0, %s19
    %s39 = sphi 0, %s41
    %s42 = sphi 0, %s39
    %s43 = sphi 0, %s42
    %s59 = sphi 0, %s43
    %s65 = sphi 0, %s67
    %s68 = sphi 0, %s65
    %s69 = sphi 0, %s68
    %s85 = sphi 0, %s69
  $region4: #{_lambda_.10} parent=0 // loop_header_branch
    %11 = sbr.rel (%p9) target = $region8
  $region5: #{_lambda_.10} parent=0 // loop_body
    %s13 = ssub.s32 %s8, 1
    %s14 = ssub.s32 %s8, 2
    %s15 = sadd.s32 %s8, 1
    %s17 = sadd.s32 %s16, 1
    %p20 = scmp.eq.s32.totalorder %s8, 1
    %p21 = scmp.ne.s32.totalorder %s16, %s18
    %p22 = scmp.eq.s32.totalorder %s8, 0
    %p23 = por %p21, %p22
    %p24 = scmp.ne.s32.totalorder %s16, %s18
    %p25 = scmp.eq.s32.totalorder %s13, 1
    %p26 = por %p24, %p25
    %p27 = scmp.ne.s32.totalorder %s18, %s19
    %p28 = scmp.eq.s32.totalorder %s13, 0
    %p29 = por %p27, %p28
    %p30 = scmp.ne.s32.totalorder %s18, %s19
    %p31 = scmp.eq.s32.totalorder %s14, 1
    %p32 = por %p30, %p31
    %p34 = scmp.ne.s32.totalorder %s19, %s33
    %p35 = scmp.eq.s32.totalorder %s14, 0
    %p36 = por %p34, %p35
    %s37 = ssub.s32 %s8, %s15
    %p38 = scmp.eq.s32.totalorder %s37, 0
    %s40 = sadd.s32 %s39, 1
    %s41 = scalar_select %p38, %s39, %s40
    %p44 = pneg %p38
    %p45 = scmp.eq.s32.totalorder %s8, 1
    %p46 = por %p44, %p45
    %p47 = scmp.ne.s32.totalorder %s39, %s42
    %p48 = scmp.eq.s32.totalorder %s8, 0
    %p49 = por %p47, %p48
    %p50 = scmp.ne.s32.totalorder %s39, %s42
    %p51 = scmp.eq.s32.totalorder %s13, 1
    %p52 = por %p50, %p51
    %p53 = scmp.ne.s32.totalorder %s42, %s43
    %p54 = scmp.eq.s32.totalorder %s13, 0
    %p55 = por %p53, %p54
    %p56 = scmp.ne.s32.totalorder %s42, %s43
    %p57 = scmp.eq.s32.totalorder %s14, 1
    %p58 = por %p56, %p57
    %p60 = scmp.ne.s32.totalorder %s43, %s59
    %p61 = scmp.eq.s32.totalorder %s14, 0
    %p62 = por %p60, %p61
    %s63 = ssub.s32 %s8, %s15
    %p64 = scmp.eq.s32.totalorder %s63, 0
    %s66 = sadd.s32 %s65, 1
    %s67 = scalar_select %p64, %s65, %s66
    %p70 = pneg %p64
    %p71 = scmp.eq.s32.totalorder %s8, 1
    %p72 = por %p70, %p71
    %p73 = scmp.ne.s32.totalorder %s65, %s68
    %p74 = scmp.eq.s32.totalorder %s8, 0
    %p75 = por %p73, %p74
    %p76 = scmp.ne.s32.totalorder %s65, %s68
    %p77 = scmp.eq.s32.totalorder %s13, 1
    %p78 = por %p76, %p77
    %p79 = scmp.ne.s32.totalorder %s68, %s69
    %p80 = scmp.eq.s32.totalorder %s13, 0
    %p81 = por %p79, %p80
    %p82 = scmp.ne.s32.totalorder %s68, %s69
    %p83 = scmp.eq.s32.totalorder %s14, 1
    %p84 = por %p82, %p83
    %p86 = scmp.ne.s32.totalorder %s69, %s85
    %p87 = scmp.eq.s32.totalorder %s14, 0
    %p88 = por %p86, %p87
    %p89 = scmp.le.s32.totalorder 1, %s8
    %p90 = scmp.lt.s32.totalorder %s8, 3
    %p91 = pnand %p89, %p90
    %p92 = pneg %p91
    // Predicated region
    $region9: #{_lambda_.10} parent=5 // pred_check
      _
    $region10: #{_lambda_.10} parent=5 // pred_check_branch
      %94 = sbr.rel (%p91) target = $region12
    $region11: #{_lambda_.10} parent=5 // pred_region
      %s95 = ssub.s32 %s8, 1
      // Predicated region
      $region13: #{_lambda_.10} parent=11 // pred_check
        %p96 = pneg %p29
      $region14: #{_lambda_.10} parent=11 // pred_check_branch
        %98 = sbr.rel (%p96) target = $region16
      $region15: #{_lambda_.10} parent=11 // pred_region
        _
      $region16: #{_lambda_.10} parent=11 // pred_fallthru
        _
    $region12: #{_lambda_.10} parent=5 // pred_fallthru
      _
    %p99 = scmp.lt.s32.totalorder %s8, 2
    // Predicated region
    $region17: #{_lambda_.10} parent=5 // pred_check
      %p100 = pneg %p99
    $region18: #{_lambda_.10} parent=5 // pred_check_branch
      %102 = sbr.rel (%p100) target = $region20
    $region19: #{_lambda_.10} parent=5 // pred_region
      // Predicated region
      $region21: #{_lambda_.10} parent=19 // pred_check
        %p103 = pneg %p49
      $region22: #{_lambda_.10} parent=19 // pred_check_branch
        %105 = sbr.rel (%p103) target = $region24
      $region23: #{_lambda_.10} parent=19 // pred_region
        %p106 = scmp.lt.s32.totalorder %s8, 1
        %s107 = scalar_select %p106, %s8, 1
        %s108 = smul.addr %s107, 4
        %s109 = smul.addr %s108, 4
        %s110 = scalar_lea.vmem %s1, %s109
      $region24: #{_lambda_.10} parent=19 // pred_fallthru
        _
    $region20: #{_lambda_.10} parent=5 // pred_fallthru
      _
    %p111 = scmp.le.s32.totalorder 1, %s8
    %p112 = scmp.lt.s32.totalorder %s8, 3
    %p113 = pnand %p111, %p112
    %p114 = pneg %p113
    // Predicated region
    $region25: #{_lambda_.10} parent=5 // pred_check
      _
    $region26: #{_lambda_.10} parent=5 // pred_check_branch
      %116 = sbr.rel (%p113) target = $region28
    $region27: #{_lambda_.10} parent=5 // pred_region
      %s117 = ssub.s32 %s8, 1
      %p118 = pneg %p29
      %p119 = pneg %p26
      %p120 = scmp.lt.s32.totalorder %s13, 1
      %s121 = scalar_select %p120, %s13, 1
      %s122 = smul.addr %s121, 4
      %s123 = smul.addr %s122, 4
      %s124 = scalar_lea.vmem %s1, %s123
      %p125 = pneg %p55
      %p126 = pneg %p52
      %p127 = pneg %p81
      %p128 = pneg %p78
      %p129 = scmp.lt.s32.totalorder %s13, 1
      %s130 = scalar_select %p129, %s13, 1
      %s131 = smul.addr %s130, 16
      %s132 = smul.addr %s131, 4
      %s133 = scalar_lea.vmem %s2, %s132
      %p134 = scmp.lt.s32.totalorder %s13, 1
      %s135 = scalar_select %p134, %s13, 1
      %s136 = smul.addr %s135, 4
      %s137 = smul.addr %s136, 4
      %s138 = scalar_lea.vmem %s1, %s137
      %p139 = scmp.lt.s32.totalorder %s13, 1
      %s140 = scalar_select %p139, %s13, 1
      %s141 = smul.addr %s140, 16
      %s142 = smul.addr %s141, 4
      %s143 = scalar_lea.vmem %s2, %s142
      %v145 = vld [vmem:[%s0] sm:$0xf]
      %v146 = vld [vmem:[%s0 + $0x4] sm:$0xf]
      %v147 = vld [vmem:[%s0 + $0x8] sm:$0xf]
      %v148 = vld [vmem:[%s0 + $0xc] sm:$0xf]
      %v149 = vld [vmem:[%s0 + $0x10] sm:$0xf]
      %v150 = vld [vmem:[%s0 + $0x14] sm:$0xf]
      %v151 = vld [vmem:[%s0 + $0x18] sm:$0xf]
      %v152 = vld [vmem:[%s0 + $0x1c] sm:$0xf]
      %v153 = vld [vmem:[%s0 + $0x20] sm:$0xf]
      %v154 = vld [vmem:[%s0 + $0x24] sm:$0xf]
      %v155 = vld [vmem:[%s0 + $0x28] sm:$0xf]
      %v156 = vld [vmem:[%s0 + $0x2c] sm:$0xf]
      %v157 = vld [vmem:[%s0 + $0x30] sm:$0xf]
      %v158 = vld [vmem:[%s0 + $0x34] sm:$0xf]
      %v159 = vld [vmem:[%s0 + $0x38] sm:$0xf]
      %v160 = vld [vmem:[%s0 + $0x3c] sm:$0xf]
      %v161 = vld [vmem:[%s138] sm:$0xf]
      %v162 = vld [vmem:[%s138 + $0x4] sm:$0xf]
      %v163 = vld [vmem:[%s138 + $0x8] sm:$0xf]
      %v164 = vld [vmem:[%s138 + $0xc] sm:$0xf]
      %v181 = vunpack.c.l.b16 %v145
      %v182 = vunpack.c.l.b16 %v146
      %v183 = vunpack.c.l.b16 %v147
      %v184 = vunpack.c.l.b16 %v148
      %v185 = vunpack.c.l.b16 %v149
      %v186 = vunpack.c.l.b16 %v150
      %v187 = vunpack.c.l.b16 %v151
      %v188 = vunpack.c.l.b16 %v152
      %v189 = vunpack.c.l.b16 %v153
      %v190 = vunpack.c.l.b16 %v154
      %v191 = vunpack.c.l.b16 %v155
      %v192 = vunpack.c.l.b16 %v156
      %v193 = vunpack.c.l.b16 %v157
      %v194 = vunpack.c.l.b16 %v158
      %v195 = vunpack.c.l.b16 %v159
      %v196 = vunpack.c.l.b16 %v160
      %v197 = vpack.c.b16 %v182, %v181
      %v198 = vpack.c.b16 %v184, %v183
      %v199 = vpack.c.b16 %v186, %v185
      %v200 = vpack.c.b16 %v188, %v187
      %v201 = vpack.c.b16 %v190, %v189
      %v202 = vpack.c.b16 %v192, %v191
      %v203 = vpack.c.b16 %v194, %v193
      %v204 = vpack.c.b16 %v196, %v195
      %v209 = vunpack.c.l.b16 %v161
      %v210 = vunpack.c.l.b16 %v162
      %v211 = vunpack.c.l.b16 %v163
      %v212 = vunpack.c.l.b16 %v164
      %v213 = vpack.c.b16 %v210, %v209
      %v214 = vpack.c.b16 %v212, %v211
      %vm217 = vcmask 261120
      %v219 = vsel %vm217, %v197, 0
      %v222 = vsel %vm217, %v198, 0
      %v225 = vsel %vm217, %v199, 0
      %v228 = vsel %vm217, %v200, 0
      %v231 = vsel %vm217, %v201, 0
      %v234 = vsel %vm217, %v202, 0
      %v237 = vsel %vm217, %v203, 0
      %v240 = vsel %vm217, %v204, 0
      %242 = vmatprep.subr.bf16.mxu0 0
      %243 = vmatpush1.bf16.msra.mxu0 0
      %244 = vmatprep.subr.bf16.mxu0 0
      %245 = vmatpush1.bf16.msra.mxu0 0
      %246 = vmatprep.subr.bf16.mxu0 0
      %247 = vmatpush1.bf16.msra.mxu0 0
      %248 = vmatprep.subr.bf16.mxu0 0
      %249 = vmatpush1.bf16.msra.mxu0 0
      %250 = vmatprep.subr.bf16.mxu0 0
      %251 = vmatpush1.bf16.msra.mxu0 0
      %252 = vmatprep.subr.bf16.mxu0 0
      %253 = vmatpush1.bf16.msra.mxu0 0
      %254 = vmatprep.subr.bf16.mxu0 0
      %255 = vmatpush1.bf16.msra.mxu0 %v214
      %256 = vmatprep.subr.bf16.mxu0 0
      %257 = vmatpush1.bf16.msra.mxu0 %v213
      %258 = vmatprep.subr.bf16.mxu0 0
      %259 = vmatpush2.bf16.msra.mxu0 0
      %260 = vmatprep.subr.bf16.mxu0 0
      %261 = vmatpush2.bf16.msra.mxu0 0
      %262 = vmatprep.subr.bf16.mxu0 0
      %263 = vmatpush2.bf16.msra.mxu0 0
      %264 = vmatprep.subr.bf16.mxu0 0
      %265 = vmatpush2.bf16.msra.mxu0 0
      %266 = vmatprep.subr.bf16.mxu0 0
      %267 = vmatpush2.bf16.msra.mxu0 0
      %268 = vmatprep.subr.bf16.mxu0 0
      %269 = vmatpush2.bf16.msra.mxu0 0
      %270 = vmatprep.subr.bf16.mxu0 0
      %271 = vmatpush2.bf16.msra.mxu0 0
      %272 = vmatprep.subr.bf16.mxu0 0
      %273 = vmatpush2.bf16.msra.mxu0 0
      %274 = vmatprep.mubr.bf16.mxu0 0
      %275 = vmatmul.mubr.bf16.gmra.mxu0 %v219
      %v276 = vpop.f32.mrf.mxu0
      %v277 = vadd.f32 0.0, %v276
      %v278 = vpop.f32.mrf.mxu0
      %v279 = vpop.f32.mrf.mxu0
      %v280 = vadd.f32 0.0, %v279
      %v281 = vpop.f32.mrf.mxu0
      %282 = vmatprep.mubr.bf16.mxu0 0
      %283 = vmatmul.mubr.bf16.gmra.mxu0 %v222
      %v284 = vpop.f32.mrf.mxu0
      %v285 = vadd.f32 0.0, %v284
      %v286 = vpop.f32.mrf.mxu0
      %v287 = vpop.f32.mrf.mxu0
      %v288 = vadd.f32 0.0, %v287
      %v289 = vpop.f32.mrf.mxu0
      %290 = vmatprep.mubr.bf16.mxu0 0
      %291 = vmatmul.mubr.bf16.gmra.mxu0 %v225
      %v292 = vpop.f32.mrf.mxu0
      %v293 = vadd.f32 0.0, %v292
      %v294 = vpop.f32.mrf.mxu0
      %v295 = vpop.f32.mrf.mxu0
      %v296 = vadd.f32 0.0, %v295
      %v297 = vpop.f32.mrf.mxu0
      %298 = vmatprep.mubr.bf16.mxu0 0
      %299 = vmatmul.mubr.bf16.gmra.mxu0 %v228
      %v300 = vpop.f32.mrf.mxu0
      %v301 = vadd.f32 0.0, %v300
      %v302 = vpop.f32.mrf.mxu0
      %v303 = vpop.f32.mrf.mxu0
      %v304 = vadd.f32 0.0, %v303
      %v305 = vpop.f32.mrf.mxu0
      %306 = vmatprep.mubr.bf16.mxu0 0
      %307 = vmatmul.mubr.bf16.gmra.mxu0 %v231
      %v308 = vpop.f32.mrf.mxu0
      %v309 = vadd.f32 0.0, %v308
      %v310 = vpop.f32.mrf.mxu0
      %v311 = vpop.f32.mrf.mxu0
      %v312 = vadd.f32 0.0, %v311
      %v313 = vpop.f32.mrf.mxu0
      %314 = vmatprep.mubr.bf16.mxu0 0
      %315 = vmatmul.mubr.bf16.gmra.mxu0 %v234
      %v316 = vpop.f32.mrf.mxu0
      %v317 = vadd.f32 0.0, %v316
      %v318 = vpop.f32.mrf.mxu0
      %v319 = vpop.f32.mrf.mxu0
      %v320 = vadd.f32 0.0, %v319
      %v321 = vpop.f32.mrf.mxu0
      %322 = vmatprep.mubr.bf16.mxu0 0
      %323 = vmatmul.mubr.bf16.gmra.mxu0 %v237
      %v324 = vpop.f32.mrf.mxu0
      %v325 = vadd.f32 0.0, %v324
      %v326 = vpop.f32.mrf.mxu0
      %v327 = vpop.f32.mrf.mxu0
      %v328 = vadd.f32 0.0, %v327
      %v329 = vpop.f32.mrf.mxu0
      %330 = vmatprep.mubr.bf16.mxu0 0
      %331 = vmatmul.mubr.bf16.gmra.mxu0 %v240
      %v332 = vpop.f32.mrf.mxu0
      %v333 = vadd.f32 0.0, %v332
      %v334 = vpop.f32.mrf.mxu0
      %v335 = vpop.f32.mrf.mxu0
      %v336 = vadd.f32 0.0, %v335
      %v337 = vpop.f32.mrf.mxu0
      %338 = vdwg.mxu0
      %v339 = vpack.c.bf16 %v280, %v277
      %v340 = vpack.c.bf16 %v288, %v285
      %v341 = vpack.c.bf16 %v296, %v293
      %v342 = vpack.c.bf16 %v304, %v301
      %v343 = vpack.c.bf16 %v312, %v309
      %v344 = vpack.c.bf16 %v320, %v317
      %v345 = vpack.c.bf16 %v328, %v325
      %v346 = vpack.c.bf16 %v336, %v333
      %v355 = vunpack.c.l.b16 %v339
      %v356 = vunpack.c.h.b16 %v339
      %v357 = vunpack.c.l.b16 %v340
      %v358 = vunpack.c.h.b16 %v340
      %v359 = vunpack.c.l.b16 %v341
      %v360 = vunpack.c.h.b16 %v341
      %v361 = vunpack.c.l.b16 %v342
      %v362 = vunpack.c.h.b16 %v342
      %v363 = vunpack.c.l.b16 %v343
      %v364 = vunpack.c.h.b16 %v343
      %v365 = vunpack.c.l.b16 %v344
      %v366 = vunpack.c.h.b16 %v344
      %v367 = vunpack.c.l.b16 %v345
      %v368 = vunpack.c.h.b16 %v345
      %v369 = vunpack.c.l.b16 %v346
      %v370 = vunpack.c.h.b16 %v346
      %v371 = vpack.c.b16 %v355, %v355
      %v372 = vpack.c.b16 %v356, %v356
      %v373 = vpack.c.b16 %v357, %v357
      %v374 = vpack.c.b16 %v358, %v358
      %v375 = vpack.c.b16 %v359, %v359
      %v376 = vpack.c.b16 %v360, %v360
      %v377 = vpack.c.b16 %v361, %v361
      %v378 = vpack.c.b16 %v362, %v362
      %v379 = vpack.c.b16 %v363, %v363
      %v380 = vpack.c.b16 %v364, %v364
      %v381 = vpack.c.b16 %v365, %v365
      %v382 = vpack.c.b16 %v366, %v366
      %v383 = vpack.c.b16 %v367, %v367
      %v384 = vpack.c.b16 %v368, %v368
      %v385 = vpack.c.b16 %v369, %v369
      %v386 = vpack.c.b16 %v370, %v370
      %vm403 = vcmask 257024
      %404 = vst.msk [vmem:[%s143] sm:$0xf] %vm403, %v371
      %405 = vst.msk [vmem:[%s143 + $0x4] sm:$0xf] %vm403, %v372
      %406 = vst.msk [vmem:[%s143 + $0x8] sm:$0xf] %vm403, %v373
      %407 = vst.msk [vmem:[%s143 + $0xc] sm:$0xf] %vm403, %v374
      %408 = vst.msk [vmem:[%s143 + $0x10] sm:$0xf] %vm403, %v375
      %409 = vst.msk [vmem:[%s143 + $0x14] sm:$0xf] %vm403, %v376
      %410 = vst.msk [vmem:[%s143 + $0x18] sm:$0xf] %vm403, %v377
      %411 = vst.msk [vmem:[%s143 + $0x1c] sm:$0xf] %vm403, %v378
      %412 = vst.msk [vmem:[%s143 + $0x20] sm:$0xf] %vm403, %v379
      %413 = vst.msk [vmem:[%s143 + $0x24] sm:$0xf] %vm403, %v380
      %414 = vst.msk [vmem:[%s143 + $0x28] sm:$0xf] %vm403, %v381
      %415 = vst.msk [vmem:[%s143 + $0x2c] sm:$0xf] %vm403, %v382
      %416 = vst.msk [vmem:[%s143 + $0x30] sm:$0xf] %vm403, %v383
      %417 = vst.msk [vmem:[%s143 + $0x34] sm:$0xf] %vm403, %v384
      %418 = vst.msk [vmem:[%s143 + $0x38] sm:$0xf] %vm403, %v385
      %419 = vst.msk [vmem:[%s143 + $0x3c] sm:$0xf] %vm403, %v386
      %p420 = scmp.lt.s32.totalorder %s13, 1
      %s421 = scalar_select %p420, %s13, 1
      %s422 = smul.addr %s421, 16
      %s423 = smul.addr %s422, 4
      %s424 = scalar_lea.vmem %s2, %s423
      // Predicated region
      $region29: #{_lambda_.10} parent=27 // pred_check
        %p425 = pneg %p78
      $region30: #{_lambda_.10} parent=27 // pred_check_branch
        %427 = sbr.rel (%p425) target = $region32
      $region31: #{_lambda_.10} parent=27 // pred_region
        _
      $region32: #{_lambda_.10} parent=27 // pred_fallthru
        _
    $region28: #{_lambda_.10} parent=5 // pred_fallthru
      _
    %p428 = scmp.le.s32.totalorder 2, %s8
    // Predicated region
    $region33: #{_lambda_.10} parent=5 // pred_check
      %p429 = pneg %p428
    $region34: #{_lambda_.10} parent=5 // pred_check_branch
      %431 = sbr.rel (%p429) target = $region36
    $region35: #{_lambda_.10} parent=5 // pred_region
      %s432 = ssub.s32 %s8, 2
      // Predicated region
      $region37: #{_lambda_.10} parent=35 // pred_check
        %p433 = pneg %p84
      $region38: #{_lambda_.10} parent=35 // pred_check_branch
        %435 = sbr.rel (%p433) target = $region40
      $region39: #{_lambda_.10} parent=35 // pred_region
        %p436 = scmp.lt.s32.totalorder %s14, 1
        %s437 = scalar_select %p436, %s14, 1
        %s438 = smul.addr %s437, 16
        %s439 = smul.addr %s438, 4
        %s440 = scalar_lea.vmem %s2, %s439
      $region40: #{_lambda_.10} parent=35 // pred_fallthru
        _
    $region36: #{_lambda_.10} parent=5 // pred_fallthru
      _
  $region6: #{_lambda_.10} parent=0 // loop_footer
    %s12 = sadd.s32 1, %s8
  $region7: #{_lambda_.10} parent=0 // loop_footer_branch
    %7 = sbr.rel target = $region3
  $region8: #{_lambda_.10} parent=0 // loop_exit
    _

// kernel: _lambda_.17
$region0: #{_lambda_.17}
  #allocation0 [shape = 'u32[]', space=smem, size = 0x4, offset = 0x4, fixed_abs, tag = 'smem constant byte address 0x4 - core index']
  #allocation1 [shape = 'u32[144,128]{1,0:T(1,128)}', space=vmem, size = 0x12000, scoped, tag = 'internal scratch']
  %s0 = inlined_call_operand.vmem [shape: bf16[2,16,32], index: 0, kind: input, shape index: {}]
  %s1 = inlined_call_operand.vmem [shape: f32[1,32], index: 1, kind: input, shape index: {}]
  %s2 = inlined_call_operand.vmem [shape: f32[1,32], index: 2, kind: input, shape index: {}]
  %s3 = inlined_call_operand.vmem [shape: bf16[32,32], index: 3, kind: input, shape index: {}]
  %s4 = inlined_call_operand.vmem [shape: f32[1,32], index: 4, kind: input, shape index: {}]
  %s5 = inlined_call_operand.vmem [shape: bf16[2,16,32], index: 5, kind: output, shape index: {}]
  %s6 = sld [smem:[#allocation0]]
  $region53: #{_lambda_.17} parent=0
    _
  %s8 = ssub.s32 1, %s6
  %s9 = scalar_select 0, %s8, %s6
  loop: start=0, step=1, limit=4
  $region2: #{_lambda_.17} parent=0 // loop_pre_header
    _
  $region3: #{_lambda_.17} parent=0 // loop_header
    %s11 = sphi 0, %s15
    %p12 = scmp.ge.s32.totalorder %s11, 4
    %s18 = sphi 0, %s30
    %s19 = sphi 0, %s26
    %s20 = sphi 0, %s18
    %s21 = sphi 0, %s19
    %s22 = sphi 0, %s20
    %s23 = sphi 0, %s21
    %s35 = sphi 0, %s37
    %s38 = sphi 0, %s35
    %s39 = sphi 0, %s38
    %s55 = sphi 0, %s39
    %s59 = sphi 0, %s59
    %s61 = sphi 0, %s59
    %s62 = sphi 0, %s61
    %s76 = sphi 0, %s62
    %s80 = sphi 0, %s80
    %s82 = sphi 0, %s80
    %s83 = sphi 0, %s82
    %s97 = sphi 0, %s83
    %s101 = sphi 0, %s101
    %s103 = sphi 0, %s101
    %s104 = sphi 0, %s103
    %s118 = sphi 0, %s104
    %s122 = sphi 0, %s122
    %s124 = sphi 0, %s122
    %s125 = sphi 0, %s124
    %s139 = sphi 0, %s125
    %s147 = sphi 0, %s149
    %s150 = sphi 0, %s147
    %s151 = sphi 0, %s150
    %s167 = sphi 0, %s151
  $region4: #{_lambda_.17} parent=0 // loop_header_branch
    %14 = sbr.rel (%p12) target = $region8
  $region5: #{_lambda_.17} parent=0 // loop_body
    %s16 = ssub.s32 %s11, 1
    %s17 = ssub.s32 %s11, 2
    %s24 = sadd.s32 1, %s19
    %p25 = scmp.ge.s32.totalorder %s24, 1
    %s26 = scalar_select %p25, 0, %s24
    %s27 = sadd.s32 1, %s18
    %s28 = scalar_select %p25, %s27, %s18
    %p29 = scmp.ge.s32.totalorder %s28, 2
    %s30 = scalar_select %p29, 0, %s28
    %s31 = ssub.s32 %s18, %s30
    %s32 = ssub.s32 %s19, %s26
    %s33 = sor.u32 %s31, %s32
    %p34 = scmp.eq.s32.totalorder %s33, 0
    %s36 = sadd.s32 %s35, 1
    %s37 = scalar_select %p34, %s35, %s36
    %p40 = pneg %p34
    %p41 = scmp.eq.s32.totalorder %s11, 1
    %p42 = por %p40, %p41
    %p43 = scmp.ne.s32.totalorder %s35, %s38
    %p44 = scmp.eq.s32.totalorder %s11, 0
    %p45 = por %p43, %p44
    %p46 = scmp.ne.s32.totalorder %s35, %s38
    %p47 = scmp.eq.s32.totalorder %s16, 1
    %p48 = por %p46, %p47
    %p49 = scmp.ne.s32.totalorder %s38, %s39
    %p50 = scmp.eq.s32.totalorder %s16, 0
    %p51 = por %p49, %p50
    %p52 = scmp.ne.s32.totalorder %s38, %s39
    %p53 = scmp.eq.s32.totalorder %s17, 1
    %p54 = por %p52, %p53
    %p56 = scmp.ne.s32.totalorder %s39, %s55
    %p57 = scmp.eq.s32.totalorder %s17, 0
    %p58 = por %p56, %p57
    %s60 = sadd.s32 %s59, 1
    %p63 = scmp.eq.s32.totalorder %s11, 1
    %p64 = scmp.ne.s32.totalorder %s59, %s61
    %p65 = scmp.eq.s32.totalorder %s11, 0
    %p66 = por %p64, %p65
    %p67 = scmp.ne.s32.totalorder %s59, %s61
    %p68 = scmp.eq.s32.totalorder %s16, 1
    %p69 = por %p67, %p68
    %p70 = scmp.ne.s32.totalorder %s61, %s62
    %p71 = scmp.eq.s32.totalorder %s16, 0
    %p72 = por %p70, %p71
    %p73 = scmp.ne.s32.totalorder %s61, %s62
    %p74 = scmp.eq.s32.totalorder %s17, 1
    %p75 = por %p73, %p74
    %p77 = scmp.ne.s32.totalorder %s62, %s76
    %p78 = scmp.eq.s32.totalorder %s17, 0
    %p79 = por %p77, %p78
    %s81 = sadd.s32 %s80, 1
    %p84 = scmp.eq.s32.totalorder %s11, 1
    %p85 = scmp.ne.s32.totalorder %s80, %s82
    %p86 = scmp.eq.s32.totalorder %s11, 0
    %p87 = por %p85, %p86
    %p88 = scmp.ne.s32.totalorder %s80, %s82
    %p89 = scmp.eq.s32.totalorder %s16, 1
    %p90 = por %p88, %p89
    %p91 = scmp.ne.s32.totalorder %s82, %s83
    %p92 = scmp.eq.s32.totalorder %s16, 0
    %p93 = por %p91, %p92
    %p94 = scmp.ne.s32.totalorder %s82, %s83
    %p95 = scmp.eq.s32.totalorder %s17, 1
    %p96 = por %p94, %p95
    %p98 = scmp.ne.s32.totalorder %s83, %s97
    %p99 = scmp.eq.s32.totalorder %s17, 0
    %p100 = por %p98, %p99
    %s102 = sadd.s32 %s101, 1
    %p105 = scmp.eq.s32.totalorder %s11, 1
    %p106 = scmp.ne.s32.totalorder %s101, %s103
    %p107 = scmp.eq.s32.totalorder %s11, 0
    %p108 = por %p106, %p107
    %p109 = scmp.ne.s32.totalorder %s101, %s103
    %p110 = scmp.eq.s32.totalorder %s16, 1
    %p111 = por %p109, %p110
    %p112 = scmp.ne.s32.totalorder %s103, %s104
    %p113 = scmp.eq.s32.totalorder %s16, 0
    %p114 = por %p112, %p113
    %p115 = scmp.ne.s32.totalorder %s103, %s104
    %p116 = scmp.eq.s32.totalorder %s17, 1
    %p117 = por %p115, %p116
    %p119 = scmp.ne.s32.totalorder %s104, %s118
    %p120 = scmp.eq.s32.totalorder %s17, 0
    %p121 = por %p119, %p120
    %s123 = sadd.s32 %s122, 1
    %p126 = scmp.eq.s32.totalorder %s11, 1
    %p127 = scmp.ne.s32.totalorder %s122, %s124
    %p128 = scmp.eq.s32.totalorder %s11, 0
    %p129 = por %p127, %p128
    %p130 = scmp.ne.s32.totalorder %s122, %s124
    %p131 = scmp.eq.s32.totalorder %s16, 1
    %p132 = por %p130, %p131
    %p133 = scmp.ne.s32.totalorder %s124, %s125
    %p134 = scmp.eq.s32.totalorder %s16, 0
    %p135 = por %p133, %p134
    %p136 = scmp.ne.s32.totalorder %s124, %s125
    %p137 = scmp.eq.s32.totalorder %s17, 1
    %p138 = por %p136, %p137
    %p140 = scmp.ne.s32.totalorder %s125, %s139
    %p141 = scmp.eq.s32.totalorder %s17, 0
    %p142 = por %p140, %p141
    %s143 = ssub.s32 %s18, %s30
    %s144 = ssub.s32 %s19, %s26
    %s145 = sor.u32 %s143, %s144
    %p146 = scmp.eq.s32.totalorder %s145, 0
    %s148 = sadd.s32 %s147, 1
    %s149 = scalar_select %p146, %s147, %s148
    %p152 = pneg %p146
    %p153 = scmp.eq.s32.totalorder %s11, 1
    %p154 = por %p152, %p153
    %p155 = scmp.ne.s32.totalorder %s147, %s150
    %p156 = scmp.eq.s32.totalorder %s11, 0
    %p157 = por %p155, %p156
    %p158 = scmp.ne.s32.totalorder %s147, %s150
    %p159 = scmp.eq.s32.totalorder %s16, 1
    %p160 = por %p158, %p159
    %p161 = scmp.ne.s32.totalorder %s150, %s151
    %p162 = scmp.eq.s32.totalorder %s16, 0
    %p163 = por %p161, %p162
    %p164 = scmp.ne.s32.totalorder %s150, %s151
    %p165 = scmp.eq.s32.totalorder %s17, 1
    %p166 = por %p164, %p165
    %p168 = scmp.ne.s32.totalorder %s151, %s167
    %p169 = scmp.eq.s32.totalorder %s17, 0
    %p170 = por %p168, %p169
    %p171 = scmp.le.s32.totalorder 1, %s11
    %p172 = scmp.lt.s32.totalorder %s11, 3
    %p173 = pnand %p171, %p172
    %p174 = pneg %p173
    // Predicated region
    $region9: #{_lambda_.17} parent=5 // pred_check
      _
    $region10: #{_lambda_.17} parent=5 // pred_check_branch
      %176 = sbr.rel (%p173) target = $region12
    $region11: #{_lambda_.17} parent=5 // pred_region
      %s177 = ssub.s32 %s11, 1
      // Predicated region
      $region13: #{_lambda_.17} parent=11 // pred_check
        %p178 = pneg %p72
      $region14: #{_lambda_.17} parent=11 // pred_check_branch
        %180 = sbr.rel (%p178) target = $region16
      $region15: #{_lambda_.17} parent=11 // pred_region
        _
      $region16: #{_lambda_.17} parent=11 // pred_fallthru
        _
      // Predicated region
      $region17: #{_lambda_.17} parent=11 // pred_check
        %p181 = pneg %p93
      $region18: #{_lambda_.17} parent=11 // pred_check_branch
        %183 = sbr.rel (%p181) target = $region20
      $region19: #{_lambda_.17} parent=11 // pred_region
        _
      $region20: #{_lambda_.17} parent=11 // pred_fallthru
        _
      // Predicated region
      $region21: #{_lambda_.17} parent=11 // pred_check
        %p184 = pneg %p114
      $region22: #{_lambda_.17} parent=11 // pred_check_branch
        %186 = sbr.rel (%p184) target = $region24
      $region23: #{_lambda_.17} parent=11 // pred_region
        _
      $region24: #{_lambda_.17} parent=11 // pred_fallthru
        _
      // Predicated region
      $region25: #{_lambda_.17} parent=11 // pred_check
        %p187 = pneg %p135
      $region26: #{_lambda_.17} parent=11 // pred_check_branch
        %189 = sbr.rel (%p187) target = $region28
      $region27: #{_lambda_.17} parent=11 // pred_region
        _
      $region28: #{_lambda_.17} parent=11 // pred_fallthru
        _
    $region12: #{_lambda_.17} parent=5 // pred_fallthru
      _
    %p190 = scmp.lt.s32.totalorder %s11, 2
    // Predicated region
    $region29: #{_lambda_.17} parent=5 // pred_check
      %p191 = pneg %p190
    $region30: #{_lambda_.17} parent=5 // pred_check_branch
      %193 = sbr.rel (%p191) target = $region32
    $region31: #{_lambda_.17} parent=5 // pred_region
      // Predicated region
      $region33: #{_lambda_.17} parent=31 // pred_check
        %p194 = pneg %p45
      $region34: #{_lambda_.17} parent=31 // pred_check_branch
        %196 = sbr.rel (%p194) target = $region36
      $region35: #{_lambda_.17} parent=31 // pred_region
        %s197 = smul.u32 2, %s19
        %p198 = scmp.lt.s32.totalorder %s18, 1
        %s199 = scalar_select %p198, %s18, 1
        %p200 = scmp.lt.s32.totalorder %s197, 1
        %s201 = scalar_select %p200, %s197, 1
        %s202 = smul.addr %s199, 2
        %s203 = sadd.s32 %s201, %s202
        %s204 = smul.addr %s203, 4
        %s205 = scalar_lea.vmem %s0, %s204
        %s206 = smul.u32 2, %s19
      $region36: #{_lambda_.17} parent=31 // pred_fallthru
        _
    $region32: #{_lambda_.17} parent=5 // pred_fallthru
      _
    %p207 = scmp.le.s32.totalorder 1, %s11
    %p208 = scmp.lt.s32.totalorder %s11, 3
    %p209 = pnand %p207, %p208
    %p210 = pneg %p209
    // Predicated region
    $region37: #{_lambda_.17} parent=5 // pred_check
      _
    $region38: #{_lambda_.17} parent=5 // pred_check_branch
      %212 = sbr.rel (%p209) target = $region40
    $region39: #{_lambda_.17} parent=5 // pred_region
      %s213 = ssub.s32 %s11, 1
      %s214 = smul.u32 2, %s21
      %p215 = scmp.lt.s32.totalorder %s20, 1
      %s216 = scalar_select %p215, %s20, 1
      %p217 = scmp.lt.s32.totalorder %s214, 1
      %s218 = scalar_select %p217, %s214, 1
      %s219 = smul.addr %s216, 2
      %s220 = sadd.s32 %s218, %s219
      %s221 = smul.addr %s220, 4
      %s222 = scalar_lea.vmem %s0, %s221
      %p223 = pneg %p51
      %p224 = pneg %p48
      %p225 = pneg %p72
      %p226 = pneg %p69
      %p227 = pneg %p93
      %p228 = pneg %p90
      %p229 = pneg %p114
      %p230 = pneg %p111
      %p231 = pneg %p135
      %p232 = pneg %p132
      %p233 = pneg %p163
      %p234 = pneg %p160
      %s235 = smul.u32 2, %s21
      %p236 = scmp.lt.s32.totalorder %s20, 1
      %s237 = scalar_select %p236, %s20, 1
      %p238 = scmp.lt.s32.totalorder %s235, 1
      %s239 = scalar_select %p238, %s235, 1
      %s240 = smul.addr %s237, 2
      %s241 = sadd.s32 %s239, %s240
      %s242 = smul.addr %s241, 4
      %s243 = scalar_lea.vmem %s5, %s242
      %s244 = smul.u32 2, %s21
      %p245 = scmp.lt.s32.totalorder %s20, 1
      %s246 = scalar_select %p245, %s20, 1
      %p247 = scmp.lt.s32.totalorder %s244, 1
      %s248 = scalar_select %p247, %s244, 1
      %s249 = smul.addr %s246, 2
      %s250 = sadd.s32 %s248, %s249
      %s251 = smul.addr %s250, 4
      %s252 = scalar_lea.vmem %s0, %s251
      %s253 = smul.u32 2, %s21
      %s254 = smul.u32 2, %s21
      %p255 = scmp.lt.s32.totalorder %s20, 1
      %s256 = scalar_select %p255, %s20, 1
      %p257 = scmp.lt.s32.totalorder %s254, 1
      %s258 = scalar_select %p257, %s254, 1
      %s259 = smul.addr %s256, 2
      %s260 = sadd.s32 %s258, %s259
      %s261 = smul.addr %s260, 4
      %s262 = scalar_lea.vmem %s5, %s261
      %s263 = smul.u32 2, %s21
      %v265 = vld [vmem:[%s252] sm:$0xf]
      %v266 = vld [vmem:[%s252 + $0x4] sm:$0xf]
      %v267 = vunpack.c.l.bf16 %v265
      %v268 = vunpack.c.l.bf16 %v266
      %v269 = vld [vmem:[%s1] sm:$0x1]
      %v270 = vld [vmem:[%s2] sm:$0x1]
      %vm271 = vcmask 261120
      %v272 = vsel %vm271, %v267, 0.0
      %273 = vadd.xlane.f32.xlu0 %v272
      %v274 = vpop.xlane.xlu0 %273
      %v275 = vsel %vm271, %v268, 0.0
      %276 = vadd.xlane.f32.xlu0 %v275
      %v277 = vpop.xlane.xlu0 %276
      %v278 = vrcp.pop 32.0
      %v279 = vmul.f32 %v274, %v278
      %v280 = vmul.f32 %v277, %v278
      %v281 = vsub.f32 %v267, %v279
      %v282 = vsub.f32 %v268, %v280
      %v283 = vmul.f32 %v281, %v281
      %v284 = vmul.f32 %v282, %v282
      %v285 = vsel %vm271, %v283, 0.0
      %286 = vadd.xlane.f32.xlu0 %v285
      %v287 = vpop.xlane.xlu0 %286
      %v288 = vsel %vm271, %v284, 0.0
      %289 = vadd.xlane.f32.xlu0 %v288
      %v290 = vpop.xlane.xlu0 %289
      %v291 = vmul.f32 %v287, %v278
      %v292 = vmul.f32 %v290, %v278
      %v293 = vadd.f32 %v291, 1e-12
      %v294 = vadd.f32 %v292, 1e-12
      %v295 = vrsqrt.pop %v293
      %v296 = vrsqrt.pop %v294
      %v297 = vmul.f32 %v281, %v295
      %v298 = vmul.f32 %v282, %v296
      %v300 = vlaneseq
      %v301 = vshrl.u32 %v300, 7
      %v302 = vsub.s32 0, %v301
      %v303 = vrot.slane %v269, %v302
      %v305 = vmul.f32 %v297, %v303
      %v306 = vmul.f32 %v298, %v303
      %v308 = vlaneseq
      %v309 = vshrl.u32 %v308, 7
      %v310 = vsub.s32 0, %v309
      %v311 = vrot.slane %v270, %v310
      %v313 = vadd.f32 %v305, %v311
      %v314 = vadd.f32 %v306, %v311
      %v315 = vpack.c.bf16 %v314, %v313
      %v316 = vld [vmem:[%s3] sm:$0xf]
      %v317 = vld [vmem:[%s3 + $0x4] sm:$0xf]
      %v318 = vld [vmem:[%s3 + $0x8] sm:$0xf]
      %v319 = vld [vmem:[%s3 + $0xc] sm:$0xf]
      %v320 = vld [vmem:[%s4] sm:$0x1]
      %v322 = vlaneseq
      %v323 = vshrl.u32 %v322, 7
      %v324 = vsub.s32 0, %v323
      %v325 = vrot.slane %v320, %v324
      %v331 = vunpack.c.l.b16 %v316
      %v332 = vunpack.c.l.b16 %v317
      %v333 = vunpack.c.l.b16 %v318
      %v334 = vunpack.c.l.b16 %v319
      %v335 = vpack.c.b16 %v332, %v331
      %v336 = vpack.c.b16 %v334, %v333
      %v340 = vsel %vm271, %v315, 0
      %342 = vmatprep.subr.bf16.mxu0 0
      %343 = vmatpush1.bf16.msra.mxu0 0
      %344 = vmatprep.subr.bf16.mxu0 0
      %345 = vmatpush1.bf16.msra.mxu0 0
      %346 = vmatprep.subr.bf16.mxu0 0
      %347 = vmatpush1.bf16.msra.mxu0 0
      %348 = vmatprep.subr.bf16.mxu0 0
      %349 = vmatpush1.bf16.msra.mxu0 0
      %350 = vmatprep.subr.bf16.mxu0 0
      %351 = vmatpush1.bf16.msra.mxu0 0
      %352 = vmatprep.subr.bf16.mxu0 0
      %353 = vmatpush1.bf16.msra.mxu0 0
      %354 = vmatprep.subr.bf16.mxu0 0
      %355 = vmatpush1.bf16.msra.mxu0 %v336
      %356 = vmatprep.subr.bf16.mxu0 0
      %357 = vmatpush1.bf16.msra.mxu0 %v335
      %358 = vmatprep.subr.bf16.mxu0 0
      %359 = vmatpush2.bf16.msra.mxu0 0
      %360 = vmatprep.subr.bf16.mxu0 0
      %361 = vmatpush2.bf16.msra.mxu0 0
      %362 = vmatprep.subr.bf16.mxu0 0
      %363 = vmatpush2.bf16.msra.mxu0 0
      %364 = vmatprep.subr.bf16.mxu0 0
      %365 = vmatpush2.bf16.msra.mxu0 0
      %366 = vmatprep.subr.bf16.mxu0 0
      %367 = vmatpush2.bf16.msra.mxu0 0
      %368 = vmatprep.subr.bf16.mxu0 0
      %369 = vmatpush2.bf16.msra.mxu0 0
      %370 = vmatprep.subr.bf16.mxu0 0
      %371 = vmatpush2.bf16.msra.mxu0 0
      %372 = vmatprep.subr.bf16.mxu0 0
      %373 = vmatpush2.bf16.msra.mxu0 0
      %374 = vmatprep.mubr.bf16.mxu0 0
      %375 = vmatmul.mubr.bf16.gmra.mxu0 %v340
      %v376 = vpop.f32.mrf.mxu0
      %v377 = vadd.f32 %v325, %v376
      %v378 = vpop.f32.mrf.mxu0
      %v379 = vpop.f32.mrf.mxu0
      %v380 = vadd.f32 %v325, %v379
      %v381 = vpop.f32.mrf.mxu0
      %382 = vdwg.mxu0
      %v383 = vpack.c.bf16 %v380, %v377
      %v385 = vunpack.c.l.b16 %v383
      %v386 = vunpack.c.h.b16 %v383
      %v387 = vpack.c.b16 %v385, %v385
      %v388 = vpack.c.b16 %v386, %v386
      %vm391 = vcmask 257024
      %392 = vst.msk [vmem:[%s262] sm:$0xf] %vm391, %v387
      %393 = vst.msk [vmem:[%s262 + $0x4] sm:$0xf] %vm391, %v388
      %s394 = smul.u32 2, %s21
      %p395 = scmp.lt.s32.totalorder %s20, 1
      %s396 = scalar_select %p395, %s20, 1
      %p397 = scmp.lt.s32.totalorder %s394, 1
      %s398 = scalar_select %p397, %s394, 1
      %s399 = smul.addr %s396, 2
      %s400 = sadd.s32 %s398, %s399
      %s401 = smul.addr %s400, 4
      %s402 = scalar_lea.vmem %s5, %s401
      // Predicated region
      $region41: #{_lambda_.17} parent=39 // pred_check
        %p403 = pneg %p160
      $region42: #{_lambda_.17} parent=39 // pred_check_branch
        %405 = sbr.rel (%p403) target = $region44
      $region43: #{_lambda_.17} parent=39 // pred_region
        %s406 = smul.u32 2, %s21
      $region44: #{_lambda_.17} parent=39 // pred_fallthru
        _
    $region40: #{_lambda_.17} parent=5 // pred_fallthru
      _
    %p407 = scmp.le.s32.totalorder 2, %s11
    // Predicated region
    $region45: #{_lambda_.17} parent=5 // pred_check
      %p408 = pneg %p407
    $region46: #{_lambda_.17} parent=5 // pred_check_branch
      %410 = sbr.rel (%p408) target = $region48
    $region47: #{_lambda_.17} parent=5 // pred_region
      %s411 = ssub.s32 %s11, 2
      // Predicated region
      $region49: #{_lambda_.17} parent=47 // pred_check
        %p412 = pneg %p166
      $region50: #{_lambda_.17} parent=47 // pred_check_branch
        %414 = sbr.rel (%p412) target = $region52
      $region51: #{_lambda_.17} parent=47 // pred_region
        %s415 = smul.u32 2, %s23
        %p416 = scmp.lt.s32.totalorder %s22, 1
        %s417 = scalar_select %p416, %s22, 1
        %p418 = scmp.lt.s32.totalorder %s415, 1
        %s419 = scalar_select %p418, %s415, 1
        %s420 = smul.addr %s417, 2
        %s421 = sadd.s32 %s419, %s420
        %s422 = smul.addr %s421, 4
        %s423 = scalar_lea.vmem %s5, %s422
      $region52: #{_lambda_.17} parent=47 // pred_fallthru
        _
    $region48: #{_lambda_.17} parent=5 // pred_fallthru
      _
  $region6: #{_lambda_.17} parent=0 // loop_footer
    %s15 = sadd.s32 1, %s11
  $region7: #{_lambda_.17} parent=0 // loop_footer_branch
    %10 = sbr.rel target = $region3
  $region8: #{_lambda_.17} parent=0 // loop_exit
    _

// kernel: _lambda_.13
$region0: #{_lambda_.13}
  #allocation0 [shape = 'u32[]', space=smem, size = 0x4, offset = 0x4, fixed_abs, tag = 'smem constant byte address 0x4 - core index']
  #allocation1 [shape = 'u32[144,128]{1,0:T(1,128)}', space=vmem, size = 0x12000, scoped, tag = 'internal scratch']
  %s0 = inlined_call_operand.vmem [shape: bf16[2,16,32], index: 0, kind: input, shape index: {}]
  %s1 = inlined_call_operand.vmem [shape: f32[1,32], index: 1, kind: input, shape index: {}]
  %s2 = inlined_call_operand.vmem [shape: f32[1,32], index: 2, kind: input, shape index: {}]
  %s3 = inlined_call_operand.vmem [shape: bf16[32,64], index: 3, kind: input, shape index: {}]
  %s4 = inlined_call_operand.vmem [shape: f32[1,64], index: 4, kind: input, shape index: {}]
  %s5 = inlined_call_operand.vmem [shape: bf16[64,32], index: 5, kind: input, shape index: {}]
  %s6 = inlined_call_operand.vmem [shape: f32[1,32], index: 6, kind: input, shape index: {}]
  %s7 = inlined_call_operand.vmem [shape: f32[1,32], index: 7, kind: input, shape index: {}]
  %s8 = inlined_call_operand.vmem [shape: f32[1,32], index: 8, kind: input, shape index: {}]
  %s9 = inlined_call_operand.vmem [shape: bf16[2,16,32], index: 9, kind: output, shape index: {}]
  %s10 = sld [smem:[#allocation0]]
  $region69: #{_lambda_.13} parent=0
    _
  %s12 = ssub.s32 1, %s10
  %s13 = scalar_select 0, %s12, %s10
  loop: start=0, step=1, limit=4
  $region2: #{_lambda_.13} parent=0 // loop_pre_header
    _
  $region3: #{_lambda_.13} parent=0 // loop_header
    %s15 = sphi 0, %s19
    %p16 = scmp.ge.s32.totalorder %s15, 4
    %s22 = sphi 0, %s34
    %s23 = sphi 0, %s30
    %s24 = sphi 0, %s22
    %s25 = sphi 0, %s23
    %s26 = sphi 0, %s24
    %s27 = sphi 0, %s25
    %s39 = sphi 0, %s41
    %s42 = sphi 0, %s39
    %s43 = sphi 0, %s42
    %s59 = sphi 0, %s43
    %s63 = sphi 0, %s63
    %s65 = sphi 0, %s63
    %s66 = sphi 0, %s65
    %s80 = sphi 0, %s66
    %s84 = sphi 0, %s84
    %s86 = sphi 0, %s84
    %s87 = sphi 0, %s86
    %s101 = sphi 0, %s87
    %s105 = sphi 0, %s105
    %s107 = sphi 0, %s105
    %s108 = sphi 0, %s107
    %s122 = sphi 0, %s108
    %s126 = sphi 0, %s126
    %s128 = sphi 0, %s126
    %s129 = sphi 0, %s128
    %s143 = sphi 0, %s129
    %s147 = sphi 0, %s147
    %s149 = sphi 0, %s147
    %s150 = sphi 0, %s149
    %s164 = sphi 0, %s150
    %s168 = sphi 0, %s168
    %s170 = sphi 0, %s168
    %s171 = sphi 0, %s170
    %s185 = sphi 0, %s171
    %s189 = sphi 0, %s189
    %s191 = sphi 0, %s189
    %s192 = sphi 0, %s191
    %s206 = sphi 0, %s192
    %s210 = sphi 0, %s210
    %s212 = sphi 0, %s210
    %s213 = sphi 0, %s212
    %s227 = sphi 0, %s213
    %s235 = sphi 0, %s237
    %s238 = sphi 0, %s235
    %s239 = sphi 0, %s238
    %s255 = sphi 0, %s239
  $region4: #{_lambda_.13} parent=0 // loop_header_branch
    %18 = sbr.rel (%p16) target = $region8
  $region5: #{_lambda_.13} parent=0 // loop_body
    %s20 = ssub.s32 %s15, 1
    %s21 = ssub.s32 %s15, 2
    %s28 = sadd.s32 1, %s23
    %p29 = scmp.ge.s32.totalorder %s28, 1
    %s30 = scalar_select %p29, 0, %s28
    %s31 = sadd.s32 1, %s22
    %s32 = scalar_select %p29, %s31, %s22
    %p33 = scmp.ge.s32.totalorder %s32, 2
    %s34 = scalar_select %p33, 0, %s32
    %s35 = ssub.s32 %s22, %s34
    %s36 = ssub.s32 %s23, %s30
    %s37 = sor.u32 %s35, %s36
    %p38 = scmp.eq.s32.totalorder %s37, 0
    %s40 = sadd.s32 %s39, 1
    %s41 = scalar_select %p38, %s39, %s40
    %p44 = pneg %p38
    %p45 = scmp.eq.s32.totalorder %s15, 1
    %p46 = por %p44, %p45
    %p47 = scmp.ne.s32.totalorder %s39, %s42
    %p48 = scmp.eq.s32.totalorder %s15, 0
    %p49 = por %p47, %p48
    %p50 = scmp.ne.s32.totalorder %s39, %s42
    %p51 = scmp.eq.s32.totalorder %s20, 1
    %p52 = por %p50, %p51
    %p53 = scmp.ne.s32.totalorder %s42, %s43
    %p54 = scmp.eq.s32.totalorder %s20, 0
    %p55 = por %p53, %p54
    %p56 = scmp.ne.s32.totalorder %s42, %s43
    %p57 = scmp.eq.s32.totalorder %s21, 1
    %p58 = por %p56, %p57
    %p60 = scmp.ne.s32.totalorder %s43, %s59
    %p61 = scmp.eq.s32.totalorder %s21, 0
    %p62 = por %p60, %p61
    %s64 = sadd.s32 %s63, 1
    %p67 = scmp.eq.s32.totalorder %s15, 1
    %p68 = scmp.ne.s32.totalorder %s63, %s65
    %p69 = scmp.eq.s32.totalorder %s15, 0
    %p70 = por %p68, %p69
    %p71 = scmp.ne.s32.totalorder %s63, %s65
    %p72 = scmp.eq.s32.totalorder %s20, 1
    %p73 = por %p71, %p72
    %p74 = scmp.ne.s32.totalorder %s65, %s66
    %p75 = scmp.eq.s32.totalorder %s20, 0
    %p76 = por %p74, %p75
    %p77 = scmp.ne.s32.totalorder %s65, %s66
    %p78 = scmp.eq.s32.totalorder %s21, 1
    %p79 = por %p77, %p78
    %p81 = scmp.ne.s32.totalorder %s66, %s80
    %p82 = scmp.eq.s32.totalorder %s21, 0
    %p83 = por %p81, %p82
    %s85 = sadd.s32 %s84, 1
    %p88 = scmp.eq.s32.totalorder %s15, 1
    %p89 = scmp.ne.s32.totalorder %s84, %s86
    %p90 = scmp.eq.s32.totalorder %s15, 0
    %p91 = por %p89, %p90
    %p92 = scmp.ne.s32.totalorder %s84, %s86
    %p93 = scmp.eq.s32.totalorder %s20, 1
    %p94 = por %p92, %p93
    %p95 = scmp.ne.s32.totalorder %s86, %s87
    %p96 = scmp.eq.s32.totalorder %s20, 0
    %p97 = por %p95, %p96
    %p98 = scmp.ne.s32.totalorder %s86, %s87
    %p99 = scmp.eq.s32.totalorder %s21, 1
    %p100 = por %p98, %p99
    %p102 = scmp.ne.s32.totalorder %s87, %s101
    %p103 = scmp.eq.s32.totalorder %s21, 0
    %p104 = por %p102, %p103
    %s106 = sadd.s32 %s105, 1
    %p109 = scmp.eq.s32.totalorder %s15, 1
    %p110 = scmp.ne.s32.totalorder %s105, %s107
    %p111 = scmp.eq.s32.totalorder %s15, 0
    %p112 = por %p110, %p111
    %p113 = scmp.ne.s32.totalorder %s105, %s107
    %p114 = scmp.eq.s32.totalorder %s20, 1
    %p115 = por %p113, %p114
    %p116 = scmp.ne.s32.totalorder %s107, %s108
    %p117 = scmp.eq.s32.totalorder %s20, 0
    %p118 = por %p116, %p117
    %p119 = scmp.ne.s32.totalorder %s107, %s108
    %p120 = scmp.eq.s32.totalorder %s21, 1
    %p121 = por %p119, %p120
    %p123 = scmp.ne.s32.totalorder %s108, %s122
    %p124 = scmp.eq.s32.totalorder %s21, 0
    %p125 = por %p123, %p124
    %s127 = sadd.s32 %s126, 1
    %p130 = scmp.eq.s32.totalorder %s15, 1
    %p131 = scmp.ne.s32.totalorder %s126, %s128
    %p132 = scmp.eq.s32.totalorder %s15, 0
    %p133 = por %p131, %p132
    %p134 = scmp.ne.s32.totalorder %s126, %s128
    %p135 = scmp.eq.s32.totalorder %s20, 1
    %p136 = por %p134, %p135
    %p137 = scmp.ne.s32.totalorder %s128, %s129
    %p138 = scmp.eq.s32.totalorder %s20, 0
    %p139 = por %p137, %p138
    %p140 = scmp.ne.s32.totalorder %s128, %s129
    %p141 = scmp.eq.s32.totalorder %s21, 1
    %p142 = por %p140, %p141
    %p144 = scmp.ne.s32.totalorder %s129, %s143
    %p145 = scmp.eq.s32.totalorder %s21, 0
    %p146 = por %p144, %p145
    %s148 = sadd.s32 %s147, 1
    %p151 = scmp.eq.s32.totalorder %s15, 1
    %p152 = scmp.ne.s32.totalorder %s147, %s149
    %p153 = scmp.eq.s32.totalorder %s15, 0
    %p154 = por %p152, %p153
    %p155 = scmp.ne.s32.totalorder %s147, %s149
    %p156 = scmp.eq.s32.totalorder %s20, 1
    %p157 = por %p155, %p156
    %p158 = scmp.ne.s32.totalorder %s149, %s150
    %p159 = scmp.eq.s32.totalorder %s20, 0
    %p160 = por %p158, %p159
    %p161 = scmp.ne.s32.totalorder %s149, %s150
    %p162 = scmp.eq.s32.totalorder %s21, 1
    %p163 = por %p161, %p162
    %p165 = scmp.ne.s32.totalorder %s150, %s164
    %p166 = scmp.eq.s32.totalorder %s21, 0
    %p167 = por %p165, %p166
    %s169 = sadd.s32 %s168, 1
    %p172 = scmp.eq.s32.totalorder %s15, 1
    %p173 = scmp.ne.s32.totalorder %s168, %s170
    %p174 = scmp.eq.s32.totalorder %s15, 0
    %p175 = por %p173, %p174
    %p176 = scmp.ne.s32.totalorder %s168, %s170
    %p177 = scmp.eq.s32.totalorder %s20, 1
    %p178 = por %p176, %p177
    %p179 = scmp.ne.s32.totalorder %s170, %s171
    %p180 = scmp.eq.s32.totalorder %s20, 0
    %p181 = por %p179, %p180
    %p182 = scmp.ne.s32.totalorder %s170, %s171
    %p183 = scmp.eq.s32.totalorder %s21, 1
    %p184 = por %p182, %p183
    %p186 = scmp.ne.s32.totalorder %s171, %s185
    %p187 = scmp.eq.s32.totalorder %s21, 0
    %p188 = por %p186, %p187
    %s190 = sadd.s32 %s189, 1
    %p193 = scmp.eq.s32.totalorder %s15, 1
    %p194 = scmp.ne.s32.totalorder %s189, %s191
    %p195 = scmp.eq.s32.totalorder %s15, 0
    %p196 = por %p194, %p195
    %p197 = scmp.ne.s32.totalorder %s189, %s191
    %p198 = scmp.eq.s32.totalorder %s20, 1
    %p199 = por %p197, %p198
    %p200 = scmp.ne.s32.totalorder %s191, %s192
    %p201 = scmp.eq.s32.totalorder %s20, 0
    %p202 = por %p200, %p201
    %p203 = scmp.ne.s32.totalorder %s191, %s192
    %p204 = scmp.eq.s32.totalorder %s21, 1
    %p205 = por %p203, %p204
    %p207 = scmp.ne.s32.totalorder %s192, %s206
    %p208 = scmp.eq.s32.totalorder %s21, 0
    %p209 = por %p207, %p208
    %s211 = sadd.s32 %s210, 1
    %p214 = scmp.eq.s32.totalorder %s15, 1
    %p215 = scmp.ne.s32.totalorder %s210, %s212
    %p216 = scmp.eq.s32.totalorder %s15, 0
    %p217 = por %p215, %p216
    %p218 = scmp.ne.s32.totalorder %s210, %s212
    %p219 = scmp.eq.s32.totalorder %s20, 1
    %p220 = por %p218, %p219
    %p221 = scmp.ne.s32.totalorder %s212, %s213
    %p222 = scmp.eq.s32.totalorder %s20, 0
    %p223 = por %p221, %p222
    %p224 = scmp.ne.s32.totalorder %s212, %s213
    %p225 = scmp.eq.s32.totalorder %s21, 1
    %p226 = por %p224, %p225
    %p228 = scmp.ne.s32.totalorder %s213, %s227
    %p229 = scmp.eq.s32.totalorder %s21, 0
    %p230 = por %p228, %p229
    %s231 = ssub.s32 %s22, %s34
    %s232 = ssub.s32 %s23, %s30
    %s233 = sor.u32 %s231, %s232
    %p234 = scmp.eq.s32.totalorder %s233, 0
    %s236 = sadd.s32 %s235, 1
    %s237 = scalar_select %p234, %s235, %s236
    %p240 = pneg %p234
    %p241 = scmp.eq.s32.totalorder %s15, 1
    %p242 = por %p240, %p241
    %p243 = scmp.ne.s32.totalorder %s235, %s238
    %p244 = scmp.eq.s32.totalorder %s15, 0
    %p245 = por %p243, %p244
    %p246 = scmp.ne.s32.totalorder %s235, %s238
    %p247 = scmp.eq.s32.totalorder %s20, 1
    %p248 = por %p246, %p247
    %p249 = scmp.ne.s32.totalorder %s238, %s239
    %p250 = scmp.eq.s32.totalorder %s20, 0
    %p251 = por %p249, %p250
    %p252 = scmp.ne.s32.totalorder %s238, %s239
    %p253 = scmp.eq.s32.totalorder %s21, 1
    %p254 = por %p252, %p253
    %p256 = scmp.ne.s32.totalorder %s239, %s255
    %p257 = scmp.eq.s32.totalorder %s21, 0
    %p258 = por %p256, %p257
    %p259 = scmp.le.s32.totalorder 1, %s15
    %p260 = scmp.lt.s32.totalorder %s15, 3
    %p261 = pnand %p259, %p260
    %p262 = pneg %p261
    // Predicated region
    $region9: #{_lambda_.13} parent=5 // pred_check
      _
    $region10: #{_lambda_.13} parent=5 // pred_check_branch
      %264 = sbr.rel (%p261) target = $region12
    $region11: #{_lambda_.13} parent=5 // pred_region
      %s265 = ssub.s32 %s15, 1
      // Predicated region
      $region13: #{_lambda_.13} parent=11 // pred_check
        %p266 = pneg %p76
      $region14: #{_lambda_.13} parent=11 // pred_check_branch
        %268 = sbr.rel (%p266) target = $region16
      $region15: #{_lambda_.13} parent=11 // pred_region
        _
      $region16: #{_lambda_.13} parent=11 // pred_fallthru
        _
      // Predicated region
      $region17: #{_lambda_.13} parent=11 // pred_check
        %p269 = pneg %p97
      $region18: #{_lambda_.13} parent=11 // pred_check_branch
        %271 = sbr.rel (%p269) target = $region20
      $region19: #{_lambda_.13} parent=11 // pred_region
        _
      $region20: #{_lambda_.13} parent=11 // pred_fallthru
        _
      // Predicated region
      $region21: #{_lambda_.13} parent=11 // pred_check
        %p272 = pneg %p118
      $region22: #{_lambda_.13} parent=11 // pred_check_branch
        %274 = sbr.rel (%p272) target = $region24
      $region23: #{_lambda_.13} parent=11 // pred_region
        _
      $region24: #{_lambda_.13} parent=11 // pred_fallthru
        _
      // Predicated region
      $region25: #{_lambda_.13} parent=11 // pred_check
        %p275 = pneg %p139
      $region26: #{_lambda_.13} parent=11 // pred_check_branch
        %277 = sbr.rel (%p275) target = $region28
      $region27: #{_lambda_.13} parent=11 // pred_region
        _
      $region28: #{_lambda_.13} parent=11 // pred_fallthru
        _
      // Predicated region
      $region29: #{_lambda_.13} parent=11 // pred_check
        %p278 = pneg %p160
      $region30: #{_lambda_.13} parent=11 // pred_check_branch
        %280 = sbr.rel (%p278) target = $region32
      $region31: #{_lambda_.13} parent=11 // pred_region
        _
      $region32: #{_lambda_.13} parent=11 // pred_fallthru
        _
      // Predicated region
      $region33: #{_lambda_.13} parent=11 // pred_check
        %p281 = pneg %p181
      $region34: #{_lambda_.13} parent=11 // pred_check_branch
        %283 = sbr.rel (%p281) target = $region36
      $region35: #{_lambda_.13} parent=11 // pred_region
        _
      $region36: #{_lambda_.13} parent=11 // pred_fallthru
        _
      // Predicated region
      $region37: #{_lambda_.13} parent=11 // pred_check
        %p284 = pneg %p202
      $region38: #{_lambda_.13} parent=11 // pred_check_branch
        %286 = sbr.rel (%p284) target = $region40
      $region39: #{_lambda_.13} parent=11 // pred_region
        _
      $region40: #{_lambda_.13} parent=11 // pred_fallthru
        _
      // Predicated region
      $region41: #{_lambda_.13} parent=11 // pred_check
        %p287 = pneg %p223
      $region42: #{_lambda_.13} parent=11 // pred_check_branch
        %289 = sbr.rel (%p287) target = $region44
      $region43: #{_lambda_.13} parent=11 // pred_region
        _
      $region44: #{_lambda_.13} parent=11 // pred_fallthru
        _
    $region12: #{_lambda_.13} parent=5 // pred_fallthru
      _
    %p290 = scmp.lt.s32.totalorder %s15, 2
    // Predicated region
    $region45: #{_lambda_.13} parent=5 // pred_check
      %p291 = pneg %p290
    $region46: #{_lambda_.13} parent=5 // pred_check_branch
      %293 = sbr.rel (%p291) target = $region48
    $region47: #{_lambda_.13} parent=5 // pred_region
      // Predicated region
      $region49: #{_lambda_.13} parent=47 // pred_check
        %p294 = pneg %p49
      $region50: #{_lambda_.13} parent=47 // pred_check_branch
        %296 = sbr.rel (%p294) target = $region52
      $region51: #{_lambda_.13} parent=47 // pred_region
        %s297 = smul.u32 2, %s23
        %p298 = scmp.lt.s32.totalorder %s22, 1
        %s299 = scalar_select %p298, %s22, 1
        %p300 = scmp.lt.s32.totalorder %s297, 1
        %s301 = scalar_select %p300, %s297, 1
        %s302 = smul.addr %s299, 2
        %s303 = sadd.s32 %s301, %s302
        %s304 = smul.addr %s303, 4
        %s305 = scalar_lea.vmem %s0, %s304
        %s306 = smul.u32 2, %s23
      $region52: #{_lambda_.13} parent=47 // pred_fallthru
        _
    $region48: #{_lambda_.13} parent=5 // pred_fallthru
      _
    %p307 = scmp.le.s32.totalorder 1, %s15
    %p308 = scmp.lt.s32.totalorder %s15, 3
    %p309 = pnand %p307, %p308
    %p310 = pneg %p309
    // Predicated region
    $region53: #{_lambda_.13} parent=5 // pred_check
      _
    $region54: #{_lambda_.13} parent=5 // pred_check_branch
      %312 = sbr.rel (%p309) target = $region56
    $region55: #{_lambda_.13} parent=5 // pred_region
      %s313 = ssub.s32 %s15, 1
      %s314 = smul.u32 2, %s25
      %p315 = scmp.lt.s32.totalorder %s24, 1
      %s316 = scalar_select %p315, %s24, 1
      %p317 = scmp.lt.s32.totalorder %s314, 1
      %s318 = scalar_select %p317, %s314, 1
      %s319 = smul.addr %s316, 2
      %s320 = sadd.s32 %s318, %s319
      %s321 = smul.addr %s320, 4
      %s322 = scalar_lea.vmem %s0, %s321
      %p323 = pneg %p55
      %p324 = pneg %p52
      %p325 = pneg %p76
      %p326 = pneg %p73
      %p327 = pneg %p97
      %p328 = pneg %p94
      %p329 = pneg %p118
      %p330 = pneg %p115
      %p331 = pneg %p139
      %p332 = pneg %p136
      %p333 = pneg %p160
      %p334 = pneg %p157
      %p335 = pneg %p181
      %p336 = pneg %p178
      %p337 = pneg %p202
      %p338 = pneg %p199
      %p339 = pneg %p223
      %p340 = pneg %p220
      %p341 = pneg %p251
      %p342 = pneg %p248
      %s343 = smul.u32 2, %s25
      %p344 = scmp.lt.s32.totalorder %s24, 1
      %s345 = scalar_select %p344, %s24, 1
      %p346 = scmp.lt.s32.totalorder %s343, 1
      %s347 = scalar_select %p346, %s343, 1
      %s348 = smul.addr %s345, 2
      %s349 = sadd.s32 %s347, %s348
      %s350 = smul.addr %s349, 4
      %s351 = scalar_lea.vmem %s9, %s350
      %s352 = smul.u32 2, %s25
      %p353 = scmp.lt.s32.totalorder %s24, 1
      %s354 = scalar_select %p353, %s24, 1
      %p355 = scmp.lt.s32.totalorder %s352, 1
      %s356 = scalar_select %p355, %s352, 1
      %s357 = smul.addr %s354, 2
      %s358 = sadd.s32 %s356, %s357
      %s359 = smul.addr %s358, 4
      %s360 = scalar_lea.vmem %s0, %s359
      %s361 = smul.u32 2, %s25
      %s362 = smul.u32 2, %s25
      %p363 = scmp.lt.s32.totalorder %s24, 1
      %s364 = scalar_select %p363, %s24, 1
      %p365 = scmp.lt.s32.totalorder %s362, 1
      %s366 = scalar_select %p365, %s362, 1
      %s367 = smul.addr %s364, 2
      %s368 = sadd.s32 %s366, %s367
      %s369 = smul.addr %s368, 4
      %s370 = scalar_lea.vmem %s9, %s369
      %s371 = smul.u32 2, %s25
      %v373 = vld [vmem:[%s360] sm:$0xf]
      %v374 = vld [vmem:[%s360 + $0x4] sm:$0xf]
      %v375 = vunpack.c.l.bf16 %v373
      %v376 = vunpack.c.l.bf16 %v374
      %v377 = vld [vmem:[%s1] sm:$0x1]
      %v378 = vld [vmem:[%s2] sm:$0x1]
      %vm379 = vcmask 261120
      %v380 = vsel %vm379, %v375, 0.0
      %381 = vadd.xlane.f32.xlu0 %v380
      %v382 = vpop.xlane.xlu0 %381
      %v383 = vsel %vm379, %v376, 0.0
      %384 = vadd.xlane.f32.xlu0 %v383
      %v385 = vpop.xlane.xlu0 %384
      %v386 = vrcp.pop 32.0
      %v387 = vmul.f32 %v382, %v386
      %v388 = vmul.f32 %v385, %v386
      %v389 = vsub.f32 %v375, %v387
      %v390 = vsub.f32 %v376, %v388
      %v391 = vmul.f32 %v389, %v389
      %v392 = vmul.f32 %v390, %v390
      %v393 = vsel %vm379, %v391, 0.0
      %394 = vadd.xlane.f32.xlu0 %v393
      %v395 = vpop.xlane.xlu0 %394
      %v396 = vsel %vm379, %v392, 0.0
      %397 = vadd.xlane.f32.xlu0 %v396
      %v398 = vpop.xlane.xlu0 %397
      %v399 = vmul.f32 %v395, %v386
      %v400 = vmul.f32 %v398, %v386
      %v401 = vadd.f32 %v399, 1e-12
      %v402 = vadd.f32 %v400, 1e-12
      %v403 = vrsqrt.pop %v401
      %v404 = vrsqrt.pop %v402
      %v405 = vmul.f32 %v389, %v403
      %v406 = vmul.f32 %v390, %v404
      %v408 = vlaneseq
      %v409 = vshrl.u32 %v408, 7
      %v410 = vsub.s32 0, %v409
      %v411 = vrot.slane %v377, %v410
      %v413 = vmul.f32 %v405, %v411
      %v414 = vmul.f32 %v406, %v411
      %v416 = vlaneseq
      %v417 = vshrl.u32 %v416, 7
      %v418 = vsub.s32 0, %v417
      %v419 = vrot.slane %v378, %v418
      %v421 = vadd.f32 %v413, %v419
      %v422 = vadd.f32 %v414, %v419
      %v423 = vpack.c.bf16 %v422, %v421
      %v424 = vld [vmem:[%s3] sm:$0xf]
      %v425 = vld [vmem:[%s3 + $0x4] sm:$0xf]
      %v426 = vld [vmem:[%s3 + $0x8] sm:$0xf]
      %v427 = vld [vmem:[%s3 + $0xc] sm:$0xf]
      %v428 = vld [vmem:[%s4] sm:$0x1]
      %v430 = vlaneseq
      %v431 = vshrl.u32 %v430, 7
      %v432 = vsub.s32 0, %v431
      %v433 = vrot.slane %v428, %v432
      %v439 = vunpack.c.l.b16 %v424
      %v440 = vunpack.c.l.b16 %v425
      %v441 = vunpack.c.l.b16 %v426
      %v442 = vunpack.c.l.b16 %v427
      %v443 = vpack.c.b16 %v440, %v439
      %v444 = vpack.c.b16 %v442, %v441
      %v448 = vsel %vm379, %v423, 0
      %450 = vmatprep.subr.bf16.mxu0 0
      %451 = vmatpush1.bf16.msra.mxu0 0
      %452 = vmatprep.subr.bf16.mxu0 0
      %453 = vmatpush1.bf16.msra.mxu0 0
      %454 = vmatprep.subr.bf16.mxu0 0
      %455 = vmatpush1.bf16.msra.mxu0 0
      %456 = vmatprep.subr.bf16.mxu0 0
      %457 = vmatpush1.bf16.msra.mxu0 0
      %458 = vmatprep.subr.bf16.mxu0 0
      %459 = vmatpush1.bf16.msra.mxu0 0
      %460 = vmatprep.subr.bf16.mxu0 0
      %461 = vmatpush1.bf16.msra.mxu0 0
      %462 = vmatprep.subr.bf16.mxu0 0
      %463 = vmatpush1.bf16.msra.mxu0 %v444
      %464 = vmatprep.subr.bf16.mxu0 0
      %465 = vmatpush1.bf16.msra.mxu0 %v443
      %466 = vmatprep.subr.bf16.mxu0 0
      %467 = vmatpush2.bf16.msra.mxu0 0
      %468 = vmatprep.subr.bf16.mxu0 0
      %469 = vmatpush2.bf16.msra.mxu0 0
      %470 = vmatprep.subr.bf16.mxu0 0
      %471 = vmatpush2.bf16.msra.mxu0 0
      %472 = vmatprep.subr.bf16.mxu0 0
      %473 = vmatpush2.bf16.msra.mxu0 0
      %474 = vmatprep.subr.bf16.mxu0 0
      %475 = vmatpush2.bf16.msra.mxu0 0
      %476 = vmatprep.subr.bf16.mxu0 0
      %477 = vmatpush2.bf16.msra.mxu0 0
      %478 = vmatprep.subr.bf16.mxu0 0
      %479 = vmatpush2.bf16.msra.mxu0 0
      %480 = vmatprep.subr.bf16.mxu0 0
      %481 = vmatpush2.bf16.msra.mxu0 0
      %482 = vmatprep.mubr.bf16.mxu0 0
      %483 = vmatmul.mubr.bf16.gmra.mxu0 %v448
      %v484 = vpop.f32.mrf.mxu0
      %v485 = vadd.f32 %v433, %v484
      %v486 = vpop.f32.mrf.mxu0
      %v487 = vpop.f32.mrf.mxu0
      %v488 = vadd.f32 %v433, %v487
      %v489 = vpop.f32.mrf.mxu0
      %490 = vdwg.mxu0
      %v491 = vmax.f32 %v485, 0.0
      %v492 = vmax.f32 %v488, 0.0
      %v493 = vpack.c.bf16 %v492, %v491
      %v494 = vld [vmem:[%s5] sm:$0xf]
      %v495 = vld [vmem:[%s5 + $0x4] sm:$0xf]
      %v496 = vld [vmem:[%s5 + $0x8] sm:$0xf]
      %v497 = vld [vmem:[%s5 + $0xc] sm:$0xf]
      %v498 = vld [vmem:[%s5 + $0x10] sm:$0xf]
      %v499 = vld [vmem:[%s5 + $0x14] sm:$0xf]
      %v500 = vld [vmem:[%s5 + $0x18] sm:$0xf]
      %v501 = vld [vmem:[%s5 + $0x1c] sm:$0xf]
      %v502 = vld [vmem:[%s6] sm:$0x1]
      %v504 = vlaneseq
      %v505 = vshrl.u32 %v504, 7
      %v506 = vsub.s32 0, %v505
      %v507 = vrot.slane %v502, %v506
      %v517 = vunpack.c.l.b16 %v494
      %v518 = vunpack.c.l.b16 %v495
      %v519 = vunpack.c.l.b16 %v496
      %v520 = vunpack.c.l.b16 %v497
      %v521 = vunpack.c.l.b16 %v498
      %v522 = vunpack.c.l.b16 %v499
      %v523 = vunpack.c.l.b16 %v500
      %v524 = vunpack.c.l.b16 %v501
      %v525 = vpack.c.b16 %v518, %v517
      %v526 = vpack.c.b16 %v520, %v519
      %v527 = vpack.c.b16 %v522, %v521
      %v528 = vpack.c.b16 %v524, %v523
      %vm533 = vcmask 523264
      %v535 = vsel %vm533, %v493, 0
      %537 = vmatprep.subr.bf16.mxu0 0
      %538 = vmatpush1.bf16.msra.mxu0 0
      %539 = vmatprep.subr.bf16.mxu0 0
      %540 = vmatpush1.bf16.msra.mxu0 0
      %541 = vmatprep.subr.bf16.mxu0 0
      %542 = vmatpush1.bf16.msra.mxu0 0
      %543 = vmatprep.subr.bf16.mxu0 0
      %544 = vmatpush1.bf16.msra.mxu0 0
      %545 = vmatprep.subr.bf16.mxu0 0
      %546 = vmatpush1.bf16.msra.mxu0 %v528
      %547 = vmatprep.subr.bf16.mxu0 0
      %548 = vmatpush1.bf16.msra.mxu0 %v527
      %549 = vmatprep.subr.bf16.mxu0 0
      %550 = vmatpush1.bf16.msra.mxu0 %v526
      %551 = vmatprep.subr.bf16.mxu0 0
      %552 = vmatpush1.bf16.msra.mxu0 %v525
      %553 = vmatprep.subr.bf16.mxu0 0
      %554 = vmatpush2.bf16.msra.mxu0 0
      %555 = vmatprep.subr.bf16.mxu0 0
      %556 = vmatpush2.bf16.msra.mxu0 0
      %557 = vmatprep.subr.bf16.mxu0 0
      %558 = vmatpush2.bf16.msra.mxu0 0
      %559 = vmatprep.subr.bf16.mxu0 0
      %560 = vmatpush2.bf16.msra.mxu0 0
      %561 = vmatprep.subr.bf16.mxu0 0
      %562 = vmatpush2.bf16.msra.mxu0 0
      %563 = vmatprep.subr.bf16.mxu0 0
      %564 = vmatpush2.bf16.msra.mxu0 0
      %565 = vmatprep.subr.bf16.mxu0 0
      %566 = vmatpush2.bf16.msra.mxu0 0
      %567 = vmatprep.subr.bf16.mxu0 0
      %568 = vmatpush2.bf16.msra.mxu0 0
      %569 = vmatprep.mubr.bf16.mxu0 0
      %570 = vmatmul.mubr.bf16.gmra.mxu0 %v535
      %v571 = vpop.f32.mrf.mxu0
      %v572 = vadd.f32 %v507, %v571
      %v573 = vpop.f32.mrf.mxu0
      %v574 = vpop.f32.mrf.mxu0
      %v575 = vadd.f32 %v507, %v574
      %v576 = vpop.f32.mrf.mxu0
      %577 = vdwg.mxu0
      %v578 = vmul.f32 %v572, 0.5
      %v579 = vmul.f32 %v575, 0.5
      %v580 = vadd.f32 %v375, %v578
      %v581 = vadd.f32 %v376, %v579
      %v582 = vld [vmem:[%s7] sm:$0x1]
      %v583 = vld [vmem:[%s8] sm:$0x1]
      %v584 = vsel %vm379, %v580, 0.0
      %585 = vadd.xlane.f32.xlu0 %v584
      %v586 = vpop.xlane.xlu0 %585
      %v587 = vsel %vm379, %v581, 0.0
      %588 = vadd.xlane.f32.xlu0 %v587
      %v589 = vpop.xlane.xlu0 %588
      %v590 = vmul.f32 %v586, %v386
      %v591 = vmul.f32 %v589, %v386
      %v592 = vsub.f32 %v580, %v590
      %v593 = vsub.f32 %v581, %v591
      %v594 = vmul.f32 %v592, %v592
      %v595 = vmul.f32 %v593, %v593
      %v596 = vsel %vm379, %v594, 0.0
      %597 = vadd.xlane.f32.xlu0 %v596
      %v598 = vpop.xlane.xlu0 %597
      %v599 = vsel %vm379, %v595, 0.0
      %600 = vadd.xlane.f32.xlu0 %v599
      %v601 = vpop.xlane.xlu0 %600
      %v602 = vmul.f32 %v598, %v386
      %v603 = vmul.f32 %v601, %v386
      %v604 = vadd.f32 %v602, 1e-12
      %v605 = vadd.f32 %v603, 1e-12
      %v606 = vrsqrt.pop %v604
      %v607 = vrsqrt.pop %v605
      %v608 = vmul.f32 %v592, %v606
      %v609 = vmul.f32 %v593, %v607
      %v611 = vlaneseq
      %v612 = vshrl.u32 %v611, 7
      %v613 = vsub.s32 0, %v612
      %v614 = vrot.slane %v582, %v613
      %v616 = vmul.f32 %v608, %v614
      %v617 = vmul.f32 %v609, %v614
      %v619 = vlaneseq
      %v620 = vshrl.u32 %v619, 7
      %v621 = vsub.s32 0, %v620
      %v622 = vrot.slane %v583, %v621
      %v624 = vadd.f32 %v616, %v622
      %v625 = vadd.f32 %v617, %v622
      %v626 = vpack.c.bf16 %v625, %v624
      %v628 = vunpack.c.l.b16 %v626
      %v629 = vunpack.c.h.b16 %v626
      %v630 = vpack.c.b16 %v628, %v628
      %v631 = vpack.c.b16 %v629, %v629
      %vm634 = vcmask 257024
      %635 = vst.msk [vmem:[%s370] sm:$0xf] %vm634, %v630
      %636 = vst.msk [vmem:[%s370 + $0x4] sm:$0xf] %vm634, %v631
      %s637 = smul.u32 2, %s25
      %p638 = scmp.lt.s32.totalorder %s24, 1
      %s639 = scalar_select %p638, %s24, 1
      %p640 = scmp.lt.s32.totalorder %s637, 1
      %s641 = scalar_select %p640, %s637, 1
      %s642 = smul.addr %s639, 2
      %s643 = sadd.s32 %s641, %s642
      %s644 = smul.addr %s643, 4
      %s645 = scalar_lea.vmem %s9, %s644
      // Predicated region
      $region57: #{_lambda_.13} parent=55 // pred_check
        %p646 = pneg %p248
      $region58: #{_lambda_.13} parent=55 // pred_check_branch
        %648 = sbr.rel (%p646) target = $region60
      $region59: #{_lambda_.13} parent=55 // pred_region
        %s649 = smul.u32 2, %s25
      $region60: #{_lambda_.13} parent=55 // pred_fallthru
        _
    $region56: #{_lambda_.13} parent=5 // pred_fallthru
      _
    %p650 = scmp.le.s32.totalorder 2, %s15
    // Predicated region
    $region61: #{_lambda_.13} parent=5 // pred_check
      %p651 = pneg %p650
    $region62: #{_lambda_.13} parent=5 // pred_check_branch
      %653 = sbr.rel (%p651) target = $region64
    $region63: #{_lambda_.13} parent=5 // pred_region
      %s654 = ssub.s32 %s15, 2
      // Predicated region
      $region65: #{_lambda_.13} parent=63 // pred_check
        %p655 = pneg %p254
      $region66: #{_lambda_.13} parent=63 // pred_check_branch
        %657 = sbr.rel (%p655) target = $region68
      $region67: #{_lambda_.13} parent=63 // pred_region
        %s658 = smul.u32 2, %s27
        %p659 = scmp.lt.s32.totalorder %s26, 1
        %s660 = scalar_select %p659, %s26, 1
        %p661 = scmp.lt.s32.totalorder %s658, 1
        %s662 = scalar_select %p661, %s658, 1
        %s663 = smul.addr %s660, 2
        %s664 = sadd.s32 %s662, %s663
        %s665 = smul.addr %s664, 4
        %s666 = scalar_lea.vmem %s9, %s665
      $region68: #{_lambda_.13} parent=63 // pred_fallthru
        _
    $region64: #{_lambda_.13} parent=5 // pred_fallthru
      _
  $region6: #{_lambda_.13} parent=0 // loop_footer
    %s19 = sadd.s32 1, %s15
  $region7: #{_lambda_.13} parent=0 // loop_footer_branch
    %14 = sbr.rel target = $region3
  $region8: #{_lambda_.13} parent=0 // loop_exit
    _

// kernel: _lambda_.12
$region0: #{_lambda_.12}
  #allocation0 [shape = 'u32[]', space=smem, size = 0x4, offset = 0x4, fixed_abs, tag = 'smem constant byte address 0x4 - core index']
  #allocation1 [shape = 'u32[144,128]{1,0:T(1,128)}', space=vmem, size = 0x12000, scoped, tag = 'internal scratch']
  %s0 = inlined_call_operand.vmem [shape: bf16[2,16,32], index: 0, kind: input, shape index: {}]
  %s1 = inlined_call_operand.vmem [shape: f32[1,32], index: 1, kind: input, shape index: {}]
  %s2 = inlined_call_operand.vmem [shape: f32[1,32], index: 2, kind: input, shape index: {}]
  %s3 = inlined_call_operand.vmem [shape: bf16[32,64], index: 3, kind: input, shape index: {}]
  %s4 = inlined_call_operand.vmem [shape: f32[1,64], index: 4, kind: input, shape index: {}]
  %s5 = inlined_call_operand.vmem [shape: f32[7,32], index: 5, kind: input, shape index: {}]
  %s6 = inlined_call_operand.vmem [shape: f32[1,32], index: 6, kind: input, shape index: {}]
  %s7 = inlined_call_operand.vmem [shape: f32[1,32], index: 7, kind: input, shape index: {}]
  %s8 = inlined_call_operand.vmem [shape: bf16[32,32], index: 8, kind: input, shape index: {}]
  %s9 = inlined_call_operand.vmem [shape: f32[1,32], index: 9, kind: input, shape index: {}]
  %s10 = inlined_call_operand.vmem [shape: bf16[2,16,32], index: 10, kind: output, shape index: {}]
  %s11 = sld [smem:[#allocation0]]
  $region73: #{_lambda_.12} parent=0
    _
  %s13 = ssub.s32 1, %s11
  %s14 = scalar_select 0, %s13, %s11
  loop: start=0, step=1, limit=4
  $region2: #{_lambda_.12} parent=0 // loop_pre_header
    _
  $region3: #{_lambda_.12} parent=0 // loop_header
    %s16 = sphi 0, %s20
    %p17 = scmp.ge.s32.totalorder %s16, 4
    %s26 = sphi 0, %s28
    %s29 = sphi 0, %s26
    %s30 = sphi 0, %s29
    %s46 = sphi 0, %s30
    %s50 = sphi 0, %s50
    %s52 = sphi 0, %s50
    %s53 = sphi 0, %s52
    %s67 = sphi 0, %s53
    %s71 = sphi 0, %s71
    %s73 = sphi 0, %s71
    %s74 = sphi 0, %s73
    %s88 = sphi 0, %s74
    %s92 = sphi 0, %s92
    %s94 = sphi 0, %s92
    %s95 = sphi 0, %s94
    %s109 = sphi 0, %s95
    %s113 = sphi 0, %s113
    %s115 = sphi 0, %s113
    %s116 = sphi 0, %s115
    %s130 = sphi 0, %s116
    %s134 = sphi 0, %s134
    %s136 = sphi 0, %s134
    %s137 = sphi 0, %s136
    %s151 = sphi 0, %s137
    %s155 = sphi 0, %s155
    %s157 = sphi 0, %s155
    %s158 = sphi 0, %s157
    %s172 = sphi 0, %s158
    %s176 = sphi 0, %s176
    %s178 = sphi 0, %s176
    %s179 = sphi 0, %s178
    %s193 = sphi 0, %s179
    %s197 = sphi 0, %s197
    %s199 = sphi 0, %s197
    %s200 = sphi 0, %s199
    %s214 = sphi 0, %s200
    %s218 = sphi 0, %s218
    %s220 = sphi 0, %s218
    %s221 = sphi 0, %s220
    %s235 = sphi 0, %s221
    %s241 = sphi 0, %s243
    %s244 = sphi 0, %s241
    %s245 = sphi 0, %s244
    %s261 = sphi 0, %s245
  $region4: #{_lambda_.12} parent=0 // loop_header_branch
    %19 = sbr.rel (%p17) target = $region8
  $region5: #{_lambda_.12} parent=0 // loop_body
    %s21 = ssub.s32 %s16, 1
    %s22 = ssub.s32 %s16, 2
    %s23 = sadd.s32 %s16, 1
    %s24 = ssub.s32 %s16, %s23
    %p25 = scmp.eq.s32.totalorder %s24, 0
    %s27 = sadd.s32 %s26, 1
    %s28 = scalar_select %p25, %s26, %s27
    %p31 = pneg %p25
    %p32 = scmp.eq.s32.totalorder %s16, 1
    %p33 = por %p31, %p32
    %p34 = scmp.ne.s32.totalorder %s26, %s29
    %p35 = scmp.eq.s32.totalorder %s16, 0
    %p36 = por %p34, %p35
    %p37 = scmp.ne.s32.totalorder %s26, %s29
    %p38 = scmp.eq.s32.totalorder %s21, 1
    %p39 = por %p37, %p38
    %p40 = scmp.ne.s32.totalorder %s29, %s30
    %p41 = scmp.eq.s32.totalorder %s21, 0
    %p42 = por %p40, %p41
    %p43 = scmp.ne.s32.totalorder %s29, %s30
    %p44 = scmp.eq.s32.totalorder %s22, 1
    %p45 = por %p43, %p44
    %p47 = scmp.ne.s32.totalorder %s30, %s46
    %p48 = scmp.eq.s32.totalorder %s22, 0
    %p49 = por %p47, %p48
    %s51 = sadd.s32 %s50, 1
    %p54 = scmp.eq.s32.totalorder %s16, 1
    %p55 = scmp.ne.s32.totalorder %s50, %s52
    %p56 = scmp.eq.s32.totalorder %s16, 0
    %p57 = por %p55, %p56
    %p58 = scmp.ne.s32.totalorder %s50, %s52
    %p59 = scmp.eq.s32.totalorder %s21, 1
    %p60 = por %p58, %p59
    %p61 = scmp.ne.s32.totalorder %s52, %s53
    %p62 = scmp.eq.s32.totalorder %s21, 0
    %p63 = por %p61, %p62
    %p64 = scmp.ne.s32.totalorder %s52, %s53
    %p65 = scmp.eq.s32.totalorder %s22, 1
    %p66 = por %p64, %p65
    %p68 = scmp.ne.s32.totalorder %s53, %s67
    %p69 = scmp.eq.s32.totalorder %s22, 0
    %p70 = por %p68, %p69
    %s72 = sadd.s32 %s71, 1
    %p75 = scmp.eq.s32.totalorder %s16, 1
    %p76 = scmp.ne.s32.totalorder %s71, %s73
    %p77 = scmp.eq.s32.totalorder %s16, 0
    %p78 = por %p76, %p77
    %p79 = scmp.ne.s32.totalorder %s71, %s73
    %p80 = scmp.eq.s32.totalorder %s21, 1
    %p81 = por %p79, %p80
    %p82 = scmp.ne.s32.totalorder %s73, %s74
    %p83 = scmp.eq.s32.totalorder %s21, 0
    %p84 = por %p82, %p83
    %p85 = scmp.ne.s32.totalorder %s73, %s74
    %p86 = scmp.eq.s32.totalorder %s22, 1
    %p87 = por %p85, %p86
    %p89 = scmp.ne.s32.totalorder %s74, %s88
    %p90 = scmp.eq.s32.totalorder %s22, 0
    %p91 = por %p89, %p90
    %s93 = sadd.s32 %s92, 1
    %p96 = scmp.eq.s32.totalorder %s16, 1
    %p97 = scmp.ne.s32.totalorder %s92, %s94
    %p98 = scmp.eq.s32.totalorder %s16, 0
    %p99 = por %p97, %p98
    %p100 = scmp.ne.s32.totalorder %s92, %s94
    %p101 = scmp.eq.s32.totalorder %s21, 1
    %p102 = por %p100, %p101
    %p103 = scmp.ne.s32.totalorder %s94, %s95
    %p104 = scmp.eq.s32.totalorder %s21, 0
    %p105 = por %p103, %p104
    %p106 = scmp.ne.s32.totalorder %s94, %s95
    %p107 = scmp.eq.s32.totalorder %s22, 1
    %p108 = por %p106, %p107
    %p110 = scmp.ne.s32.totalorder %s95, %s109
    %p111 = scmp.eq.s32.totalorder %s22, 0
    %p112 = por %p110, %p111
    %s114 = sadd.s32 %s113, 1
    %p117 = scmp.eq.s32.totalorder %s16, 1
    %p118 = scmp.ne.s32.totalorder %s113, %s115
    %p119 = scmp.eq.s32.totalorder %s16, 0
    %p120 = por %p118, %p119
    %p121 = scmp.ne.s32.totalorder %s113, %s115
    %p122 = scmp.eq.s32.totalorder %s21, 1
    %p123 = por %p121, %p122
    %p124 = scmp.ne.s32.totalorder %s115, %s116
    %p125 = scmp.eq.s32.totalorder %s21, 0
    %p126 = por %p124, %p125
    %p127 = scmp.ne.s32.totalorder %s115, %s116
    %p128 = scmp.eq.s32.totalorder %s22, 1
    %p129 = por %p127, %p128
    %p131 = scmp.ne.s32.totalorder %s116, %s130
    %p132 = scmp.eq.s32.totalorder %s22, 0
    %p133 = por %p131, %p132
    %s135 = sadd.s32 %s134, 1
    %p138 = scmp.eq.s32.totalorder %s16, 1
    %p139 = scmp.ne.s32.totalorder %s134, %s136
    %p140 = scmp.eq.s32.totalorder %s16, 0
    %p141 = por %p139, %p140
    %p142 = scmp.ne.s32.totalorder %s134, %s136
    %p143 = scmp.eq.s32.totalorder %s21, 1
    %p144 = por %p142, %p143
    %p145 = scmp.ne.s32.totalorder %s136, %s137
    %p146 = scmp.eq.s32.totalorder %s21, 0
    %p147 = por %p145, %p146
    %p148 = scmp.ne.s32.totalorder %s136, %s137
    %p149 = scmp.eq.s32.totalorder %s22, 1
    %p150 = por %p148, %p149
    %p152 = scmp.ne.s32.totalorder %s137, %s151
    %p153 = scmp.eq.s32.totalorder %s22, 0
    %p154 = por %p152, %p153
    %s156 = sadd.s32 %s155, 1
    %p159 = scmp.eq.s32.totalorder %s16, 1
    %p160 = scmp.ne.s32.totalorder %s155, %s157
    %p161 = scmp.eq.s32.totalorder %s16, 0
    %p162 = por %p160, %p161
    %p163 = scmp.ne.s32.totalorder %s155, %s157
    %p164 = scmp.eq.s32.totalorder %s21, 1
    %p165 = por %p163, %p164
    %p166 = scmp.ne.s32.totalorder %s157, %s158
    %p167 = scmp.eq.s32.totalorder %s21, 0
    %p168 = por %p166, %p167
    %p169 = scmp.ne.s32.totalorder %s157, %s158
    %p170 = scmp.eq.s32.totalorder %s22, 1
    %p171 = por %p169, %p170
    %p173 = scmp.ne.s32.totalorder %s158, %s172
    %p174 = scmp.eq.s32.totalorder %s22, 0
    %p175 = por %p173, %p174
    %s177 = sadd.s32 %s176, 1
    %p180 = scmp.eq.s32.totalorder %s16, 1
    %p181 = scmp.ne.s32.totalorder %s176, %s178
    %p182 = scmp.eq.s32.totalorder %s16, 0
    %p183 = por %p181, %p182
    %p184 = scmp.ne.s32.totalorder %s176, %s178
    %p185 = scmp.eq.s32.totalorder %s21, 1
    %p186 = por %p184, %p185
    %p187 = scmp.ne.s32.totalorder %s178, %s179
    %p188 = scmp.eq.s32.totalorder %s21, 0
    %p189 = por %p187, %p188
    %p190 = scmp.ne.s32.totalorder %s178, %s179
    %p191 = scmp.eq.s32.totalorder %s22, 1
    %p192 = por %p190, %p191
    %p194 = scmp.ne.s32.totalorder %s179, %s193
    %p195 = scmp.eq.s32.totalorder %s22, 0
    %p196 = por %p194, %p195
    %s198 = sadd.s32 %s197, 1
    %p201 = scmp.eq.s32.totalorder %s16, 1
    %p202 = scmp.ne.s32.totalorder %s197, %s199
    %p203 = scmp.eq.s32.totalorder %s16, 0
    %p204 = por %p202, %p203
    %p205 = scmp.ne.s32.totalorder %s197, %s199
    %p206 = scmp.eq.s32.totalorder %s21, 1
    %p207 = por %p205, %p206
    %p208 = scmp.ne.s32.totalorder %s199, %s200
    %p209 = scmp.eq.s32.totalorder %s21, 0
    %p210 = por %p208, %p209
    %p211 = scmp.ne.s32.totalorder %s199, %s200
    %p212 = scmp.eq.s32.totalorder %s22, 1
    %p213 = por %p211, %p212
    %p215 = scmp.ne.s32.totalorder %s200, %s214
    %p216 = scmp.eq.s32.totalorder %s22, 0
    %p217 = por %p215, %p216
    %s219 = sadd.s32 %s218, 1
    %p222 = scmp.eq.s32.totalorder %s16, 1
    %p223 = scmp.ne.s32.totalorder %s218, %s220
    %p224 = scmp.eq.s32.totalorder %s16, 0
    %p225 = por %p223, %p224
    %p226 = scmp.ne.s32.totalorder %s218, %s220
    %p227 = scmp.eq.s32.totalorder %s21, 1
    %p228 = por %p226, %p227
    %p229 = scmp.ne.s32.totalorder %s220, %s221
    %p230 = scmp.eq.s32.totalorder %s21, 0
    %p231 = por %p229, %p230
    %p232 = scmp.ne.s32.totalorder %s220, %s221
    %p233 = scmp.eq.s32.totalorder %s22, 1
    %p234 = por %p232, %p233
    %p236 = scmp.ne.s32.totalorder %s221, %s235
    %p237 = scmp.eq.s32.totalorder %s22, 0
    %p238 = por %p236, %p237
    %s239 = ssub.s32 %s16, %s23
    %p240 = scmp.eq.s32.totalorder %s239, 0
    %s242 = sadd.s32 %s241, 1
    %s243 = scalar_select %p240, %s241, %s242
    %p246 = pneg %p240
    %p247 = scmp.eq.s32.totalorder %s16, 1
    %p248 = por %p246, %p247
    %p249 = scmp.ne.s32.totalorder %s241, %s244
    %p250 = scmp.eq.s32.totalorder %s16, 0
    %p251 = por %p249, %p250
    %p252 = scmp.ne.s32.totalorder %s241, %s244
    %p253 = scmp.eq.s32.totalorder %s21, 1
    %p254 = por %p252, %p253
    %p255 = scmp.ne.s32.totalorder %s244, %s245
    %p256 = scmp.eq.s32.totalorder %s21, 0
    %p257 = por %p255, %p256
    %p258 = scmp.ne.s32.totalorder %s244, %s245
    %p259 = scmp.eq.s32.totalorder %s22, 1
    %p260 = por %p258, %p259
    %p262 = scmp.ne.s32.totalorder %s245, %s261
    %p263 = scmp.eq.s32.totalorder %s22, 0
    %p264 = por %p262, %p263
    %p265 = scmp.le.s32.totalorder 1, %s16
    %p266 = scmp.lt.s32.totalorder %s16, 3
    %p267 = pnand %p265, %p266
    %p268 = pneg %p267
    // Predicated region
    $region9: #{_lambda_.12} parent=5 // pred_check
      _
    $region10: #{_lambda_.12} parent=5 // pred_check_branch
      %270 = sbr.rel (%p267) target = $region12
    $region11: #{_lambda_.12} parent=5 // pred_region
      %s271 = ssub.s32 %s16, 1
      // Predicated region
      $region13: #{_lambda_.12} parent=11 // pred_check
        %p272 = pneg %p63
      $region14: #{_lambda_.12} parent=11 // pred_check_branch
        %274 = sbr.rel (%p272) target = $region16
      $region15: #{_lambda_.12} parent=11 // pred_region
        _
      $region16: #{_lambda_.12} parent=11 // pred_fallthru
        _
      // Predicated region
      $region17: #{_lambda_.12} parent=11 // pred_check
        %p275 = pneg %p84
      $region18: #{_lambda_.12} parent=11 // pred_check_branch
        %277 = sbr.rel (%p275) target = $region20
      $region19: #{_lambda_.12} parent=11 // pred_region
        _
      $region20: #{_lambda_.12} parent=11 // pred_fallthru
        _
      // Predicated region
      $region21: #{_lambda_.12} parent=11 // pred_check
        %p278 = pneg %p105
      $region22: #{_lambda_.12} parent=11 // pred_check_branch
        %280 = sbr.rel (%p278) target = $region24
      $region23: #{_lambda_.12} parent=11 // pred_region
        _
      $region24: #{_lambda_.12} parent=11 // pred_fallthru
        _
      // Predicated region
      $region25: #{_lambda_.12} parent=11 // pred_check
        %p281 = pneg %p126
      $region26: #{_lambda_.12} parent=11 // pred_check_branch
        %283 = sbr.rel (%p281) target = $region28
      $region27: #{_lambda_.12} parent=11 // pred_region
        _
      $region28: #{_lambda_.12} parent=11 // pred_fallthru
        _
      // Predicated region
      $region29: #{_lambda_.12} parent=11 // pred_check
        %p284 = pneg %p147
      $region30: #{_lambda_.12} parent=11 // pred_check_branch
        %286 = sbr.rel (%p284) target = $region32
      $region31: #{_lambda_.12} parent=11 // pred_region
        _
      $region32: #{_lambda_.12} parent=11 // pred_fallthru
        _
      // Predicated region
      $region33: #{_lambda_.12} parent=11 // pred_check
        %p287 = pneg %p168
      $region34: #{_lambda_.12} parent=11 // pred_check_branch
        %289 = sbr.rel (%p287) target = $region36
      $region35: #{_lambda_.12} parent=11 // pred_region
        _
      $region36: #{_lambda_.12} parent=11 // pred_fallthru
        _
      // Predicated region
      $region37: #{_lambda_.12} parent=11 // pred_check
        %p290 = pneg %p189
      $region38: #{_lambda_.12} parent=11 // pred_check_branch
        %292 = sbr.rel (%p290) target = $region40
      $region39: #{_lambda_.12} parent=11 // pred_region
        _
      $region40: #{_lambda_.12} parent=11 // pred_fallthru
        _
      // Predicated region
      $region41: #{_lambda_.12} parent=11 // pred_check
        %p293 = pneg %p210
      $region42: #{_lambda_.12} parent=11 // pred_check_branch
        %295 = sbr.rel (%p293) target = $region44
      $region43: #{_lambda_.12} parent=11 // pred_region
        _
      $region44: #{_lambda_.12} parent=11 // pred_fallthru
        _
      // Predicated region
      $region45: #{_lambda_.12} parent=11 // pred_check
        %p296 = pneg %p231
      $region46: #{_lambda_.12} parent=11 // pred_check_branch
        %298 = sbr.rel (%p296) target = $region48
      $region47: #{_lambda_.12} parent=11 // pred_region
        _
      $region48: #{_lambda_.12} parent=11 // pred_fallthru
        _
    $region12: #{_lambda_.12} parent=5 // pred_fallthru
      _
    %p299 = scmp.lt.s32.totalorder %s16, 2
    // Predicated region
    $region49: #{_lambda_.12} parent=5 // pred_check
      %p300 = pneg %p299
    $region50: #{_lambda_.12} parent=5 // pred_check_branch
      %302 = sbr.rel (%p300) target = $region52
    $region51: #{_lambda_.12} parent=5 // pred_region
      // Predicated region
      $region53: #{_lambda_.12} parent=51 // pred_check
        %p303 = pneg %p36
      $region54: #{_lambda_.12} parent=51 // pred_check_branch
        %305 = sbr.rel (%p303) target = $region56
      $region55: #{_lambda_.12} parent=51 // pred_region
        %p306 = scmp.lt.s32.totalorder %s16, 1
        %s307 = scalar_select %p306, %s16, 1
        %s308 = smul.addr %s307, 2
        %s309 = smul.addr %s308, 4
        %s310 = scalar_lea.vmem %s0, %s309
      $region56: #{_lambda_.12} parent=51 // pred_fallthru
        _
    $region52: #{_lambda_.12} parent=5 // pred_fallthru
      _
    %p311 = scmp.le.s32.totalorder 1, %s16
    %p312 = scmp.lt.s32.totalorder %s16, 3
    %p313 = pnand %p311, %p312
    %p314 = pneg %p313
    // Predicated region
    $region57: #{_lambda_.12} parent=5 // pred_check
      _
    $region58: #{_lambda_.12} parent=5 // pred_check_branch
      %316 = sbr.rel (%p313) target = $region60
    $region59: #{_lambda_.12} parent=5 // pred_region
      %s317 = ssub.s32 %s16, 1
      %p318 = scmp.lt.s32.totalorder %s21, 1
      %s319 = scalar_select %p318, %s21, 1
      %s320 = smul.addr %s319, 2
      %s321 = smul.addr %s320, 4
      %s322 = scalar_lea.vmem %s0, %s321
      %p323 = pneg %p42
      %p324 = pneg %p39
      %p325 = pneg %p63
      %p326 = pneg %p60
      %p327 = pneg %p84
      %p328 = pneg %p81
      %p329 = pneg %p105
      %p330 = pneg %p102
      %p331 = pneg %p126
      %p332 = pneg %p123
      %p333 = pneg %p147
      %p334 = pneg %p144
      %p335 = pneg %p168
      %p336 = pneg %p165
      %p337 = pneg %p189
      %p338 = pneg %p186
      %p339 = pneg %p210
      %p340 = pneg %p207
      %p341 = pneg %p231
      %p342 = pneg %p228
      %p343 = pneg %p257
      %p344 = pneg %p254
      %p345 = scmp.lt.s32.totalorder %s21, 1
      %s346 = scalar_select %p345, %s21, 1
      %s347 = smul.addr %s346, 2
      %s348 = smul.addr %s347, 4
      %s349 = scalar_lea.vmem %s10, %s348
      %p350 = scmp.lt.s32.totalorder %s21, 1
      %s351 = scalar_select %p350, %s21, 1
      %s352 = smul.addr %s351, 2
      %s353 = smul.addr %s352, 4
      %s354 = scalar_lea.vmem %s0, %s353
      %p355 = scmp.lt.s32.totalorder %s21, 1
      %s356 = scalar_select %p355, %s21, 1
      %s357 = smul.addr %s356, 2
      %s358 = smul.addr %s357, 4
      %s359 = scalar_lea.vmem %s10, %s358
      %v361 = vld [vmem:[%s354] sm:$0xf]
      %v362 = vld [vmem:[%s354 + $0x4] sm:$0xf]
      %v363 = vunpack.c.l.bf16 %v361
      %v364 = vunpack.c.l.bf16 %v362
      %v365 = vld [vmem:[%s1] sm:$0x1]
      %v366 = vld [vmem:[%s2] sm:$0x1]
      %vm367 = vcmask 261120
      %v368 = vsel %vm367, %v363, 0.0
      %369 = vadd.xlane.f32.xlu0 %v368
      %v370 = vpop.xlane.xlu0 %369
      %v371 = vsel %vm367, %v364, 0.0
      %372 = vadd.xlane.f32.xlu0 %v371
      %v373 = vpop.xlane.xlu0 %372
      %v374 = vrcp.pop 32.0
      %v375 = vmul.f32 %v370, %v374
      %v376 = vmul.f32 %v373, %v374
      %v377 = vsub.f32 %v363, %v375
      %v378 = vsub.f32 %v364, %v376
      %v379 = vmul.f32 %v377, %v377
      %v380 = vmul.f32 %v378, %v378
      %v381 = vsel %vm367, %v379, 0.0
      %382 = vadd.xlane.f32.xlu0 %v381
      %v383 = vpop.xlane.xlu0 %382
      %v384 = vsel %vm367, %v380, 0.0
      %385 = vadd.xlane.f32.xlu0 %v384
      %v386 = vpop.xlane.xlu0 %385
      %v387 = vmul.f32 %v383, %v374
      %v388 = vmul.f32 %v386, %v374
      %v389 = vadd.f32 %v387, 1e-12
      %v390 = vadd.f32 %v388, 1e-12
      %v391 = vrsqrt.pop %v389
      %v392 = vrsqrt.pop %v390
      %v393 = vmul.f32 %v377, %v391
      %v394 = vmul.f32 %v378, %v392
      %v396 = vlaneseq
      %v397 = vshrl.u32 %v396, 7
      %v398 = vsub.s32 0, %v397
      %v399 = vrot.slane %v365, %v398
      %v401 = vmul.f32 %v393, %v399
      %v402 = vmul.f32 %v394, %v399
      %v404 = vlaneseq
      %v405 = vshrl.u32 %v404, 7
      %v406 = vsub.s32 0, %v405
      %v407 = vrot.slane %v366, %v406
      %v409 = vadd.f32 %v401, %v407
      %v410 = vadd.f32 %v402, %v407
      %v411 = vpack.c.bf16 %v410, %v409
      %v412 = vld [vmem:[%s3] sm:$0xf]
      %v413 = vld [vmem:[%s3 + $0x4] sm:$0xf]
      %v414 = vld [vmem:[%s3 + $0x8] sm:$0xf]
      %v415 = vld [vmem:[%s3 + $0xc] sm:$0xf]
      %v416 = vld [vmem:[%s4] sm:$0x1]
      %v418 = vlaneseq
      %v419 = vshrl.u32 %v418, 7
      %v420 = vsub.s32 0, %v419
      %v421 = vrot.slane %v416, %v420
      %v427 = vunpack.c.l.b16 %v412
      %v428 = vunpack.c.l.b16 %v413
      %v429 = vunpack.c.l.b16 %v414
      %v430 = vunpack.c.l.b16 %v415
      %v431 = vpack.c.b16 %v428, %v427
      %v432 = vpack.c.b16 %v430, %v429
      %v436 = vsel %vm367, %v411, 0
      %438 = vmatprep.subr.bf16.mxu0 0
      %439 = vmatpush1.bf16.msra.mxu0 0
      %440 = vmatprep.subr.bf16.mxu0 0
      %441 = vmatpush1.bf16.msra.mxu0 0
      %442 = vmatprep.subr.bf16.mxu0 0
      %443 = vmatpush1.bf16.msra.mxu0 0
      %444 = vmatprep.subr.bf16.mxu0 0
      %445 = vmatpush1.bf16.msra.mxu0 0
      %446 = vmatprep.subr.bf16.mxu0 0
      %447 = vmatpush1.bf16.msra.mxu0 0
      %448 = vmatprep.subr.bf16.mxu0 0
      %449 = vmatpush1.bf16.msra.mxu0 0
      %450 = vmatprep.subr.bf16.mxu0 0
      %451 = vmatpush1.bf16.msra.mxu0 %v432
      %452 = vmatprep.subr.bf16.mxu0 0
      %453 = vmatpush1.bf16.msra.mxu0 %v431
      %454 = vmatprep.subr.bf16.mxu0 0
      %455 = vmatpush2.bf16.msra.mxu0 0
      %456 = vmatprep.subr.bf16.mxu0 0
      %457 = vmatpush2.bf16.msra.mxu0 0
      %458 = vmatprep.subr.bf16.mxu0 0
      %459 = vmatpush2.bf16.msra.mxu0 0
      %460 = vmatprep.subr.bf16.mxu0 0
      %461 = vmatpush2.bf16.msra.mxu0 0
      %462 = vmatprep.subr.bf16.mxu0 0
      %463 = vmatpush2.bf16.msra.mxu0 0
      %464 = vmatprep.subr.bf16.mxu0 0
      %465 = vmatpush2.bf16.msra.mxu0 0
      %466 = vmatprep.subr.bf16.mxu0 0
      %467 = vmatpush2.bf16.msra.mxu0 0
      %468 = vmatprep.subr.bf16.mxu0 0
      %469 = vmatpush2.bf16.msra.mxu0 0
      %470 = vmatprep.mubr.bf16.mxu0 0
      %471 = vmatmul.mubr.bf16.gmra.mxu0 %v436
      %v472 = vpop.f32.mrf.mxu0
      %v473 = vadd.f32 %v421, %v472
      %v474 = vpop.f32.mrf.mxu0
      %v475 = vpop.f32.mrf.mxu0
      %v476 = vadd.f32 %v421, %v475
      %v477 = vpop.f32.mrf.mxu0
      %478 = vdwg.mxu0
      %v479 = vxor.u32 %v473, 2147483648
      %v480 = vxor.u32 %v476, 2147483648
      %v481 = vmul.f32 %v479, 1.442695
      %v482 = vpow.pop %v481
      %v483 = vmul.f32 %v480, 1.442695
      %v484 = vpow.pop %v483
      %v485 = vadd.f32 %v482, 1.0
      %v486 = vadd.f32 %v484, 1.0
      %v487 = vrcp.pop %v485
      %v488 = vmul.f32 1.0, %v487
      %v489 = vrcp.pop %v486
      %v490 = vmul.f32 1.0, %v489
      %493 = vrot.lane.b32.xlu0 %v488, 96
      %v494 = vpop.permute.xlu0 %493
      %495 = vrot.lane.b32.xlu0 %v490, 96
      %v496 = vpop.permute.xlu0 %495
      %v499 = vmul.f32 %v473, %v494
      %v500 = vmul.f32 %v476, %v496
      %vm503 = vcmask 1042432
      %v504 = vrot.slane %v499, 5
      %v505 = vrot.slane %v500, 5
      %v506 = vsel %vm503, %v504, %v505
      %v510 = vsel %vm503, 0.0, %v504
      %v511 = vsel %vm503, %v505, 0.0
      %v512 = vld [vmem:[%s5] sm:$0x1]
      %v513 = vlaneseq
      %v514 = vshrl.u32 %v513, 7
      %v515 = vsub.s32 0, %v514
      %v516 = vrot.slane %v512, %v515
      %v517 = vmul.f32 %v510, %v516
      %v518 = vmul.f32 %v506, %v516
      %v519 = vadd.f32 %v517, 0.0
      %v520 = vadd.f32 %v518, 0.0
      %v521 = vld [vmem:[%s5 + $0x1] sm:$0x1]
      %v522 = vlaneseq
      %v523 = vshrl.u32 %v522, 7
      %v524 = vsub.s32 0, %v523
      %v525 = vrot.slane %v521, %v524
      %v526 = vmul.f32 %v510, %v525
      %v527 = vmul.f32 %v506, %v525
      %v528 = vmul.f32 %v511, %v525
      %vm532 = vcmask 1046528
      %v533 = vrot.slane %v526, 1
      %v534 = vrot.slane %v527, 1
      %v535 = vsel %vm532, %v533, %v534
      %v536 = vrot.slane %v528, 1
      %v537 = vsel %vm532, %v534, %v536
      %v540 = vadd.f32 %v519, %v535
      %v541 = vadd.f32 %v520, %v537
      %v542 = vld [vmem:[%s5 + $0x2] sm:$0x1]
      %v543 = vlaneseq
      %v544 = vshrl.u32 %v543, 7
      %v545 = vsub.s32 0, %v544
      %v546 = vrot.slane %v542, %v545
      %v547 = vmul.f32 %v510, %v546
      %v548 = vmul.f32 %v506, %v546
      %v549 = vmul.f32 %v511, %v546
      %vm553 = vcmask 1045504
      %v554 = vrot.slane %v547, 2
      %v555 = vrot.slane %v548, 2
      %v556 = vsel %vm553, %v554, %v555
      %v557 = vrot.slane %v549, 2
      %v558 = vsel %vm553, %v555, %v557
      %v561 = vadd.f32 %v540, %v556
      %v562 = vadd.f32 %v541, %v558
      %v563 = vld [vmem:[%s5 + $0x3] sm:$0x1]
      %v564 = vlaneseq
      %v565 = vshrl.u32 %v564, 7
      %v566 = vsub.s32 0, %v565
      %v567 = vrot.slane %v563, %v566
      %v568 = vmul.f32 %v510, %v567
      %v569 = vmul.f32 %v506, %v567
      %v570 = vmul.f32 %v511, %v567
      %vm574 = vcmask 1044480
      %v575 = vrot.slane %v568, 3
      %v576 = vrot.slane %v569, 3
      %v577 = vsel %vm574, %v575, %v576
      %v578 = vrot.slane %v570, 3
      %v579 = vsel %vm574, %v576, %v578
      %v582 = vadd.f32 %v561, %v577
      %v583 = vadd.f32 %v562, %v579
      %v584 = vld [vmem:[%s5 + $0x4] sm:$0x1]
      %v585 = vlaneseq
      %v586 = vshrl.u32 %v585, 7
      %v587 = vsub.s32 0, %v586
      %v588 = vrot.slane %v584, %v587
      %v589 = vmul.f32 %v510, %v588
      %v590 = vmul.f32 %v506, %v588
      %v591 = vmul.f32 %v511, %v588
      %vm595 = vcmask 1043456
      %v596 = vrot.slane %v589, 4
      %v597 = vrot.slane %v590, 4
      %v598 = vsel %vm595, %v596, %v597
      %v599 = vrot.slane %v591, 4
      %v600 = vsel %vm595, %v597, %v599
      %v603 = vadd.f32 %v582, %v598
      %v604 = vadd.f32 %v583, %v600
      %v605 = vld [vmem:[%s5 + $0x5] sm:$0x1]
      %v606 = vlaneseq
      %v607 = vshrl.u32 %v606, 7
      %v608 = vsub.s32 0, %v607
      %v609 = vrot.slane %v605, %v608
      %v610 = vmul.f32 %v510, %v609
      %v611 = vmul.f32 %v506, %v609
      %v612 = vmul.f32 %v511, %v609
      %v616 = vrot.slane %v610, 5
      %v617 = vrot.slane %v611, 5
      %v618 = vsel %vm503, %v616, %v617
      %v619 = vrot.slane %v612, 5
      %v620 = vsel %vm503, %v617, %v619
      %v623 = vadd.f32 %v603, %v618
      %v624 = vadd.f32 %v604, %v620
      %v625 = vld [vmem:[%s5 + $0x6] sm:$0x1]
      %v626 = vlaneseq
      %v627 = vshrl.u32 %v626, 7
      %v628 = vsub.s32 0, %v627
      %v629 = vrot.slane %v625, %v628
      %v630 = vmul.f32 %v510, %v629
      %v631 = vmul.f32 %v506, %v629
      %v632 = vmul.f32 %v511, %v629
      %vm636 = vcmask 1041408
      %v637 = vrot.slane %v630, 6
      %v638 = vrot.slane %v631, 6
      %v639 = vsel %vm636, %v637, %v638
      %v640 = vrot.slane %v632, 6
      %v641 = vsel %vm636, %v638, %v640
      %v644 = vadd.f32 %v623, %v639
      %v645 = vadd.f32 %v624, %v641
      %v646 = vld [vmem:[%s6] sm:$0x1]
      %v648 = vlaneseq
      %v649 = vshrl.u32 %v648, 7
      %v650 = vsub.s32 0, %v649
      %v651 = vrot.slane %v646, %v650
      %v653 = vmul.f32 %v644, %v651
      %v654 = vmul.f32 %v645, %v651
      %v655 = vld [vmem:[%s7] sm:$0x1]
      %v657 = vlaneseq
      %v658 = vshrl.u32 %v657, 7
      %v659 = vsub.s32 0, %v658
      %v660 = vrot.slane %v655, %v659
      %v662 = vadd.f32 %v653, %v660
      %v663 = vadd.f32 %v654, %v660
      %v664 = vxor.u32 %v662, 2147483648
      %v665 = vxor.u32 %v663, 2147483648
      %v666 = vmul.f32 %v664, 1.442695
      %v667 = vpow.pop %v666
      %v668 = vmul.f32 %v665, 1.442695
      %v669 = vpow.pop %v668
      %v670 = vadd.f32 %v667, 1.0
      %v671 = vadd.f32 %v669, 1.0
      %v672 = vrcp.pop %v670
      %v673 = vmul.f32 1.0, %v672
      %v674 = vrcp.pop %v671
      %v675 = vmul.f32 1.0, %v674
      %v676 = vmul.f32 %v662, %v673
      %v677 = vmul.f32 %v663, %v675
      %v678 = vpack.c.bf16 %v677, %v676
      %v679 = vld [vmem:[%s8] sm:$0xf]
      %v680 = vld [vmem:[%s8 + $0x4] sm:$0xf]
      %v681 = vld [vmem:[%s8 + $0x8] sm:$0xf]
      %v682 = vld [vmem:[%s8 + $0xc] sm:$0xf]
      %v683 = vld [vmem:[%s9] sm:$0x1]
      %v685 = vlaneseq
      %v686 = vshrl.u32 %v685, 7
      %v687 = vsub.s32 0, %v686
      %v688 = vrot.slane %v683, %v687
      %v694 = vunpack.c.l.b16 %v679
      %v695 = vunpack.c.l.b16 %v680
      %v696 = vunpack.c.l.b16 %v681
      %v697 = vunpack.c.l.b16 %v682
      %v698 = vpack.c.b16 %v695, %v694
      %v699 = vpack.c.b16 %v697, %v696
      %v703 = vsel %vm367, %v678, 0
      %705 = vmatprep.subr.bf16.mxu0 0
      %706 = vmatpush1.bf16.msra.mxu0 0
      %707 = vmatprep.subr.bf16.mxu0 0
      %708 = vmatpush1.bf16.msra.mxu0 0
      %709 = vmatprep.subr.bf16.mxu0 0
      %710 = vmatpush1.bf16.msra.mxu0 0
      %711 = vmatprep.subr.bf16.mxu0 0
      %712 = vmatpush1.bf16.msra.mxu0 0
      %713 = vmatprep.subr.bf16.mxu0 0
      %714 = vmatpush1.bf16.msra.mxu0 0
      %715 = vmatprep.subr.bf16.mxu0 0
      %716 = vmatpush1.bf16.msra.mxu0 0
      %717 = vmatprep.subr.bf16.mxu0 0
      %718 = vmatpush1.bf16.msra.mxu0 %v699
      %719 = vmatprep.subr.bf16.mxu0 0
      %720 = vmatpush1.bf16.msra.mxu0 %v698
      %721 = vmatprep.subr.bf16.mxu0 0
      %722 = vmatpush2.bf16.msra.mxu0 0
      %723 = vmatprep.subr.bf16.mxu0 0
      %724 = vmatpush2.bf16.msra.mxu0 0
      %725 = vmatprep.subr.bf16.mxu0 0
      %726 = vmatpush2.bf16.msra.mxu0 0
      %727 = vmatprep.subr.bf16.mxu0 0
      %728 = vmatpush2.bf16.msra.mxu0 0
      %729 = vmatprep.subr.bf16.mxu0 0
      %730 = vmatpush2.bf16.msra.mxu0 0
      %731 = vmatprep.subr.bf16.mxu0 0
      %732 = vmatpush2.bf16.msra.mxu0 0
      %733 = vmatprep.subr.bf16.mxu0 0
      %734 = vmatpush2.bf16.msra.mxu0 0
      %735 = vmatprep.subr.bf16.mxu0 0
      %736 = vmatpush2.bf16.msra.mxu0 0
      %737 = vmatprep.mubr.bf16.mxu0 0
      %738 = vmatmul.mubr.bf16.gmra.mxu0 %v703
      %v739 = vpop.f32.mrf.mxu0
      %v740 = vadd.f32 %v688, %v739
      %v741 = vpop.f32.mrf.mxu0
      %v742 = vpop.f32.mrf.mxu0
      %v743 = vadd.f32 %v688, %v742
      %v744 = vpop.f32.mrf.mxu0
      %745 = vdwg.mxu0
      %v746 = vadd.f32 %v363, %v740
      %v747 = vadd.f32 %v364, %v743
      %v748 = vpack.c.bf16 %v747, %v746
      %v750 = vunpack.c.l.b16 %v748
      %v751 = vunpack.c.h.b16 %v748
      %v752 = vpack.c.b16 %v750, %v750
      %v753 = vpack.c.b16 %v751, %v751
      %vm756 = vcmask 257024
      %757 = vst.msk [vmem:[%s359] sm:$0xf] %vm756, %v752
      %758 = vst.msk [vmem:[%s359 + $0x4] sm:$0xf] %vm756, %v753
      %p759 = scmp.lt.s32.totalorder %s21, 1
      %s760 = scalar_select %p759, %s21, 1
      %s761 = smul.addr %s760, 2
      %s762 = smul.addr %s761, 4
      %s763 = scalar_lea.vmem %s10, %s762
      // Predicated region
      $region61: #{_lambda_.12} parent=59 // pred_check
        %p764 = pneg %p254
      $region62: #{_lambda_.12} parent=59 // pred_check_branch
        %766 = sbr.rel (%p764) target = $region64
      $region63: #{_lambda_.12} parent=59 // pred_region
        _
      $region64: #{_lambda_.12} parent=59 // pred_fallthru
        _
    $region60: #{_lambda_.12} parent=5 // pred_fallthru
      _
    %p767 = scmp.le.s32.totalorder 2, %s16
    // Predicated region
    $region65: #{_lambda_.12} parent=5 // pred_check
      %p768 = pneg %p767
    $region66: #{_lambda_.12} parent=5 // pred_check_branch
      %770 = sbr.rel (%p768) target = $region68
    $region67: #{_lambda_.12} parent=5 // pred_region
      %s771 = ssub.s32 %s16, 2
      // Predicated region
      $region69: #{_lambda_.12} parent=67 // pred_check
        %p772 = pneg %p260
      $region70: #{_lambda_.12} parent=67 // pred_check_branch
        %774 = sbr.rel (%p772) target = $region72
      $region71: #{_lambda_.12} parent=67 // pred_region
        %p775 = scmp.lt.s32.totalorder %s22, 1
        %s776 = scalar_select %p775, %s22, 1
        %s777 = smul.addr %s776, 2
        %s778 = smul.addr %s777, 4
        %s779 = scalar_lea.vmem %s10, %s778
      $region72: #{_lambda_.12} parent=67 // pred_fallthru
        _
    $region68: #{_lambda_.12} parent=5 // pred_fallthru
      _
  $region6: #{_lambda_.12} parent=0 // loop_footer
    %s20 = sadd.s32 1, %s16
  $region7: #{_lambda_.12} parent=0 // loop_footer_branch
    %15 = sbr.rel target = $region3
  $region8: #{_lambda_.12} parent=0 // loop_exit
    _

// kernel: _lambda_.11
$region0: #{_lambda_.11}
  #allocation0 [shape = 'u32[]', space=smem, size = 0x4, offset = 0x4, fixed_abs, tag = 'smem constant byte address 0x4 - core index']
  #allocation1 [shape = 'u32[144,128]{1,0:T(1,128)}', space=vmem, size = 0x12000, scoped, tag = 'internal scratch']
  #allocation2 [shape = 'f32[16,32]{1,0:T(8,128)}', space=vmem, size = 0x2000, scoped, tag = 'scratch operand']
  #allocation3 [shape = 'f32[16,32]{1,0:T(8,128)}', space=vmem, size = 0x2000, scoped, tag = 'scratch operand']
  %s0 = inlined_call_operand.vmem [shape: bf16[2,16,32], index: 0, kind: input, shape index: {}]
  %s1 = inlined_call_operand.vmem [shape: f32[1,32], index: 1, kind: input, shape index: {}]
  %s2 = inlined_call_operand.vmem [shape: f32[1,32], index: 2, kind: input, shape index: {}]
  %s3 = inlined_call_operand.vmem [shape: bf16[32,64], index: 3, kind: input, shape index: {}]
  %s4 = inlined_call_operand.vmem [shape: f32[1,64], index: 4, kind: input, shape index: {}]
  %s5 = inlined_call_operand.vmem [shape: bf16[64,32], index: 5, kind: input, shape index: {}]
  %s6 = inlined_call_operand.vmem [shape: f32[1,32], index: 6, kind: input, shape index: {}]
  %s7 = inlined_call_operand.vmem [shape: f32[1,32], index: 7, kind: input, shape index: {}]
  %s8 = inlined_call_operand.vmem [shape: f32[1,32], index: 8, kind: input, shape index: {}]
  %s9 = inlined_call_operand.vmem [shape: bf16[4,32,8], index: 9, kind: input, shape index: {}]
  %s10 = inlined_call_operand.vmem [shape: f32[4,1,8], index: 10, kind: input, shape index: {}]
  %s11 = inlined_call_operand.vmem [shape: bf16[4,32,8], index: 11, kind: input, shape index: {}]
  %s12 = inlined_call_operand.vmem [shape: f32[4,1,8], index: 12, kind: input, shape index: {}]
  %s13 = inlined_call_operand.vmem [shape: bf16[4,32,8], index: 13, kind: input, shape index: {}]
  %s14 = inlined_call_operand.vmem [shape: f32[4,1,8], index: 14, kind: input, shape index: {}]
  %s15 = inlined_call_operand.vmem [shape: f32[4,1,8], index: 15, kind: input, shape index: {}]
  %s16 = inlined_call_operand.vmem [shape: f32[4,1,8], index: 16, kind: input, shape index: {}]
  %s17 = inlined_call_operand.vmem [shape: bf16[4,128,8], index: 17, kind: input, shape index: {}]
  %s18 = inlined_call_operand.vmem [shape: bf16[4,8,32], index: 18, kind: input, shape index: {}]
  %s19 = inlined_call_operand.vmem [shape: f32[1,32], index: 19, kind: input, shape index: {}]
  %s20 = inlined_call_operand.vmem [shape: bf16[2,16,32], index: 20, kind: output, shape index: {}]
  %s21 = sld [smem:[#allocation0]]
  $region121: #{_lambda_.11} parent=0
    _
  %s23 = ssub.s32 1, %s21
  %s24 = scalar_select 0, %s23, %s21
  loop: start=0, step=1, limit=10
  $region2: #{_lambda_.11} parent=0 // loop_pre_header
    _
  $region3: #{_lambda_.11} parent=0 // loop_header
    %s26 = sphi 0, %s30
    %p27 = scmp.ge.s32.totalorder %s26, 10
    %s33 = sphi 0, %s45
    %s34 = sphi 0, %s41
    %s35 = sphi 0, %s33
    %s36 = sphi 0, %s34
    %s37 = sphi 0, %s35
    %s38 = sphi 0, %s36
    %s48 = sphi 0, %s50
    %s51 = sphi 0, %s48
    %s52 = sphi 0, %s51
    %s68 = sphi 0, %s52
    %s72 = sphi 0, %s72
    %s74 = sphi 0, %s72
    %s75 = sphi 0, %s74
    %s89 = sphi 0, %s75
    %s93 = sphi 0, %s93
    %s95 = sphi 0, %s93
    %s96 = sphi 0, %s95
    %s110 = sphi 0, %s96
    %s114 = sphi 0, %s114
    %s116 = sphi 0, %s114
    %s117 = sphi 0, %s116
    %s131 = sphi 0, %s117
    %s135 = sphi 0, %s135
    %s137 = sphi 0, %s135
    %s138 = sphi 0, %s137
    %s152 = sphi 0, %s138
    %s156 = sphi 0, %s156
    %s158 = sphi 0, %s156
    %s159 = sphi 0, %s158
    %s173 = sphi 0, %s159
    %s177 = sphi 0, %s177
    %s179 = sphi 0, %s177
    %s180 = sphi 0, %s179
    %s194 = sphi 0, %s180
    %s198 = sphi 0, %s198
    %s200 = sphi 0, %s198
    %s201 = sphi 0, %s200
    %s215 = sphi 0, %s201
    %s219 = sphi 0, %s219
    %s221 = sphi 0, %s219
    %s222 = sphi 0, %s221
    %s236 = sphi 0, %s222
    %s242 = sphi 0, %s244
    %s245 = sphi 0, %s242
    %s246 = sphi 0, %s245
    %s262 = sphi 0, %s246
    %s268 = sphi 0, %s270
    %s271 = sphi 0, %s268
    %s272 = sphi 0, %s271
    %s288 = sphi 0, %s272
    %s294 = sphi 0, %s296
    %s297 = sphi 0, %s294
    %s298 = sphi 0, %s297
    %s314 = sphi 0, %s298
    %s320 = sphi 0, %s322
    %s323 = sphi 0, %s320
    %s324 = sphi 0, %s323
    %s340 = sphi 0, %s324
    %s346 = sphi 0, %s348
    %s349 = sphi 0, %s346
    %s350 = sphi 0, %s349
    %s366 = sphi 0, %s350
    %s372 = sphi 0, %s374
    %s375 = sphi 0, %s372
    %s376 = sphi 0, %s375
    %s392 = sphi 0, %s376
    %s398 = sphi 0, %s400
    %s401 = sphi 0, %s398
    %s402 = sphi 0, %s401
    %s418 = sphi 0, %s402
    %s424 = sphi 0, %s426
    %s427 = sphi 0, %s424
    %s428 = sphi 0, %s427
    %s444 = sphi 0, %s428
    %s450 = sphi 0, %s452
    %s453 = sphi 0, %s450
    %s454 = sphi 0, %s453
    %s470 = sphi 0, %s454
    %s476 = sphi 0, %s478
    %s479 = sphi 0, %s476
    %s480 = sphi 0, %s479
    %s496 = sphi 0, %s480
    %s500 = sphi 0, %s500
    %s502 = sphi 0, %s500
    %s503 = sphi 0, %s502
    %s517 = sphi 0, %s503
    %s523 = sphi 0, %s525
    %s526 = sphi 0, %s523
    %s527 = sphi 0, %s526
    %s543 = sphi 0, %s527
  $region4: #{_lambda_.11} parent=0 // loop_header_branch
    %29 = sbr.rel (%p27) target = $region8
  $region5: #{_lambda_.11} parent=0 // loop_body
    %s31 = ssub.s32 %s26, 1
    %s32 = ssub.s32 %s26, 2
    %s39 = sadd.s32 1, %s34
    %p40 = scmp.ge.s32.totalorder %s39, 4
    %s41 = scalar_select %p40, 0, %s39
    %s42 = sadd.s32 1, %s33
    %s43 = scalar_select %p40, %s42, %s33
    %p44 = scmp.ge.s32.totalorder %s43, 2
    %s45 = scalar_select %p44, 0, %s43
    %s46 = ssub.s32 %s33, %s45
    %p47 = scmp.eq.s32.totalorder %s46, 0
    %s49 = sadd.s32 %s48, 1
    %s50 = scalar_select %p47, %s48, %s49
    %p53 = pneg %p47
    %p54 = scmp.eq.s32.totalorder %s26, 7
    %p55 = por %p53, %p54
    %p56 = scmp.ne.s32.totalorder %s48, %s51
    %p57 = scmp.eq.s32.totalorder %s26, 0
    %p58 = por %p56, %p57
    %p59 = scmp.ne.s32.totalorder %s48, %s51
    %p60 = scmp.eq.s32.totalorder %s31, 7
    %p61 = por %p59, %p60
    %p62 = scmp.ne.s32.totalorder %s51, %s52
    %p63 = scmp.eq.s32.totalorder %s31, 0
    %p64 = por %p62, %p63
    %p65 = scmp.ne.s32.totalorder %s51, %s52
    %p66 = scmp.eq.s32.totalorder %s32, 7
    %p67 = por %p65, %p66
    %p69 = scmp.ne.s32.totalorder %s52, %s68
    %p70 = scmp.eq.s32.totalorder %s32, 0
    %p71 = por %p69, %p70
    %s73 = sadd.s32 %s72, 1
    %p76 = scmp.eq.s32.totalorder %s26, 7
    %p77 = scmp.ne.s32.totalorder %s72, %s74
    %p78 = scmp.eq.s32.totalorder %s26, 0
    %p79 = por %p77, %p78
    %p80 = scmp.ne.s32.totalorder %s72, %s74
    %p81 = scmp.eq.s32.totalorder %s31, 7
    %p82 = por %p80, %p81
    %p83 = scmp.ne.s32.totalorder %s74, %s75
    %p84 = scmp.eq.s32.totalorder %s31, 0
    %p85 = por %p83, %p84
    %p86 = scmp.ne.s32.totalorder %s74, %s75
    %p87 = scmp.eq.s32.totalorder %s32, 7
    %p88 = por %p86, %p87
    %p90 = scmp.ne.s32.totalorder %s75, %s89
    %p91 = scmp.eq.s32.totalorder %s32, 0
    %p92 = por %p90, %p91
    %s94 = sadd.s32 %s93, 1
    %p97 = scmp.eq.s32.totalorder %s26, 7
    %p98 = scmp.ne.s32.totalorder %s93, %s95
    %p99 = scmp.eq.s32.totalorder %s26, 0
    %p100 = por %p98, %p99
    %p101 = scmp.ne.s32.totalorder %s93, %s95
    %p102 = scmp.eq.s32.totalorder %s31, 7
    %p103 = por %p101, %p102
    %p104 = scmp.ne.s32.totalorder %s95, %s96
    %p105 = scmp.eq.s32.totalorder %s31, 0
    %p106 = por %p104, %p105
    %p107 = scmp.ne.s32.totalorder %s95, %s96
    %p108 = scmp.eq.s32.totalorder %s32, 7
    %p109 = por %p107, %p108
    %p111 = scmp.ne.s32.totalorder %s96, %s110
    %p112 = scmp.eq.s32.totalorder %s32, 0
    %p113 = por %p111, %p112
    %s115 = sadd.s32 %s114, 1
    %p118 = scmp.eq.s32.totalorder %s26, 7
    %p119 = scmp.ne.s32.totalorder %s114, %s116
    %p120 = scmp.eq.s32.totalorder %s26, 0
    %p121 = por %p119, %p120
    %p122 = scmp.ne.s32.totalorder %s114, %s116
    %p123 = scmp.eq.s32.totalorder %s31, 7
    %p124 = por %p122, %p123
    %p125 = scmp.ne.s32.totalorder %s116, %s117
    %p126 = scmp.eq.s32.totalorder %s31, 0
    %p127 = por %p125, %p126
    %p128 = scmp.ne.s32.totalorder %s116, %s117
    %p129 = scmp.eq.s32.totalorder %s32, 7
    %p130 = por %p128, %p129
    %p132 = scmp.ne.s32.totalorder %s117, %s131
    %p133 = scmp.eq.s32.totalorder %s32, 0
    %p134 = por %p132, %p133
    %s136 = sadd.s32 %s135, 1
    %p139 = scmp.eq.s32.totalorder %s26, 7
    %p140 = scmp.ne.s32.totalorder %s135, %s137
    %p141 = scmp.eq.s32.totalorder %s26, 0
    %p142 = por %p140, %p141
    %p143 = scmp.ne.s32.totalorder %s135, %s137
    %p144 = scmp.eq.s32.totalorder %s31, 7
    %p145 = por %p143, %p144
    %p146 = scmp.ne.s32.totalorder %s137, %s138
    %p147 = scmp.eq.s32.totalorder %s31, 0
    %p148 = por %p146, %p147
    %p149 = scmp.ne.s32.totalorder %s137, %s138
    %p150 = scmp.eq.s32.totalorder %s32, 7
    %p151 = por %p149, %p150
    %p153 = scmp.ne.s32.totalorder %s138, %s152
    %p154 = scmp.eq.s32.totalorder %s32, 0
    %p155 = por %p153, %p154
    %s157 = sadd.s32 %s156, 1
    %p160 = scmp.eq.s32.totalorder %s26, 7
    %p161 = scmp.ne.s32.totalorder %s156, %s158
    %p162 = scmp.eq.s32.totalorder %s26, 0
    %p163 = por %p161, %p162
    %p164 = scmp.ne.s32.totalorder %s156, %s158
    %p165 = scmp.eq.s32.totalorder %s31, 7
    %p166 = por %p164, %p165
    %p167 = scmp.ne.s32.totalorder %s158, %s159
    %p168 = scmp.eq.s32.totalorder %s31, 0
    %p169 = por %p167, %p168
    %p170 = scmp.ne.s32.totalorder %s158, %s159
    %p171 = scmp.eq.s32.totalorder %s32, 7
    %p172 = por %p170, %p171
    %p174 = scmp.ne.s32.totalorder %s159, %s173
    %p175 = scmp.eq.s32.totalorder %s32, 0
    %p176 = por %p174, %p175
    %s178 = sadd.s32 %s177, 1
    %p181 = scmp.eq.s32.totalorder %s26, 7
    %p182 = scmp.ne.s32.totalorder %s177, %s179
    %p183 = scmp.eq.s32.totalorder %s26, 0
    %p184 = por %p182, %p183
    %p185 = scmp.ne.s32.totalorder %s177, %s179
    %p186 = scmp.eq.s32.totalorder %s31, 7
    %p187 = por %p185, %p186
    %p188 = scmp.ne.s32.totalorder %s179, %s180
    %p189 = scmp.eq.s32.totalorder %s31, 0
    %p190 = por %p188, %p189
    %p191 = scmp.ne.s32.totalorder %s179, %s180
    %p192 = scmp.eq.s32.totalorder %s32, 7
    %p193 = por %p191, %p192
    %p195 = scmp.ne.s32.totalorder %s180, %s194
    %p196 = scmp.eq.s32.totalorder %s32, 0
    %p197 = por %p195, %p196
    %s199 = sadd.s32 %s198, 1
    %p202 = scmp.eq.s32.totalorder %s26, 7
    %p203 = scmp.ne.s32.totalorder %s198, %s200
    %p204 = scmp.eq.s32.totalorder %s26, 0
    %p205 = por %p203, %p204
    %p206 = scmp.ne.s32.totalorder %s198, %s200
    %p207 = scmp.eq.s32.totalorder %s31, 7
    %p208 = por %p206, %p207
    %p209 = scmp.ne.s32.totalorder %s200, %s201
    %p210 = scmp.eq.s32.totalorder %s31, 0
    %p211 = por %p209, %p210
    %p212 = scmp.ne.s32.totalorder %s200, %s201
    %p213 = scmp.eq.s32.totalorder %s32, 7
    %p214 = por %p212, %p213
    %p216 = scmp.ne.s32.totalorder %s201, %s215
    %p217 = scmp.eq.s32.totalorder %s32, 0
    %p218 = por %p216, %p217
    %s220 = sadd.s32 %s219, 1
    %p223 = scmp.eq.s32.totalorder %s26, 7
    %p224 = scmp.ne.s32.totalorder %s219, %s221
    %p225 = scmp.eq.s32.totalorder %s26, 0
    %p226 = por %p224, %p225
    %p227 = scmp.ne.s32.totalorder %s219, %s221
    %p228 = scmp.eq.s32.totalorder %s31, 7
    %p229 = por %p227, %p228
    %p230 = scmp.ne.s32.totalorder %s221, %s222
    %p231 = scmp.eq.s32.totalorder %s31, 0
    %p232 = por %p230, %p231
    %p233 = scmp.ne.s32.totalorder %s221, %s222
    %p234 = scmp.eq.s32.totalorder %s32, 7
    %p235 = por %p233, %p234
    %p237 = scmp.ne.s32.totalorder %s222, %s236
    %p238 = scmp.eq.s32.totalorder %s32, 0
    %p239 = por %p237, %p238
    %s240 = ssub.s32 %s34, %s41
    %p241 = scmp.eq.s32.totalorder %s240, 0
    %s243 = sadd.s32 %s242, 1
    %s244 = scalar_select %p241, %s242, %s243
    %p247 = pneg %p241
    %p248 = scmp.eq.s32.totalorder %s26, 7
    %p249 = por %p247, %p248
    %p250 = scmp.ne.s32.totalorder %s242, %s245
    %p251 = scmp.eq.s32.totalorder %s26, 0
    %p252 = por %p250, %p251
    %p253 = scmp.ne.s32.totalorder %s242, %s245
    %p254 = scmp.eq.s32.totalorder %s31, 7
    %p255 = por %p253, %p254
    %p256 = scmp.ne.s32.totalorder %s245, %s246
    %p257 = scmp.eq.s32.totalorder %s31, 0
    %p258 = por %p256, %p257
    %p259 = scmp.ne.s32.totalorder %s245, %s246
    %p260 = scmp.eq.s32.totalorder %s32, 7
    %p261 = por %p259, %p260
    %p263 = scmp.ne.s32.totalorder %s246, %s262
    %p264 = scmp.eq.s32.totalorder %s32, 0
    %p265 = por %p263, %p264
    %s266 = ssub.s32 %s34, %s41
    %p267 = scmp.eq.s32.totalorder %s266, 0
    %s269 = sadd.s32 %s268, 1
    %s270 = scalar_select %p267, %s268, %s269
    %p273 = pneg %p267
    %p274 = scmp.eq.s32.totalorder %s26, 7
    %p275 = por %p273, %p274
    %p276 = scmp.ne.s32.totalorder %s268, %s271
    %p277 = scmp.eq.s32.totalorder %s26, 0
    %p278 = por %p276, %p277
    %p279 = scmp.ne.s32.totalorder %s268, %s271
    %p280 = scmp.eq.s32.totalorder %s31, 7
    %p281 = por %p279, %p280
    %p282 = scmp.ne.s32.totalorder %s271, %s272
    %p283 = scmp.eq.s32.totalorder %s31, 0
    %p284 = por %p282, %p283
    %p285 = scmp.ne.s32.totalorder %s271, %s272
    %p286 = scmp.eq.s32.totalorder %s32, 7
    %p287 = por %p285, %p286
    %p289 = scmp.ne.s32.totalorder %s272, %s288
    %p290 = scmp.eq.s32.totalorder %s32, 0
    %p291 = por %p289, %p290
    %s292 = ssub.s32 %s34, %s41
    %p293 = scmp.eq.s32.totalorder %s292, 0
    %s295 = sadd.s32 %s294, 1
    %s296 = scalar_select %p293, %s294, %s295
    %p299 = pneg %p293
    %p300 = scmp.eq.s32.totalorder %s26, 7
    %p301 = por %p299, %p300
    %p302 = scmp.ne.s32.totalorder %s294, %s297
    %p303 = scmp.eq.s32.totalorder %s26, 0
    %p304 = por %p302, %p303
    %p305 = scmp.ne.s32.totalorder %s294, %s297
    %p306 = scmp.eq.s32.totalorder %s31, 7
    %p307 = por %p305, %p306
    %p308 = scmp.ne.s32.totalorder %s297, %s298
    %p309 = scmp.eq.s32.totalorder %s31, 0
    %p310 = por %p308, %p309
    %p311 = scmp.ne.s32.totalorder %s297, %s298
    %p312 = scmp.eq.s32.totalorder %s32, 7
    %p313 = por %p311, %p312
    %p315 = scmp.ne.s32.totalorder %s298, %s314
    %p316 = scmp.eq.s32.totalorder %s32, 0
    %p317 = por %p315, %p316
    %s318 = ssub.s32 %s34, %s41
    %p319 = scmp.eq.s32.totalorder %s318, 0
    %s321 = sadd.s32 %s320, 1
    %s322 = scalar_select %p319, %s320, %s321
    %p325 = pneg %p319
    %p326 = scmp.eq.s32.totalorder %s26, 7
    %p327 = por %p325, %p326
    %p328 = scmp.ne.s32.totalorder %s320, %s323
    %p329 = scmp.eq.s32.totalorder %s26, 0
    %p330 = por %p328, %p329
    %p331 = scmp.ne.s32.totalorder %s320, %s323
    %p332 = scmp.eq.s32.totalorder %s31, 7
    %p333 = por %p331, %p332
    %p334 = scmp.ne.s32.totalorder %s323, %s324
    %p335 = scmp.eq.s32.totalorder %s31, 0
    %p336 = por %p334, %p335
    %p337 = scmp.ne.s32.totalorder %s323, %s324
    %p338 = scmp.eq.s32.totalorder %s32, 7
    %p339 = por %p337, %p338
    %p341 = scmp.ne.s32.totalorder %s324, %s340
    %p342 = scmp.eq.s32.totalorder %s32, 0
    %p343 = por %p341, %p342
    %s344 = ssub.s32 %s34, %s41
    %p345 = scmp.eq.s32.totalorder %s344, 0
    %s347 = sadd.s32 %s346, 1
    %s348 = scalar_select %p345, %s346, %s347
    %p351 = pneg %p345
    %p352 = scmp.eq.s32.totalorder %s26, 7
    %p353 = por %p351, %p352
    %p354 = scmp.ne.s32.totalorder %s346, %s349
    %p355 = scmp.eq.s32.totalorder %s26, 0
    %p356 = por %p354, %p355
    %p357 = scmp.ne.s32.totalorder %s346, %s349
    %p358 = scmp.eq.s32.totalorder %s31, 7
    %p359 = por %p357, %p358
    %p360 = scmp.ne.s32.totalorder %s349, %s350
    %p361 = scmp.eq.s32.totalorder %s31, 0
    %p362 = por %p360, %p361
    %p363 = scmp.ne.s32.totalorder %s349, %s350
    %p364 = scmp.eq.s32.totalorder %s32, 7
    %p365 = por %p363, %p364
    %p367 = scmp.ne.s32.totalorder %s350, %s366
    %p368 = scmp.eq.s32.totalorder %s32, 0
    %p369 = por %p367, %p368
    %s370 = ssub.s32 %s34, %s41
    %p371 = scmp.eq.s32.totalorder %s370, 0
    %s373 = sadd.s32 %s372, 1
    %s374 = scalar_select %p371, %s372, %s373
    %p377 = pneg %p371
    %p378 = scmp.eq.s32.totalorder %s26, 7
    %p379 = por %p377, %p378
    %p380 = scmp.ne.s32.totalorder %s372, %s375
    %p381 = scmp.eq.s32.totalorder %s26, 0
    %p382 = por %p380, %p381
    %p383 = scmp.ne.s32.totalorder %s372, %s375
    %p384 = scmp.eq.s32.totalorder %s31, 7
    %p385 = por %p383, %p384
    %p386 = scmp.ne.s32.totalorder %s375, %s376
    %p387 = scmp.eq.s32.totalorder %s31, 0
    %p388 = por %p386, %p387
    %p389 = scmp.ne.s32.totalorder %s375, %s376
    %p390 = scmp.eq.s32.totalorder %s32, 7
    %p391 = por %p389, %p390
    %p393 = scmp.ne.s32.totalorder %s376, %s392
    %p394 = scmp.eq.s32.totalorder %s32, 0
    %p395 = por %p393, %p394
    %s396 = ssub.s32 %s34, %s41
    %p397 = scmp.eq.s32.totalorder %s396, 0
    %s399 = sadd.s32 %s398, 1
    %s400 = scalar_select %p397, %s398, %s399
    %p403 = pneg %p397
    %p404 = scmp.eq.s32.totalorder %s26, 7
    %p405 = por %p403, %p404
    %p406 = scmp.ne.s32.totalorder %s398, %s401
    %p407 = scmp.eq.s32.totalorder %s26, 0
    %p408 = por %p406, %p407
    %p409 = scmp.ne.s32.totalorder %s398, %s401
    %p410 = scmp.eq.s32.totalorder %s31, 7
    %p411 = por %p409, %p410
    %p412 = scmp.ne.s32.totalorder %s401, %s402
    %p413 = scmp.eq.s32.totalorder %s31, 0
    %p414 = por %p412, %p413
    %p415 = scmp.ne.s32.totalorder %s401, %s402
    %p416 = scmp.eq.s32.totalorder %s32, 7
    %p417 = por %p415, %p416
    %p419 = scmp.ne.s32.totalorder %s402, %s418
    %p420 = scmp.eq.s32.totalorder %s32, 0
    %p421 = por %p419, %p420
    %s422 = ssub.s32 %s34, %s41
    %p423 = scmp.eq.s32.totalorder %s422, 0
    %s425 = sadd.s32 %s424, 1
    %s426 = scalar_select %p423, %s424, %s425
    %p429 = pneg %p423
    %p430 = scmp.eq.s32.totalorder %s26, 7
    %p431 = por %p429, %p430
    %p432 = scmp.ne.s32.totalorder %s424, %s427
    %p433 = scmp.eq.s32.totalorder %s26, 0
    %p434 = por %p432, %p433
    %p435 = scmp.ne.s32.totalorder %s424, %s427
    %p436 = scmp.eq.s32.totalorder %s31, 7
    %p437 = por %p435, %p436
    %p438 = scmp.ne.s32.totalorder %s427, %s428
    %p439 = scmp.eq.s32.totalorder %s31, 0
    %p440 = por %p438, %p439
    %p441 = scmp.ne.s32.totalorder %s427, %s428
    %p442 = scmp.eq.s32.totalorder %s32, 7
    %p443 = por %p441, %p442
    %p445 = scmp.ne.s32.totalorder %s428, %s444
    %p446 = scmp.eq.s32.totalorder %s32, 0
    %p447 = por %p445, %p446
    %s448 = ssub.s32 %s34, %s41
    %p449 = scmp.eq.s32.totalorder %s448, 0
    %s451 = sadd.s32 %s450, 1
    %s452 = scalar_select %p449, %s450, %s451
    %p455 = pneg %p449
    %p456 = scmp.eq.s32.totalorder %s26, 7
    %p457 = por %p455, %p456
    %p458 = scmp.ne.s32.totalorder %s450, %s453
    %p459 = scmp.eq.s32.totalorder %s26, 0
    %p460 = por %p458, %p459
    %p461 = scmp.ne.s32.totalorder %s450, %s453
    %p462 = scmp.eq.s32.totalorder %s31, 7
    %p463 = por %p461, %p462
    %p464 = scmp.ne.s32.totalorder %s453, %s454
    %p465 = scmp.eq.s32.totalorder %s31, 0
    %p466 = por %p464, %p465
    %p467 = scmp.ne.s32.totalorder %s453, %s454
    %p468 = scmp.eq.s32.totalorder %s32, 7
    %p469 = por %p467, %p468
    %p471 = scmp.ne.s32.totalorder %s454, %s470
    %p472 = scmp.eq.s32.totalorder %s32, 0
    %p473 = por %p471, %p472
    %s474 = ssub.s32 %s34, %s41
    %p475 = scmp.eq.s32.totalorder %s474, 0
    %s477 = sadd.s32 %s476, 1
    %s478 = scalar_select %p475, %s476, %s477
    %p481 = pneg %p475
    %p482 = scmp.eq.s32.totalorder %s26, 7
    %p483 = por %p481, %p482
    %p484 = scmp.ne.s32.totalorder %s476, %s479
    %p485 = scmp.eq.s32.totalorder %s26, 0
    %p486 = por %p484, %p485
    %p487 = scmp.ne.s32.totalorder %s476, %s479
    %p488 = scmp.eq.s32.totalorder %s31, 7
    %p489 = por %p487, %p488
    %p490 = scmp.ne.s32.totalorder %s479, %s480
    %p491 = scmp.eq.s32.totalorder %s31, 0
    %p492 = por %p490, %p491
    %p493 = scmp.ne.s32.totalorder %s479, %s480
    %p494 = scmp.eq.s32.totalorder %s32, 7
    %p495 = por %p493, %p494
    %p497 = scmp.ne.s32.totalorder %s480, %s496
    %p498 = scmp.eq.s32.totalorder %s32, 0
    %p499 = por %p497, %p498
    %s501 = sadd.s32 %s500, 1
    %p504 = scmp.eq.s32.totalorder %s26, 7
    %p505 = scmp.ne.s32.totalorder %s500, %s502
    %p506 = scmp.eq.s32.totalorder %s26, 0
    %p507 = por %p505, %p506
    %p508 = scmp.ne.s32.totalorder %s500, %s502
    %p509 = scmp.eq.s32.totalorder %s31, 7
    %p510 = por %p508, %p509
    %p511 = scmp.ne.s32.totalorder %s502, %s503
    %p512 = scmp.eq.s32.totalorder %s31, 0
    %p513 = por %p511, %p512
    %p514 = scmp.ne.s32.totalorder %s502, %s503
    %p515 = scmp.eq.s32.totalorder %s32, 7
    %p516 = por %p514, %p515
    %p518 = scmp.ne.s32.totalorder %s503, %s517
    %p519 = scmp.eq.s32.totalorder %s32, 0
    %p520 = por %p518, %p519
    %s521 = ssub.s32 %s33, %s45
    %p522 = scmp.eq.s32.totalorder %s521, 0
    %s524 = sadd.s32 %s523, 1
    %s525 = scalar_select %p522, %s523, %s524
    %p528 = pneg %p522
    %p529 = scmp.eq.s32.totalorder %s26, 7
    %p530 = por %p528, %p529
    %p531 = scmp.ne.s32.totalorder %s523, %s526
    %p532 = scmp.eq.s32.totalorder %s26, 0
    %p533 = por %p531, %p532
    %p534 = scmp.ne.s32.totalorder %s523, %s526
    %p535 = scmp.eq.s32.totalorder %s31, 7
    %p536 = por %p534, %p535
    %p537 = scmp.ne.s32.totalorder %s526, %s527
    %p538 = scmp.eq.s32.totalorder %s31, 0
    %p539 = por %p537, %p538
    %p540 = scmp.ne.s32.totalorder %s526, %s527
    %p541 = scmp.eq.s32.totalorder %s32, 7
    %p542 = por %p540, %p541
    %p544 = scmp.ne.s32.totalorder %s527, %s543
    %p545 = scmp.eq.s32.totalorder %s32, 0
    %p546 = por %p544, %p545
    %p547 = scmp.le.s32.totalorder 1, %s26
    %p548 = scmp.lt.s32.totalorder %s26, 9
    %p549 = pnand %p547, %p548
    %p550 = pneg %p549
    // Predicated region
    $region9: #{_lambda_.11} parent=5 // pred_check
      _
    $region10: #{_lambda_.11} parent=5 // pred_check_branch
      %552 = sbr.rel (%p549) target = $region12
    $region11: #{_lambda_.11} parent=5 // pred_region
      %s553 = ssub.s32 %s26, 1
      // Predicated region
      $region13: #{_lambda_.11} parent=11 // pred_check
        %p554 = pneg %p85
      $region14: #{_lambda_.11} parent=11 // pred_check_branch
        %556 = sbr.rel (%p554) target = $region16
      $region15: #{_lambda_.11} parent=11 // pred_region
        _
      $region16: #{_lambda_.11} parent=11 // pred_fallthru
        _
      // Predicated region
      $region17: #{_lambda_.11} parent=11 // pred_check
        %p557 = pneg %p106
      $region18: #{_lambda_.11} parent=11 // pred_check_branch
        %559 = sbr.rel (%p557) target = $region20
      $region19: #{_lambda_.11} parent=11 // pred_region
        _
      $region20: #{_lambda_.11} parent=11 // pred_fallthru
        _
      // Predicated region
      $region21: #{_lambda_.11} parent=11 // pred_check
        %p560 = pneg %p127
      $region22: #{_lambda_.11} parent=11 // pred_check_branch
        %562 = sbr.rel (%p560) target = $region24
      $region23: #{_lambda_.11} parent=11 // pred_region
        _
      $region24: #{_lambda_.11} parent=11 // pred_fallthru
        _
      // Predicated region
      $region25: #{_lambda_.11} parent=11 // pred_check
        %p563 = pneg %p148
      $region26: #{_lambda_.11} parent=11 // pred_check_branch
        %565 = sbr.rel (%p563) target = $region28
      $region27: #{_lambda_.11} parent=11 // pred_region
        _
      $region28: #{_lambda_.11} parent=11 // pred_fallthru
        _
      // Predicated region
      $region29: #{_lambda_.11} parent=11 // pred_check
        %p566 = pneg %p169
      $region30: #{_lambda_.11} parent=11 // pred_check_branch
        %568 = sbr.rel (%p566) target = $region32
      $region31: #{_lambda_.11} parent=11 // pred_region
        _
      $region32: #{_lambda_.11} parent=11 // pred_fallthru
        _
      // Predicated region
      $region33: #{_lambda_.11} parent=11 // pred_check
        %p569 = pneg %p190
      $region34: #{_lambda_.11} parent=11 // pred_check_branch
        %571 = sbr.rel (%p569) target = $region36
      $region35: #{_lambda_.11} parent=11 // pred_region
        _
      $region36: #{_lambda_.11} parent=11 // pred_fallthru
        _
      // Predicated region
      $region37: #{_lambda_.11} parent=11 // pred_check
        %p572 = pneg %p211
      $region38: #{_lambda_.11} parent=11 // pred_check_branch
        %574 = sbr.rel (%p572) target = $region40
      $region39: #{_lambda_.11} parent=11 // pred_region
        _
      $region40: #{_lambda_.11} parent=11 // pred_fallthru
        _
      // Predicated region
      $region41: #{_lambda_.11} parent=11 // pred_check
        %p575 = pneg %p232
      $region42: #{_lambda_.11} parent=11 // pred_check_branch
        %577 = sbr.rel (%p575) target = $region44
      $region43: #{_lambda_.11} parent=11 // pred_region
        _
      $region44: #{_lambda_.11} parent=11 // pred_fallthru
        _
      // Predicated region
      $region45: #{_lambda_.11} parent=11 // pred_check
        %p578 = pneg %p513
      $region46: #{_lambda_.11} parent=11 // pred_check_branch
        %580 = sbr.rel (%p578) target = $region48
      $region47: #{_lambda_.11} parent=11 // pred_region
        _
      $region48: #{_lambda_.11} parent=11 // pred_fallthru
        _
    $region12: #{_lambda_.11} parent=5 // pred_fallthru
      _
    %p581 = scmp.lt.s32.totalorder %s26, 8
    // Predicated region
    $region49: #{_lambda_.11} parent=5 // pred_check
      %p582 = pneg %p581
    $region50: #{_lambda_.11} parent=5 // pred_check_branch
      %584 = sbr.rel (%p582) target = $region52
    $region51: #{_lambda_.11} parent=5 // pred_region
      // Predicated region
      $region53: #{_lambda_.11} parent=51 // pred_check
        %p585 = pneg %p58
      $region54: #{_lambda_.11} parent=51 // pred_check_branch
        %587 = sbr.rel (%p585) target = $region56
      $region55: #{_lambda_.11} parent=51 // pred_region
        %p588 = scmp.lt.s32.totalorder %s33, 1
        %s589 = scalar_select %p588, %s33, 1
        %s590 = smul.addr %s589, 2
        %s591 = smul.addr %s590, 4
        %s592 = scalar_lea.vmem %s0, %s591
      $region56: #{_lambda_.11} parent=51 // pred_fallthru
        _
      // Predicated region
      $region57: #{_lambda_.11} parent=51 // pred_check
        %p593 = pneg %p252
      $region58: #{_lambda_.11} parent=51 // pred_check_branch
        %595 = sbr.rel (%p593) target = $region60
      $region59: #{_lambda_.11} parent=51 // pred_region
        %p596 = scmp.lt.s32.totalorder %s34, 3
        %s597 = scalar_select %p596, %s34, 3
        %s598 = smul.addr %s597, 4
        %s599 = smul.addr %s598, 4
        %s600 = scalar_lea.vmem %s9, %s599
      $region60: #{_lambda_.11} parent=51 // pred_fallthru
        _
      // Predicated region
      $region61: #{_lambda_.11} parent=51 // pred_check
        %p601 = pneg %p278
      $region62: #{_lambda_.11} parent=51 // pred_check_branch
        %603 = sbr.rel (%p601) target = $region64
      $region63: #{_lambda_.11} parent=51 // pred_region
        %p604 = scmp.lt.s32.totalorder %s34, 3
        %s605 = scalar_select %p604, %s34, 3
        %s606 = scalar_lea.vmem %s10, %s605
      $region64: #{_lambda_.11} parent=51 // pred_fallthru
        _
      // Predicated region
      $region65: #{_lambda_.11} parent=51 // pred_check
        %p607 = pneg %p304
      $region66: #{_lambda_.11} parent=51 // pred_check_branch
        %609 = sbr.rel (%p607) target = $region68
      $region67: #{_lambda_.11} parent=51 // pred_region
        %p610 = scmp.lt.s32.totalorder %s34, 3
        %s611 = scalar_select %p610, %s34, 3
        %s612 = smul.addr %s611, 4
        %s613 = smul.addr %s612, 4
        %s614 = scalar_lea.vmem %s11, %s613
      $region68: #{_lambda_.11} parent=51 // pred_fallthru
        _
      // Predicated region
      $region69: #{_lambda_.11} parent=51 // pred_check
        %p615 = pneg %p330
      $region70: #{_lambda_.11} parent=51 // pred_check_branch
        %617 = sbr.rel (%p615) target = $region72
      $region71: #{_lambda_.11} parent=51 // pred_region
        %p618 = scmp.lt.s32.totalorder %s34, 3
        %s619 = scalar_select %p618, %s34, 3
        %s620 = scalar_lea.vmem %s12, %s619
      $region72: #{_lambda_.11} parent=51 // pred_fallthru
        _
      // Predicated region
      $region73: #{_lambda_.11} parent=51 // pred_check
        %p621 = pneg %p356
      $region74: #{_lambda_.11} parent=51 // pred_check_branch
        %623 = sbr.rel (%p621) target = $region76
      $region75: #{_lambda_.11} parent=51 // pred_region
        %p624 = scmp.lt.s32.totalorder %s34, 3
        %s625 = scalar_select %p624, %s34, 3
        %s626 = smul.addr %s625, 4
        %s627 = smul.addr %s626, 4
        %s628 = scalar_lea.vmem %s13, %s627
      $region76: #{_lambda_.11} parent=51 // pred_fallthru
        _
      // Predicated region
      $region77: #{_lambda_.11} parent=51 // pred_check
        %p629 = pneg %p382
      $region78: #{_lambda_.11} parent=51 // pred_check_branch
        %631 = sbr.rel (%p629) target = $region80
      $region79: #{_lambda_.11} parent=51 // pred_region
        %p632 = scmp.lt.s32.totalorder %s34, 3
        %s633 = scalar_select %p632, %s34, 3
        %s634 = scalar_lea.vmem %s14, %s633
      $region80: #{_lambda_.11} parent=51 // pred_fallthru
        _
      // Predicated region
      $region81: #{_lambda_.11} parent=51 // pred_check
        %p635 = pneg %p408
      $region82: #{_lambda_.11} parent=51 // pred_check_branch
        %637 = sbr.rel (%p635) target = $region84
      $region83: #{_lambda_.11} parent=51 // pred_region
        %p638 = scmp.lt.s32.totalorder %s34, 3
        %s639 = scalar_select %p638, %s34, 3
        %s640 = scalar_lea.vmem %s15, %s639
      $region84: #{_lambda_.11} parent=51 // pred_fallthru
        _
      // Predicated region
      $region85: #{_lambda_.11} parent=51 // pred_check
        %p641 = pneg %p434
      $region86: #{_lambda_.11} parent=51 // pred_check_branch
        %643 = sbr.rel (%p641) target = $region88
      $region87: #{_lambda_.11} parent=51 // pred_region
        %p644 = scmp.lt.s32.totalorder %s34, 3
        %s645 = scalar_select %p644, %s34, 3
        %s646 = scalar_lea.vmem %s16, %s645
      $region88: #{_lambda_.11} parent=51 // pred_fallthru
        _
      // Predicated region
      $region89: #{_lambda_.11} parent=51 // pred_check
        %p647 = pneg %p460
      $region90: #{_lambda_.11} parent=51 // pred_check_branch
        %649 = sbr.rel (%p647) target = $region92
      $region91: #{_lambda_.11} parent=51 // pred_region
        %p650 = scmp.lt.s32.totalorder %s34, 3
        %s651 = scalar_select %p650, %s34, 3
        %s652 = smul.addr %s651, 16
        %s653 = smul.addr %s652, 4
        %s654 = scalar_lea.vmem %s17, %s653
      $region92: #{_lambda_.11} parent=51 // pred_fallthru
        _
      // Predicated region
      $region93: #{_lambda_.11} parent=51 // pred_check
        %p655 = pneg %p486
      $region94: #{_lambda_.11} parent=51 // pred_check_branch
        %657 = sbr.rel (%p655) target = $region96
      $region95: #{_lambda_.11} parent=51 // pred_region
        %p658 = scmp.lt.s32.totalorder %s34, 3
        %s659 = scalar_select %p658, %s34, 3
        %s660 = smul.addr %s659, 4
        %s661 = scalar_lea.vmem %s18, %s660
      $region96: #{_lambda_.11} parent=51 // pred_fallthru
        _
    $region52: #{_lambda_.11} parent=5 // pred_fallthru
      _
    %p662 = scmp.le.s32.totalorder 1, %s26
    %p663 = scmp.lt.s32.totalorder %s26, 9
    %p664 = pnand %p662, %p663
    %p665 = pneg %p664
    // Predicated region
    $region97: #{_lambda_.11} parent=5 // pred_check
      _
    $region98: #{_lambda_.11} parent=5 // pred_check_branch
      %667 = sbr.rel (%p664) target = $region100
    $region99: #{_lambda_.11} parent=5 // pred_region
      %s668 = ssub.s32 %s26, 1
      %p669 = scmp.lt.s32.totalorder %s35, 1
      %s670 = scalar_select %p669, %s35, 1
      %s671 = smul.addr %s670, 2
      %s672 = smul.addr %s671, 4
      %s673 = scalar_lea.vmem %s0, %s672
      %p674 = pneg %p64
      %p675 = pneg %p61
      %p676 = pneg %p85
      %p677 = pneg %p82
      %p678 = pneg %p106
      %p679 = pneg %p103
      %p680 = pneg %p127
      %p681 = pneg %p124
      %p682 = pneg %p148
      %p683 = pneg %p145
      %p684 = pneg %p169
      %p685 = pneg %p166
      %p686 = pneg %p190
      %p687 = pneg %p187
      %p688 = pneg %p211
      %p689 = pneg %p208
      %p690 = pneg %p232
      %p691 = pneg %p229
      %p692 = scmp.lt.s32.totalorder %s36, 3
      %s693 = scalar_select %p692, %s36, 3
      %s694 = smul.addr %s693, 4
      %s695 = smul.addr %s694, 4
      %s696 = scalar_lea.vmem %s9, %s695
      %p697 = pneg %p258
      %p698 = pneg %p255
      %p699 = scmp.lt.s32.totalorder %s36, 3
      %s700 = scalar_select %p699, %s36, 3
      %s701 = scalar_lea.vmem %s10, %s700
      %p702 = pneg %p284
      %p703 = pneg %p281
      %p704 = scmp.lt.s32.totalorder %s36, 3
      %s705 = scalar_select %p704, %s36, 3
      %s706 = smul.addr %s705, 4
      %s707 = smul.addr %s706, 4
      %s708 = scalar_lea.vmem %s11, %s707
      %p709 = pneg %p310
      %p710 = pneg %p307
      %p711 = scmp.lt.s32.totalorder %s36, 3
      %s712 = scalar_select %p711, %s36, 3
      %s713 = scalar_lea.vmem %s12, %s712
      %p714 = pneg %p336
      %p715 = pneg %p333
      %p716 = scmp.lt.s32.totalorder %s36, 3
      %s717 = scalar_select %p716, %s36, 3
      %s718 = smul.addr %s717, 4
      %s719 = smul.addr %s718, 4
      %s720 = scalar_lea.vmem %s13, %s719
      %p721 = pneg %p362
      %p722 = pneg %p359
      %p723 = scmp.lt.s32.totalorder %s36, 3
      %s724 = scalar_select %p723, %s36, 3
      %s725 = scalar_lea.vmem %s14, %s724
      %p726 = pneg %p388
      %p727 = pneg %p385
      %p728 = scmp.lt.s32.totalorder %s36, 3
      %s729 = scalar_select %p728, %s36, 3
      %s730 = scalar_lea.vmem %s15, %s729
      %p731 = pneg %p414
      %p732 = pneg %p411
      %p733 = scmp.lt.s32.totalorder %s36, 3
      %s734 = scalar_select %p733, %s36, 3
      %s735 = scalar_lea.vmem %s16, %s734
      %p736 = pneg %p440
      %p737 = pneg %p437
      %p738 = scmp.lt.s32.totalorder %s36, 3
      %s739 = scalar_select %p738, %s36, 3
      %s740 = smul.addr %s739, 16
      %s741 = smul.addr %s740, 4
      %s742 = scalar_lea.vmem %s17, %s741
      %p743 = pneg %p466
      %p744 = pneg %p463
      %p745 = scmp.lt.s32.totalorder %s36, 3
      %s746 = scalar_select %p745, %s36, 3
      %s747 = smul.addr %s746, 4
      %s748 = scalar_lea.vmem %s18, %s747
      %p749 = pneg %p492
      %p750 = pneg %p489
      %p751 = pneg %p513
      %p752 = pneg %p510
      %p753 = pneg %p539
      %p754 = pneg %p536
      %p755 = scmp.lt.s32.totalorder %s35, 1
      %s756 = scalar_select %p755, %s35, 1
      %s757 = smul.addr %s756, 2
      %s758 = smul.addr %s757, 4
      %s759 = scalar_lea.vmem %s20, %s758
      %p760 = scmp.lt.s32.totalorder %s35, 1
      %s761 = scalar_select %p760, %s35, 1
      %s762 = smul.addr %s761, 2
      %s763 = smul.addr %s762, 4
      %s764 = scalar_lea.vmem %s0, %s763
      %p765 = scmp.lt.s32.totalorder %s36, 3
      %s766 = scalar_select %p765, %s36, 3
      %s767 = smul.addr %s766, 4
      %s768 = smul.addr %s767, 4
      %s769 = scalar_lea.vmem %s9, %s768
      %p770 = scmp.lt.s32.totalorder %s36, 3
      %s771 = scalar_select %p770, %s36, 3
      %s772 = scalar_lea.vmem %s10, %s771
      %p773 = scmp.lt.s32.totalorder %s36, 3
      %s774 = scalar_select %p773, %s36, 3
      %s775 = smul.addr %s774, 4
      %s776 = smul.addr %s775, 4
      %s777 = scalar_lea.vmem %s11, %s776
      %p778 = scmp.lt.s32.totalorder %s36, 3
      %s779 = scalar_select %p778, %s36, 3
      %s780 = scalar_lea.vmem %s12, %s779
      %p781 = scmp.lt.s32.totalorder %s36, 3
      %s782 = scalar_select %p781, %s36, 3
      %s783 = smul.addr %s782, 4
      %s784 = smul.addr %s783, 4
      %s785 = scalar_lea.vmem %s13, %s784
      %p786 = scmp.lt.s32.totalorder %s36, 3
      %s787 = scalar_select %p786, %s36, 3
      %s788 = scalar_lea.vmem %s14, %s787
      %p789 = scmp.lt.s32.totalorder %s36, 3
      %s790 = scalar_select %p789, %s36, 3
      %s791 = scalar_lea.vmem %s15, %s790
      %p792 = scmp.lt.s32.totalorder %s36, 3
      %s793 = scalar_select %p792, %s36, 3
      %s794 = scalar_lea.vmem %s16, %s793
      %p795 = scmp.lt.s32.totalorder %s36, 3
      %s796 = scalar_select %p795, %s36, 3
      %s797 = smul.addr %s796, 16
      %s798 = smul.addr %s797, 4
      %s799 = scalar_lea.vmem %s17, %s798
      %p800 = scmp.lt.s32.totalorder %s36, 3
      %s801 = scalar_select %p800, %s36, 3
      %s802 = smul.addr %s801, 4
      %s803 = scalar_lea.vmem %s18, %s802
      %p804 = scmp.lt.s32.totalorder %s35, 1
      %s805 = scalar_select %p804, %s35, 1
      %s806 = smul.addr %s805, 2
      %s807 = smul.addr %s806, 4
      %s808 = scalar_lea.vmem %s20, %s807
      %p810 = scmp.eq.s32.totalorder %s36, 0
      // Predicated region
      $region101: #{_lambda_.11} parent=99 // pred_check
        %p811 = pneg %p810
      $region102: #{_lambda_.11} parent=99 // pred_check_branch
        %813 = sbr.rel (%p811) target = $region104
      $region103: #{_lambda_.11} parent=99 // pred_region
        %v814 = vld [vmem:[%s764] sm:$0xf]
        %v815 = vld [vmem:[%s764 + $0x4] sm:$0xf]
        %v816 = vunpack.c.l.bf16 %v814
        %v817 = vunpack.c.l.bf16 %v815
        %v818 = vld [vmem:[%s1] sm:$0x1]
        %v819 = vld [vmem:[%s2] sm:$0x1]
        %vm820 = vcmask 261120
        %v821 = vsel %vm820, %v816, 0.0
        %822 = vadd.xlane.f32.xlu0 %v821
        %v823 = vpop.xlane.xlu0 %822
        %v824 = vsel %vm820, %v817, 0.0
        %825 = vadd.xlane.f32.xlu0 %v824
        %v826 = vpop.xlane.xlu0 %825
        %v827 = vrcp.pop 32.0
        %v828 = vmul.f32 %v823, %v827
        %v829 = vmul.f32 %v826, %v827
        %v830 = vsub.f32 %v816, %v828
        %v831 = vsub.f32 %v817, %v829
        %v832 = vmul.f32 %v830, %v830
        %v833 = vmul.f32 %v831, %v831
        %v834 = vsel %vm820, %v832, 0.0
        %835 = vadd.xlane.f32.xlu0 %v834
        %v836 = vpop.xlane.xlu0 %835
        %v837 = vsel %vm820, %v833, 0.0
        %838 = vadd.xlane.f32.xlu0 %v837
        %v839 = vpop.xlane.xlu0 %838
        %v840 = vmul.f32 %v836, %v827
        %v841 = vmul.f32 %v839, %v827
        %v842 = vadd.f32 %v840, 1e-12
        %v843 = vadd.f32 %v841, 1e-12
        %v844 = vrsqrt.pop %v842
        %v845 = vrsqrt.pop %v843
        %v846 = vmul.f32 %v830, %v844
        %v847 = vmul.f32 %v831, %v845
        %v849 = vlaneseq
        %v850 = vshrl.u32 %v849, 7
        %v851 = vsub.s32 0, %v850
        %v852 = vrot.slane %v818, %v851
        %v854 = vmul.f32 %v846, %v852
        %v855 = vmul.f32 %v847, %v852
        %v857 = vlaneseq
        %v858 = vshrl.u32 %v857, 7
        %v859 = vsub.s32 0, %v858
        %v860 = vrot.slane %v819, %v859
        %v862 = vadd.f32 %v854, %v860
        %v863 = vadd.f32 %v855, %v860
        %v864 = vpack.c.bf16 %v863, %v862
        %v865 = vld [vmem:[%s3] sm:$0xf]
        %v866 = vld [vmem:[%s3 + $0x4] sm:$0xf]
        %v867 = vld [vmem:[%s3 + $0x8] sm:$0xf]
        %v868 = vld [vmem:[%s3 + $0xc] sm:$0xf]
        %v869 = vld [vmem:[%s4] sm:$0x1]
        %v871 = vlaneseq
        %v872 = vshrl.u32 %v871, 7
        %v873 = vsub.s32 0, %v872
        %v874 = vrot.slane %v869, %v873
        %v880 = vunpack.c.l.b16 %v865
        %v881 = vunpack.c.l.b16 %v866
        %v882 = vunpack.c.l.b16 %v867
        %v883 = vunpack.c.l.b16 %v868
        %v884 = vpack.c.b16 %v881, %v880
        %v885 = vpack.c.b16 %v883, %v882
        %v889 = vsel %vm820, %v864, 0
        %891 = vmatprep.subr.bf16.mxu0 0
        %892 = vmatpush1.bf16.msra.mxu0 0
        %893 = vmatprep.subr.bf16.mxu0 0
        %894 = vmatpush1.bf16.msra.mxu0 0
        %895 = vmatprep.subr.bf16.mxu0 0
        %896 = vmatpush1.bf16.msra.mxu0 0
        %897 = vmatprep.subr.bf16.mxu0 0
        %898 = vmatpush1.bf16.msra.mxu0 0
        %899 = vmatprep.subr.bf16.mxu0 0
        %900 = vmatpush1.bf16.msra.mxu0 0
        %901 = vmatprep.subr.bf16.mxu0 0
        %902 = vmatpush1.bf16.msra.mxu0 0
        %903 = vmatprep.subr.bf16.mxu0 0
        %904 = vmatpush1.bf16.msra.mxu0 %v885
        %905 = vmatprep.subr.bf16.mxu0 0
        %906 = vmatpush1.bf16.msra.mxu0 %v884
        %907 = vmatprep.subr.bf16.mxu0 0
        %908 = vmatpush2.bf16.msra.mxu0 0
        %909 = vmatprep.subr.bf16.mxu0 0
        %910 = vmatpush2.bf16.msra.mxu0 0
        %911 = vmatprep.subr.bf16.mxu0 0
        %912 = vmatpush2.bf16.msra.mxu0 0
        %913 = vmatprep.subr.bf16.mxu0 0
        %914 = vmatpush2.bf16.msra.mxu0 0
        %915 = vmatprep.subr.bf16.mxu0 0
        %916 = vmatpush2.bf16.msra.mxu0 0
        %917 = vmatprep.subr.bf16.mxu0 0
        %918 = vmatpush2.bf16.msra.mxu0 0
        %919 = vmatprep.subr.bf16.mxu0 0
        %920 = vmatpush2.bf16.msra.mxu0 0
        %921 = vmatprep.subr.bf16.mxu0 0
        %922 = vmatpush2.bf16.msra.mxu0 0
        %923 = vmatprep.mubr.bf16.mxu0 0
        %924 = vmatmul.mubr.bf16.gmra.mxu0 %v889
        %v925 = vpop.f32.mrf.mxu0
        %v926 = vadd.f32 %v874, %v925
        %v927 = vpop.f32.mrf.mxu0
        %v928 = vpop.f32.mrf.mxu0
        %v929 = vadd.f32 %v874, %v928
        %v930 = vpop.f32.mrf.mxu0
        %931 = vdwg.mxu0
        %v932 = vmax.f32 %v926, 0.0
        %v933 = vmax.f32 %v929, 0.0
        %v934 = vpack.c.bf16 %v933, %v932
        %v935 = vld [vmem:[%s5] sm:$0xf]
        %v936 = vld [vmem:[%s5 + $0x4] sm:$0xf]
        %v937 = vld [vmem:[%s5 + $0x8] sm:$0xf]
        %v938 = vld [vmem:[%s5 + $0xc] sm:$0xf]
        %v939 = vld [vmem:[%s5 + $0x10] sm:$0xf]
        %v940 = vld [vmem:[%s5 + $0x14] sm:$0xf]
        %v941 = vld [vmem:[%s5 + $0x18] sm:$0xf]
        %v942 = vld [vmem:[%s5 + $0x1c] sm:$0xf]
        %v943 = vld [vmem:[%s6] sm:$0x1]
        %v945 = vlaneseq
        %v946 = vshrl.u32 %v945, 7
        %v947 = vsub.s32 0, %v946
        %v948 = vrot.slane %v943, %v947
        %v958 = vunpack.c.l.b16 %v935
        %v959 = vunpack.c.l.b16 %v936
        %v960 = vunpack.c.l.b16 %v937
        %v961 = vunpack.c.l.b16 %v938
        %v962 = vunpack.c.l.b16 %v939
        %v963 = vunpack.c.l.b16 %v940
        %v964 = vunpack.c.l.b16 %v941
        %v965 = vunpack.c.l.b16 %v942
        %v966 = vpack.c.b16 %v959, %v958
        %v967 = vpack.c.b16 %v961, %v960
        %v968 = vpack.c.b16 %v963, %v962
        %v969 = vpack.c.b16 %v965, %v964
        %vm974 = vcmask 523264
        %v976 = vsel %vm974, %v934, 0
        %978 = vmatprep.subr.bf16.mxu0 0
        %979 = vmatpush1.bf16.msra.mxu0 0
        %980 = vmatprep.subr.bf16.mxu0 0
        %981 = vmatpush1.bf16.msra.mxu0 0
        %982 = vmatprep.subr.bf16.mxu0 0
        %983 = vmatpush1.bf16.msra.mxu0 0
        %984 = vmatprep.subr.bf16.mxu0 0
        %985 = vmatpush1.bf16.msra.mxu0 0
        %986 = vmatprep.subr.bf16.mxu0 0
        %987 = vmatpush1.bf16.msra.mxu0 %v969
        %988 = vmatprep.subr.bf16.mxu0 0
        %989 = vmatpush1.bf16.msra.mxu0 %v968
        %990 = vmatprep.subr.bf16.mxu0 0
        %991 = vmatpush1.bf16.msra.mxu0 %v967
        %992 = vmatprep.subr.bf16.mxu0 0
        %993 = vmatpush1.bf16.msra.mxu0 %v966
        %994 = vmatprep.subr.bf16.mxu0 0
        %995 = vmatpush2.bf16.msra.mxu0 0
        %996 = vmatprep.subr.bf16.mxu0 0
        %997 = vmatpush2.bf16.msra.mxu0 0
        %998 = vmatprep.subr.bf16.mxu0 0
        %999 = vmatpush2.bf16.msra.mxu0 0
        %1000 = vmatprep.subr.bf16.mxu0 0
        %1001 = vmatpush2.bf16.msra.mxu0 0
        %1002 = vmatprep.subr.bf16.mxu0 0
        %1003 = vmatpush2.bf16.msra.mxu0 0
        %1004 = vmatprep.subr.bf16.mxu0 0
        %1005 = vmatpush2.bf16.msra.mxu0 0
        %1006 = vmatprep.subr.bf16.mxu0 0
        %1007 = vmatpush2.bf16.msra.mxu0 0
        %1008 = vmatprep.subr.bf16.mxu0 0
        %1009 = vmatpush2.bf16.msra.mxu0 0
        %1010 = vmatprep.mubr.bf16.mxu0 0
        %1011 = vmatmul.mubr.bf16.gmra.mxu0 %v976
        %v1012 = vpop.f32.mrf.mxu0
        %v1013 = vadd.f32 %v948, %v1012
        %v1014 = vpop.f32.mrf.mxu0
        %v1015 = vpop.f32.mrf.mxu0
        %v1016 = vadd.f32 %v948, %v1015
        %v1017 = vpop.f32.mrf.mxu0
        %1018 = vdwg.mxu0
        %v1019 = vmul.f32 %v1013, 0.5
        %v1020 = vmul.f32 %v1016, 0.5
        %v1021 = vadd.f32 %v816, %v1019
        %v1022 = vadd.f32 %v817, %v1020
        %1023 = vst.msk [vmem:[#allocation2] sm:$0xff] %vm820, %v1021
        %1024 = vst.msk [vmem:[#allocation2 + $0x8] sm:$0xff] %vm820, %v1022
        %1025 = vst.msk [vmem:[#allocation3] sm:$0xff] %vm820, 0.0
        %1026 = vst.msk [vmem:[#allocation3 + $0x8] sm:$0xff] %vm820, 0.0
      $region104: #{_lambda_.11} parent=99 // pred_fallthru
        _
      %v1027 = vld [vmem:[#allocation2] sm:$0xff]
      %v1028 = vld [vmem:[#allocation2 + $0x8] sm:$0xff]
      %v1029 = vld [vmem:[%s7] sm:$0x1]
      %v1030 = vld [vmem:[%s8] sm:$0x1]
      %vm1031 = vcmask 261120
      %v1032 = vsel %vm1031, %v1027, 0.0
      %1033 = vadd.xlane.f32.xlu0 %v1032
      %v1034 = vpop.xlane.xlu0 %1033
      %v1035 = vsel %vm1031, %v1028, 0.0
      %1036 = vadd.xlane.f32.xlu0 %v1035
      %v1037 = vpop.xlane.xlu0 %1036
      %v1038 = vrcp.pop 32.0
      %v1039 = vmul.f32 %v1034, %v1038
      %v1040 = vmul.f32 %v1037, %v1038
      %v1041 = vsub.f32 %v1027, %v1039
      %v1042 = vsub.f32 %v1028, %v1040
      %v1043 = vmul.f32 %v1041, %v1041
      %v1044 = vmul.f32 %v1042, %v1042
      %v1045 = vsel %vm1031, %v1043, 0.0
      %1046 = vadd.xlane.f32.xlu0 %v1045
      %v1047 = vpop.xlane.xlu0 %1046
      %v1048 = vsel %vm1031, %v1044, 0.0
      %1049 = vadd.xlane.f32.xlu0 %v1048
      %v1050 = vpop.xlane.xlu0 %1049
      %v1051 = vmul.f32 %v1047, %v1038
      %v1052 = vmul.f32 %v1050, %v1038
      %v1053 = vadd.f32 %v1051, 1e-12
      %v1054 = vadd.f32 %v1052, 1e-12
      %v1055 = vrsqrt.pop %v1053
      %v1056 = vrsqrt.pop %v1054
      %v1057 = vmul.f32 %v1041, %v1055
      %v1058 = vmul.f32 %v1042, %v1056
      %v1060 = vlaneseq
      %v1061 = vshrl.u32 %v1060, 7
      %v1062 = vsub.s32 0, %v1061
      %v1063 = vrot.slane %v1029, %v1062
      %v1065 = vmul.f32 %v1057, %v1063
      %v1066 = vmul.f32 %v1058, %v1063
      %v1068 = vlaneseq
      %v1069 = vshrl.u32 %v1068, 7
      %v1070 = vsub.s32 0, %v1069
      %v1071 = vrot.slane %v1030, %v1070
      %v1073 = vadd.f32 %v1065, %v1071
      %v1074 = vadd.f32 %v1066, %v1071
      %v1075 = vpack.c.bf16 %v1074, %v1073
      %v1076 = vld [vmem:[%s769] sm:$0xf]
      %v1077 = vld [vmem:[%s769 + $0x4] sm:$0xf]
      %v1078 = vld [vmem:[%s769 + $0x8] sm:$0xf]
      %v1079 = vld [vmem:[%s769 + $0xc] sm:$0xf]
      %v1080 = vld [vmem:[%s772] sm:$0x1]
      %v1082 = vlaneseq
      %v1083 = vshrl.u32 %v1082, 7
      %v1084 = vsub.s32 0, %v1083
      %v1085 = vrot.slane %v1080, %v1084
      %v1091 = vunpack.c.l.b16 %v1076
      %v1092 = vunpack.c.l.b16 %v1077
      %v1093 = vunpack.c.l.b16 %v1078
      %v1094 = vunpack.c.l.b16 %v1079
      %v1095 = vpack.c.b16 %v1092, %v1091
      %v1096 = vpack.c.b16 %v1094, %v1093
      %v1100 = vsel %vm1031, %v1075, 0
      %1102 = vmatprep.subr.bf16.mxu0 0
      %1103 = vmatpush1.bf16.msra.mxu0 0
      %1104 = vmatprep.subr.bf16.mxu0 0
      %1105 = vmatpush1.bf16.msra.mxu0 0
      %1106 = vmatprep.subr.bf16.mxu0 0
      %1107 = vmatpush1.bf16.msra.mxu0 0
      %1108 = vmatprep.subr.bf16.mxu0 0
      %1109 = vmatpush1.bf16.msra.mxu0 0
      %1110 = vmatprep.subr.bf16.mxu0 0
      %1111 = vmatpush1.bf16.msra.mxu0 0
      %1112 = vmatprep.subr.bf16.mxu0 0
      %1113 = vmatpush1.bf16.msra.mxu0 0
      %1114 = vmatprep.subr.bf16.mxu0 0
      %1115 = vmatpush1.bf16.msra.mxu0 %v1096
      %1116 = vmatprep.subr.bf16.mxu0 0
      %1117 = vmatpush1.bf16.msra.mxu0 %v1095
      %1118 = vmatprep.subr.bf16.mxu0 0
      %1119 = vmatpush2.bf16.msra.mxu0 0
      %1120 = vmatprep.subr.bf16.mxu0 0
      %1121 = vmatpush2.bf16.msra.mxu0 0
      %1122 = vmatprep.subr.bf16.mxu0 0
      %1123 = vmatpush2.bf16.msra.mxu0 0
      %1124 = vmatprep.subr.bf16.mxu0 0
      %1125 = vmatpush2.bf16.msra.mxu0 0
      %1126 = vmatprep.subr.bf16.mxu0 0
      %1127 = vmatpush2.bf16.msra.mxu0 0
      %1128 = vmatprep.subr.bf16.mxu0 0
      %1129 = vmatpush2.bf16.msra.mxu0 0
      %1130 = vmatprep.subr.bf16.mxu0 0
      %1131 = vmatpush2.bf16.msra.mxu0 0
      %1132 = vmatprep.subr.bf16.mxu0 0
      %1133 = vmatpush2.bf16.msra.mxu0 0
      %1134 = vmatprep.mubr.bf16.mxu0 0
      %1135 = vmatmul.mubr.bf16.gmra.mxu0 %v1100
      %v1136 = vpop.f32.mrf.mxu0
      %v1137 = vadd.f32 %v1085, %v1136
      %v1138 = vpop.f32.mrf.mxu0
      %v1139 = vpop.f32.mrf.mxu0
      %v1140 = vadd.f32 %v1085, %v1139
      %v1141 = vpop.f32.mrf.mxu0
      %1142 = vdwg.mxu0
      %v1143 = vld [vmem:[%s777] sm:$0xf]
      %v1144 = vld [vmem:[%s777 + $0x4] sm:$0xf]
      %v1145 = vld [vmem:[%s777 + $0x8] sm:$0xf]
      %v1146 = vld [vmem:[%s777 + $0xc] sm:$0xf]
      %v1147 = vld [vmem:[%s780] sm:$0x1]
      %v1149 = vlaneseq
      %v1150 = vshrl.u32 %v1149, 7
      %v1151 = vsub.s32 0, %v1150
      %v1152 = vrot.slane %v1147, %v1151
      %v1158 = vunpack.c.l.b16 %v1143
      %v1159 = vunpack.c.l.b16 %v1144
      %v1160 = vunpack.c.l.b16 %v1145
      %v1161 = vunpack.c.l.b16 %v1146
      %v1162 = vpack.c.b16 %v1159, %v1158
      %v1163 = vpack.c.b16 %v1161, %v1160
      %1166 = vmatprep.subr.bf16.mxu0 0
      %1167 = vmatpush1.bf16.msra.mxu0 0
      %1168 = vmatprep.subr.bf16.mxu0 0
      %1169 = vmatpush1.bf16.msra.mxu0 0
      %1170 = vmatprep.subr.bf16.mxu0 0
      %1171 = vmatpush1.bf16.msra.mxu0 0
      %1172 = vmatprep.subr.bf16.mxu0 0
      %1173 = vmatpush1.bf16.msra.mxu0 0
      %1174 = vmatprep.subr.bf16.mxu0 0
      %1175 = vmatpush1.bf16.msra.mxu0 0
      %1176 = vmatprep.subr.bf16.mxu0 0
      %1177 = vmatpush1.bf16.msra.mxu0 0
      %1178 = vmatprep.subr.bf16.mxu0 0
      %1179 = vmatpush1.bf16.msra.mxu0 %v1163
      %1180 = vmatprep.subr.bf16.mxu0 0
      %1181 = vmatpush1.bf16.msra.mxu0 %v1162
      %1182 = vmatprep.subr.bf16.mxu0 0
      %1183 = vmatpush2.bf16.msra.mxu0 0
      %1184 = vmatprep.subr.bf16.mxu0 0
      %1185 = vmatpush2.bf16.msra.mxu0 0
      %1186 = vmatprep.subr.bf16.mxu0 0
      %1187 = vmatpush2.bf16.msra.mxu0 0
      %1188 = vmatprep.subr.bf16.mxu0 0
      %1189 = vmatpush2.bf16.msra.mxu0 0
      %1190 = vmatprep.subr.bf16.mxu0 0
      %1191 = vmatpush2.bf16.msra.mxu0 0
      %1192 = vmatprep.subr.bf16.mxu0 0
      %1193 = vmatpush2.bf16.msra.mxu0 0
      %1194 = vmatprep.subr.bf16.mxu0 0
      %1195 = vmatpush2.bf16.msra.mxu0 0
      %1196 = vmatprep.subr.bf16.mxu0 0
      %1197 = vmatpush2.bf16.msra.mxu0 0
      %1198 = vmatprep.mubr.bf16.mxu0 0
      %1199 = vmatmul.mubr.bf16.gmra.mxu0 %v1100
      %v1200 = vpop.f32.mrf.mxu0
      %v1201 = vadd.f32 %v1152, %v1200
      %v1202 = vpop.f32.mrf.mxu0
      %v1203 = vpop.f32.mrf.mxu0
      %v1204 = vadd.f32 %v1152, %v1203
      %v1205 = vpop.f32.mrf.mxu0
      %1206 = vdwg.mxu0
      %v1207 = vld [vmem:[%s785] sm:$0xf]
      %v1208 = vld [vmem:[%s785 + $0x4] sm:$0xf]
      %v1209 = vld [vmem:[%s785 + $0x8] sm:$0xf]
      %v1210 = vld [vmem:[%s785 + $0xc] sm:$0xf]
      %v1211 = vld [vmem:[%s788] sm:$0x1]
      %v1213 = vlaneseq
      %v1214 = vshrl.u32 %v1213, 7
      %v1215 = vsub.s32 0, %v1214
      %v1216 = vrot.slane %v1211, %v1215
      %v1222 = vunpack.c.l.b16 %v1207
      %v1223 = vunpack.c.l.b16 %v1208
      %v1224 = vunpack.c.l.b16 %v1209
      %v1225 = vunpack.c.l.b16 %v1210
      %v1226 = vpack.c.b16 %v1223, %v1222
      %v1227 = vpack.c.b16 %v1225, %v1224
      %1230 = vmatprep.subr.bf16.mxu0 0
      %1231 = vmatpush1.bf16.msra.mxu0 0
      %1232 = vmatprep.subr.bf16.mxu0 0
      %1233 = vmatpush1.bf16.msra.mxu0 0
      %1234 = vmatprep.subr.bf16.mxu0 0
      %1235 = vmatpush1.bf16.msra.mxu0 0
      %1236 = vmatprep.subr.bf16.mxu0 0
      %1237 = vmatpush1.bf16.msra.mxu0 0
      %1238 = vmatprep.subr.bf16.mxu0 0
      %1239 = vmatpush1.bf16.msra.mxu0 0
      %1240 = vmatprep.subr.bf16.mxu0 0
      %1241 = vmatpush1.bf16.msra.mxu0 0
      %1242 = vmatprep.subr.bf16.mxu0 0
      %1243 = vmatpush1.bf16.msra.mxu0 %v1227
      %1244 = vmatprep.subr.bf16.mxu0 0
      %1245 = vmatpush1.bf16.msra.mxu0 %v1226
      %1246 = vmatprep.subr.bf16.mxu0 0
      %1247 = vmatpush2.bf16.msra.mxu0 0
      %1248 = vmatprep.subr.bf16.mxu0 0
      %1249 = vmatpush2.bf16.msra.mxu0 0
      %1250 = vmatprep.subr.bf16.mxu0 0
      %1251 = vmatpush2.bf16.msra.mxu0 0
      %1252 = vmatprep.subr.bf16.mxu0 0
      %1253 = vmatpush2.bf16.msra.mxu0 0
      %1254 = vmatprep.subr.bf16.mxu0 0
      %1255 = vmatpush2.bf16.msra.mxu0 0
      %1256 = vmatprep.subr.bf16.mxu0 0
      %1257 = vmatpush2.bf16.msra.mxu0 0
      %1258 = vmatprep.subr.bf16.mxu0 0
      %1259 = vmatpush2.bf16.msra.mxu0 0
      %1260 = vmatprep.subr.bf16.mxu0 0
      %1261 = vmatpush2.bf16.msra.mxu0 0
      %1262 = vmatprep.mubr.bf16.mxu0 0
      %1263 = vmatmul.mubr.bf16.gmra.mxu0 %v1100
      %v1264 = vpop.f32.mrf.mxu0
      %v1265 = vadd.f32 %v1216, %v1264
      %v1266 = vpop.f32.mrf.mxu0
      %v1267 = vpop.f32.mrf.mxu0
      %v1268 = vadd.f32 %v1216, %v1267
      %v1269 = vpop.f32.mrf.mxu0
      %1270 = vdwg.mxu0
      %v1271 = vld [vmem:[%s791] sm:$0x1]
      %v1273 = vlaneseq
      %v1274 = vshrl.u32 %v1273, 7
      %v1275 = vsub.s32 0, %v1274
      %v1276 = vrot.slane %v1271, %v1275
      %v1278 = vadd.f32 %v1137, %v1276
      %v1279 = vadd.f32 %v1140, %v1276
      %v1280 = vld [vmem:[%s794] sm:$0x1]
      %v1282 = vlaneseq
      %v1283 = vshrl.u32 %v1282, 7
      %v1284 = vsub.s32 0, %v1283
      %v1285 = vrot.slane %v1280, %v1284
      %v1287 = vadd.f32 %v1137, %v1285
      %v1288 = vadd.f32 %v1140, %v1285
      %v1289 = vld [vmem:[%s799] sm:$0xf]
      %v1290 = vld [vmem:[%s799 + $0x4] sm:$0xf]
      %v1291 = vld [vmem:[%s799 + $0x8] sm:$0xf]
      %v1292 = vld [vmem:[%s799 + $0xc] sm:$0xf]
      %v1293 = vld [vmem:[%s799 + $0x10] sm:$0xf]
      %v1294 = vld [vmem:[%s799 + $0x14] sm:$0xf]
      %v1295 = vld [vmem:[%s799 + $0x18] sm:$0xf]
      %v1296 = vld [vmem:[%s799 + $0x1c] sm:$0xf]
      %v1297 = vld [vmem:[%s799 + $0x20] sm:$0xf]
      %v1298 = vld [vmem:[%s799 + $0x24] sm:$0xf]
      %v1299 = vld [vmem:[%s799 + $0x28] sm:$0xf]
      %v1300 = vld [vmem:[%s799 + $0x2c] sm:$0xf]
      %v1301 = vld [vmem:[%s799 + $0x30] sm:$0xf]
      %v1302 = vld [vmem:[%s799 + $0x34] sm:$0xf]
      %v1303 = vld [vmem:[%s799 + $0x38] sm:$0xf]
      %v1304 = vld [vmem:[%s799 + $0x3c] sm:$0xf]
      %v1305 = vunpack.c.l.bf16 %v1289
      %v1306 = vunpack.c.l.bf16 %v1290
      %v1307 = vunpack.c.l.bf16 %v1291
      %v1308 = vunpack.c.l.bf16 %v1292
      %v1309 = vunpack.c.l.bf16 %v1293
      %v1310 = vunpack.c.l.bf16 %v1294
      %v1311 = vunpack.c.l.bf16 %v1295
      %v1312 = vunpack.c.l.bf16 %v1296
      %v1313 = vunpack.c.l.bf16 %v1297
      %v1314 = vunpack.c.l.bf16 %v1298
      %v1315 = vunpack.c.l.bf16 %v1299
      %v1316 = vunpack.c.l.bf16 %v1300
      %v1317 = vunpack.c.l.bf16 %v1301
      %v1318 = vunpack.c.l.bf16 %v1302
      %v1319 = vunpack.c.l.bf16 %v1303
      %v1320 = vunpack.c.l.bf16 %v1304
      %vm1321 = vcmask 64512
      %v1323 = vsel %vm1321, %v1287, 0
      %v1326 = vsel %vm1321, %v1288, 0
      %v1329 = vsel %vm1321, %v1305, 0
      %v1332 = vsel %vm1321, %v1306, 0
      %v1335 = vsel %vm1321, %v1307, 0
      %v1338 = vsel %vm1321, %v1308, 0
      %v1341 = vsel %vm1321, %v1309, 0
      %v1344 = vsel %vm1321, %v1310, 0
      %v1347 = vsel %vm1321, %v1311, 0
      %v1350 = vsel %vm1321, %v1312, 0
      %v1353 = vsel %vm1321, %v1313, 0
      %v1356 = vsel %vm1321, %v1314, 0
      %v1359 = vsel %vm1321, %v1315, 0
      %v1362 = vsel %vm1321, %v1316, 0
      %v1365 = vsel %vm1321, %v1317, 0
      %v1368 = vsel %vm1321, %v1318, 0
      %v1371 = vsel %vm1321, %v1319, 0
      %v1374 = vsel %vm1321, %v1320, 0
      %1376 = vmatprep.subr.mxu0 0.0
      %1377 = vmatpush1.xpose.msra.mxu0 %v1374
      %1378 = vmatprep.subr.mxu0 0.0
      %1379 = vmatpush1.xpose.msra.mxu0 %v1371
      %1380 = vmatprep.subr.mxu0 0.0
      %1381 = vmatpush1.xpose.msra.mxu0 %v1368
      %1382 = vmatprep.subr.mxu0 0.0
      %1383 = vmatpush1.xpose.msra.mxu0 %v1365
      %1384 = vmatprep.subr.mxu0 0.0
      %1385 = vmatpush1.xpose.msra.mxu0 %v1362
      %1386 = vmatprep.subr.mxu0 0.0
      %1387 = vmatpush1.xpose.msra.mxu0 %v1359
      %1388 = vmatprep.subr.mxu0 0.0
      %1389 = vmatpush1.xpose.msra.mxu0 %v1356
      %1390 = vmatprep.subr.mxu0 0.0
      %1391 = vmatpush1.xpose.msra.mxu0 %v1353
      %1392 = vmatprep.subr.mxu0 0.0
      %1393 = vmatpush1.xpose.msra.mxu0 %v1350
      %1394 = vmatprep.subr.mxu0 0.0
      %1395 = vmatpush1.xpose.msra.mxu0 %v1347
      %1396 = vmatprep.subr.mxu0 0.0
      %1397 = vmatpush1.xpose.msra.mxu0 %v1344
      %1398 = vmatprep.subr.mxu0 0.0
      %1399 = vmatpush1.xpose.msra.mxu0 %v1341
      %1400 = vmatprep.subr.mxu0 0.0
      %1401 = vmatpush1.xpose.msra.mxu0 %v1338
      %1402 = vmatprep.subr.mxu0 0.0
      %1403 = vmatpush1.xpose.msra.mxu0 %v1335
      %1404 = vmatprep.subr.mxu0 0.0
      %1405 = vmatpush1.xpose.msra.mxu0 %v1332
      %1406 = vmatprep.subr.mxu0 0.0
      %1407 = vmatpush1.xpose.msra.mxu0 %v1329
      %1408 = vmatprep.subr.mxu0 0.0
      %1409 = vmatpush2.xpose.msra.mxu0 0.0
      %1410 = vmatprep.subr.mxu0 0.0
      %1411 = vmatpush2.xpose.msra.mxu0 0.0
      %1412 = vmatprep.subr.mxu0 0.0
      %1413 = vmatpush2.xpose.msra.mxu0 0.0
      %1414 = vmatprep.subr.mxu0 0.0
      %1415 = vmatpush2.xpose.msra.mxu0 0.0
      %1416 = vmatprep.subr.mxu0 0.0
      %1417 = vmatpush2.xpose.msra.mxu0 0.0
      %1418 = vmatprep.subr.mxu0 0.0
      %1419 = vmatpush2.xpose.msra.mxu0 0.0
      %1420 = vmatprep.subr.mxu0 0.0
      %1421 = vmatpush2.xpose.msra.mxu0 0.0
      %1422 = vmatprep.subr.mxu0 0.0
      %1423 = vmatpush2.xpose.msra.mxu0 0.0
      %1424 = vmatprep.subr.mxu0 0.0
      %1425 = vmatpush2.xpose.msra.mxu0 0.0
      %1426 = vmatprep.subr.mxu0 0.0
      %1427 = vmatpush2.xpose.msra.mxu0 0.0
      %1428 = vmatprep.subr.mxu0 0.0
      %1429 = vmatpush2.xpose.msra.mxu0 0.0
      %1430 = vmatprep.subr.mxu0 0.0
      %1431 = vmatpush2.xpose.msra.mxu0 0.0
      %1432 = vmatprep.subr.mxu0 0.0
      %1433 = vmatpush2.xpose.msra.mxu0 0.0
      %1434 = vmatprep.subr.mxu0 0.0
      %1435 = vmatpush2.xpose.msra.mxu0 0.0
      %1436 = vmatprep.subr.mxu0 0.0
      %1437 = vmatpush2.xpose.msra.mxu0 0.0
      %1438 = vmatprep.subr.mxu0 0.0
      %1439 = vmatpush2.xpose.msra.mxu0 0.0
      %1440 = vmatprep.mubr.f32.mxu0 0.0
      %1441 = vmatmul.mubr.f32.gmra.mxu0 %v1323
      %v1442 = vpop.f32.mrf.mxu0
      %v1443 = vadd.f32 0.0, %v1442
      %v1444 = vpop.f32.mrf.mxu0
      %1445 = vmatprep.mubr.f32.mxu0 0.0
      %1446 = vmatmul.mubr.f32.gmra.mxu0 %v1326
      %v1447 = vpop.f32.mrf.mxu0
      %v1448 = vadd.f32 0.0, %v1447
      %v1449 = vpop.f32.mrf.mxu0
      %1450 = vdwg.mxu0
      %1452 = vrot.lane.b32.xlu0 %v1443, 1
      %v1453 = vpop.permute.xlu0 %1452
      %1455 = vrot.lane.b32.xlu0 %v1443, 2
      %v1456 = vpop.permute.xlu0 %1455
      %1458 = vrot.lane.b32.xlu0 %v1443, 3
      %v1459 = vpop.permute.xlu0 %1458
      %1461 = vrot.lane.b32.xlu0 %v1443, 4
      %v1462 = vpop.permute.xlu0 %1461
      %1464 = vrot.lane.b32.xlu0 %v1443, 5
      %v1465 = vpop.permute.xlu0 %1464
      %1467 = vrot.lane.b32.xlu0 %v1443, 6
      %v1468 = vpop.permute.xlu0 %1467
      %1470 = vrot.lane.b32.xlu0 %v1443, 7
      %v1471 = vpop.permute.xlu0 %1470
      %1474 = vrot.lane.b32.xlu0 %v1448, 8
      %v1475 = vpop.permute.xlu0 %1474
      %1477 = vrot.lane.b32.xlu0 %v1448, 9
      %v1478 = vpop.permute.xlu0 %1477
      %1480 = vrot.lane.b32.xlu0 %v1448, 10
      %v1481 = vpop.permute.xlu0 %1480
      %1483 = vrot.lane.b32.xlu0 %v1448, 11
      %v1484 = vpop.permute.xlu0 %1483
      %1486 = vrot.lane.b32.xlu0 %v1448, 12
      %v1487 = vpop.permute.xlu0 %1486
      %1489 = vrot.lane.b32.xlu0 %v1448, 13
      %v1490 = vpop.permute.xlu0 %1489
      %1492 = vrot.lane.b32.xlu0 %v1448, 14
      %v1493 = vpop.permute.xlu0 %1492
      %1495 = vrot.lane.b32.xlu0 %v1448, 15
      %v1496 = vpop.permute.xlu0 %1495
      %vm1498 = vcmask 1040384
      %v1499 = vsel %vm1498, %v1443, %v1453
      %vm1500 = vcmask 1041408
      %v1501 = vsel %vm1500, %v1499, %v1456
      %vm1502 = vcmask 1042432
      %v1503 = vsel %vm1502, %v1501, %v1459
      %vm1504 = vcmask 1043456
      %v1505 = vsel %vm1504, %v1503, %v1462
      %vm1506 = vcmask 1044480
      %v1507 = vsel %vm1506, %v1505, %v1465
      %vm1508 = vcmask 1045504
      %v1509 = vsel %vm1508, %v1507, %v1468
      %vm1510 = vcmask 1046528
      %v1511 = vsel %vm1510, %v1509, %v1471
      %v1512 = vsel %vm1498, %v1475, %v1478
      %v1513 = vsel %vm1500, %v1512, %v1481
      %v1514 = vsel %vm1502, %v1513, %v1484
      %v1515 = vsel %vm1504, %v1514, %v1487
      %v1516 = vsel %vm1506, %v1515, %v1490
      %v1517 = vsel %vm1508, %v1516, %v1493
      %v1518 = vsel %vm1510, %v1517, %v1496
      %1521 = vrot.lane.b32.xlu0 %v1511, 113
      %v1522 = vpop.permute.xlu0 %1521
      %1523 = vrot.lane.b32.xlu0 %v1518, 113
      %v1524 = vpop.permute.xlu0 %1523
      %v1528 = vsel %vm1321, %v1278, 0
      %v1531 = vsel %vm1321, %v1279, 0
      %v1534 = vsel %vm1321, %v1201, 0
      %v1537 = vsel %vm1321, %v1204, 0
      %1539 = vmatprep.subr.mxu0 0.0
      %1540 = vmatpush1.xpose.msra.mxu0 0.0
      %1541 = vmatprep.subr.mxu0 0.0
      %1542 = vmatpush1.xpose.msra.mxu0 0.0
      %1543 = vmatprep.subr.mxu0 0.0
      %1544 = vmatpush1.xpose.msra.mxu0 0.0
      %1545 = vmatprep.subr.mxu0 0.0
      %1546 = vmatpush1.xpose.msra.mxu0 0.0
      %1547 = vmatprep.subr.mxu0 0.0
      %1548 = vmatpush1.xpose.msra.mxu0 0.0
      %1549 = vmatprep.subr.mxu0 0.0
      %1550 = vmatpush1.xpose.msra.mxu0 0.0
      %1551 = vmatprep.subr.mxu0 0.0
      %1552 = vmatpush1.xpose.msra.mxu0 0.0
      %1553 = vmatprep.subr.mxu0 0.0
      %1554 = vmatpush1.xpose.msra.mxu0 0.0
      %1555 = vmatprep.subr.mxu0 0.0
      %1556 = vmatpush1.xpose.msra.mxu0 0.0
      %1557 = vmatprep.subr.mxu0 0.0
      %1558 = vmatpush1.xpose.msra.mxu0 0.0
      %1559 = vmatprep.subr.mxu0 0.0
      %1560 = vmatpush1.xpose.msra.mxu0 0.0
      %1561 = vmatprep.subr.mxu0 0.0
      %1562 = vmatpush1.xpose.msra.mxu0 0.0
      %1563 = vmatprep.subr.mxu0 0.0
      %1564 = vmatpush1.xpose.msra.mxu0 0.0
      %1565 = vmatprep.subr.mxu0 0.0
      %1566 = vmatpush1.xpose.msra.mxu0 0.0
      %1567 = vmatprep.subr.mxu0 0.0
      %1568 = vmatpush1.xpose.msra.mxu0 %v1537
      %1569 = vmatprep.subr.mxu0 0.0
      %1570 = vmatpush1.xpose.msra.mxu0 %v1534
      %1571 = vmatprep.subr.mxu0 0.0
      %1572 = vmatpush2.xpose.msra.mxu0 0.0
      %1573 = vmatprep.subr.mxu0 0.0
      %1574 = vmatpush2.xpose.msra.mxu0 0.0
      %1575 = vmatprep.subr.mxu0 0.0
      %1576 = vmatpush2.xpose.msra.mxu0 0.0
      %1577 = vmatprep.subr.mxu0 0.0
      %1578 = vmatpush2.xpose.msra.mxu0 0.0
      %1579 = vmatprep.subr.mxu0 0.0
      %1580 = vmatpush2.xpose.msra.mxu0 0.0
      %1581 = vmatprep.subr.mxu0 0.0
      %1582 = vmatpush2.xpose.msra.mxu0 0.0
      %1583 = vmatprep.subr.mxu0 0.0
      %1584 = vmatpush2.xpose.msra.mxu0 0.0
      %1585 = vmatprep.subr.mxu0 0.0
      %1586 = vmatpush2.xpose.msra.mxu0 0.0
      %1587 = vmatprep.subr.mxu0 0.0
      %1588 = vmatpush2.xpose.msra.mxu0 0.0
      %1589 = vmatprep.subr.mxu0 0.0
      %1590 = vmatpush2.xpose.msra.mxu0 0.0
      %1591 = vmatprep.subr.mxu0 0.0
      %1592 = vmatpush2.xpose.msra.mxu0 0.0
      %1593 = vmatprep.subr.mxu0 0.0
      %1594 = vmatpush2.xpose.msra.mxu0 0.0
      %1595 = vmatprep.subr.mxu0 0.0
      %1596 = vmatpush2.xpose.msra.mxu0 0.0
      %1597 = vmatprep.subr.mxu0 0.0
      %1598 = vmatpush2.xpose.msra.mxu0 0.0
      %1599 = vmatprep.subr.mxu0 0.0
      %1600 = vmatpush2.xpose.msra.mxu0 0.0
      %1601 = vmatprep.subr.mxu0 0.0
      %1602 = vmatpush2.xpose.msra.mxu0 0.0
      %1603 = vmatprep.mubr.f32.mxu0 0.0
      %1604 = vmatmul.mubr.f32.gmra.mxu0 %v1528
      %v1605 = vpop.f32.mrf.mxu0
      %v1606 = vadd.f32 %v1522, %v1605
      %v1607 = vpop.f32.mrf.mxu0
      %1608 = vmatprep.mubr.f32.mxu0 0.0
      %1609 = vmatmul.mubr.f32.gmra.mxu0 %v1531
      %v1610 = vpop.f32.mrf.mxu0
      %v1611 = vadd.f32 %v1524, %v1610
      %v1612 = vpop.f32.mrf.mxu0
      %1613 = vdwg.mxu0
      %v1614 = vmul.f32 %v1606, 0.35355338
      %v1615 = vmul.f32 %v1611, 0.35355338
      %vm1616 = vcmask 130048
      %v1617 = vsel %vm1616, %v1614, -inf
      %1618 = vmax.xlane.f32.xlu0 %v1617
      %v1619 = vpop.xlane.xlu0 %1618
      %v1620 = vsel %vm1616, %v1615, -inf
      %1621 = vmax.xlane.f32.xlu0 %v1620
      %v1622 = vpop.xlane.xlu0 %1621
      %v1623 = vsub.f32 %v1614, %v1619
      %v1624 = vsub.f32 %v1615, %v1622
      %v1625 = vmul.f32 %v1623, 1.442695
      %v1626 = vpow.pop %v1625
      %v1627 = vmul.f32 %v1624, 1.442695
      %v1628 = vpow.pop %v1627
      %v1629 = vsel %vm1616, %v1626, 0.0
      %1630 = vadd.xlane.f32.xlu0 %v1629
      %v1631 = vpop.xlane.xlu0 %1630
      %v1632 = vsel %vm1616, %v1628, 0.0
      %1633 = vadd.xlane.f32.xlu0 %v1632
      %v1634 = vpop.xlane.xlu0 %1633
      %v1635 = vrcp.pop %v1631
      %v1636 = vmul.f32 %v1626, %v1635
      %v1637 = vrcp.pop %v1634
      %v1638 = vmul.f32 %v1628, %v1637
      %v1640 = vsel %vm1616, %v1636, 0
      %v1643 = vsel %vm1616, %v1638, 0
      %1645 = vmatprep.subr.mxu0 0.0
      %1646 = vmatpush1.msra.mxu0 0.0
      %1647 = vmatprep.subr.mxu0 0.0
      %1648 = vmatpush1.msra.mxu0 0.0
      %1649 = vmatprep.subr.mxu0 0.0
      %1650 = vmatpush1.msra.mxu0 0.0
      %1651 = vmatprep.subr.mxu0 0.0
      %1652 = vmatpush1.msra.mxu0 0.0
      %1653 = vmatprep.subr.mxu0 0.0
      %1654 = vmatpush1.msra.mxu0 0.0
      %1655 = vmatprep.subr.mxu0 0.0
      %1656 = vmatpush1.msra.mxu0 0.0
      %1657 = vmatprep.subr.mxu0 0.0
      %1658 = vmatpush1.msra.mxu0 0.0
      %1659 = vmatprep.subr.mxu0 0.0
      %1660 = vmatpush1.msra.mxu0 0.0
      %1661 = vmatprep.subr.mxu0 0.0
      %1662 = vmatpush1.msra.mxu0 0.0
      %1663 = vmatprep.subr.mxu0 0.0
      %1664 = vmatpush1.msra.mxu0 0.0
      %1665 = vmatprep.subr.mxu0 0.0
      %1666 = vmatpush1.msra.mxu0 0.0
      %1667 = vmatprep.subr.mxu0 0.0
      %1668 = vmatpush1.msra.mxu0 0.0
      %1669 = vmatprep.subr.mxu0 0.0
      %1670 = vmatpush1.msra.mxu0 0.0
      %1671 = vmatprep.subr.mxu0 0.0
      %1672 = vmatpush1.msra.mxu0 0.0
      %1673 = vmatprep.subr.mxu0 0.0
      %1674 = vmatpush1.msra.mxu0 %v1268
      %1675 = vmatprep.subr.mxu0 0.0
      %1676 = vmatpush1.msra.mxu0 %v1265
      %1677 = vmatprep.subr.mxu0 0.0
      %1678 = vmatpush2.msra.mxu0 0.0
      %1679 = vmatprep.subr.mxu0 0.0
      %1680 = vmatpush2.msra.mxu0 0.0
      %1681 = vmatprep.subr.mxu0 0.0
      %1682 = vmatpush2.msra.mxu0 0.0
      %1683 = vmatprep.subr.mxu0 0.0
      %1684 = vmatpush2.msra.mxu0 0.0
      %1685 = vmatprep.subr.mxu0 0.0
      %1686 = vmatpush2.msra.mxu0 0.0
      %1687 = vmatprep.subr.mxu0 0.0
      %1688 = vmatpush2.msra.mxu0 0.0
      %1689 = vmatprep.subr.mxu0 0.0
      %1690 = vmatpush2.msra.mxu0 0.0
      %1691 = vmatprep.subr.mxu0 0.0
      %1692 = vmatpush2.msra.mxu0 0.0
      %1693 = vmatprep.subr.mxu0 0.0
      %1694 = vmatpush2.msra.mxu0 0.0
      %1695 = vmatprep.subr.mxu0 0.0
      %1696 = vmatpush2.msra.mxu0 0.0
      %1697 = vmatprep.subr.mxu0 0.0
      %1698 = vmatpush2.msra.mxu0 0.0
      %1699 = vmatprep.subr.mxu0 0.0
      %1700 = vmatpush2.msra.mxu0 0.0
      %1701 = vmatprep.subr.mxu0 0.0
      %1702 = vmatpush2.msra.mxu0 0.0
      %1703 = vmatprep.subr.mxu0 0.0
      %1704 = vmatpush2.msra.mxu0 0.0
      %1705 = vmatprep.subr.mxu0 0.0
      %1706 = vmatpush2.msra.mxu0 0.0
      %1707 = vmatprep.subr.mxu0 0.0
      %1708 = vmatpush2.msra.mxu0 0.0
      %1709 = vmatprep.mubr.f32.mxu0 0.0
      %1710 = vmatmul.mubr.f32.gmra.mxu0 %v1640
      %v1711 = vpop.f32.mrf.mxu0
      %v1712 = vadd.f32 0.0, %v1711
      %v1713 = vpop.f32.mrf.mxu0
      %1714 = vmatprep.mubr.f32.mxu0 0.0
      %1715 = vmatmul.mubr.f32.gmra.mxu0 %v1643
      %v1716 = vpop.f32.mrf.mxu0
      %v1717 = vadd.f32 0.0, %v1716
      %v1718 = vpop.f32.mrf.mxu0
      %1719 = vdwg.mxu0
      %v1720 = vld [vmem:[#allocation3] sm:$0xff]
      %v1721 = vld [vmem:[#allocation3 + $0x8] sm:$0xff]
      %v1722 = vpack.c.bf16 %v1717, %v1712
      %v1723 = vld [vmem:[%s803] sm:$0xf]
      %v1725 = vsel %vm1321, %v1722, 0
      %v1728 = vsel %vm1504, %v1723, 0
      %1730 = vmatprep.subr.bf16.mxu0 0
      %1731 = vmatpush1.bf16.msra.mxu0 0
      %1732 = vmatprep.subr.bf16.mxu0 0
      %1733 = vmatpush1.bf16.msra.mxu0 0
      %1734 = vmatprep.subr.bf16.mxu0 0
      %1735 = vmatpush1.bf16.msra.mxu0 0
      %1736 = vmatprep.subr.bf16.mxu0 0
      %1737 = vmatpush1.bf16.msra.mxu0 0
      %1738 = vmatprep.subr.bf16.mxu0 0
      %1739 = vmatpush1.bf16.msra.mxu0 0
      %1740 = vmatprep.subr.bf16.mxu0 0
      %1741 = vmatpush1.bf16.msra.mxu0 0
      %1742 = vmatprep.subr.bf16.mxu0 0
      %1743 = vmatpush1.bf16.msra.mxu0 0
      %1744 = vmatprep.subr.bf16.mxu0 0
      %1745 = vmatpush1.bf16.msra.mxu0 %v1728
      %1746 = vmatprep.subr.bf16.mxu0 0
      %1747 = vmatpush2.bf16.msra.mxu0 0
      %1748 = vmatprep.subr.bf16.mxu0 0
      %1749 = vmatpush2.bf16.msra.mxu0 0
      %1750 = vmatprep.subr.bf16.mxu0 0
      %1751 = vmatpush2.bf16.msra.mxu0 0
      %1752 = vmatprep.subr.bf16.mxu0 0
      %1753 = vmatpush2.bf16.msra.mxu0 0
      %1754 = vmatprep.subr.bf16.mxu0 0
      %1755 = vmatpush2.bf16.msra.mxu0 0
      %1756 = vmatprep.subr.bf16.mxu0 0
      %1757 = vmatpush2.bf16.msra.mxu0 0
      %1758 = vmatprep.subr.bf16.mxu0 0
      %1759 = vmatpush2.bf16.msra.mxu0 0
      %1760 = vmatprep.subr.bf16.mxu0 0
      %1761 = vmatpush2.bf16.msra.mxu0 0
      %1762 = vmatprep.mubr.bf16.mxu0 0
      %1763 = vmatmul.mubr.bf16.gmra.mxu0 %v1725
      %v1764 = vpop.f32.mrf.mxu0
      %v1765 = vadd.f32 0.0, %v1764
      %v1766 = vpop.f32.mrf.mxu0
      %v1767 = vpop.f32.mrf.mxu0
      %v1768 = vadd.f32 0.0, %v1767
      %v1769 = vpop.f32.mrf.mxu0
      %1770 = vdwg.mxu0
      %v1771 = vadd.f32 %v1720, %v1765
      %v1772 = vadd.f32 %v1721, %v1768
      %1773 = vst.msk [vmem:[#allocation3] sm:$0xff] %vm1031, %v1771
      %1774 = vst.msk [vmem:[#allocation3 + $0x8] sm:$0xff] %vm1031, %v1772
      %p1775 = scmp.eq.s32.totalorder %s36, 3
      // Predicated region
      $region105: #{_lambda_.11} parent=99 // pred_check
        %p1776 = pneg %p1775
      $region106: #{_lambda_.11} parent=99 // pred_check_branch
        %1778 = sbr.rel (%p1776) target = $region108
      $region107: #{_lambda_.11} parent=99 // pred_region
        %v1779 = vld [vmem:[#allocation2] sm:$0xff]
        %v1780 = vld [vmem:[#allocation2 + $0x8] sm:$0xff]
        %v1781 = vld [vmem:[#allocation3] sm:$0xff]
        %v1782 = vld [vmem:[#allocation3 + $0x8] sm:$0xff]
        %v1783 = vadd.f32 %v1779, %v1781
        %v1784 = vadd.f32 %v1780, %v1782
        %v1785 = vld [vmem:[%s19] sm:$0x1]
        %v1787 = vlaneseq
        %v1788 = vshrl.u32 %v1787, 7
        %v1789 = vsub.s32 0, %v1788
        %v1790 = vrot.slane %v1785, %v1789
        %v1792 = vadd.f32 %v1783, %v1790
        %v1793 = vadd.f32 %v1784, %v1790
        %v1794 = vpack.c.bf16 %v1793, %v1792
        %v1796 = vunpack.c.l.b16 %v1794
        %v1797 = vunpack.c.h.b16 %v1794
        %v1798 = vpack.c.b16 %v1796, %v1796
        %v1799 = vpack.c.b16 %v1797, %v1797
        %vm1802 = vcmask 257024
        %1803 = vst.msk [vmem:[%s808] sm:$0xf] %vm1802, %v1798
        %1804 = vst.msk [vmem:[%s808 + $0x4] sm:$0xf] %vm1802, %v1799
      $region108: #{_lambda_.11} parent=99 // pred_fallthru
        _
      %p1805 = scmp.lt.s32.totalorder %s35, 1
      %s1806 = scalar_select %p1805, %s35, 1
      %s1807 = smul.addr %s1806, 2
      %s1808 = smul.addr %s1807, 4
      %s1809 = scalar_lea.vmem %s20, %s1808
      // Predicated region
      $region109: #{_lambda_.11} parent=99 // pred_check
        %p1810 = pneg %p536
      $region110: #{_lambda_.11} parent=99 // pred_check_branch
        %1812 = sbr.rel (%p1810) target = $region112
      $region111: #{_lambda_.11} parent=99 // pred_region
        _
      $region112: #{_lambda_.11} parent=99 // pred_fallthru
        _
    $region100: #{_lambda_.11} parent=5 // pred_fallthru
      _
    %p1813 = scmp.le.s32.totalorder 2, %s26
    // Predicated region
    $region113: #{_lambda_.11} parent=5 // pred_check
      %p1814 = pneg %p1813
    $region114: #{_lambda_.11} parent=5 // pred_check_branch
      %1816 = sbr.rel (%p1814) target = $region116
    $region115: #{_lambda_.11} parent=5 // pred_region
      %s1817 = ssub.s32 %s26, 2
      // Predicated region
      $region117: #{_lambda_.11} parent=115 // pred_check
        %p1818 = pneg %p542
      $region118: #{_lambda_.11} parent=115 // pred_check_branch
        %1820 = sbr.rel (%p1818) target = $region120
      $region119: #{_lambda_.11} parent=115 // pred_region
        %p1821 = scmp.lt.s32.totalorder %s37, 1
        %s1822 = scalar_select %p1821, %s37, 1
        %s1823 = smul.addr %s1822, 2
        %s1824 = smul.addr %s1823, 4
        %s1825 = scalar_lea.vmem %s20, %s1824
      $region120: #{_lambda_.11} parent=115 // pred_fallthru
        _
    $region116: #{_lambda_.11} parent=5 // pred_fallthru
      _
  $region6: #{_lambda_.11} parent=0 // loop_footer
    %s30 = sadd.s32 1, %s26
  $region7: #{_lambda_.11} parent=0 // loop_footer_branch
    %25 = sbr.rel target = $region3
  $region8: #{_lambda_.11} parent=0 // loop_exit
    _

// kernel: _lambda_.18
$region0: #{_lambda_.18}
  #allocation0 [shape = 'u32[]', space=smem, size = 0x4, offset = 0x4, fixed_abs, tag = 'smem constant byte address 0x4 - core index']
  #allocation1 [shape = 'u32[144,128]{1,0:T(1,128)}', space=vmem, size = 0x12000, scoped, tag = 'internal scratch']
  %s0 = inlined_call_operand.vmem [shape: bf16[2,16,32], index: 0, kind: input, shape index: {}]
  %s1 = inlined_call_operand.vmem [shape: bf16[5,32,16], index: 1, kind: input, shape index: {}]
  %s2 = inlined_call_operand.vmem [shape: f32[1,16], index: 2, kind: input, shape index: {}]
  %s3 = inlined_call_operand.vmem [shape: f32[1,16], index: 3, kind: input, shape index: {}]
  %s4 = inlined_call_operand.vmem [shape: bf16[2,16,16], index: 4, kind: output, shape index: {}]
  %s5 = sld [smem:[#allocation0]]
  $region49: #{_lambda_.18} parent=0
    _
  %s7 = ssub.s32 1, %s5
  %s8 = scalar_select 0, %s7, %s5
  loop: start=0, step=1, limit=4
  $region2: #{_lambda_.18} parent=0 // loop_pre_header
    _
  $region3: #{_lambda_.18} parent=0 // loop_header
    %s10 = sphi 0, %s14
    %p11 = scmp.ge.s32.totalorder %s10, 4
    %s20 = sphi 0, %s22
    %s23 = sphi 0, %s20
    %s24 = sphi 0, %s23
    %s40 = sphi 0, %s24
    %s44 = sphi 0, %s44
    %s46 = sphi 0, %s44
    %s47 = sphi 0, %s46
    %s61 = sphi 0, %s47
    %s65 = sphi 0, %s65
    %s67 = sphi 0, %s65
    %s68 = sphi 0, %s67
    %s82 = sphi 0, %s68
    %s86 = sphi 0, %s86
    %s88 = sphi 0, %s86
    %s89 = sphi 0, %s88
    %s103 = sphi 0, %s89
    %s109 = sphi 0, %s111
    %s112 = sphi 0, %s109
    %s113 = sphi 0, %s112
    %s129 = sphi 0, %s113
  $region4: #{_lambda_.18} parent=0 // loop_header_branch
    %13 = sbr.rel (%p11) target = $region8
  $region5: #{_lambda_.18} parent=0 // loop_body
    %s15 = ssub.s32 %s10, 1
    %s16 = ssub.s32 %s10, 2
    %s17 = sadd.s32 %s10, 1
    %s18 = ssub.s32 %s10, %s17
    %p19 = scmp.eq.s32.totalorder %s18, 0
    %s21 = sadd.s32 %s20, 1
    %s22 = scalar_select %p19, %s20, %s21
    %p25 = pneg %p19
    %p26 = scmp.eq.s32.totalorder %s10, 1
    %p27 = por %p25, %p26
    %p28 = scmp.ne.s32.totalorder %s20, %s23
    %p29 = scmp.eq.s32.totalorder %s10, 0
    %p30 = por %p28, %p29
    %p31 = scmp.ne.s32.totalorder %s20, %s23
    %p32 = scmp.eq.s32.totalorder %s15, 1
    %p33 = por %p31, %p32
    %p34 = scmp.ne.s32.totalorder %s23, %s24
    %p35 = scmp.eq.s32.totalorder %s15, 0
    %p36 = por %p34, %p35
    %p37 = scmp.ne.s32.totalorder %s23, %s24
    %p38 = scmp.eq.s32.totalorder %s16, 1
    %p39 = por %p37, %p38
    %p41 = scmp.ne.s32.totalorder %s24, %s40
    %p42 = scmp.eq.s32.totalorder %s16, 0
    %p43 = por %p41, %p42
    %s45 = sadd.s32 %s44, 1
    %p48 = scmp.eq.s32.totalorder %s10, 1
    %p49 = scmp.ne.s32.totalorder %s44, %s46
    %p50 = scmp.eq.s32.totalorder %s10, 0
    %p51 = por %p49, %p50
    %p52 = scmp.ne.s32.totalorder %s44, %s46
    %p53 = scmp.eq.s32.totalorder %s15, 1
    %p54 = por %p52, %p53
    %p55 = scmp.ne.s32.totalorder %s46, %s47
    %p56 = scmp.eq.s32.totalorder %s15, 0
    %p57 = por %p55, %p56
    %p58 = scmp.ne.s32.totalorder %s46, %s47
    %p59 = scmp.eq.s32.totalorder %s16, 1
    %p60 = por %p58, %p59
    %p62 = scmp.ne.s32.totalorder %s47, %s61
    %p63 = scmp.eq.s32.totalorder %s16, 0
    %p64 = por %p62, %p63
    %s66 = sadd.s32 %s65, 1
    %p69 = scmp.eq.s32.totalorder %s10, 1
    %p70 = scmp.ne.s32.totalorder %s65, %s67
    %p71 = scmp.eq.s32.totalorder %s10, 0
    %p72 = por %p70, %p71
    %p73 = scmp.ne.s32.totalorder %s65, %s67
    %p74 = scmp.eq.s32.totalorder %s15, 1
    %p75 = por %p73, %p74
    %p76 = scmp.ne.s32.totalorder %s67, %s68
    %p77 = scmp.eq.s32.totalorder %s15, 0
    %p78 = por %p76, %p77
    %p79 = scmp.ne.s32.totalorder %s67, %s68
    %p80 = scmp.eq.s32.totalorder %s16, 1
    %p81 = por %p79, %p80
    %p83 = scmp.ne.s32.totalorder %s68, %s82
    %p84 = scmp.eq.s32.totalorder %s16, 0
    %p85 = por %p83, %p84
    %s87 = sadd.s32 %s86, 1
    %p90 = scmp.eq.s32.totalorder %s10, 1
    %p91 = scmp.ne.s32.totalorder %s86, %s88
    %p92 = scmp.eq.s32.totalorder %s10, 0
    %p93 = por %p91, %p92
    %p94 = scmp.ne.s32.totalorder %s86, %s88
    %p95 = scmp.eq.s32.totalorder %s15, 1
    %p96 = por %p94, %p95
    %p97 = scmp.ne.s32.totalorder %s88, %s89
    %p98 = scmp.eq.s32.totalorder %s15, 0
    %p99 = por %p97, %p98
    %p100 = scmp.ne.s32.totalorder %s88, %s89
    %p101 = scmp.eq.s32.totalorder %s16, 1
    %p102 = por %p100, %p101
    %p104 = scmp.ne.s32.totalorder %s89, %s103
    %p105 = scmp.eq.s32.totalorder %s16, 0
    %p106 = por %p104, %p105
    %s107 = ssub.s32 %s10, %s17
    %p108 = scmp.eq.s32.totalorder %s107, 0
    %s110 = sadd.s32 %s109, 1
    %s111 = scalar_select %p108, %s109, %s110
    %p114 = pneg %p108
    %p115 = scmp.eq.s32.totalorder %s10, 1
    %p116 = por %p114, %p115
    %p117 = scmp.ne.s32.totalorder %s109, %s112
    %p118 = scmp.eq.s32.totalorder %s10, 0
    %p119 = por %p117, %p118
    %p120 = scmp.ne.s32.totalorder %s109, %s112
    %p121 = scmp.eq.s32.totalorder %s15, 1
    %p122 = por %p120, %p121
    %p123 = scmp.ne.s32.totalorder %s112, %s113
    %p124 = scmp.eq.s32.totalorder %s15, 0
    %p125 = por %p123, %p124
    %p126 = scmp.ne.s32.totalorder %s112, %s113
    %p127 = scmp.eq.s32.totalorder %s16, 1
    %p128 = por %p126, %p127
    %p130 = scmp.ne.s32.totalorder %s113, %s129
    %p131 = scmp.eq.s32.totalorder %s16, 0
    %p132 = por %p130, %p131
    %p133 = scmp.le.s32.totalorder 1, %s10
    %p134 = scmp.lt.s32.totalorder %s10, 3
    %p135 = pnand %p133, %p134
    %p136 = pneg %p135
    // Predicated region
    $region9: #{_lambda_.18} parent=5 // pred_check
      _
    $region10: #{_lambda_.18} parent=5 // pred_check_branch
      %138 = sbr.rel (%p135) target = $region12
    $region11: #{_lambda_.18} parent=5 // pred_region
      %s139 = ssub.s32 %s10, 1
      // Predicated region
      $region13: #{_lambda_.18} parent=11 // pred_check
        %p140 = pneg %p57
      $region14: #{_lambda_.18} parent=11 // pred_check_branch
        %142 = sbr.rel (%p140) target = $region16
      $region15: #{_lambda_.18} parent=11 // pred_region
        _
      $region16: #{_lambda_.18} parent=11 // pred_fallthru
        _
      // Predicated region
      $region17: #{_lambda_.18} parent=11 // pred_check
        %p143 = pneg %p78
      $region18: #{_lambda_.18} parent=11 // pred_check_branch
        %145 = sbr.rel (%p143) target = $region20
      $region19: #{_lambda_.18} parent=11 // pred_region
        _
      $region20: #{_lambda_.18} parent=11 // pred_fallthru
        _
      // Predicated region
      $region21: #{_lambda_.18} parent=11 // pred_check
        %p146 = pneg %p99
      $region22: #{_lambda_.18} parent=11 // pred_check_branch
        %148 = sbr.rel (%p146) target = $region24
      $region23: #{_lambda_.18} parent=11 // pred_region
        _
      $region24: #{_lambda_.18} parent=11 // pred_fallthru
        _
    $region12: #{_lambda_.18} parent=5 // pred_fallthru
      _
    %p149 = scmp.lt.s32.totalorder %s10, 2
    // Predicated region
    $region25: #{_lambda_.18} parent=5 // pred_check
      %p150 = pneg %p149
    $region26: #{_lambda_.18} parent=5 // pred_check_branch
      %152 = sbr.rel (%p150) target = $region28
    $region27: #{_lambda_.18} parent=5 // pred_region
      // Predicated region
      $region29: #{_lambda_.18} parent=27 // pred_check
        %p153 = pneg %p30
      $region30: #{_lambda_.18} parent=27 // pred_check_branch
        %155 = sbr.rel (%p153) target = $region32
      $region31: #{_lambda_.18} parent=27 // pred_region
        %p156 = scmp.lt.s32.totalorder %s10, 1
        %s157 = scalar_select %p156, %s10, 1
        %s158 = smul.addr %s157, 2
        %s159 = smul.addr %s158, 4
        %s160 = scalar_lea.vmem %s0, %s159
      $region32: #{_lambda_.18} parent=27 // pred_fallthru
        _
    $region28: #{_lambda_.18} parent=5 // pred_fallthru
      _
    %p161 = scmp.le.s32.totalorder 1, %s10
    %p162 = scmp.lt.s32.totalorder %s10, 3
    %p163 = pnand %p161, %p162
    %p164 = pneg %p163
    // Predicated region
    $region33: #{_lambda_.18} parent=5 // pred_check
      _
    $region34: #{_lambda_.18} parent=5 // pred_check_branch
      %166 = sbr.rel (%p163) target = $region36
    $region35: #{_lambda_.18} parent=5 // pred_region
      %s167 = ssub.s32 %s10, 1
      %p168 = scmp.lt.s32.totalorder %s15, 1
      %s169 = scalar_select %p168, %s15, 1
      %s170 = smul.addr %s169, 2
      %s171 = smul.addr %s170, 4
      %s172 = scalar_lea.vmem %s0, %s171
      %p173 = pneg %p36
      %p174 = pneg %p33
      %p175 = pneg %p57
      %p176 = pneg %p54
      %p177 = pneg %p78
      %p178 = pneg %p75
      %p179 = pneg %p99
      %p180 = pneg %p96
      %p181 = pneg %p125
      %p182 = pneg %p122
      %p183 = scmp.lt.s32.totalorder %s15, 1
      %s184 = scalar_select %p183, %s15, 1
      %s185 = smul.addr %s184, 2
      %s186 = smul.addr %s185, 4
      %s187 = scalar_lea.vmem %s4, %s186
      %p188 = scmp.lt.s32.totalorder %s15, 1
      %s189 = scalar_select %p188, %s15, 1
      %s190 = smul.addr %s189, 2
      %s191 = smul.addr %s190, 4
      %s192 = scalar_lea.vmem %s0, %s191
      %p193 = scmp.lt.s32.totalorder %s15, 1
      %s194 = scalar_select %p193, %s15, 1
      %s195 = smul.addr %s194, 2
      %s196 = smul.addr %s195, 4
      %s197 = scalar_lea.vmem %s4, %s196
      %v199 = vld [vmem:[%s192] sm:$0xf]
      %v200 = vld [vmem:[%s192 + $0x4] sm:$0xf]
      %v203 = vunpack.c.l.b16 %v199
      %v204 = vunpack.c.l.b16 %v200
      %v205 = vpack.c.b16 %v204, %v203
      %v206 = vrot.slane %v205, 7
      %vm207 = vcmask 1040384
      %v210 = vsel %vm207, 0, %v206
      %v211 = vsel %vm207, %v206, 0
      %v212 = vld [vmem:[%s1] sm:$0xf]
      %v213 = vld [vmem:[%s1 + $0x4] sm:$0xf]
      %v214 = vld [vmem:[%s1 + $0x8] sm:$0xf]
      %v215 = vld [vmem:[%s1 + $0xc] sm:$0xf]
      %s216 = scalar_lea.vmem %s1, 16
      %v217 = vld [vmem:[%s216] sm:$0xf]
      %v218 = vld [vmem:[%s216 + $0x4] sm:$0xf]
      %v219 = vld [vmem:[%s216 + $0x8] sm:$0xf]
      %v220 = vld [vmem:[%s216 + $0xc] sm:$0xf]
      %vm221 = vsmask.f32 7424
      %v222 = vshrl.u32 %v210, 16
      %v224 = vshll.u32 %v210, 16
      %v226 = vrot.slane %v224, 1
      %v227 = vor.u32 %v222, %v226
      %v228 = vshll.u32 %v211, 16
      %v230 = vrot.slane %v228, 1
      %v231 = vsel %vm221, %v227, %v230
      %v236 = vunpack.c.l.b16 %v217
      %v237 = vunpack.c.l.b16 %v218
      %v238 = vunpack.c.l.b16 %v219
      %v239 = vunpack.c.l.b16 %v220
      %v240 = vpack.c.b16 %v237, %v236
      %v241 = vpack.c.b16 %v239, %v238
      %vm244 = vcmask 261120
      %v246 = vsel %vm244, %v231, 0
      %248 = vmatprep.subr.bf16.mxu0 0
      %249 = vmatpush1.bf16.msra.mxu0 0
      %250 = vmatprep.subr.bf16.mxu0 0
      %251 = vmatpush1.bf16.msra.mxu0 0
      %252 = vmatprep.subr.bf16.mxu0 0
      %253 = vmatpush1.bf16.msra.mxu0 0
      %254 = vmatprep.subr.bf16.mxu0 0
      %255 = vmatpush1.bf16.msra.mxu0 0
      %256 = vmatprep.subr.bf16.mxu0 0
      %257 = vmatpush1.bf16.msra.mxu0 0
      %258 = vmatprep.subr.bf16.mxu0 0
      %259 = vmatpush1.bf16.msra.mxu0 0
      %260 = vmatprep.subr.bf16.mxu0 0
      %261 = vmatpush1.bf16.msra.mxu0 %v241
      %262 = vmatprep.subr.bf16.mxu0 0
      %263 = vmatpush1.bf16.msra.mxu0 %v240
      %264 = vmatprep.subr.bf16.mxu0 0
      %265 = vmatpush2.bf16.msra.mxu0 0
      %266 = vmatprep.subr.bf16.mxu0 0
      %267 = vmatpush2.bf16.msra.mxu0 0
      %268 = vmatprep.subr.bf16.mxu0 0
      %269 = vmatpush2.bf16.msra.mxu0 0
      %270 = vmatprep.subr.bf16.mxu0 0
      %271 = vmatpush2.bf16.msra.mxu0 0
      %272 = vmatprep.subr.bf16.mxu0 0
      %273 = vmatpush2.bf16.msra.mxu0 0
      %274 = vmatprep.subr.bf16.mxu0 0
      %275 = vmatpush2.bf16.msra.mxu0 0
      %276 = vmatprep.subr.bf16.mxu0 0
      %277 = vmatpush2.bf16.msra.mxu0 0
      %278 = vmatprep.subr.bf16.mxu0 0
      %279 = vmatpush2.bf16.msra.mxu0 0
      %280 = vmatprep.mubr.bf16.mxu0 0
      %281 = vmatmul.mubr.bf16.gmra.mxu0 %v246
      %v282 = vpop.f32.mrf.mxu0
      %v283 = vadd.f32 0.0, %v282
      %v284 = vpop.f32.mrf.mxu0
      %v285 = vpop.f32.mrf.mxu0
      %v286 = vadd.f32 0.0, %v285
      %v287 = vpop.f32.mrf.mxu0
      %288 = vdwg.mxu0
      %v293 = vunpack.c.l.b16 %v212
      %v294 = vunpack.c.l.b16 %v213
      %v295 = vunpack.c.l.b16 %v214
      %v296 = vunpack.c.l.b16 %v215
      %v297 = vpack.c.b16 %v294, %v293
      %v298 = vpack.c.b16 %v296, %v295
      %v301 = vsel %vm244, %v210, 0
      %303 = vmatprep.subr.bf16.mxu0 0
      %304 = vmatpush1.bf16.msra.mxu0 0
      %305 = vmatprep.subr.bf16.mxu0 0
      %306 = vmatpush1.bf16.msra.mxu0 0
      %307 = vmatprep.subr.bf16.mxu0 0
      %308 = vmatpush1.bf16.msra.mxu0 0
      %309 = vmatprep.subr.bf16.mxu0 0
      %310 = vmatpush1.bf16.msra.mxu0 0
      %311 = vmatprep.subr.bf16.mxu0 0
      %312 = vmatpush1.bf16.msra.mxu0 0
      %313 = vmatprep.subr.bf16.mxu0 0
      %314 = vmatpush1.bf16.msra.mxu0 0
      %315 = vmatprep.subr.bf16.mxu0 0
      %316 = vmatpush1.bf16.msra.mxu0 %v298
      %317 = vmatprep.subr.bf16.mxu0 0
      %318 = vmatpush1.bf16.msra.mxu0 %v297
      %319 = vmatprep.subr.bf16.mxu0 0
      %320 = vmatpush2.bf16.msra.mxu0 0
      %321 = vmatprep.subr.bf16.mxu0 0
      %322 = vmatpush2.bf16.msra.mxu0 0
      %323 = vmatprep.subr.bf16.mxu0 0
      %324 = vmatpush2.bf16.msra.mxu0 0
      %325 = vmatprep.subr.bf16.mxu0 0
      %326 = vmatpush2.bf16.msra.mxu0 0
      %327 = vmatprep.subr.bf16.mxu0 0
      %328 = vmatpush2.bf16.msra.mxu0 0
      %329 = vmatprep.subr.bf16.mxu0 0
      %330 = vmatpush2.bf16.msra.mxu0 0
      %331 = vmatprep.subr.bf16.mxu0 0
      %332 = vmatpush2.bf16.msra.mxu0 0
      %333 = vmatprep.subr.bf16.mxu0 0
      %334 = vmatpush2.bf16.msra.mxu0 0
      %335 = vmatprep.mubr.bf16.mxu0 0
      %336 = vmatmul.mubr.bf16.gmra.mxu0 %v301
      %v337 = vpop.f32.mrf.mxu0
      %v338 = vadd.f32 %v283, %v337
      %v339 = vpop.f32.mrf.mxu0
      %v340 = vpop.f32.mrf.mxu0
      %v341 = vadd.f32 %v286, %v340
      %v342 = vpop.f32.mrf.mxu0
      %343 = vdwg.mxu0
      %s344 = scalar_lea.vmem %s1, 32
      %v345 = vld [vmem:[%s344] sm:$0xf]
      %v346 = vld [vmem:[%s344 + $0x4] sm:$0xf]
      %v347 = vld [vmem:[%s344 + $0x8] sm:$0xf]
      %v348 = vld [vmem:[%s344 + $0xc] sm:$0xf]
      %vm351 = vcmask 1046528
      %v352 = vrot.slane %v210, 1
      %v353 = vrot.slane %v211, 1
      %v354 = vsel %vm351, %v352, %v353
      %v359 = vunpack.c.l.b16 %v345
      %v360 = vunpack.c.l.b16 %v346
      %v361 = vunpack.c.l.b16 %v347
      %v362 = vunpack.c.l.b16 %v348
      %v363 = vpack.c.b16 %v360, %v359
      %v364 = vpack.c.b16 %v362, %v361
      %v368 = vsel %vm244, %v354, 0
      %370 = vmatprep.subr.bf16.mxu0 0
      %371 = vmatpush1.bf16.msra.mxu0 0
      %372 = vmatprep.subr.bf16.mxu0 0
      %373 = vmatpush1.bf16.msra.mxu0 0
      %374 = vmatprep.subr.bf16.mxu0 0
      %375 = vmatpush1.bf16.msra.mxu0 0
      %376 = vmatprep.subr.bf16.mxu0 0
      %377 = vmatpush1.bf16.msra.mxu0 0
      %378 = vmatprep.subr.bf16.mxu0 0
      %379 = vmatpush1.bf16.msra.mxu0 0
      %380 = vmatprep.subr.bf16.mxu0 0
      %381 = vmatpush1.bf16.msra.mxu0 0
      %382 = vmatprep.subr.bf16.mxu0 0
      %383 = vmatpush1.bf16.msra.mxu0 %v364
      %384 = vmatprep.subr.bf16.mxu0 0
      %385 = vmatpush1.bf16.msra.mxu0 %v363
      %386 = vmatprep.subr.bf16.mxu0 0
      %387 = vmatpush2.bf16.msra.mxu0 0
      %388 = vmatprep.subr.bf16.mxu0 0
      %389 = vmatpush2.bf16.msra.mxu0 0
      %390 = vmatprep.subr.bf16.mxu0 0
      %391 = vmatpush2.bf16.msra.mxu0 0
      %392 = vmatprep.subr.bf16.mxu0 0
      %393 = vmatpush2.bf16.msra.mxu0 0
      %394 = vmatprep.subr.bf16.mxu0 0
      %395 = vmatpush2.bf16.msra.mxu0 0
      %396 = vmatprep.subr.bf16.mxu0 0
      %397 = vmatpush2.bf16.msra.mxu0 0
      %398 = vmatprep.subr.bf16.mxu0 0
      %399 = vmatpush2.bf16.msra.mxu0 0
      %400 = vmatprep.subr.bf16.mxu0 0
      %401 = vmatpush2.bf16.msra.mxu0 0
      %402 = vmatprep.mubr.bf16.mxu0 0
      %403 = vmatmul.mubr.bf16.gmra.mxu0 %v368
      %v404 = vpop.f32.mrf.mxu0
      %v405 = vadd.f32 0.0, %v404
      %v406 = vpop.f32.mrf.mxu0
      %v407 = vpop.f32.mrf.mxu0
      %v408 = vadd.f32 0.0, %v407
      %v409 = vpop.f32.mrf.mxu0
      %410 = vdwg.mxu0
      %v411 = vadd.f32 %v338, %v405
      %v412 = vadd.f32 %v341, %v408
      %s413 = scalar_lea.vmem %s1, 48
      %v414 = vld [vmem:[%s413] sm:$0xf]
      %v415 = vld [vmem:[%s413 + $0x4] sm:$0xf]
      %v416 = vld [vmem:[%s413 + $0x8] sm:$0xf]
      %v417 = vld [vmem:[%s413 + $0xc] sm:$0xf]
      %vm418 = vsmask.f32 6400
      %v419 = vrot.slane %v222, 1
      %v420 = vrot.slane %v224, 2
      %v421 = vor.u32 %v419, %v420
      %v422 = vshrl.u32 %v211, 16
      %v424 = vrot.slane %v422, 1
      %v425 = vrot.slane %v228, 2
      %v426 = vor.u32 %v424, %v425
      %v427 = vsel %vm418, %v421, %v426
      %v432 = vunpack.c.l.b16 %v414
      %v433 = vunpack.c.l.b16 %v415
      %v434 = vunpack.c.l.b16 %v416
      %v435 = vunpack.c.l.b16 %v417
      %v436 = vpack.c.b16 %v433, %v432
      %v437 = vpack.c.b16 %v435, %v434
      %v441 = vsel %vm244, %v427, 0
      %443 = vmatprep.subr.bf16.mxu0 0
      %444 = vmatpush1.bf16.msra.mxu0 0
      %445 = vmatprep.subr.bf16.mxu0 0
      %446 = vmatpush1.bf16.msra.mxu0 0
      %447 = vmatprep.subr.bf16.mxu0 0
      %448 = vmatpush1.bf16.msra.mxu0 0
      %449 = vmatprep.subr.bf16.mxu0 0
      %450 = vmatpush1.bf16.msra.mxu0 0
      %451 = vmatprep.subr.bf16.mxu0 0
      %452 = vmatpush1.bf16.msra.mxu0 0
      %453 = vmatprep.subr.bf16.mxu0 0
      %454 = vmatpush1.bf16.msra.mxu0 0
      %455 = vmatprep.subr.bf16.mxu0 0
      %456 = vmatpush1.bf16.msra.mxu0 %v437
      %457 = vmatprep.subr.bf16.mxu0 0
      %458 = vmatpush1.bf16.msra.mxu0 %v436
      %459 = vmatprep.subr.bf16.mxu0 0
      %460 = vmatpush2.bf16.msra.mxu0 0
      %461 = vmatprep.subr.bf16.mxu0 0
      %462 = vmatpush2.bf16.msra.mxu0 0
      %463 = vmatprep.subr.bf16.mxu0 0
      %464 = vmatpush2.bf16.msra.mxu0 0
      %465 = vmatprep.subr.bf16.mxu0 0
      %466 = vmatpush2.bf16.msra.mxu0 0
      %467 = vmatprep.subr.bf16.mxu0 0
      %468 = vmatpush2.bf16.msra.mxu0 0
      %469 = vmatprep.subr.bf16.mxu0 0
      %470 = vmatpush2.bf16.msra.mxu0 0
      %471 = vmatprep.subr.bf16.mxu0 0
      %472 = vmatpush2.bf16.msra.mxu0 0
      %473 = vmatprep.subr.bf16.mxu0 0
      %474 = vmatpush2.bf16.msra.mxu0 0
      %475 = vmatprep.mubr.bf16.mxu0 0
      %476 = vmatmul.mubr.bf16.gmra.mxu0 %v441
      %v477 = vpop.f32.mrf.mxu0
      %v478 = vadd.f32 0.0, %v477
      %v479 = vpop.f32.mrf.mxu0
      %v480 = vpop.f32.mrf.mxu0
      %v481 = vadd.f32 0.0, %v480
      %v482 = vpop.f32.mrf.mxu0
      %483 = vdwg.mxu0
      %v484 = vadd.f32 %v411, %v478
      %v485 = vadd.f32 %v412, %v481
      %s486 = scalar_lea.vmem %s1, 64
      %v487 = vld [vmem:[%s486] sm:$0xf]
      %v488 = vld [vmem:[%s486 + $0x4] sm:$0xf]
      %v489 = vld [vmem:[%s486 + $0x8] sm:$0xf]
      %v490 = vld [vmem:[%s486 + $0xc] sm:$0xf]
      %vm491 = vcmask 1045504
      %v492 = vrot.slane %v210, 2
      %v493 = vrot.slane %v211, 2
      %v494 = vsel %vm491, %v492, %v493
      %v499 = vunpack.c.l.b16 %v487
      %v500 = vunpack.c.l.b16 %v488
      %v501 = vunpack.c.l.b16 %v489
      %v502 = vunpack.c.l.b16 %v490
      %v503 = vpack.c.b16 %v500, %v499
      %v504 = vpack.c.b16 %v502, %v501
      %v508 = vsel %vm244, %v494, 0
      %510 = vmatprep.subr.bf16.mxu0 0
      %511 = vmatpush1.bf16.msra.mxu0 0
      %512 = vmatprep.subr.bf16.mxu0 0
      %513 = vmatpush1.bf16.msra.mxu0 0
      %514 = vmatprep.subr.bf16.mxu0 0
      %515 = vmatpush1.bf16.msra.mxu0 0
      %516 = vmatprep.subr.bf16.mxu0 0
      %517 = vmatpush1.bf16.msra.mxu0 0
      %518 = vmatprep.subr.bf16.mxu0 0
      %519 = vmatpush1.bf16.msra.mxu0 0
      %520 = vmatprep.subr.bf16.mxu0 0
      %521 = vmatpush1.bf16.msra.mxu0 0
      %522 = vmatprep.subr.bf16.mxu0 0
      %523 = vmatpush1.bf16.msra.mxu0 %v504
      %524 = vmatprep.subr.bf16.mxu0 0
      %525 = vmatpush1.bf16.msra.mxu0 %v503
      %526 = vmatprep.subr.bf16.mxu0 0
      %527 = vmatpush2.bf16.msra.mxu0 0
      %528 = vmatprep.subr.bf16.mxu0 0
      %529 = vmatpush2.bf16.msra.mxu0 0
      %530 = vmatprep.subr.bf16.mxu0 0
      %531 = vmatpush2.bf16.msra.mxu0 0
      %532 = vmatprep.subr.bf16.mxu0 0
      %533 = vmatpush2.bf16.msra.mxu0 0
      %534 = vmatprep.subr.bf16.mxu0 0
      %535 = vmatpush2.bf16.msra.mxu0 0
      %536 = vmatprep.subr.bf16.mxu0 0
      %537 = vmatpush2.bf16.msra.mxu0 0
      %538 = vmatprep.subr.bf16.mxu0 0
      %539 = vmatpush2.bf16.msra.mxu0 0
      %540 = vmatprep.subr.bf16.mxu0 0
      %541 = vmatpush2.bf16.msra.mxu0 0
      %542 = vmatprep.mubr.bf16.mxu0 0
      %543 = vmatmul.mubr.bf16.gmra.mxu0 %v508
      %v544 = vpop.f32.mrf.mxu0
      %v545 = vadd.f32 0.0, %v544
      %v546 = vpop.f32.mrf.mxu0
      %v547 = vpop.f32.mrf.mxu0
      %v548 = vadd.f32 0.0, %v547
      %v549 = vpop.f32.mrf.mxu0
      %550 = vdwg.mxu0
      %v551 = vadd.f32 %v484, %v545
      %v552 = vadd.f32 %v485, %v548
      %v553 = vld [vmem:[%s2] sm:$0x1]
      %v555 = vlaneseq
      %v556 = vshrl.u32 %v555, 7
      %v557 = vsub.s32 0, %v556
      %v558 = vrot.slane %v553, %v557
      %v560 = vmul.f32 %v551, %v558
      %v561 = vmul.f32 %v552, %v558
      %v562 = vld [vmem:[%s3] sm:$0x1]
      %v564 = vlaneseq
      %v565 = vshrl.u32 %v564, 7
      %v566 = vsub.s32 0, %v565
      %v567 = vrot.slane %v562, %v566
      %v569 = vadd.f32 %v560, %v567
      %v570 = vadd.f32 %v561, %v567
      %v571 = vtanh.pop %v569
      %v572 = vtanh.pop %v570
      %v573 = vpack.c.bf16 %v572, %v571
      %v575 = vunpack.c.l.b16 %v573
      %v576 = vunpack.c.h.b16 %v573
      %v577 = vpack.c.b16 %v575, %v575
      %v578 = vpack.c.b16 %v576, %v576
      %vm581 = vcmask 125952
      %582 = vst.msk [vmem:[%s197] sm:$0xf] %vm581, %v577
      %583 = vst.msk [vmem:[%s197 + $0x4] sm:$0xf] %vm581, %v578
      %p584 = scmp.lt.s32.totalorder %s15, 1
      %s585 = scalar_select %p584, %s15, 1
      %s586 = smul.addr %s585, 2
      %s587 = smul.addr %s586, 4
      %s588 = scalar_lea.vmem %s4, %s587
      // Predicated region
      $region37: #{_lambda_.18} parent=35 // pred_check
        %p589 = pneg %p122
      $region38: #{_lambda_.18} parent=35 // pred_check_branch
        %591 = sbr.rel (%p589) target = $region40
      $region39: #{_lambda_.18} parent=35 // pred_region
        _
      $region40: #{_lambda_.18} parent=35 // pred_fallthru
        _
    $region36: #{_lambda_.18} parent=5 // pred_fallthru
      _
    %p592 = scmp.le.s32.totalorder 2, %s10
    // Predicated region
    $region41: #{_lambda_.18} parent=5 // pred_check
      %p593 = pneg %p592
    $region42: #{_lambda_.18} parent=5 // pred_check_branch
      %595 = sbr.rel (%p593) target = $region44
    $region43: #{_lambda_.18} parent=5 // pred_region
      %s596 = ssub.s32 %s10, 2
      // Predicated region
      $region45: #{_lambda_.18} parent=43 // pred_check
        %p597 = pneg %p128
      $region46: #{_lambda_.18} parent=43 // pred_check_branch
        %599 = sbr.rel (%p597) target = $region48
      $region47: #{_lambda_.18} parent=43 // pred_region
        %p600 = scmp.lt.s32.totalorder %s16, 1
        %s601 = scalar_select %p600, %s16, 1
        %s602 = smul.addr %s601, 2
        %s603 = smul.addr %s602, 4
        %s604 = scalar_lea.vmem %s4, %s603
      $region48: #{_lambda_.18} parent=43 // pred_fallthru
        _
    $region44: #{_lambda_.18} parent=5 // pred_fallthru
      _
  $region6: #{_lambda_.18} parent=0 // loop_footer
    %s14 = sadd.s32 1, %s10
  $region7: #{_lambda_.18} parent=0 // loop_footer_branch
    %9 = sbr.rel target = $region3
  $region8: #{_lambda_.18} parent=0 // loop_exit
    _

// kernel: _lambda_.19
$region0: #{_lambda_.19}
  #allocation0 [shape = 'u32[]', space=smem, size = 0x4, offset = 0x4, fixed_abs, tag = 'smem constant byte address 0x4 - core index']
  #allocation1 [shape = 'u32[144,128]{1,0:T(1,128)}', space=vmem, size = 0x12000, scoped, tag = 'internal scratch']
  %s0 = inlined_call_operand.vmem [shape: bf16[2,16,16], index: 0, kind: input, shape index: {}]
  %s1 = inlined_call_operand.vmem [shape: bf16[5,16,32], index: 1, kind: input, shape index: {}]
  %s2 = inlined_call_operand.vmem [shape: f32[1,32], index: 2, kind: input, shape index: {}]
  %s3 = inlined_call_operand.vmem [shape: f32[1,32], index: 3, kind: input, shape index: {}]
  %s4 = inlined_call_operand.vmem [shape: bf16[2,16,32], index: 4, kind: input, shape index: {}]
  %s5 = inlined_call_operand.hbm [shape: f32[2,16,32], index: 5, kind: output, shape index: {}]
  %s6 = sld [smem:[#allocation0]]
  $region53: #{_lambda_.19} parent=0
    _
  %s8 = ssub.s32 1, %s6
  %s9 = scalar_select 0, %s8, %s6
  $region1: #{_lambda_.19} parent=0
    #allocation2 [shape = 'u8[16384]{0}', space=vmem, size = 0x4000, scoped, tag = 'output window, operand 0']
    #allocation3 [shape = 's32[2]{0}', space=sflag, size = 0x8, scoped, tag = 'scoped memory for _lambda_.19']
    %10 = vsyncpa [#allocation3], 0
    %s11 = scalar_lea.sflag [#allocation3], 1
    %12 = vsyncpa %s11, 0
    loop: start=0, step=1, limit=4
    $region2: #{_lambda_.19} parent=1 // loop_pre_header
      _
    $region3: #{_lambda_.19} parent=1 // loop_header
      %s14 = sphi 0, %s18
      %p15 = scmp.ge.s32.totalorder %s14, 4
      %s24 = sphi 0, %s26
      %s27 = sphi 0, %s24
      %s28 = sphi 0, %s27
      %s44 = sphi 0, %s28
      %s48 = sphi 0, %s48
      %s50 = sphi 0, %s48
      %s51 = sphi 0, %s50
      %s65 = sphi 0, %s51
      %s69 = sphi 0, %s69
      %s71 = sphi 0, %s69
      %s72 = sphi 0, %s71
      %s86 = sphi 0, %s72
      %s90 = sphi 0, %s90
      %s92 = sphi 0, %s90
      %s93 = sphi 0, %s92
      %s107 = sphi 0, %s93
      %s113 = sphi 0, %s115
      %s116 = sphi 0, %s113
      %s117 = sphi 0, %s116
      %s133 = sphi 0, %s117
      %s139 = sphi 0, %s141
      %s142 = sphi 0, %s139
      %s143 = sphi 0, %s142
      %s159 = sphi 0, %s143
    $region4: #{_lambda_.19} parent=1 // loop_header_branch
      %17 = sbr.rel (%p15) target = $region8
    $region5: #{_lambda_.19} parent=1 // loop_body
      %s19 = ssub.s32 %s14, 1
      %s20 = ssub.s32 %s14, 2
      %s21 = sadd.s32 %s14, 1
      %s22 = ssub.s32 %s14, %s21
      %p23 = scmp.eq.s32.totalorder %s22, 0
      %s25 = sadd.s32 %s24, 1
      %s26 = scalar_select %p23, %s24, %s25
      %p29 = pneg %p23
      %p30 = scmp.eq.s32.totalorder %s14, 1
      %p31 = por %p29, %p30
      %p32 = scmp.ne.s32.totalorder %s24, %s27
      %p33 = scmp.eq.s32.totalorder %s14, 0
      %p34 = por %p32, %p33
      %p35 = scmp.ne.s32.totalorder %s24, %s27
      %p36 = scmp.eq.s32.totalorder %s19, 1
      %p37 = por %p35, %p36
      %p38 = scmp.ne.s32.totalorder %s27, %s28
      %p39 = scmp.eq.s32.totalorder %s19, 0
      %p40 = por %p38, %p39
      %p41 = scmp.ne.s32.totalorder %s27, %s28
      %p42 = scmp.eq.s32.totalorder %s20, 1
      %p43 = por %p41, %p42
      %p45 = scmp.ne.s32.totalorder %s28, %s44
      %p46 = scmp.eq.s32.totalorder %s20, 0
      %p47 = por %p45, %p46
      %s49 = sadd.s32 %s48, 1
      %p52 = scmp.eq.s32.totalorder %s14, 1
      %p53 = scmp.ne.s32.totalorder %s48, %s50
      %p54 = scmp.eq.s32.totalorder %s14, 0
      %p55 = por %p53, %p54
      %p56 = scmp.ne.s32.totalorder %s48, %s50
      %p57 = scmp.eq.s32.totalorder %s19, 1
      %p58 = por %p56, %p57
      %p59 = scmp.ne.s32.totalorder %s50, %s51
      %p60 = scmp.eq.s32.totalorder %s19, 0
      %p61 = por %p59, %p60
      %p62 = scmp.ne.s32.totalorder %s50, %s51
      %p63 = scmp.eq.s32.totalorder %s20, 1
      %p64 = por %p62, %p63
      %p66 = scmp.ne.s32.totalorder %s51, %s65
      %p67 = scmp.eq.s32.totalorder %s20, 0
      %p68 = por %p66, %p67
      %s70 = sadd.s32 %s69, 1
      %p73 = scmp.eq.s32.totalorder %s14, 1
      %p74 = scmp.ne.s32.totalorder %s69, %s71
      %p75 = scmp.eq.s32.totalorder %s14, 0
      %p76 = por %p74, %p75
      %p77 = scmp.ne.s32.totalorder %s69, %s71
      %p78 = scmp.eq.s32.totalorder %s19, 1
      %p79 = por %p77, %p78
      %p80 = scmp.ne.s32.totalorder %s71, %s72
      %p81 = scmp.eq.s32.totalorder %s19, 0
      %p82 = por %p80, %p81
      %p83 = scmp.ne.s32.totalorder %s71, %s72
      %p84 = scmp.eq.s32.totalorder %s20, 1
      %p85 = por %p83, %p84
      %p87 = scmp.ne.s32.totalorder %s72, %s86
      %p88 = scmp.eq.s32.totalorder %s20, 0
      %p89 = por %p87, %p88
      %s91 = sadd.s32 %s90, 1
      %p94 = scmp.eq.s32.totalorder %s14, 1
      %p95 = scmp.ne.s32.totalorder %s90, %s92
      %p96 = scmp.eq.s32.totalorder %s14, 0
      %p97 = por %p95, %p96
      %p98 = scmp.ne.s32.totalorder %s90, %s92
      %p99 = scmp.eq.s32.totalorder %s19, 1
      %p100 = por %p98, %p99
      %p101 = scmp.ne.s32.totalorder %s92, %s93
      %p102 = scmp.eq.s32.totalorder %s19, 0
      %p103 = por %p101, %p102
      %p104 = scmp.ne.s32.totalorder %s92, %s93
      %p105 = scmp.eq.s32.totalorder %s20, 1
      %p106 = por %p104, %p105
      %p108 = scmp.ne.s32.totalorder %s93, %s107
      %p109 = scmp.eq.s32.totalorder %s20, 0
      %p110 = por %p108, %p109
      %s111 = ssub.s32 %s14, %s21
      %p112 = scmp.eq.s32.totalorder %s111, 0
      %s114 = sadd.s32 %s113, 1
      %s115 = scalar_select %p112, %s113, %s114
      %p118 = pneg %p112
      %p119 = scmp.eq.s32.totalorder %s14, 1
      %p120 = por %p118, %p119
      %p121 = scmp.ne.s32.totalorder %s113, %s116
      %p122 = scmp.eq.s32.totalorder %s14, 0
      %p123 = por %p121, %p122
      %p124 = scmp.ne.s32.totalorder %s113, %s116
      %p125 = scmp.eq.s32.totalorder %s19, 1
      %p126 = por %p124, %p125
      %p127 = scmp.ne.s32.totalorder %s116, %s117
      %p128 = scmp.eq.s32.totalorder %s19, 0
      %p129 = por %p127, %p128
      %p130 = scmp.ne.s32.totalorder %s116, %s117
      %p131 = scmp.eq.s32.totalorder %s20, 1
      %p132 = por %p130, %p131
      %p134 = scmp.ne.s32.totalorder %s117, %s133
      %p135 = scmp.eq.s32.totalorder %s20, 0
      %p136 = por %p134, %p135
      %s137 = ssub.s32 %s14, %s21
      %p138 = scmp.eq.s32.totalorder %s137, 0
      %s140 = sadd.s32 %s139, 1
      %s141 = scalar_select %p138, %s139, %s140
      %p144 = pneg %p138
      %p145 = scmp.eq.s32.totalorder %s14, 1
      %p146 = por %p144, %p145
      %p147 = scmp.ne.s32.totalorder %s139, %s142
      %p148 = scmp.eq.s32.totalorder %s14, 0
      %p149 = por %p147, %p148
      %p150 = scmp.ne.s32.totalorder %s139, %s142
      %p151 = scmp.eq.s32.totalorder %s19, 1
      %p152 = por %p150, %p151
      %p153 = scmp.ne.s32.totalorder %s142, %s143
      %p154 = scmp.eq.s32.totalorder %s19, 0
      %p155 = por %p153, %p154
      %p156 = scmp.ne.s32.totalorder %s142, %s143
      %p157 = scmp.eq.s32.totalorder %s20, 1
      %p158 = por %p156, %p157
      %p160 = scmp.ne.s32.totalorder %s143, %s159
      %p161 = scmp.eq.s32.totalorder %s20, 0
      %p162 = por %p160, %p161
      %p163 = scmp.le.s32.totalorder 1, %s14
      %p164 = scmp.lt.s32.totalorder %s14, 3
      %p165 = pnand %p163, %p164
      %p166 = pneg %p165
      // Predicated region
      $region9: #{_lambda_.19} parent=5 // pred_check
        _
      $region10: #{_lambda_.19} parent=5 // pred_check_branch
        %168 = sbr.rel (%p165) target = $region12
      $region11: #{_lambda_.19} parent=5 // pred_region
        %s169 = ssub.s32 %s14, 1
        // Predicated region
        $region13: #{_lambda_.19} parent=11 // pred_check
          %p170 = pneg %p61
        $region14: #{_lambda_.19} parent=11 // pred_check_branch
          %172 = sbr.rel (%p170) target = $region16
        $region15: #{_lambda_.19} parent=11 // pred_region
          _
        $region16: #{_lambda_.19} parent=11 // pred_fallthru
          _
        // Predicated region
        $region17: #{_lambda_.19} parent=11 // pred_check
          %p173 = pneg %p82
        $region18: #{_lambda_.19} parent=11 // pred_check_branch
          %175 = sbr.rel (%p173) target = $region20
        $region19: #{_lambda_.19} parent=11 // pred_region
          _
        $region20: #{_lambda_.19} parent=11 // pred_fallthru
          _
        // Predicated region
        $region21: #{_lambda_.19} parent=11 // pred_check
          %p176 = pneg %p103
        $region22: #{_lambda_.19} parent=11 // pred_check_branch
          %178 = sbr.rel (%p176) target = $region24
        $region23: #{_lambda_.19} parent=11 // pred_region
          _
        $region24: #{_lambda_.19} parent=11 // pred_fallthru
          _
      $region12: #{_lambda_.19} parent=5 // pred_fallthru
        _
      %p179 = scmp.lt.s32.totalorder %s14, 2
      // Predicated region
      $region25: #{_lambda_.19} parent=5 // pred_check
        %p180 = pneg %p179
      $region26: #{_lambda_.19} parent=5 // pred_check_branch
        %182 = sbr.rel (%p180) target = $region28
      $region27: #{_lambda_.19} parent=5 // pred_region
        // Predicated region
        $region29: #{_lambda_.19} parent=27 // pred_check
          %p183 = pneg %p34
        $region30: #{_lambda_.19} parent=27 // pred_check_branch
          %185 = sbr.rel (%p183) target = $region32
        $region31: #{_lambda_.19} parent=27 // pred_region
          %p186 = scmp.lt.s32.totalorder %s14, 1
          %s187 = scalar_select %p186, %s14, 1
          %s188 = smul.addr %s187, 2
          %s189 = smul.addr %s188, 4
          %s190 = scalar_lea.vmem %s0, %s189
        $region32: #{_lambda_.19} parent=27 // pred_fallthru
          _
        // Predicated region
        $region33: #{_lambda_.19} parent=27 // pred_check
          %p191 = pneg %p123
        $region34: #{_lambda_.19} parent=27 // pred_check_branch
          %193 = sbr.rel (%p191) target = $region36
        $region35: #{_lambda_.19} parent=27 // pred_region
          %p194 = scmp.lt.s32.totalorder %s14, 1
          %s195 = scalar_select %p194, %s14, 1
          %s196 = smul.addr %s195, 2
          %s197 = smul.addr %s196, 4
          %s198 = scalar_lea.vmem %s4, %s197
        $region36: #{_lambda_.19} parent=27 // pred_fallthru
          _
      $region28: #{_lambda_.19} parent=5 // pred_fallthru
        _
      %p199 = scmp.le.s32.totalorder 1, %s14
      %p200 = scmp.lt.s32.totalorder %s14, 3
      %p201 = pnand %p199, %p200
      %p202 = pneg %p201
      // Predicated region
      $region37: #{_lambda_.19} parent=5 // pred_check
        _
      $region38: #{_lambda_.19} parent=5 // pred_check_branch
        %204 = sbr.rel (%p201) target = $region40
      $region39: #{_lambda_.19} parent=5 // pred_region
        %s205 = ssub.s32 %s14, 1
        %p206 = scmp.lt.s32.totalorder %s19, 1
        %s207 = scalar_select %p206, %s19, 1
        %s208 = smul.addr %s207, 2
        %s209 = smul.addr %s208, 4
        %s210 = scalar_lea.vmem %s0, %s209
        %p211 = pneg %p40
        %p212 = pneg %p37
        %p213 = pneg %p61
        %p214 = pneg %p58
        %p215 = pneg %p82
        %p216 = pneg %p79
        %p217 = pneg %p103
        %p218 = pneg %p100
        %p219 = scmp.lt.s32.totalorder %s19, 1
        %s220 = scalar_select %p219, %s19, 1
        %s221 = smul.addr %s220, 2
        %s222 = smul.addr %s221, 4
        %s223 = scalar_lea.vmem %s4, %s222
        %p224 = pneg %p129
        %p225 = pneg %p126
        %p226 = pneg %p155
        %p227 = pneg %p152
        %s228 = sand.u32 %s142, 1
        %s229 = scalar_lea.sflag [#allocation3], %s228
        %s230 = sand.u32 %s142, 1
        %s231 = smul.addr %s230, 16
        %s232 = scalar_lea.vmem [#allocation2], %s231
        %p233 = scmp.lt.s32.totalorder %s19, 1
        %s234 = scalar_select %p233, %s19, 1
        %s235 = smul.addr %s234, 2
        %s236 = smul.addr %s235, 4
        %s237 = scalar_lea.vmem %s0, %s236
        %p238 = scmp.lt.s32.totalorder %s19, 1
        %s239 = scalar_select %p238, %s19, 1
        %s240 = smul.addr %s239, 2
        %s241 = smul.addr %s240, 4
        %s242 = scalar_lea.vmem %s4, %s241
        %v244 = vld [vmem:[%s237] sm:$0xf]
        %v245 = vld [vmem:[%s237 + $0x4] sm:$0xf]
        %v248 = vunpack.c.l.b16 %v244
        %v249 = vunpack.c.l.b16 %v245
        %v250 = vpack.c.b16 %v249, %v248
        %v251 = vrot.slane %v250, 7
        %vm252 = vcmask 1040384
        %v255 = vsel %vm252, 0, %v251
        %v256 = vsel %vm252, %v251, 0
        %v257 = vld [vmem:[%s1] sm:$0xf]
        %v258 = vld [vmem:[%s1 + $0x4] sm:$0xf]
        %s259 = scalar_lea.vmem %s1, 8
        %v260 = vld [vmem:[%s259] sm:$0xf]
        %v261 = vld [vmem:[%s259 + $0x4] sm:$0xf]
        %vm262 = vsmask.f32 7424
        %v263 = vshrl.u32 %v255, 16
        %v265 = vshll.u32 %v255, 16
        %v267 = vrot.slane %v265, 1
        %v268 = vor.u32 %v263, %v267
        %v269 = vshll.u32 %v256, 16
        %v271 = vrot.slane %v269, 1
        %v272 = vsel %vm262, %v268, %v271
        %v275 = vunpack.c.l.b16 %v260
        %v276 = vunpack.c.l.b16 %v261
        %v277 = vpack.c.b16 %v276, %v275
        %vm279 = vcmask 130048
        %v281 = vsel %vm279, %v272, 0
        %283 = vmatprep.subr.bf16.mxu0 0
        %284 = vmatpush1.bf16.msra.mxu0 0
        %285 = vmatprep.subr.bf16.mxu0 0
        %286 = vmatpush1.bf16.msra.mxu0 0
        %287 = vmatprep.subr.bf16.mxu0 0
        %288 = vmatpush1.bf16.msra.mxu0 0
        %289 = vmatprep.subr.bf16.mxu0 0
        %290 = vmatpush1.bf16.msra.mxu0 0
        %291 = vmatprep.subr.bf16.mxu0 0
        %292 = vmatpush1.bf16.msra.mxu0 0
        %293 = vmatprep.subr.bf16.mxu0 0
        %294 = vmatpush1.bf16.msra.mxu0 0
        %295 = vmatprep.subr.bf16.mxu0 0
        %296 = vmatpush1.bf16.msra.mxu0 0
        %297 = vmatprep.subr.bf16.mxu0 0
        %298 = vmatpush1.bf16.msra.mxu0 %v277
        %299 = vmatprep.subr.bf16.mxu0 0
        %300 = vmatpush2.bf16.msra.mxu0 0
        %301 = vmatprep.subr.bf16.mxu0 0
        %302 = vmatpush2.bf16.msra.mxu0 0
        %303 = vmatprep.subr.bf16.mxu0 0
        %304 = vmatpush2.bf16.msra.mxu0 0
        %305 = vmatprep.subr.bf16.mxu0 0
        %306 = vmatpush2.bf16.msra.mxu0 0
        %307 = vmatprep.subr.bf16.mxu0 0
        %308 = vmatpush2.bf16.msra.mxu0 0
        %309 = vmatprep.subr.bf16.mxu0 0
        %310 = vmatpush2.bf16.msra.mxu0 0
        %311 = vmatprep.subr.bf16.mxu0 0
        %312 = vmatpush2.bf16.msra.mxu0 0
        %313 = vmatprep.subr.bf16.mxu0 0
        %314 = vmatpush2.bf16.msra.mxu0 0
        %315 = vmatprep.mubr.bf16.mxu0 0
        %316 = vmatmul.mubr.bf16.gmra.mxu0 %v281
        %v317 = vpop.f32.mrf.mxu0
        %v318 = vadd.f32 0.0, %v317
        %v319 = vpop.f32.mrf.mxu0
        %v320 = vpop.f32.mrf.mxu0
        %v321 = vadd.f32 0.0, %v320
        %v322 = vpop.f32.mrf.mxu0
        %323 = vdwg.mxu0
        %v326 = vunpack.c.l.b16 %v257
        %v327 = vunpack.c.l.b16 %v258
        %v328 = vpack.c.b16 %v327, %v326
        %v330 = vsel %vm279, %v255, 0
        %332 = vmatprep.subr.bf16.mxu0 0
        %333 = vmatpush1.bf16.msra.mxu0 0
        %334 = vmatprep.subr.bf16.mxu0 0
        %335 = vmatpush1.bf16.msra.mxu0 0
        %336 = vmatprep.subr.bf16.mxu0 0
        %337 = vmatpush1.bf16.msra.mxu0 0
        %338 = vmatprep.subr.bf16.mxu0 0
        %339 = vmatpush1.bf16.msra.mxu0 0
        %340 = vmatprep.subr.bf16.mxu0 0
        %341 = vmatpush1.bf16.msra.mxu0 0
        %342 = vmatprep.subr.bf16.mxu0 0
        %343 = vmatpush1.bf16.msra.mxu0 0
        %344 = vmatprep.subr.bf16.mxu0 0
        %345 = vmatpush1.bf16.msra.mxu0 0
        %346 = vmatprep.subr.bf16.mxu0 0
        %347 = vmatpush1.bf16.msra.mxu0 %v328
        %348 = vmatprep.subr.bf16.mxu0 0
        %349 = vmatpush2.bf16.msra.mxu0 0
        %350 = vmatprep.subr.bf16.mxu0 0
        %351 = vmatpush2.bf16.msra.mxu0 0
        %352 = vmatprep.subr.bf16.mxu0 0
        %353 = vmatpush2.bf16.msra.mxu0 0
        %354 = vmatprep.subr.bf16.mxu0 0
        %355 = vmatpush2.bf16.msra.mxu0 0
        %356 = vmatprep.subr.bf16.mxu0 0
        %357 = vmatpush2.bf16.msra.mxu0 0
        %358 = vmatprep.subr.bf16.mxu0 0
        %359 = vmatpush2.bf16.msra.mxu0 0
        %360 = vmatprep.subr.bf16.mxu0 0
        %361 = vmatpush2.bf16.msra.mxu0 0
        %362 = vmatprep.subr.bf16.mxu0 0
        %363 = vmatpush2.bf16.msra.mxu0 0
        %364 = vmatprep.mubr.bf16.mxu0 0
        %365 = vmatmul.mubr.bf16.gmra.mxu0 %v330
        %v366 = vpop.f32.mrf.mxu0
        %v367 = vadd.f32 %v318, %v366
        %v368 = vpop.f32.mrf.mxu0
        %v369 = vpop.f32.mrf.mxu0
        %v370 = vadd.f32 %v321, %v369
        %v371 = vpop.f32.mrf.mxu0
        %372 = vdwg.mxu0
        %s373 = scalar_lea.vmem %s1, 16
        %v374 = vld [vmem:[%s373] sm:$0xf]
        %v375 = vld [vmem:[%s373 + $0x4] sm:$0xf]
        %vm378 = vcmask 1046528
        %v379 = vrot.slane %v255, 1
        %v380 = vrot.slane %v256, 1
        %v381 = vsel %vm378, %v379, %v380
        %v384 = vunpack.c.l.b16 %v374
        %v385 = vunpack.c.l.b16 %v375
        %v386 = vpack.c.b16 %v385, %v384
        %v389 = vsel %vm279, %v381, 0
        %391 = vmatprep.subr.bf16.mxu0 0
        %392 = vmatpush1.bf16.msra.mxu0 0
        %393 = vmatprep.subr.bf16.mxu0 0
        %394 = vmatpush1.bf16.msra.mxu0 0
        %395 = vmatprep.subr.bf16.mxu0 0
        %396 = vmatpush1.bf16.msra.mxu0 0
        %397 = vmatprep.subr.bf16.mxu0 0
        %398 = vmatpush1.bf16.msra.mxu0 0
        %399 = vmatprep.subr.bf16.mxu0 0
        %400 = vmatpush1.bf16.msra.mxu0 0
        %401 = vmatprep.subr.bf16.mxu0 0
        %402 = vmatpush1.bf16.msra.mxu0 0
        %403 = vmatprep.subr.bf16.mxu0 0
        %404 = vmatpush1.bf16.msra.mxu0 0
        %405 = vmatprep.subr.bf16.mxu0 0
        %406 = vmatpush1.bf16.msra.mxu0 %v386
        %407 = vmatprep.subr.bf16.mxu0 0
        %408 = vmatpush2.bf16.msra.mxu0 0
        %409 = vmatprep.subr.bf16.mxu0 0
        %410 = vmatpush2.bf16.msra.mxu0 0
        %411 = vmatprep.subr.bf16.mxu0 0
        %412 = vmatpush2.bf16.msra.mxu0 0
        %413 = vmatprep.subr.bf16.mxu0 0
        %414 = vmatpush2.bf16.msra.mxu0 0
        %415 = vmatprep.subr.bf16.mxu0 0
        %416 = vmatpush2.bf16.msra.mxu0 0
        %417 = vmatprep.subr.bf16.mxu0 0
        %418 = vmatpush2.bf16.msra.mxu0 0
        %419 = vmatprep.subr.bf16.mxu0 0
        %420 = vmatpush2.bf16.msra.mxu0 0
        %421 = vmatprep.subr.bf16.mxu0 0
        %422 = vmatpush2.bf16.msra.mxu0 0
        %423 = vmatprep.mubr.bf16.mxu0 0
        %424 = vmatmul.mubr.bf16.gmra.mxu0 %v389
        %v425 = vpop.f32.mrf.mxu0
        %v426 = vadd.f32 0.0, %v425
        %v427 = vpop.f32.mrf.mxu0
        %v428 = vpop.f32.mrf.mxu0
        %v429 = vadd.f32 0.0, %v428
        %v430 = vpop.f32.mrf.mxu0
        %431 = vdwg.mxu0
        %v432 = vadd.f32 %v367, %v426
        %v433 = vadd.f32 %v370, %v429
        %s434 = scalar_lea.vmem %s1, 24
        %v435 = vld [vmem:[%s434] sm:$0xf]
        %v436 = vld [vmem:[%s434 + $0x4] sm:$0xf]
        %vm437 = vsmask.f32 6400
        %v438 = vrot.slane %v263, 1
        %v439 = vrot.slane %v265, 2
        %v440 = vor.u32 %v438, %v439
        %v441 = vshrl.u32 %v256, 16
        %v443 = vrot.slane %v441, 1
        %v444 = vrot.slane %v269, 2
        %v445 = vor.u32 %v443, %v444
        %v446 = vsel %vm437, %v440, %v445
        %v449 = vunpack.c.l.b16 %v435
        %v450 = vunpack.c.l.b16 %v436
        %v451 = vpack.c.b16 %v450, %v449
        %v454 = vsel %vm279, %v446, 0
        %456 = vmatprep.subr.bf16.mxu0 0
        %457 = vmatpush1.bf16.msra.mxu0 0
        %458 = vmatprep.subr.bf16.mxu0 0
        %459 = vmatpush1.bf16.msra.mxu0 0
        %460 = vmatprep.subr.bf16.mxu0 0
        %461 = vmatpush1.bf16.msra.mxu0 0
        %462 = vmatprep.subr.bf16.mxu0 0
        %463 = vmatpush1.bf16.msra.mxu0 0
        %464 = vmatprep.subr.bf16.mxu0 0
        %465 = vmatpush1.bf16.msra.mxu0 0
        %466 = vmatprep.subr.bf16.mxu0 0
        %467 = vmatpush1.bf16.msra.mxu0 0
        %468 = vmatprep.subr.bf16.mxu0 0
        %469 = vmatpush1.bf16.msra.mxu0 0
        %470 = vmatprep.subr.bf16.mxu0 0
        %471 = vmatpush1.bf16.msra.mxu0 %v451
        %472 = vmatprep.subr.bf16.mxu0 0
        %473 = vmatpush2.bf16.msra.mxu0 0
        %474 = vmatprep.subr.bf16.mxu0 0
        %475 = vmatpush2.bf16.msra.mxu0 0
        %476 = vmatprep.subr.bf16.mxu0 0
        %477 = vmatpush2.bf16.msra.mxu0 0
        %478 = vmatprep.subr.bf16.mxu0 0
        %479 = vmatpush2.bf16.msra.mxu0 0
        %480 = vmatprep.subr.bf16.mxu0 0
        %481 = vmatpush2.bf16.msra.mxu0 0
        %482 = vmatprep.subr.bf16.mxu0 0
        %483 = vmatpush2.bf16.msra.mxu0 0
        %484 = vmatprep.subr.bf16.mxu0 0
        %485 = vmatpush2.bf16.msra.mxu0 0
        %486 = vmatprep.subr.bf16.mxu0 0
        %487 = vmatpush2.bf16.msra.mxu0 0
        %488 = vmatprep.mubr.bf16.mxu0 0
        %489 = vmatmul.mubr.bf16.gmra.mxu0 %v454
        %v490 = vpop.f32.mrf.mxu0
        %v491 = vadd.f32 0.0, %v490
        %v492 = vpop.f32.mrf.mxu0
        %v493 = vpop.f32.mrf.mxu0
        %v494 = vadd.f32 0.0, %v493
        %v495 = vpop.f32.mrf.mxu0
        %496 = vdwg.mxu0
        %v497 = vadd.f32 %v432, %v491
        %v498 = vadd.f32 %v433, %v494
        %s499 = scalar_lea.vmem %s1, 32
        %v500 = vld [vmem:[%s499] sm:$0xf]
        %v501 = vld [vmem:[%s499 + $0x4] sm:$0xf]
        %vm502 = vcmask 1045504
        %v503 = vrot.slane %v255, 2
        %v504 = vrot.slane %v256, 2
        %v505 = vsel %vm502, %v503, %v504
        %v508 = vunpack.c.l.b16 %v500
        %v509 = vunpack.c.l.b16 %v501
        %v510 = vpack.c.b16 %v509, %v508
        %v513 = vsel %vm279, %v505, 0
        %515 = vmatprep.subr.bf16.mxu0 0
        %516 = vmatpush1.bf16.msra.mxu0 0
        %517 = vmatprep.subr.bf16.mxu0 0
        %518 = vmatpush1.bf16.msra.mxu0 0
        %519 = vmatprep.subr.bf16.mxu0 0
        %520 = vmatpush1.bf16.msra.mxu0 0
        %521 = vmatprep.subr.bf16.mxu0 0
        %522 = vmatpush1.bf16.msra.mxu0 0
        %523 = vmatprep.subr.bf16.mxu0 0
        %524 = vmatpush1.bf16.msra.mxu0 0
        %525 = vmatprep.subr.bf16.mxu0 0
        %526 = vmatpush1.bf16.msra.mxu0 0
        %527 = vmatprep.subr.bf16.mxu0 0
        %528 = vmatpush1.bf16.msra.mxu0 0
        %529 = vmatprep.subr.bf16.mxu0 0
        %530 = vmatpush1.bf16.msra.mxu0 %v510
        %531 = vmatprep.subr.bf16.mxu0 0
        %532 = vmatpush2.bf16.msra.mxu0 0
        %533 = vmatprep.subr.bf16.mxu0 0
        %534 = vmatpush2.bf16.msra.mxu0 0
        %535 = vmatprep.subr.bf16.mxu0 0
        %536 = vmatpush2.bf16.msra.mxu0 0
        %537 = vmatprep.subr.bf16.mxu0 0
        %538 = vmatpush2.bf16.msra.mxu0 0
        %539 = vmatprep.subr.bf16.mxu0 0
        %540 = vmatpush2.bf16.msra.mxu0 0
        %541 = vmatprep.subr.bf16.mxu0 0
        %542 = vmatpush2.bf16.msra.mxu0 0
        %543 = vmatprep.subr.bf16.mxu0 0
        %544 = vmatpush2.bf16.msra.mxu0 0
        %545 = vmatprep.subr.bf16.mxu0 0
        %546 = vmatpush2.bf16.msra.mxu0 0
        %547 = vmatprep.mubr.bf16.mxu0 0
        %548 = vmatmul.mubr.bf16.gmra.mxu0 %v513
        %v549 = vpop.f32.mrf.mxu0
        %v550 = vadd.f32 0.0, %v549
        %v551 = vpop.f32.mrf.mxu0
        %v552 = vpop.f32.mrf.mxu0
        %v553 = vadd.f32 0.0, %v552
        %v554 = vpop.f32.mrf.mxu0
        %555 = vdwg.mxu0
        %v556 = vadd.f32 %v497, %v550
        %v557 = vadd.f32 %v498, %v553
        %v558 = vld [vmem:[%s2] sm:$0x1]
        %v560 = vlaneseq
        %v561 = vshrl.u32 %v560, 7
        %v562 = vsub.s32 0, %v561
        %v563 = vrot.slane %v558, %v562
        %v565 = vmul.f32 %v556, %v563
        %v566 = vmul.f32 %v557, %v563
        %v567 = vld [vmem:[%s3] sm:$0x1]
        %v569 = vlaneseq
        %v570 = vshrl.u32 %v569, 7
        %v571 = vsub.s32 0, %v570
        %v572 = vrot.slane %v567, %v571
        %v574 = vadd.f32 %v565, %v572
        %v575 = vadd.f32 %v566, %v572
        %v576 = vld [vmem:[%s242] sm:$0xf]
        %v577 = vld [vmem:[%s242 + $0x4] sm:$0xf]
        %v578 = vunpack.c.l.bf16 %v576
        %v579 = vunpack.c.l.bf16 %v577
        %v580 = vadd.f32 %v574, %v578
        %v581 = vadd.f32 %v575, %v579
        %vm582 = vcmask 261120
        %583 = vst.msk [vmem:[%s232] sm:$0xff] %vm582, %v580
        %584 = vst.msk [vmem:[%s232 + $0x8] sm:$0xff] %vm582, %v581
        %s585 = sand.u32 %s142, 1
        %s586 = scalar_lea.sflag [#allocation3], %s585
        %s587 = sand.u32 %s142, 1
        %s588 = smul.addr %s587, 16
        %s589 = scalar_lea.vmem [#allocation2], %s588
        // Predicated region
        $region41: #{_lambda_.19} parent=39 // pred_check
          %p590 = pneg %p152
        $region42: #{_lambda_.19} parent=39 // pred_check_branch
          %592 = sbr.rel (%p590) target = $region44
        $region43: #{_lambda_.19} parent=39 // pred_region
          %s594 = ssub.s32 256, 256
          %595 = vsyncadd %s586, %s594
          %s596 = smul.addr %s19, 2
          %s597 = smul.addr %s596, 128
          %s598 = scalar_lea.hbm %s5, %s597
          %s599 = sshll.u32 %s589, 4
          %s600 = int_to_ptr.vmem [resolvable:$true] %s599
          %605 = dma.vmem_to_hbm [thread:$0]  %s600, 256, %s598, %s586, 128, 128, 8
        $region44: #{_lambda_.19} parent=39 // pred_fallthru
          _
      $region40: #{_lambda_.19} parent=5 // pred_fallthru
        _
      %p606 = scmp.le.s32.totalorder 2, %s14
      // Predicated region
      $region45: #{_lambda_.19} parent=5 // pred_check
        %p607 = pneg %p606
      $region46: #{_lambda_.19} parent=5 // pred_check_branch
        %609 = sbr.rel (%p607) target = $region48
      $region47: #{_lambda_.19} parent=5 // pred_region
        %s610 = ssub.s32 %s14, 2
        // Predicated region
        $region49: #{_lambda_.19} parent=47 // pred_check
          %p611 = pneg %p158
        $region50: #{_lambda_.19} parent=47 // pred_check_branch
          %613 = sbr.rel (%p611) target = $region52
        $region51: #{_lambda_.19} parent=47 // pred_region
          %s614 = sand.u32 %s143, 1
          %s615 = scalar_lea.sflag [#allocation3], %s614
          %s616 = sand.u32 %s143, 1
          %s617 = smul.addr %s616, 16
          %s618 = scalar_lea.vmem [#allocation2], %s617
          %619 = dma.done %s615, 256
        $region52: #{_lambda_.19} parent=47 // pred_fallthru
          _
      $region48: #{_lambda_.19} parent=5 // pred_fallthru
        _
    $region6: #{_lambda_.19} parent=1 // loop_footer
      %s18 = sadd.s32 1, %s14
    $region7: #{_lambda_.19} parent=1 // loop_footer_branch
      %13 = sbr.rel target = $region3
    $region8: #{_lambda_.19} parent=1 // loop_exit
      _
    %620 = vsyncpa [#allocation3], 1
    %s621 = scalar_lea.sflag [#allocation3], 1
    %622 = vsyncpa %s621, 1

</llo_original>
